<compile_context>
chip_gen: v7x
topology: tpu7x:2x2x1
jax: 0.10.0
libtpu: 0.0.40
codegen_flags: <defaults>
</compile_context>

<pallas_src>
import functools

import jax
import jax.numpy as jnp
from jax.experimental import pallas as pl
from jax.experimental.pallas import tpu as pltpu


def _leaky_relu(v, slope):
    return jnp.where(v >= 0, v, slope * v)


def _default_vmem_limit():
    # v5e/v6e have 128 MiB VMEM per core, v7x 64 MiB: leave headroom below the
    # physical capacity but do not inherit the v7x cap on the bigger parts.
    try:
        cap = int(pltpu.get_tpu_info().vmem_capacity_bytes)
    except Exception:
        cap = 64 * 1024 * 1024
    return max(32 * 1024 * 1024, min(cap - 8 * 1024 * 1024, 100 * 1024 * 1024))


def _fused_resblock_kernel(xl_ref, xc_ref, xr_ref, w1_ref, b1_ref, w2_ref, b2_ref,
                           o_ref, cbuf_ref,
                           *, dilations, kernel_size, halo, t_total, slope):
    """All three ResBlock1 iterations for one (batch, time-tile) grid step.

    xl/xc/xr : (C, h_blk) / (C, t_tile) / (C, h_blk) auto-pipelined input blocks
    w*_ref   : (n_iter, K, C, C) bf16 conv weights (single-buffered, VMEM resident)
    b*_ref   : (n_iter, C, 1)    f32 biases
    o_ref    : (C, t_tile)       output tile
    cbuf_ref : (C, W + 2*m)      bf16 conv staging buffer with zero margins
    """
    t = pl.program_id(1)
    C, t_tile = o_ref.shape
    W = t_tile + 2 * halo
    K = kernel_size
    r = (K - 1) // 2
    m = r * max(dilations)          # zero margin of the conv staging buffer
    hb = xl_ref.shape[-1]           # width of the halo-carrying edge blocks

    # Zero ONLY the margin columns; the data region is fully overwritten before
    # every matmul.  (Scratch is per-core: keep this unconditional.)
    if m > 0:
        cbuf_ref[:, :m] = jnp.zeros((C, m), cbuf_ref.dtype)
        cbuf_ref[:, m + W:] = jnp.zeros((C, m), cbuf_ref.dtype)

    # Global position of every window column.  The reference Conv1d zero-pads
    # outside [0, T); activations there must be zeroed before each conv EXCEPT
    # the very first one (x is already zero-padded in HBM, leaky_relu(0) == 0).
    gpos = jax.lax.broadcasted_iota(jnp.int32, (1, W), 1) + (t * t_tile - halo)
    valid = jnp.logical_and(gpos >= 0, gpos < t_total)

    # Assemble the halo'd f32 window from the three pipelined input blocks.
    x_cur = jnp.concatenate(
        [xl_ref[:, hb - halo:], xc_ref[...], xr_ref[:, :halo]], axis=1
    ).astype(jnp.float32)                                     # (C, W)

    def conv1d(act, w_ref, b_ref, it, d, mask):
        # One Conv1d = K accumulating (C, C) x (C, W) MXU matmuls (f32 acc)
        # against shifted views of the zero-margin bf16 buffer; no (K*C, W)
        # operand is ever materialized.
        if mask:
            act = jnp.where(valid, act, 0.0)
        cbuf_ref[:, m:m + W] = act.astype(cbuf_ref.dtype)
        y = None
        for k in range(K):
            off = m + (k - r) * d
            p = jnp.dot(w_ref[it, k], cbuf_ref[:, off:off + W],
                        preferred_element_type=jnp.float32)
            y = p if y is None else y + p
        return y + b_ref[it]

    for i, d in enumerate(dilations):
        xt = _leaky_relu(x_cur, slope)
        y = conv1d(xt, w1_ref, b1_ref, i, d, mask=(i != 0))
        y = _leaky_relu(y, slope)
        y = conv1d(y, w2_ref, b2_ref, i, 1, mask=True)
        x_cur = y + x_cur                                     # residual

    # The central t_tile columns are exact; the halo columns only absorbed
    # cross-tile edge effects and are discarded.
    o_ref[...] = x_cur[:, halo:halo + t_tile].astype(o_ref.dtype)


def res_block1(x, params, *, kernel_size=3, dilation=(1, 3, 5),
               lrelu_slope=0.1, t_tile=None, vmem_limit_bytes=None):
    """Pallas implementation of ResBlock1.forward.  x: (B, C, T)."""
    B, C, T = x.shape
    K = kernel_size
    r = (K - 1) // 2
    n_iter = len(dilation)
    halo = r * sum(d + 1 for d in dilation)   # receptive-field halo of the fused block
    m = r * max(dilation)                     # per-conv zero margin of the staging buffer
    h_blk = pl.cdiv(halo, 128) * 128          # width of the halo-carrying edge blocks

    if t_tile is None:
        # Lane-dense tiles; sweep 512-2048 (up to 4096 on v5e/v6e) at production sizes.
        t_tile = max(h_blk, min(8 * h_blk, pl.cdiv(T, h_blk) * h_blk))
    if t_tile % h_blk != 0:
        raise ValueError(f"t_tile={t_tile} must be a multiple of {h_blk}")
    n_t = pl.cdiv(T, t_tile)
    t_ceil = n_t * t_tile
    ratio = t_tile // h_blk

    # Zero-pad once in HBM: one full tile per side (covers the halo and keeps
    # every block aligned) plus rounding T up to a tile multiple.
    x_pad = jnp.pad(x, ((0, 0), (0, 0), (t_tile, t_ceil - T + t_tile)))

    # Weights: (n_iter, K, C_out, C_in) bf16 -> each tap is one (C, C) MXU matmul.
    w1_all = jnp.stack([w1 for (w1, _, _, _) in params]).astype(jnp.bfloat16)
    b1_all = jnp.stack([b1 for (_, b1, _, _) in params]).astype(jnp.float32)
    w2_all = jnp.stack([w2 for (_, _, w2, _) in params]).astype(jnp.bfloat16)
    b2_all = jnp.stack([b2 for (_, _, _, b2) in params]).astype(jnp.float32)

    if vmem_limit_bytes is None:
        vmem_limit_bytes = _default_vmem_limit()

    kernel = functools.partial(
        _fused_resblock_kernel, dilations=tuple(dilation), kernel_size=K,
        halo=halo, t_total=T, slope=lrelu_slope)

    W = t_tile + 2 * halo
    # Real data starts at column t_tile of x_pad, hence the +1 tile / +ratio shifts.
    xl_map = lambda b, t: (b, 0, (t + 1) * ratio - 1)   # last h_blk cols before tile
    xc_map = lambda b, t: (b, 0, t + 1)                 # the main tile
    xr_map = lambda b, t: (b, 0, (t + 2) * ratio)       # first h_blk cols after tile
    const4 = lambda b, t: (0, 0, 0, 0)
    const3 = lambda b, t: (0, 0, 0)

    def build(single_buffer_weights):
        if single_buffer_weights:
            # Grid-invariant operands: one VMEM buffer is enough (halves weight
            # VMEM; matters on v7x's 64 MiB VMEM at large C).
            wspec = lambda shape, imap: pl.BlockSpec(
                shape, imap, pipeline_mode=pl.Buffered(1))
        else:
            wspec = pl.BlockSpec
        grid_spec = pltpu.PrefetchScalarGridSpec(
            num_scalar_prefetch=0,
            grid=(B, n_t),
            in_specs=[
                pl.BlockSpec((None, C, h_blk), xl_map),    # left halo block
                pl.BlockSpec((None, C, t_tile), xc_map),   # main tile
                pl.BlockSpec((None, C, h_blk), xr_map),    # right halo block
                wspec((n_iter, K, C, C), const4),          # conv1 weights
                wspec((n_iter, C, 1), const3),             # conv1 bias
                wspec((n_iter, K, C, C), const4),          # conv2 weights
                wspec((n_iter, C, 1), const3),             # conv2 bias
            ],
            out_specs=pl.BlockSpec((None, C, t_tile), lambda b, t: (b, 0, t)),
            scratch_shapes=[pltpu.VMEM((C, W + 2 * m), jnp.bfloat16)],
        )
        return pl.pallas_call(
            kernel,
            out_shape=jax.ShapeDtypeStruct((B, C, t_ceil), x.dtype),
            grid_spec=grid_spec,
            compiler_params=pltpu.CompilerParams(
                dimension_semantics=("parallel", "parallel"),
                vmem_limit_bytes=vmem_limit_bytes,
            ),
        )

    operands = (x_pad, x_pad, x_pad, w1_all, b1_all, w2_all, b2_all)
    try:
        out = build(True)(*operands)
    except Exception:
        # pipeline_mode=pl.Buffered(1) not supported by this jax build -> fall
        # back to default (double-buffered) weight blocks; semantics unchanged.
        out = build(False)(*operands)
    return out[:, :, :T]


# ---------------------------------------------------------------------------
# Pure-JAX reference (f32, matches the PyTorch module semantics)
# ---------------------------------------------------------------------------
def _ref_conv1d(x, w_koi, b, dilation):
    w = jnp.transpose(w_koi, (1, 2, 0))   # (K, O, I) -> (O, I, K)
    k = w.shape[-1]
    pad = dilation * (k - 1) // 2
    y = jax.lax.conv_general_dilated(
        x, w, window_strides=(1,), padding=[(pad, pad)],
        rhs_dilation=(dilation,), dimension_numbers=("NCH", "OIH", "NCH"),
        precision=jax.lax.Precision.HIGHEST)
    return y + b[None, :, :]


def res_block1_ref(x, params, *, dilation=(1, 3, 5), lrelu_slope=0.1):
    for (w1, b1, w2, b2), d in zip(params, dilation):
        xt = jnp.where(x >= 0, x, lrelu_slope * x)
        xt = _ref_conv1d(xt, w1, b1, d)
        xt = jnp.where(xt >= 0, xt, lrelu_slope * xt)
        xt = _ref_conv1d(xt, w2, b2, 1)
        x = xt + x
    return x


# ---------------------------------------------------------------------------
# Deterministic synthetic parameters (shapes match nn.Conv1d(C, C, K))
# ---------------------------------------------------------------------------
def init_params(key, channels, kernel_size=3, n_blocks=3, scale=0.1):
    params = []
    for _ in range(n_blocks):
        key, k1, k2, k3, k4 = jax.random.split(key, 5)
        w1 = scale * jax.random.normal(k1, (kernel_size, channels, channels), jnp.float32)
        b1 = scale * jax.random.normal(k2, (channels, 1), jnp.float32)
        w2 = scale * jax.random.normal(k3, (kernel_size, channels, channels), jnp.float32)
        b2 = scale * jax.random.normal(k4, (channels, 1), jnp.float32)
        params.append((w1, b1, w2, b2))
    return params


if __name__ == "__main__":
    # Small test shapes; T=250 with t_tile=128 -> two time tiles, a partial
    # last tile and both global boundaries, so the halo blocks, validity
    # masking and residual plumbing are all exercised.
    # (Production: C=512, T in the thousands, t_tile 512-2048.)
    B, C, T = 2, 32, 250
    key = jax.random.PRNGKey(0)
    key, kx = jax.random.split(key)
    x = jax.random.normal(kx, (B, C, T), jnp.float32)
    params = init_params(key, C)

    out = res_block1(x, params, t_tile=128)
    out = jax.block_until_ready(out)

    ref = res_block1_ref(x, params)
    assert out.shape == (B, C, T)
    max_err = float(jnp.max(jnp.abs(out - ref)))
    # bf16 MXU operands vs f32 reference -> loosened tolerance.
    assert jnp.allclose(out, ref, rtol=5e-2, atol=5e-2), f"mismatch, max|err|={max_err}"

    print("KERNEL_OK")
</pallas_src>

<mosaic_0001>
module attributes {stable_mosaic.version = 11 : i64} {
  func.func @_fused_resblock_kernel(%arg0: i32, %arg1: i32, %arg2: memref<1x32x128xf32, #tpu.memory_space<vmem>>, %arg3: memref<1x32x128xf32, #tpu.memory_space<vmem>>, %arg4: memref<1x32x128xf32, #tpu.memory_space<vmem>>, %arg5: memref<3x3x32x32xbf16, #tpu.memory_space<vmem>>, %arg6: memref<3x32x1xf32, #tpu.memory_space<vmem>>, %arg7: memref<3x3x32x32xbf16, #tpu.memory_space<vmem>>, %arg8: memref<3x32x1xf32, #tpu.memory_space<vmem>>, %arg9: memref<1x32x128xf32, #tpu.memory_space<vmem>>, %arg10: memref<32x162xbf16, #tpu.memory_space<vmem>>) attributes {dimension_semantics = [#tpu.dimension_semantics<parallel>, #tpu.dimension_semantics<parallel>], iteration_bounds = array<i64: 2, 2>, scalar_prefetch = 0 : i64, scratch_operands = 1 : i64, tpu.core_type = #tpu.core_type<tc>, window_params = [{transform_indices = @transform_0, window_bounds = array<i64: 1, 32, 128>}, {transform_indices = @transform_1, window_bounds = array<i64: 1, 32, 128>}, {transform_indices = @transform_2, window_bounds = array<i64: 1, 32, 128>}, {pipeline_mode = #tpu.pipeline_mode<synchronous>, transform_indices = @transform_3, window_bounds = array<i64: 3, 3, 32, 32>}, {pipeline_mode = #tpu.pipeline_mode<synchronous>, transform_indices = @transform_4, window_bounds = array<i64: 3, 32, 1>}, {pipeline_mode = #tpu.pipeline_mode<synchronous>, transform_indices = @transform_5, window_bounds = array<i64: 3, 3, 32, 32>}, {pipeline_mode = #tpu.pipeline_mode<synchronous>, transform_indices = @transform_6, window_bounds = array<i64: 3, 32, 1>}, {transform_indices = @transform_7, window_bounds = array<i64: 1, 32, 128>}]} {
    %cst = arith.constant 0.000000e+00 : bf16
    %0 = vector.broadcast %cst : bf16 to vector<32x5xbf16>
    %c0 = arith.constant 0 : index
    %c0_0 = arith.constant 0 : index
    %1 = vector.load %arg10[%c0, %c0_0] : memref<32x162xbf16, #tpu.memory_space<vmem>>, vector<32x5xbf16>
    tpu.vector_store %arg10[%c0, %c0_0], %0 {strides = array<i32>} : memref<32x162xbf16, #tpu.memory_space<vmem>>, vector<32x5xbf16>,
    %cst_1 = arith.constant 0.000000e+00 : bf16
    %2 = vector.broadcast %cst_1 : bf16 to vector<32x5xbf16>
    %c0_2 = arith.constant 0 : index
    %c157 = arith.constant 157 : index
    %3 = vector.load %arg10[%c0_2, %c157] : memref<32x162xbf16, #tpu.memory_space<vmem>>, vector<32x5xbf16>
    tpu.vector_store %arg10[%c0_2, %c157], %2 {strides = array<i32>} : memref<32x162xbf16, #tpu.memory_space<vmem>>, vector<32x5xbf16>,
    %4 = tpu.iota {dimensions = array<i32: 1>} : vector<1x152xi32>
    %c128_i32 = arith.constant 128 : i32
    %5 = arith.muli %arg1, %c128_i32 : i32
    %c12_i32 = arith.constant 12 : i32
    %6 = arith.subi %5, %c12_i32 : i32
    %7 = vector.broadcast %6 : i32 to vector<1x152xi32>
    %8 = arith.addi %4, %7 : vector<1x152xi32>
    %c0_i32 = arith.constant 0 : i32
    %9 = vector.broadcast %c0_i32 : i32 to vector<1x152xi32>
    %10 = arith.cmpi sge, %8, %9 : vector<1x152xi32>
    %c250_i32 = arith.constant 250 : i32
    %11 = vector.broadcast %c250_i32 : i32 to vector<1x152xi32>
    %12 = arith.cmpi slt, %8, %11 : vector<1x152xi32>
    %13 = arith.andi %10, %12 : vector<1x152xi1>
    %c0_3 = arith.constant 0 : index
    %c0_4 = arith.constant 0 : index
    %c116 = arith.constant 116 : index
    %14 = vector.load %arg2[%c0_3, %c0_4, %c116] : memref<1x32x128xf32, #tpu.memory_space<vmem>>, vector<1x32x12xf32>
    %15 = vector.shape_cast %14 : vector<1x32x12xf32> to vector<32x12xf32>
    %c0_5 = arith.constant 0 : index
    %c0_6 = arith.constant 0 : index
    %c0_7 = arith.constant 0 : index
    %16 = vector.load %arg3[%c0_5, %c0_6, %c0_7] : memref<1x32x128xf32, #tpu.memory_space<vmem>>, vector<1x32x128xf32>
    %17 = vector.shape_cast %16 : vector<1x32x128xf32> to vector<32x128xf32>
    %c0_8 = arith.constant 0 : index
    %c0_9 = arith.constant 0 : index
    %c0_10 = arith.constant 0 : index
    %18 = vector.load %arg4[%c0_8, %c0_9, %c0_10] : memref<1x32x128xf32, #tpu.memory_space<vmem>>, vector<1x32x12xf32>
    %19 = vector.shape_cast %18 : vector<1x32x12xf32> to vector<32x12xf32>
    %20 = tpu.concatenate %15, %17, %19 in 1 : vector<32x12xf32>, vector<32x128xf32>, vector<32x12xf32> -> vector<32x152xf32>
    %cst_11 = arith.constant 0.000000e+00 : f32
    %21 = vector.broadcast %cst_11 : f32 to vector<32x152xf32>
    %22 = arith.cmpf oge, %20, %21 : vector<32x152xf32>
    %cst_12 = arith.constant 1.000000e-01 : f32
    %23 = vector.broadcast %cst_12 : f32 to vector<32x152xf32>
    %24 = arith.mulf %23, %20 : vector<32x152xf32>
    %25 = arith.select %22, %20, %24 : vector<32x152xi1>, vector<32x152xf32>
    %26 = arith.truncf %25 : vector<32x152xf32> to vector<32x152xbf16>
    %c0_13 = arith.constant 0 : index
    %c5 = arith.constant 5 : index
    %27 = vector.load %arg10[%c0_13, %c5] : memref<32x162xbf16, #tpu.memory_space<vmem>>, vector<32x152xbf16>
    tpu.vector_store %arg10[%c0_13, %c5], %26 {strides = array<i32>} : memref<32x162xbf16, #tpu.memory_space<vmem>>, vector<32x152xbf16>,
    %c0_14 = arith.constant 0 : index
    %c0_15 = arith.constant 0 : index
    %c0_16 = arith.constant 0 : index
    %c0_17 = arith.constant 0 : index
    %28 = vector.load %arg5[%c0_14, %c0_15, %c0_16, %c0_17] : memref<3x3x32x32xbf16, #tpu.memory_space<vmem>>, vector<1x1x32x32xbf16>
    %29 = vector.shape_cast %28 : vector<1x1x32x32xbf16> to vector<32x32xbf16>
    %c0_18 = arith.constant 0 : index
    %c4 = arith.constant 4 : index
    %30 = vector.load %arg10[%c0_18, %c4] : memref<32x162xbf16, #tpu.memory_space<vmem>>, vector<32x152xbf16>
    %cst_19 = arith.constant dense<0.000000e+00> : vector<32x152xf32>
    %31 = tpu.matmul %29, %30, %cst_19 {dimension_numbers = #tpu.dot_dimension_numbers<[1], [0], [0], [1], [0, 0, 1, 1], [], []>} : vector<32x32xbf16>, vector<32x152xbf16>, vector<32x152xf32> -> vector<32x152xf32>
    %c0_20 = arith.constant 0 : index
    %c1 = arith.constant 1 : index
    %c0_21 = arith.constant 0 : index
    %c0_22 = arith.constant 0 : index
    %32 = vector.load %arg5[%c0_20, %c1, %c0_21, %c0_22] : memref<3x3x32x32xbf16, #tpu.memory_space<vmem>>, vector<1x1x32x32xbf16>
    %33 = vector.shape_cast %32 : vector<1x1x32x32xbf16> to vector<32x32xbf16>
    %c0_23 = arith.constant 0 : index
    %c5_24 = arith.constant 5 : index
    %34 = vector.load %arg10[%c0_23, %c5_24] : memref<32x162xbf16, #tpu.memory_space<vmem>>, vector<32x152xbf16>
    %cst_25 = arith.constant dense<0.000000e+00> : vector<32x152xf32>
    %35 = tpu.matmul %33, %34, %cst_25 {dimension_numbers = #tpu.dot_dimension_numbers<[1], [0], [0], [1], [0, 0, 1, 1], [], []>} : vector<32x32xbf16>, vector<32x152xbf16>, vector<32x152xf32> -> vector<32x152xf32>
    %36 = arith.addf %31, %35 : vector<32x152xf32>
    %c0_26 = arith.constant 0 : index
    %c2 = arith.constant 2 : index
    %c0_27 = arith.constant 0 : index
    %c0_28 = arith.constant 0 : index
    %37 = vector.load %arg5[%c0_26, %c2, %c0_27, %c0_28] : memref<3x3x32x32xbf16, #tpu.memory_space<vmem>>, vector<1x1x32x32xbf16>
    %38 = vector.shape_cast %37 : vector<1x1x32x32xbf16> to vector<32x32xbf16>
    %c0_29 = arith.constant 0 : index
    %c6 = arith.constant 6 : index
    %39 = vector.load %arg10[%c0_29, %c6] : memref<32x162xbf16, #tpu.memory_space<vmem>>, vector<32x152xbf16>
    %cst_30 = arith.constant dense<0.000000e+00> : vector<32x152xf32>
    %40 = tpu.matmul %38, %39, %cst_30 {dimension_numbers = #tpu.dot_dimension_numbers<[1], [0], [0], [1], [0, 0, 1, 1], [], []>} : vector<32x32xbf16>, vector<32x152xbf16>, vector<32x152xf32> -> vector<32x152xf32>
    %41 = arith.addf %36, %40 : vector<32x152xf32>
    %c0_31 = arith.constant 0 : index
    %c0_32 = arith.constant 0 : index
    %c0_33 = arith.constant 0 : index
    %42 = vector.load %arg6[%c0_31, %c0_32, %c0_33] : memref<3x32x1xf32, #tpu.memory_space<vmem>>, vector<1x32x1xf32>
    %43 = vector.shape_cast %42 : vector<1x32x1xf32> to vector<32x1xf32>
    %44 = vector.broadcast %43 : vector<32x1xf32> to vector<32x152xf32>
    %45 = arith.addf %41, %44 : vector<32x152xf32>
    %cst_34 = arith.constant 0.000000e+00 : f32
    %46 = vector.broadcast %cst_34 : f32 to vector<32x152xf32>
    %47 = arith.cmpf oge, %45, %46 : vector<32x152xf32>
    %cst_35 = arith.constant 1.000000e-01 : f32
    %48 = vector.broadcast %cst_35 : f32 to vector<32x152xf32>
    %49 = arith.mulf %48, %45 : vector<32x152xf32>
    %50 = arith.select %47, %45, %49 : vector<32x152xi1>, vector<32x152xf32>
    %cst_36 = arith.constant 0.000000e+00 : f32
    %51 = vector.shape_cast %13 : vector<1x152xi1> to vector<1x152xi1>
    %52 = vector.broadcast %51 : vector<1x152xi1> to vector<32x152xi1>
    %53 = vector.broadcast %cst_36 : f32 to vector<32x152xf32>
    %54 = arith.select %52, %50, %53 : vector<32x152xi1>, vector<32x152xf32>
    %55 = arith.truncf %54 : vector<32x152xf32> to vector<32x152xbf16>
    %c0_37 = arith.constant 0 : index
    %c5_38 = arith.constant 5 : index
    %56 = vector.load %arg10[%c0_37, %c5_38] : memref<32x162xbf16, #tpu.memory_space<vmem>>, vector<32x152xbf16>
    tpu.vector_store %arg10[%c0_37, %c5_38], %55 {strides = array<i32>} : memref<32x162xbf16, #tpu.memory_space<vmem>>, vector<32x152xbf16>,
    %c0_39 = arith.constant 0 : index
    %c0_40 = arith.constant 0 : index
    %c0_41 = arith.constant 0 : index
    %c0_42 = arith.constant 0 : index
    %57 = vector.load %arg7[%c0_39, %c0_40, %c0_41, %c0_42] : memref<3x3x32x32xbf16, #tpu.memory_space<vmem>>, vector<1x1x32x32xbf16>
    %58 = vector.shape_cast %57 : vector<1x1x32x32xbf16> to vector<32x32xbf16>
    %c0_43 = arith.constant 0 : index
    %c4_44 = arith.constant 4 : index
    %59 = vector.load %arg10[%c0_43, %c4_44] : memref<32x162xbf16, #tpu.memory_space<vmem>>, vector<32x152xbf16>
    %cst_45 = arith.constant dense<0.000000e+00> : vector<32x152xf32>
    %60 = tpu.matmul %58, %59, %cst_45 {dimension_numbers = #tpu.dot_dimension_numbers<[1], [0], [0], [1], [0, 0, 1, 1], [], []>} : vector<32x32xbf16>, vector<32x152xbf16>, vector<32x152xf32> -> vector<32x152xf32>
    %c0_46 = arith.constant 0 : index
    %c1_47 = arith.constant 1 : index
    %c0_48 = arith.constant 0 : index
    %c0_49 = arith.constant 0 : index
    %61 = vector.load %arg7[%c0_46, %c1_47, %c0_48, %c0_49] : memref<3x3x32x32xbf16, #tpu.memory_space<vmem>>, vector<1x1x32x32xbf16>
    %62 = vector.shape_cast %61 : vector<1x1x32x32xbf16> to vector<32x32xbf16>
    %c0_50 = arith.constant 0 : index
    %c5_51 = arith.constant 5 : index
    %63 = vector.load %arg10[%c0_50, %c5_51] : memref<32x162xbf16, #tpu.memory_space<vmem>>, vector<32x152xbf16>
    %cst_52 = arith.constant dense<0.000000e+00> : vector<32x152xf32>
    %64 = tpu.matmul %62, %63, %cst_52 {dimension_numbers = #tpu.dot_dimension_numbers<[1], [0], [0], [1], [0, 0, 1, 1], [], []>} : vector<32x32xbf16>, vector<32x152xbf16>, vector<32x152xf32> -> vector<32x152xf32>
    %65 = arith.addf %60, %64 : vector<32x152xf32>
    %c0_53 = arith.constant 0 : index
    %c2_54 = arith.constant 2 : index
    %c0_55 = arith.constant 0 : index
    %c0_56 = arith.constant 0 : index
    %66 = vector.load %arg7[%c0_53, %c2_54, %c0_55, %c0_56] : memref<3x3x32x32xbf16, #tpu.memory_space<vmem>>, vector<1x1x32x32xbf16>
    %67 = vector.shape_cast %66 : vector<1x1x32x32xbf16> to vector<32x32xbf16>
    %c0_57 = arith.constant 0 : index
    %c6_58 = arith.constant 6 : index
    %68 = vector.load %arg10[%c0_57, %c6_58] : memref<32x162xbf16, #tpu.memory_space<vmem>>, vector<32x152xbf16>
    %cst_59 = arith.constant dense<0.000000e+00> : vector<32x152xf32>
    %69 = tpu.matmul %67, %68, %cst_59 {dimension_numbers = #tpu.dot_dimension_numbers<[1], [0], [0], [1], [0, 0, 1, 1], [], []>} : vector<32x32xbf16>, vector<32x152xbf16>, vector<32x152xf32> -> vector<32x152xf32>
    %70 = arith.addf %65, %69 : vector<32x152xf32>
    %c0_60 = arith.constant 0 : index
    %c0_61 = arith.constant 0 : index
    %c0_62 = arith.constant 0 : index
    %71 = vector.load %arg8[%c0_60, %c0_61, %c0_62] : memref<3x32x1xf32, #tpu.memory_space<vmem>>, vector<1x32x1xf32>
    %72 = vector.shape_cast %71 : vector<1x32x1xf32> to vector<32x1xf32>
    %73 = vector.broadcast %72 : vector<32x1xf32> to vector<32x152xf32>
    %74 = arith.addf %70, %73 : vector<32x152xf32>
    %75 = arith.addf %74, %20 : vector<32x152xf32>
    %cst_63 = arith.constant 0.000000e+00 : f32
    %76 = vector.broadcast %cst_63 : f32 to vector<32x152xf32>
    %77 = arith.cmpf oge, %75, %76 : vector<32x152xf32>
    %cst_64 = arith.constant 1.000000e-01 : f32
    %78 = vector.broadcast %cst_64 : f32 to vector<32x152xf32>
    %79 = arith.mulf %78, %75 : vector<32x152xf32>
    %80 = arith.select %77, %75, %79 : vector<32x152xi1>, vector<32x152xf32>
    %cst_65 = arith.constant 0.000000e+00 : f32
    %81 = vector.shape_cast %13 : vector<1x152xi1> to vector<1x152xi1>
    %82 = vector.broadcast %81 : vector<1x152xi1> to vector<32x152xi1>
    %83 = vector.broadcast %cst_65 : f32 to vector<32x152xf32>
    %84 = arith.select %82, %80, %83 : vector<32x152xi1>, vector<32x152xf32>
    %85 = arith.truncf %84 : vector<32x152xf32> to vector<32x152xbf16>
    %c0_66 = arith.constant 0 : index
    %c5_67 = arith.constant 5 : index
    %86 = vector.load %arg10[%c0_66, %c5_67] : memref<32x162xbf16, #tpu.memory_space<vmem>>, vector<32x152xbf16>
    tpu.vector_store %arg10[%c0_66, %c5_67], %85 {strides = array<i32>} : memref<32x162xbf16, #tpu.memory_space<vmem>>, vector<32x152xbf16>,
    %c1_68 = arith.constant 1 : index
    %c0_69 = arith.constant 0 : index
    %c0_70 = arith.constant 0 : index
    %c0_71 = arith.constant 0 : index
    %87 = vector.load %arg5[%c1_68, %c0_69, %c0_70, %c0_71] : memref<3x3x32x32xbf16, #tpu.memory_space<vmem>>, vector<1x1x32x32xbf16>
    %88 = vector.shape_cast %87 : vector<1x1x32x32xbf16> to vector<32x32xbf16>
    %c0_72 = arith.constant 0 : index
    %c2_73 = arith.constant 2 : index
    %89 = vector.load %arg10[%c0_72, %c2_73] : memref<32x162xbf16, #tpu.memory_space<vmem>>, vector<32x152xbf16>
    %cst_74 = arith.constant dense<0.000000e+00> : vector<32x152xf32>
    %90 = tpu.matmul %88, %89, %cst_74 {dimension_numbers = #tpu.dot_dimension_numbers<[1], [0], [0], [1], [0, 0, 1, 1], [], []>} : vector<32x32xbf16>, vector<32x152xbf16>, vector<32x152xf32> -> vector<32x152xf32>
    %c1_75 = arith.constant 1 : index
    %c1_76 = arith.constant 1 : index
    %c0_77 = arith.constant 0 : index
    %c0_78 = arith.constant 0 : index
    %91 = vector.load %arg5[%c1_75, %c1_76, %c0_77, %c0_78] : memref<3x3x32x32xbf16, #tpu.memory_space<vmem>>, vector<1x1x32x32xbf16>
    %92 = vector.shape_cast %91 : vector<1x1x32x32xbf16> to vector<32x32xbf16>
    %c0_79 = arith.constant 0 : index
    %c5_80 = arith.constant 5 : index
    %93 = vector.load %arg10[%c0_79, %c5_80] : memref<32x162xbf16, #tpu.memory_space<vmem>>, vector<32x152xbf16>
    %cst_81 = arith.constant dense<0.000000e+00> : vector<32x152xf32>
    %94 = tpu.matmul %92, %93, %cst_81 {dimension_numbers = #tpu.dot_dimension_numbers<[1], [0], [0], [1], [0, 0, 1, 1], [], []>} : vector<32x32xbf16>, vector<32x152xbf16>, vector<32x152xf32> -> vector<32x152xf32>
    %95 = arith.addf %90, %94 : vector<32x152xf32>
    %c1_82 = arith.constant 1 : index
    %c2_83 = arith.constant 2 : index
    %c0_84 = arith.constant 0 : index
    %c0_85 = arith.constant 0 : index
    %96 = vector.load %arg5[%c1_82, %c2_83, %c0_84, %c0_85] : memref<3x3x32x32xbf16, #tpu.memory_space<vmem>>, vector<1x1x32x32xbf16>
    %97 = vector.shape_cast %96 : vector<1x1x32x32xbf16> to vector<32x32xbf16>
    %c0_86 = arith.constant 0 : index
    %c8 = arith.constant 8 : index
    %98 = vector.load %arg10[%c0_86, %c8] : memref<32x162xbf16, #tpu.memory_space<vmem>>, vector<32x152xbf16>
    %cst_87 = arith.constant dense<0.000000e+00> : vector<32x152xf32>
    %99 = tpu.matmul %97, %98, %cst_87 {dimension_numbers = #tpu.dot_dimension_numbers<[1], [0], [0], [1], [0, 0, 1, 1], [], []>} : vector<32x32xbf16>, vector<32x152xbf16>, vector<32x152xf32> -> vector<32x152xf32>
    %100 = arith.addf %95, %99 : vector<32x152xf32>
    %c1_88 = arith.constant 1 : index
    %c0_89 = arith.constant 0 : index
    %c0_90 = arith.constant 0 : index
    %101 = vector.load %arg6[%c1_88, %c0_89, %c0_90] : memref<3x32x1xf32, #tpu.memory_space<vmem>>, vector<1x32x1xf32>
    %102 = vector.shape_cast %101 : vector<1x32x1xf32> to vector<32x1xf32>
    %103 = vector.broadcast %102 : vector<32x1xf32> to vector<32x152xf32>
    %104 = arith.addf %100, %103 : vector<32x152xf32>
    %cst_91 = arith.constant 0.000000e+00 : f32
    %105 = vector.broadcast %cst_91 : f32 to vector<32x152xf32>
    %106 = arith.cmpf oge, %104, %105 : vector<32x152xf32>
    %cst_92 = arith.constant 1.000000e-01 : f32
    %107 = vector.broadcast %cst_92 : f32 to vector<32x152xf32>
    %108 = arith.mulf %107, %104 : vector<32x152xf32>
    %109 = arith.select %106, %104, %108 : vector<32x152xi1>, vector<32x152xf32>
    %cst_93 = arith.constant 0.000000e+00 : f32
    %110 = vector.shape_cast %13 : vector<1x152xi1> to vector<1x152xi1>
    %111 = vector.broadcast %110 : vector<1x152xi1> to vector<32x152xi1>
    %112 = vector.broadcast %cst_93 : f32 to vector<32x152xf32>
    %113 = arith.select %111, %109, %112 : vector<32x152xi1>, vector<32x152xf32>
    %114 = arith.truncf %113 : vector<32x152xf32> to vector<32x152xbf16>
    %c0_94 = arith.constant 0 : index
    %c5_95 = arith.constant 5 : index
    %115 = vector.load %arg10[%c0_94, %c5_95] : memref<32x162xbf16, #tpu.memory_space<vmem>>, vector<32x152xbf16>
    tpu.vector_store %arg10[%c0_94, %c5_95], %114 {strides = array<i32>} : memref<32x162xbf16, #tpu.memory_space<vmem>>, vector<32x152xbf16>,
    %c1_96 = arith.constant 1 : index
    %c0_97 = arith.constant 0 : index
    %c0_98 = arith.constant 0 : index
    %c0_99 = arith.constant 0 : index
    %116 = vector.load %arg7[%c1_96, %c0_97, %c0_98, %c0_99] : memref<3x3x32x32xbf16, #tpu.memory_space<vmem>>, vector<1x1x32x32xbf16>
    %117 = vector.shape_cast %116 : vector<1x1x32x32xbf16> to vector<32x32xbf16>
    %c0_100 = arith.constant 0 : index
    %c4_101 = arith.constant 4 : index
    %118 = vector.load %arg10[%c0_100, %c4_101] : memref<32x162xbf16, #tpu.memory_space<vmem>>, vector<32x152xbf16>
    %cst_102 = arith.constant dense<0.000000e+00> : vector<32x152xf32>
    %119 = tpu.matmul %117, %118, %cst_102 {dimension_numbers = #tpu.dot_dimension_numbers<[1], [0], [0], [1], [0, 0, 1, 1], [], []>} : vector<32x32xbf16>, vector<32x152xbf16>, vector<32x152xf32> -> vector<32x152xf32>
    %c1_103 = arith.constant 1 : index
    %c1_104 = arith.constant 1 : index
    %c0_105 = arith.constant 0 : index
    %c0_106 = arith.constant 0 : index
    %120 = vector.load %arg7[%c1_103, %c1_104, %c0_105, %c0_106] : memref<3x3x32x32xbf16, #tpu.memory_space<vmem>>, vector<1x1x32x32xbf16>
    %121 = vector.shape_cast %120 : vector<1x1x32x32xbf16> to vector<32x32xbf16>
    %c0_107 = arith.constant 0 : index
    %c5_108 = arith.constant 5 : index
    %122 = vector.load %arg10[%c0_107, %c5_108] : memref<32x162xbf16, #tpu.memory_space<vmem>>, vector<32x152xbf16>
    %cst_109 = arith.constant dense<0.000000e+00> : vector<32x152xf32>
    %123 = tpu.matmul %121, %122, %cst_109 {dimension_numbers = #tpu.dot_dimension_numbers<[1], [0], [0], [1], [0, 0, 1, 1], [], []>} : vector<32x32xbf16>, vector<32x152xbf16>, vector<32x152xf32> -> vector<32x152xf32>
    %124 = arith.addf %119, %123 : vector<32x152xf32>
    %c1_110 = arith.constant 1 : index
    %c2_111 = arith.constant 2 : index
    %c0_112 = arith.constant 0 : index
    %c0_113 = arith.constant 0 : index
    %125 = vector.load %arg7[%c1_110, %c2_111, %c0_112, %c0_113] : memref<3x3x32x32xbf16, #tpu.memory_space<vmem>>, vector<1x1x32x32xbf16>
    %126 = vector.shape_cast %125 : vector<1x1x32x32xbf16> to vector<32x32xbf16>
    %c0_114 = arith.constant 0 : index
    %c6_115 = arith.constant 6 : index
    %127 = vector.load %arg10[%c0_114, %c6_115] : memref<32x162xbf16, #tpu.memory_space<vmem>>, vector<32x152xbf16>
    %cst_116 = arith.constant dense<0.000000e+00> : vector<32x152xf32>
    %128 = tpu.matmul %126, %127, %cst_116 {dimension_numbers = #tpu.dot_dimension_numbers<[1], [0], [0], [1], [0, 0, 1, 1], [], []>} : vector<32x32xbf16>, vector<32x152xbf16>, vector<32x152xf32> -> vector<32x152xf32>
    %129 = arith.addf %124, %128 : vector<32x152xf32>
    %c1_117 = arith.constant 1 : index
    %c0_118 = arith.constant 0 : index
    %c0_119 = arith.constant 0 : index
    %130 = vector.load %arg8[%c1_117, %c0_118, %c0_119] : memref<3x32x1xf32, #tpu.memory_space<vmem>>, vector<1x32x1xf32>
    %131 = vector.shape_cast %130 : vector<1x32x1xf32> to vector<32x1xf32>
    %132 = vector.broadcast %131 : vector<32x1xf32> to vector<32x152xf32>
    %133 = arith.addf %129, %132 : vector<32x152xf32>
    %134 = arith.addf %133, %75 : vector<32x152xf32>
    %cst_120 = arith.constant 0.000000e+00 : f32
    %135 = vector.broadcast %cst_120 : f32 to vector<32x152xf32>
    %136 = arith.cmpf oge, %134, %135 : vector<32x152xf32>
    %cst_121 = arith.constant 1.000000e-01 : f32
    %137 = vector.broadcast %cst_121 : f32 to vector<32x152xf32>
    %138 = arith.mulf %137, %134 : vector<32x152xf32>
    %139 = arith.select %136, %134, %138 : vector<32x152xi1>, vector<32x152xf32>
    %cst_122 = arith.constant 0.000000e+00 : f32
    %140 = vector.shape_cast %13 : vector<1x152xi1> to vector<1x152xi1>
    %141 = vector.broadcast %140 : vector<1x152xi1> to vector<32x152xi1>
    %142 = vector.broadcast %cst_122 : f32 to vector<32x152xf32>
    %143 = arith.select %141, %139, %142 : vector<32x152xi1>, vector<32x152xf32>
    %144 = arith.truncf %143 : vector<32x152xf32> to vector<32x152xbf16>
    %c0_123 = arith.constant 0 : index
    %c5_124 = arith.constant 5 : index
    %145 = vector.load %arg10[%c0_123, %c5_124] : memref<32x162xbf16, #tpu.memory_space<vmem>>, vector<32x152xbf16>
    tpu.vector_store %arg10[%c0_123, %c5_124], %144 {strides = array<i32>} : memref<32x162xbf16, #tpu.memory_space<vmem>>, vector<32x152xbf16>,
    %c2_125 = arith.constant 2 : index
    %c0_126 = arith.constant 0 : index
    %c0_127 = arith.constant 0 : index
    %c0_128 = arith.constant 0 : index
    %146 = vector.load %arg5[%c2_125, %c0_126, %c0_127, %c0_128] : memref<3x3x32x32xbf16, #tpu.memory_space<vmem>>, vector<1x1x32x32xbf16>
    %147 = vector.shape_cast %146 : vector<1x1x32x32xbf16> to vector<32x32xbf16>
    %c0_129 = arith.constant 0 : index
    %c0_130 = arith.constant 0 : index
    %148 = vector.load %arg10[%c0_129, %c0_130] : memref<32x162xbf16, #tpu.memory_space<vmem>>, vector<32x152xbf16>
    %cst_131 = arith.constant dense<0.000000e+00> : vector<32x152xf32>
    %149 = tpu.matmul %147, %148, %cst_131 {dimension_numbers = #tpu.dot_dimension_numbers<[1], [0], [0], [1], [0, 0, 1, 1], [], []>} : vector<32x32xbf16>, vector<32x152xbf16>, vector<32x152xf32> -> vector<32x152xf32>
    %c2_132 = arith.constant 2 : index
    %c1_133 = arith.constant 1 : index
    %c0_134 = arith.constant 0 : index
    %c0_135 = arith.constant 0 : index
    %150 = vector.load %arg5[%c2_132, %c1_133, %c0_134, %c0_135] : memref<3x3x32x32xbf16, #tpu.memory_space<vmem>>, vector<1x1x32x32xbf16>
    %151 = vector.shape_cast %150 : vector<1x1x32x32xbf16> to vector<32x32xbf16>
    %c0_136 = arith.constant 0 : index
    %c5_137 = arith.constant 5 : index
    %152 = vector.load %arg10[%c0_136, %c5_137] : memref<32x162xbf16, #tpu.memory_space<vmem>>, vector<32x152xbf16>
    %cst_138 = arith.constant dense<0.000000e+00> : vector<32x152xf32>
    %153 = tpu.matmul %151, %152, %cst_138 {dimension_numbers = #tpu.dot_dimension_numbers<[1], [0], [0], [1], [0, 0, 1, 1], [], []>} : vector<32x32xbf16>, vector<32x152xbf16>, vector<32x152xf32> -> vector<32x152xf32>
    %154 = arith.addf %149, %153 : vector<32x152xf32>
    %c2_139 = arith.constant 2 : index
    %c2_140 = arith.constant 2 : index
    %c0_141 = arith.constant 0 : index
    %c0_142 = arith.constant 0 : index
    %155 = vector.load %arg5[%c2_139, %c2_140, %c0_141, %c0_142] : memref<3x3x32x32xbf16, #tpu.memory_space<vmem>>, vector<1x1x32x32xbf16>
    %156 = vector.shape_cast %155 : vector<1x1x32x32xbf16> to vector<32x32xbf16>
    %c0_143 = arith.constant 0 : index
    %c10 = arith.constant 10 : index
    %157 = vector.load %arg10[%c0_143, %c10] : memref<32x162xbf16, #tpu.memory_space<vmem>>, vector<32x152xbf16>
    %cst_144 = arith.constant dense<0.000000e+00> : vector<32x152xf32>
    %158 = tpu.matmul %156, %157, %cst_144 {dimension_numbers = #tpu.dot_dimension_numbers<[1], [0], [0], [1], [0, 0, 1, 1], [], []>} : vector<32x32xbf16>, vector<32x152xbf16>, vector<32x152xf32> -> vector<32x152xf32>
    %159 = arith.addf %154, %158 : vector<32x152xf32>
    %c2_145 = arith.constant 2 : index
    %c0_146 = arith.constant 0 : index
    %c0_147 = arith.constant 0 : index
    %160 = vector.load %arg6[%c2_145, %c0_146, %c0_147] : memref<3x32x1xf32, #tpu.memory_space<vmem>>, vector<1x32x1xf32>
    %161 = vector.shape_cast %160 : vector<1x32x1xf32> to vector<32x1xf32>
    %162 = vector.broadcast %161 : vector<32x1xf32> to vector<32x152xf32>
    %163 = arith.addf %159, %162 : vector<32x152xf32>
    %cst_148 = arith.constant 0.000000e+00 : f32
    %164 = vector.broadcast %cst_148 : f32 to vector<32x152xf32>
    %165 = arith.cmpf oge, %163, %164 : vector<32x152xf32>
    %cst_149 = arith.constant 1.000000e-01 : f32
    %166 = vector.broadcast %cst_149 : f32 to vector<32x152xf32>
    %167 = arith.mulf %166, %163 : vector<32x152xf32>
    %168 = arith.select %165, %163, %167 : vector<32x152xi1>, vector<32x152xf32>
    %cst_150 = arith.constant 0.000000e+00 : f32
    %169 = vector.shape_cast %13 : vector<1x152xi1> to vector<1x152xi1>
    %170 = vector.broadcast %169 : vector<1x152xi1> to vector<32x152xi1>
    %171 = vector.broadcast %cst_150 : f32 to vector<32x152xf32>
    %172 = arith.select %170, %168, %171 : vector<32x152xi1>, vector<32x152xf32>
    %173 = arith.truncf %172 : vector<32x152xf32> to vector<32x152xbf16>
    %c0_151 = arith.constant 0 : index
    %c5_152 = arith.constant 5 : index
    %174 = vector.load %arg10[%c0_151, %c5_152] : memref<32x162xbf16, #tpu.memory_space<vmem>>, vector<32x152xbf16>
    tpu.vector_store %arg10[%c0_151, %c5_152], %173 {strides = array<i32>} : memref<32x162xbf16, #tpu.memory_space<vmem>>, vector<32x152xbf16>,
    %c2_153 = arith.constant 2 : index
    %c0_154 = arith.constant 0 : index
    %c0_155 = arith.constant 0 : index
    %c0_156 = arith.constant 0 : index
    %175 = vector.load %arg7[%c2_153, %c0_154, %c0_155, %c0_156] : memref<3x3x32x32xbf16, #tpu.memory_space<vmem>>, vector<1x1x32x32xbf16>
    %176 = vector.shape_cast %175 : vector<1x1x32x32xbf16> to vector<32x32xbf16>
    %c0_157 = arith.constant 0 : index
    %c4_158 = arith.constant 4 : index
    %177 = vector.load %arg10[%c0_157, %c4_158] : memref<32x162xbf16, #tpu.memory_space<vmem>>, vector<32x152xbf16>
    %cst_159 = arith.constant dense<0.000000e+00> : vector<32x152xf32>
    %178 = tpu.matmul %176, %177, %cst_159 {dimension_numbers = #tpu.dot_dimension_numbers<[1], [0], [0], [1], [0, 0, 1, 1], [], []>} : vector<32x32xbf16>, vector<32x152xbf16>, vector<32x152xf32> -> vector<32x152xf32>
    %c2_160 = arith.constant 2 : index
    %c1_161 = arith.constant 1 : index
    %c0_162 = arith.constant 0 : index
    %c0_163 = arith.constant 0 : index
    %179 = vector.load %arg7[%c2_160, %c1_161, %c0_162, %c0_163] : memref<3x3x32x32xbf16, #tpu.memory_space<vmem>>, vector<1x1x32x32xbf16>
    %180 = vector.shape_cast %179 : vector<1x1x32x32xbf16> to vector<32x32xbf16>
    %c0_164 = arith.constant 0 : index
    %c5_165 = arith.constant 5 : index
    %181 = vector.load %arg10[%c0_164, %c5_165] : memref<32x162xbf16, #tpu.memory_space<vmem>>, vector<32x152xbf16>
    %cst_166 = arith.constant dense<0.000000e+00> : vector<32x152xf32>
    %182 = tpu.matmul %180, %181, %cst_166 {dimension_numbers = #tpu.dot_dimension_numbers<[1], [0], [0], [1], [0, 0, 1, 1], [], []>} : vector<32x32xbf16>, vector<32x152xbf16>, vector<32x152xf32> -> vector<32x152xf32>
    %183 = arith.addf %178, %182 : vector<32x152xf32>
    %c2_167 = arith.constant 2 : index
    %c2_168 = arith.constant 2 : index
    %c0_169 = arith.constant 0 : index
    %c0_170 = arith.constant 0 : index
    %184 = vector.load %arg7[%c2_167, %c2_168, %c0_169, %c0_170] : memref<3x3x32x32xbf16, #tpu.memory_space<vmem>>, vector<1x1x32x32xbf16>
    %185 = vector.shape_cast %184 : vector<1x1x32x32xbf16> to vector<32x32xbf16>
    %c0_171 = arith.constant 0 : index
    %c6_172 = arith.constant 6 : index
    %186 = vector.load %arg10[%c0_171, %c6_172] : memref<32x162xbf16, #tpu.memory_space<vmem>>, vector<32x152xbf16>
    %cst_173 = arith.constant dense<0.000000e+00> : vector<32x152xf32>
    %187 = tpu.matmul %185, %186, %cst_173 {dimension_numbers = #tpu.dot_dimension_numbers<[1], [0], [0], [1], [0, 0, 1, 1], [], []>} : vector<32x32xbf16>, vector<32x152xbf16>, vector<32x152xf32> -> vector<32x152xf32>
    %188 = arith.addf %183, %187 : vector<32x152xf32>
    %c2_174 = arith.constant 2 : index
    %c0_175 = arith.constant 0 : index
    %c0_176 = arith.constant 0 : index
    %189 = vector.load %arg8[%c2_174, %c0_175, %c0_176] : memref<3x32x1xf32, #tpu.memory_space<vmem>>, vector<1x32x1xf32>
    %190 = vector.shape_cast %189 : vector<1x32x1xf32> to vector<32x1xf32>
    %191 = vector.broadcast %190 : vector<32x1xf32> to vector<32x152xf32>
    %192 = arith.addf %188, %191 : vector<32x152xf32>
    %193 = arith.addf %192, %134 : vector<32x152xf32>
    %194 = vector.extract_strided_slice %193 {offsets = [0, 12], sizes = [32, 128], strides = [1, 1]} : vector<32x152xf32> to vector<32x128xf32>
    %c0_177 = arith.constant 0 : index
    %c0_178 = arith.constant 0 : index
    %c0_179 = arith.constant 0 : index
    %195 = vector.load %arg9[%c0_177, %c0_178, %c0_179] : memref<1x32x128xf32, #tpu.memory_space<vmem>>, vector<1x32x128xf32>
    %196 = vector.shape_cast %195 : vector<1x32x128xf32> to vector<32x128xf32>
    %197 = vector.shape_cast %194 : vector<32x128xf32> to vector<1x32x128xf32>
    tpu.vector_store %arg9[%c0_177, %c0_178, %c0_179], %197 {strides = array<i32>} : memref<1x32x128xf32, #tpu.memory_space<vmem>>, vector<1x32x128xf32>,
    return
  }
  func.func @transform_0(%arg0: i32, %arg1: i32) -> (i32, i32, i32) {
    %c1_i32 = arith.constant 1 : i32
    %0 = arith.addi %arg1, %c1_i32 : i32
    %c1_i32_0 = arith.constant 1 : i32
    %1 = arith.muli %0, %c1_i32_0 : i32
    %c1_i32_1 = arith.constant 1 : i32
    %2 = arith.subi %1, %c1_i32_1 : i32
    %c0_i32 = arith.constant 0 : i32
    %c0_i32_2 = arith.constant 0 : i32
    return %arg0, %c0_i32, %2 : i32, i32, i32
  }
  func.func @transform_1(%arg0: i32, %arg1: i32) -> (i32, i32, i32) {
    %c1_i32 = arith.constant 1 : i32
    %0 = arith.addi %arg1, %c1_i32 : i32
    %c0_i32 = arith.constant 0 : i32
    %c0_i32_0 = arith.constant 0 : i32
    return %arg0, %c0_i32, %0 : i32, i32, i32
  }
  func.func @transform_2(%arg0: i32, %arg1: i32) -> (i32, i32, i32) {
    %c2_i32 = arith.constant 2 : i32
    %0 = arith.addi %arg1, %c2_i32 : i32
    %c1_i32 = arith.constant 1 : i32
    %1 = arith.muli %0, %c1_i32 : i32
    %c0_i32 = arith.constant 0 : i32
    %c0_i32_0 = arith.constant 0 : i32
    return %arg0, %c0_i32, %1 : i32, i32, i32
  }
  func.func @transform_3(%arg0: i32, %arg1: i32) -> (i32, i32, i32, i32) {
    %c0_i32 = arith.constant 0 : i32
    %c0_i32_0 = arith.constant 0 : i32
    %c0_i32_1 = arith.constant 0 : i32
    %c0_i32_2 = arith.constant 0 : i32
    %c0_i32_3 = arith.constant 0 : i32
    return %c0_i32, %c0_i32_0, %c0_i32_1, %c0_i32_2 : i32, i32, i32, i32
  }
  func.func @transform_4(%arg0: i32, %arg1: i32) -> (i32, i32, i32) {
    %c0_i32 = arith.constant 0 : i32
    %c0_i32_0 = arith.constant 0 : i32
    %c0_i32_1 = arith.constant 0 : i32
    %c0_i32_2 = arith.constant 0 : i32
    return %c0_i32, %c0_i32_0, %c0_i32_1 : i32, i32, i32
  }
  func.func @transform_5(%arg0: i32, %arg1: i32) -> (i32, i32, i32, i32) {
    %c0_i32 = arith.constant 0 : i32
    %c0_i32_0 = arith.constant 0 : i32
    %c0_i32_1 = arith.constant 0 : i32
    %c0_i32_2 = arith.constant 0 : i32
    %c0_i32_3 = arith.constant 0 : i32
    return %c0_i32, %c0_i32_0, %c0_i32_1, %c0_i32_2 : i32, i32, i32, i32
  }
  func.func @transform_6(%arg0: i32, %arg1: i32) -> (i32, i32, i32) {
    %c0_i32 = arith.constant 0 : i32
    %c0_i32_0 = arith.constant 0 : i32
    %c0_i32_1 = arith.constant 0 : i32
    %c0_i32_2 = arith.constant 0 : i32
    return %c0_i32, %c0_i32_0, %c0_i32_1 : i32, i32, i32
  }
  func.func @transform_7(%arg0: i32, %arg1: i32) -> (i32, i32, i32) {
    %c0_i32 = arith.constant 0 : i32
    %c0_i32_0 = arith.constant 0 : i32
    return %arg0, %c0_i32, %arg1 : i32, i32, i32
  }
}

module attributes {stable_mosaic.version = 11 : i64} {
  func.func @_fused_resblock_kernel(%arg0: i32, %arg1: i32, %arg2: memref<1x32x128xf32, #tpu.memory_space<vmem>>, %arg3: memref<1x32x128xf32, #tpu.memory_space<vmem>>, %arg4: memref<1x32x128xf32, #tpu.memory_space<vmem>>, %arg5: memref<3x3x32x32xbf16, #tpu.memory_space<vmem>>, %arg6: memref<3x32x1xf32, #tpu.memory_space<vmem>>, %arg7: memref<3x3x32x32xbf16, #tpu.memory_space<vmem>>, %arg8: memref<3x32x1xf32, #tpu.memory_space<vmem>>, %arg9: memref<1x32x128xf32, #tpu.memory_space<vmem>>, %arg10: memref<32x162xbf16, #tpu.memory_space<vmem>>) attributes {dimension_semantics = [#tpu.dimension_semantics<parallel>, #tpu.dimension_semantics<parallel>], iteration_bounds = array<i64: 2, 2>, scalar_prefetch = 0 : i64, scratch_operands = 1 : i64, tpu.core_type = #tpu.core_type<tc>, window_params = [{transform_indices = @transform_0, window_bounds = array<i64: 1, 32, 128>}, {transform_indices = @transform_1, window_bounds = array<i64: 1, 32, 128>}, {transform_indices = @transform_2, window_bounds = array<i64: 1, 32, 128>}, {pipeline_mode = #tpu.pipeline_mode<synchronous>, transform_indices = @transform_3, window_bounds = array<i64: 3, 3, 32, 32>}, {pipeline_mode = #tpu.pipeline_mode<synchronous>, transform_indices = @transform_4, window_bounds = array<i64: 3, 32, 1>}, {pipeline_mode = #tpu.pipeline_mode<synchronous>, transform_indices = @transform_5, window_bounds = array<i64: 3, 3, 32, 32>}, {pipeline_mode = #tpu.pipeline_mode<synchronous>, transform_indices = @transform_6, window_bounds = array<i64: 3, 32, 1>}, {transform_indices = @transform_7, window_bounds = array<i64: 1, 32, 128>}]} {
    %cst = arith.constant 0.000000e+00 : bf16
    %0 = vector.broadcast %cst : bf16 to vector<32x5xbf16>
    %c0 = arith.constant 0 : index
    %c0_0 = arith.constant 0 : index
    %1 = vector.load %arg10[%c0, %c0_0] : memref<32x162xbf16, #tpu.memory_space<vmem>>, vector<32x5xbf16>
    tpu.vector_store %arg10[%c0, %c0_0], %0 {strides = array<i32>} : memref<32x162xbf16, #tpu.memory_space<vmem>>, vector<32x5xbf16>,
    %cst_1 = arith.constant 0.000000e+00 : bf16
    %2 = vector.broadcast %cst_1 : bf16 to vector<32x5xbf16>
    %c0_2 = arith.constant 0 : index
    %c157 = arith.constant 157 : index
    %3 = vector.load %arg10[%c0_2, %c157] : memref<32x162xbf16, #tpu.memory_space<vmem>>, vector<32x5xbf16>
    tpu.vector_store %arg10[%c0_2, %c157], %2 {strides = array<i32>} : memref<32x162xbf16, #tpu.memory_space<vmem>>, vector<32x5xbf16>,
    %4 = tpu.iota {dimensions = array<i32: 1>} : vector<1x152xi32>
    %c128_i32 = arith.constant 128 : i32
    %5 = arith.muli %arg1, %c128_i32 : i32
    %c12_i32 = arith.constant 12 : i32
    %6 = arith.subi %5, %c12_i32 : i32
    %7 = vector.broadcast %6 : i32 to vector<1x152xi32>
    %8 = arith.addi %4, %7 : vector<1x152xi32>
    %c0_i32 = arith.constant 0 : i32
    %9 = vector.broadcast %c0_i32 : i32 to vector<1x152xi32>
    %10 = arith.cmpi sge, %8, %9 : vector<1x152xi32>
    %c250_i32 = arith.constant 250 : i32
    %11 = vector.broadcast %c250_i32 : i32 to vector<1x152xi32>
    %12 = arith.cmpi slt, %8, %11 : vector<1x152xi32>
    %13 = arith.andi %10, %12 : vector<1x152xi1>
    %c0_3 = arith.constant 0 : index
    %c0_4 = arith.constant 0 : index
    %c116 = arith.constant 116 : index
    %14 = vector.load %arg2[%c0_3, %c0_4, %c116] : memref<1x32x128xf32, #tpu.memory_space<vmem>>, vector<1x32x12xf32>
    %15 = vector.shape_cast %14 : vector<1x32x12xf32> to vector<32x12xf32>
    %c0_5 = arith.constant 0 : index
    %c0_6 = arith.constant 0 : index
    %c0_7 = arith.constant 0 : index
    %16 = vector.load %arg3[%c0_5, %c0_6, %c0_7] : memref<1x32x128xf32, #tpu.memory_space<vmem>>, vector<1x32x128xf32>
    %17 = vector.shape_cast %16 : vector<1x32x128xf32> to vector<32x128xf32>
    %c0_8 = arith.constant 0 : index
    %c0_9 = arith.constant 0 : index
    %c0_10 = arith.constant 0 : index
    %18 = vector.load %arg4[%c0_8, %c0_9, %c0_10] : memref<1x32x128xf32, #tpu.memory_space<vmem>>, vector<1x32x12xf32>
    %19 = vector.shape_cast %18 : vector<1x32x12xf32> to vector<32x12xf32>
    %20 = tpu.concatenate %15, %17, %19 in 1 : vector<32x12xf32>, vector<32x128xf32>, vector<32x12xf32> -> vector<32x152xf32>
    %cst_11 = arith.constant 0.000000e+00 : f32
    %21 = vector.broadcast %cst_11 : f32 to vector<32x152xf32>
    %22 = arith.cmpf oge, %20, %21 : vector<32x152xf32>
    %cst_12 = arith.constant 1.000000e-01 : f32
    %23 = vector.broadcast %cst_12 : f32 to vector<32x152xf32>
    %24 = arith.mulf %23, %20 : vector<32x152xf32>
    %25 = arith.select %22, %20, %24 : vector<32x152xi1>, vector<32x152xf32>
    %26 = arith.truncf %25 : vector<32x152xf32> to vector<32x152xbf16>
    %c0_13 = arith.constant 0 : index
    %c5 = arith.constant 5 : index
    %27 = vector.load %arg10[%c0_13, %c5] : memref<32x162xbf16, #tpu.memory_space<vmem>>, vector<32x152xbf16>
    tpu.vector_store %arg10[%c0_13, %c5], %26 {strides = array<i32>} : memref<32x162xbf16, #tpu.memory_space<vmem>>, vector<32x152xbf16>,
    %c0_14 = arith.constant 0 : index
    %c0_15 = arith.constant 0 : index
    %c0_16 = arith.constant 0 : index
    %c0_17 = arith.constant 0 : index
    %28 = vector.load %arg5[%c0_14, %c0_15, %c0_16, %c0_17] : memref<3x3x32x32xbf16, #tpu.memory_space<vmem>>, vector<1x1x32x32xbf16>
    %29 = vector.shape_cast %28 : vector<1x1x32x32xbf16> to vector<32x32xbf16>
    %c0_18 = arith.constant 0 : index
    %c4 = arith.constant 4 : index
    %30 = vector.load %arg10[%c0_18, %c4] : memref<32x162xbf16, #tpu.memory_space<vmem>>, vector<32x152xbf16>
    %cst_19 = arith.constant dense<0.000000e+00> : vector<32x152xf32>
    %31 = tpu.matmul %29, %30, %cst_19 {dimension_numbers = #tpu.dot_dimension_numbers<[1], [0], [0], [1], [0, 0, 1, 1], [], []>} : vector<32x32xbf16>, vector<32x152xbf16>, vector<32x152xf32> -> vector<32x152xf32>
    %c0_20 = arith.constant 0 : index
    %c1 = arith.constant 1 : index
    %c0_21 = arith.constant 0 : index
    %c0_22 = arith.constant 0 : index
    %32 = vector.load %arg5[%c0_20, %c1, %c0_21, %c0_22] : memref<3x3x32x32xbf16, #tpu.memory_space<vmem>>, vector<1x1x32x32xbf16>
    %33 = vector.shape_cast %32 : vector<1x1x32x32xbf16> to vector<32x32xbf16>
    %c0_23 = arith.constant 0 : index
    %c5_24 = arith.constant 5 : index
    %34 = vector.load %arg10[%c0_23, %c5_24] : memref<32x162xbf16, #tpu.memory_space<vmem>>, vector<32x152xbf16>
    %cst_25 = arith.constant dense<0.000000e+00> : vector<32x152xf32>
    %35 = tpu.matmul %33, %34, %cst_25 {dimension_numbers = #tpu.dot_dimension_numbers<[1], [0], [0], [1], [0, 0, 1, 1], [], []>} : vector<32x32xbf16>, vector<32x152xbf16>, vector<32x152xf32> -> vector<32x152xf32>
    %36 = arith.addf %31, %35 : vector<32x152xf32>
    %c0_26 = arith.constant 0 : index
    %c2 = arith.constant 2 : index
    %c0_27 = arith.constant 0 : index
    %c0_28 = arith.constant 0 : index
    %37 = vector.load %arg5[%c0_26, %c2, %c0_27, %c0_28] : memref<3x3x32x32xbf16, #tpu.memory_space<vmem>>, vector<1x1x32x32xbf16>
    %38 = vector.shape_cast %37 : vector<1x1x32x32xbf16> to vector<32x32xbf16>
    %c0_29 = arith.constant 0 : index
    %c6 = arith.constant 6 : index
    %39 = vector.load %arg10[%c0_29, %c6] : memref<32x162xbf16, #tpu.memory_space<vmem>>, vector<32x152xbf16>
    %cst_30 = arith.constant dense<0.000000e+00> : vector<32x152xf32>
    %40 = tpu.matmul %38, %39, %cst_30 {dimension_numbers = #tpu.dot_dimension_numbers<[1], [0], [0], [1], [0, 0, 1, 1], [], []>} : vector<32x32xbf16>, vector<32x152xbf16>, vector<32x152xf32> -> vector<32x152xf32>
    %41 = arith.addf %36, %40 : vector<32x152xf32>
    %c0_31 = arith.constant 0 : index
    %c0_32 = arith.constant 0 : index
    %c0_33 = arith.constant 0 : index
    %42 = vector.load %arg6[%c0_31, %c0_32, %c0_33] : memref<3x32x1xf32, #tpu.memory_space<vmem>>, vector<1x32x1xf32>
    %43 = vector.shape_cast %42 : vector<1x32x1xf32> to vector<32x1xf32>
    %44 = vector.broadcast %43 : vector<32x1xf32> to vector<32x152xf32>
    %45 = arith.addf %41, %44 : vector<32x152xf32>
    %cst_34 = arith.constant 0.000000e+00 : f32
    %46 = vector.broadcast %cst_34 : f32 to vector<32x152xf32>
    %47 = arith.cmpf oge, %45, %46 : vector<32x152xf32>
    %cst_35 = arith.constant 1.000000e-01 : f32
    %48 = vector.broadcast %cst_35 : f32 to vector<32x152xf32>
    %49 = arith.mulf %48, %45 : vector<32x152xf32>
    %50 = arith.select %47, %45, %49 : vector<32x152xi1>, vector<32x152xf32>
    %cst_36 = arith.constant 0.000000e+00 : f32
    %51 = vector.shape_cast %13 : vector<1x152xi1> to vector<1x152xi1>
    %52 = vector.broadcast %51 : vector<1x152xi1> to vector<32x152xi1>
    %53 = vector.broadcast %cst_36 : f32 to vector<32x152xf32>
    %54 = arith.select %52, %50, %53 : vector<32x152xi1>, vector<32x152xf32>
    %55 = arith.truncf %54 : vector<32x152xf32> to vector<32x152xbf16>
    %c0_37 = arith.constant 0 : index
    %c5_38 = arith.constant 5 : index
    %56 = vector.load %arg10[%c0_37, %c5_38] : memref<32x162xbf16, #tpu.memory_space<vmem>>, vector<32x152xbf16>
    tpu.vector_store %arg10[%c0_37, %c5_38], %55 {strides = array<i32>} : memref<32x162xbf16, #tpu.memory_space<vmem>>, vector<32x152xbf16>,
    %c0_39 = arith.constant 0 : index
    %c0_40 = arith.constant 0 : index
    %c0_41 = arith.constant 0 : index
    %c0_42 = arith.constant 0 : index
    %57 = vector.load %arg7[%c0_39, %c0_40, %c0_41, %c0_42] : memref<3x3x32x32xbf16, #tpu.memory_space<vmem>>, vector<1x1x32x32xbf16>
    %58 = vector.shape_cast %57 : vector<1x1x32x32xbf16> to vector<32x32xbf16>
    %c0_43 = arith.constant 0 : index
    %c4_44 = arith.constant 4 : index
    %59 = vector.load %arg10[%c0_43, %c4_44] : memref<32x162xbf16, #tpu.memory_space<vmem>>, vector<32x152xbf16>
    %cst_45 = arith.constant dense<0.000000e+00> : vector<32x152xf32>
    %60 = tpu.matmul %58, %59, %cst_45 {dimension_numbers = #tpu.dot_dimension_numbers<[1], [0], [0], [1], [0, 0, 1, 1], [], []>} : vector<32x32xbf16>, vector<32x152xbf16>, vector<32x152xf32> -> vector<32x152xf32>
    %c0_46 = arith.constant 0 : index
    %c1_47 = arith.constant 1 : index
    %c0_48 = arith.constant 0 : index
    %c0_49 = arith.constant 0 : index
    %61 = vector.load %arg7[%c0_46, %c1_47, %c0_48, %c0_49] : memref<3x3x32x32xbf16, #tpu.memory_space<vmem>>, vector<1x1x32x32xbf16>
    %62 = vector.shape_cast %61 : vector<1x1x32x32xbf16> to vector<32x32xbf16>
    %c0_50 = arith.constant 0 : index
    %c5_51 = arith.constant 5 : index
    %63 = vector.load %arg10[%c0_50, %c5_51] : memref<32x162xbf16, #tpu.memory_space<vmem>>, vector<32x152xbf16>
    %cst_52 = arith.constant dense<0.000000e+00> : vector<32x152xf32>
    %64 = tpu.matmul %62, %63, %cst_52 {dimension_numbers = #tpu.dot_dimension_numbers<[1], [0], [0], [1], [0, 0, 1, 1], [], []>} : vector<32x32xbf16>, vector<32x152xbf16>, vector<32x152xf32> -> vector<32x152xf32>
    %65 = arith.addf %60, %64 : vector<32x152xf32>
    %c0_53 = arith.constant 0 : index
    %c2_54 = arith.constant 2 : index
    %c0_55 = arith.constant 0 : index
    %c0_56 = arith.constant 0 : index
    %66 = vector.load %arg7[%c0_53, %c2_54, %c0_55, %c0_56] : memref<3x3x32x32xbf16, #tpu.memory_space<vmem>>, vector<1x1x32x32xbf16>
    %67 = vector.shape_cast %66 : vector<1x1x32x32xbf16> to vector<32x32xbf16>
    %c0_57 = arith.constant 0 : index
    %c6_58 = arith.constant 6 : index
    %68 = vector.load %arg10[%c0_57, %c6_58] : memref<32x162xbf16, #tpu.memory_space<vmem>>, vector<32x152xbf16>
    %cst_59 = arith.constant dense<0.000000e+00> : vector<32x152xf32>
    %69 = tpu.matmul %67, %68, %cst_59 {dimension_numbers = #tpu.dot_dimension_numbers<[1], [0], [0], [1], [0, 0, 1, 1], [], []>} : vector<32x32xbf16>, vector<32x152xbf16>, vector<32x152xf32> -> vector<32x152xf32>
    %70 = arith.addf %65, %69 : vector<32x152xf32>
    %c0_60 = arith.constant 0 : index
    %c0_61 = arith.constant 0 : index
    %c0_62 = arith.constant 0 : index
    %71 = vector.load %arg8[%c0_60, %c0_61, %c0_62] : memref<3x32x1xf32, #tpu.memory_space<vmem>>, vector<1x32x1xf32>
    %72 = vector.shape_cast %71 : vector<1x32x1xf32> to vector<32x1xf32>
    %73 = vector.broadcast %72 : vector<32x1xf32> to vector<32x152xf32>
    %74 = arith.addf %70, %73 : vector<32x152xf32>
    %75 = arith.addf %74, %20 : vector<32x152xf32>
    %cst_63 = arith.constant 0.000000e+00 : f32
    %76 = vector.broadcast %cst_63 : f32 to vector<32x152xf32>
    %77 = arith.cmpf oge, %75, %76 : vector<32x152xf32>
    %cst_64 = arith.constant 1.000000e-01 : f32
    %78 = vector.broadcast %cst_64 : f32 to vector<32x152xf32>
    %79 = arith.mulf %78, %75 : vector<32x152xf32>
    %80 = arith.select %77, %75, %79 : vector<32x152xi1>, vector<32x152xf32>
    %cst_65 = arith.constant 0.000000e+00 : f32
    %81 = vector.shape_cast %13 : vector<1x152xi1> to vector<1x152xi1>
    %82 = vector.broadcast %81 : vector<1x152xi1> to vector<32x152xi1>
    %83 = vector.broadcast %cst_65 : f32 to vector<32x152xf32>
    %84 = arith.select %82, %80, %83 : vector<32x152xi1>, vector<32x152xf32>
    %85 = arith.truncf %84 : vector<32x152xf32> to vector<32x152xbf16>
    %c0_66 = arith.constant 0 : index
    %c5_67 = arith.constant 5 : index
    %86 = vector.load %arg10[%c0_66, %c5_67] : memref<32x162xbf16, #tpu.memory_space<vmem>>, vector<32x152xbf16>
    tpu.vector_store %arg10[%c0_66, %c5_67], %85 {strides = array<i32>} : memref<32x162xbf16, #tpu.memory_space<vmem>>, vector<32x152xbf16>,
    %c1_68 = arith.constant 1 : index
    %c0_69 = arith.constant 0 : index
    %c0_70 = arith.constant 0 : index
    %c0_71 = arith.constant 0 : index
    %87 = vector.load %arg5[%c1_68, %c0_69, %c0_70, %c0_71] : memref<3x3x32x32xbf16, #tpu.memory_space<vmem>>, vector<1x1x32x32xbf16>
    %88 = vector.shape_cast %87 : vector<1x1x32x32xbf16> to vector<32x32xbf16>
    %c0_72 = arith.constant 0 : index
    %c2_73 = arith.constant 2 : index
    %89 = vector.load %arg10[%c0_72, %c2_73] : memref<32x162xbf16, #tpu.memory_space<vmem>>, vector<32x152xbf16>
    %cst_74 = arith.constant dense<0.000000e+00> : vector<32x152xf32>
    %90 = tpu.matmul %88, %89, %cst_74 {dimension_numbers = #tpu.dot_dimension_numbers<[1], [0], [0], [1], [0, 0, 1, 1], [], []>} : vector<32x32xbf16>, vector<32x152xbf16>, vector<32x152xf32> -> vector<32x152xf32>
    %c1_75 = arith.constant 1 : index
    %c1_76 = arith.constant 1 : index
    %c0_77 = arith.constant 0 : index
    %c0_78 = arith.constant 0 : index
    %91 = vector.load %arg5[%c1_75, %c1_76, %c0_77, %c0_78] : memref<3x3x32x32xbf16, #tpu.memory_space<vmem>>, vector<1x1x32x32xbf16>
    %92 = vector.shape_cast %91 : vector<1x1x32x32xbf16> to vector<32x32xbf16>
    %c0_79 = arith.constant 0 : index
    %c5_80 = arith.constant 5 : index
    %93 = vector.load %arg10[%c0_79, %c5_80] : memref<32x162xbf16, #tpu.memory_space<vmem>>, vector<32x152xbf16>
    %cst_81 = arith.constant dense<0.000000e+00> : vector<32x152xf32>
    %94 = tpu.matmul %92, %93, %cst_81 {dimension_numbers = #tpu.dot_dimension_numbers<[1], [0], [0], [1], [0, 0, 1, 1], [], []>} : vector<32x32xbf16>, vector<32x152xbf16>, vector<32x152xf32> -> vector<32x152xf32>
    %95 = arith.addf %90, %94 : vector<32x152xf32>
    %c1_82 = arith.constant 1 : index
    %c2_83 = arith.constant 2 : index
    %c0_84 = arith.constant 0 : index
    %c0_85 = arith.constant 0 : index
    %96 = vector.load %arg5[%c1_82, %c2_83, %c0_84, %c0_85] : memref<3x3x32x32xbf16, #tpu.memory_space<vmem>>, vector<1x1x32x32xbf16>
    %97 = vector.shape_cast %96 : vector<1x1x32x32xbf16> to vector<32x32xbf16>
    %c0_86 = arith.constant 0 : index
    %c8 = arith.constant 8 : index
    %98 = vector.load %arg10[%c0_86, %c8] : memref<32x162xbf16, #tpu.memory_space<vmem>>, vector<32x152xbf16>
    %cst_87 = arith.constant dense<0.000000e+00> : vector<32x152xf32>
    %99 = tpu.matmul %97, %98, %cst_87 {dimension_numbers = #tpu.dot_dimension_numbers<[1], [0], [0], [1], [0, 0, 1, 1], [], []>} : vector<32x32xbf16>, vector<32x152xbf16>, vector<32x152xf32> -> vector<32x152xf32>
    %100 = arith.addf %95, %99 : vector<32x152xf32>
    %c1_88 = arith.constant 1 : index
    %c0_89 = arith.constant 0 : index
    %c0_90 = arith.constant 0 : index
    %101 = vector.load %arg6[%c1_88, %c0_89, %c0_90] : memref<3x32x1xf32, #tpu.memory_space<vmem>>, vector<1x32x1xf32>
    %102 = vector.shape_cast %101 : vector<1x32x1xf32> to vector<32x1xf32>
    %103 = vector.broadcast %102 : vector<32x1xf32> to vector<32x152xf32>
    %104 = arith.addf %100, %103 : vector<32x152xf32>
    %cst_91 = arith.constant 0.000000e+00 : f32
    %105 = vector.broadcast %cst_91 : f32 to vector<32x152xf32>
    %106 = arith.cmpf oge, %104, %105 : vector<32x152xf32>
    %cst_92 = arith.constant 1.000000e-01 : f32
    %107 = vector.broadcast %cst_92 : f32 to vector<32x152xf32>
    %108 = arith.mulf %107, %104 : vector<32x152xf32>
    %109 = arith.select %106, %104, %108 : vector<32x152xi1>, vector<32x152xf32>
    %cst_93 = arith.constant 0.000000e+00 : f32
    %110 = vector.shape_cast %13 : vector<1x152xi1> to vector<1x152xi1>
    %111 = vector.broadcast %110 : vector<1x152xi1> to vector<32x152xi1>
    %112 = vector.broadcast %cst_93 : f32 to vector<32x152xf32>
    %113 = arith.select %111, %109, %112 : vector<32x152xi1>, vector<32x152xf32>
    %114 = arith.truncf %113 : vector<32x152xf32> to vector<32x152xbf16>
    %c0_94 = arith.constant 0 : index
    %c5_95 = arith.constant 5 : index
    %115 = vector.load %arg10[%c0_94, %c5_95] : memref<32x162xbf16, #tpu.memory_space<vmem>>, vector<32x152xbf16>
    tpu.vector_store %arg10[%c0_94, %c5_95], %114 {strides = array<i32>} : memref<32x162xbf16, #tpu.memory_space<vmem>>, vector<32x152xbf16>,
    %c1_96 = arith.constant 1 : index
    %c0_97 = arith.constant 0 : index
    %c0_98 = arith.constant 0 : index
    %c0_99 = arith.constant 0 : index
    %116 = vector.load %arg7[%c1_96, %c0_97, %c0_98, %c0_99] : memref<3x3x32x32xbf16, #tpu.memory_space<vmem>>, vector<1x1x32x32xbf16>
    %117 = vector.shape_cast %116 : vector<1x1x32x32xbf16> to vector<32x32xbf16>
    %c0_100 = arith.constant 0 : index
    %c4_101 = arith.constant 4 : index
    %118 = vector.load %arg10[%c0_100, %c4_101] : memref<32x162xbf16, #tpu.memory_space<vmem>>, vector<32x152xbf16>
    %cst_102 = arith.constant dense<0.000000e+00> : vector<32x152xf32>
    %119 = tpu.matmul %117, %118, %cst_102 {dimension_numbers = #tpu.dot_dimension_numbers<[1], [0], [0], [1], [0, 0, 1, 1], [], []>} : vector<32x32xbf16>, vector<32x152xbf16>, vector<32x152xf32> -> vector<32x152xf32>
    %c1_103 = arith.constant 1 : index
    %c1_104 = arith.constant 1 : index
    %c0_105 = arith.constant 0 : index
    %c0_106 = arith.constant 0 : index
    %120 = vector.load %arg7[%c1_103, %c1_104, %c0_105, %c0_106] : memref<3x3x32x32xbf16, #tpu.memory_space<vmem>>, vector<1x1x32x32xbf16>
    %121 = vector.shape_cast %120 : vector<1x1x32x32xbf16> to vector<32x32xbf16>
    %c0_107 = arith.constant 0 : index
    %c5_108 = arith.constant 5 : index
    %122 = vector.load %arg10[%c0_107, %c5_108] : memref<32x162xbf16, #tpu.memory_space<vmem>>, vector<32x152xbf16>
    %cst_109 = arith.constant dense<0.000000e+00> : vector<32x152xf32>
    %123 = tpu.matmul %121, %122, %cst_109 {dimension_numbers = #tpu.dot_dimension_numbers<[1], [0], [0], [1], [0, 0, 1, 1], [], []>} : vector<32x32xbf16>, vector<32x152xbf16>, vector<32x152xf32> -> vector<32x152xf32>
    %124 = arith.addf %119, %123 : vector<32x152xf32>
    %c1_110 = arith.constant 1 : index
    %c2_111 = arith.constant 2 : index
    %c0_112 = arith.constant 0 : index
    %c0_113 = arith.constant 0 : index
    %125 = vector.load %arg7[%c1_110, %c2_111, %c0_112, %c0_113] : memref<3x3x32x32xbf16, #tpu.memory_space<vmem>>, vector<1x1x32x32xbf16>
    %126 = vector.shape_cast %125 : vector<1x1x32x32xbf16> to vector<32x32xbf16>
    %c0_114 = arith.constant 0 : index
    %c6_115 = arith.constant 6 : index
    %127 = vector.load %arg10[%c0_114, %c6_115] : memref<32x162xbf16, #tpu.memory_space<vmem>>, vector<32x152xbf16>
    %cst_116 = arith.constant dense<0.000000e+00> : vector<32x152xf32>
    %128 = tpu.matmul %126, %127, %cst_116 {dimension_numbers = #tpu.dot_dimension_numbers<[1], [0], [0], [1], [0, 0, 1, 1], [], []>} : vector<32x32xbf16>, vector<32x152xbf16>, vector<32x152xf32> -> vector<32x152xf32>
    %129 = arith.addf %124, %128 : vector<32x152xf32>
    %c1_117 = arith.constant 1 : index
    %c0_118 = arith.constant 0 : index
    %c0_119 = arith.constant 0 : index
    %130 = vector.load %arg8[%c1_117, %c0_118, %c0_119] : memref<3x32x1xf32, #tpu.memory_space<vmem>>, vector<1x32x1xf32>
    %131 = vector.shape_cast %130 : vector<1x32x1xf32> to vector<32x1xf32>
    %132 = vector.broadcast %131 : vector<32x1xf32> to vector<32x152xf32>
    %133 = arith.addf %129, %132 : vector<32x152xf32>
    %134 = arith.addf %133, %75 : vector<32x152xf32>
    %cst_120 = arith.constant 0.000000e+00 : f32
    %135 = vector.broadcast %cst_120 : f32 to vector<32x152xf32>
    %136 = arith.cmpf oge, %134, %135 : vector<32x152xf32>
    %cst_121 = arith.constant 1.000000e-01 : f32
    %137 = vector.broadcast %cst_121 : f32 to vector<32x152xf32>
    %138 = arith.mulf %137, %134 : vector<32x152xf32>
    %139 = arith.select %136, %134, %138 : vector<32x152xi1>, vector<32x152xf32>
    %cst_122 = arith.constant 0.000000e+00 : f32
    %140 = vector.shape_cast %13 : vector<1x152xi1> to vector<1x152xi1>
    %141 = vector.broadcast %140 : vector<1x152xi1> to vector<32x152xi1>
    %142 = vector.broadcast %cst_122 : f32 to vector<32x152xf32>
    %143 = arith.select %141, %139, %142 : vector<32x152xi1>, vector<32x152xf32>
    %144 = arith.truncf %143 : vector<32x152xf32> to vector<32x152xbf16>
    %c0_123 = arith.constant 0 : index
    %c5_124 = arith.constant 5 : index
    %145 = vector.load %arg10[%c0_123, %c5_124] : memref<32x162xbf16, #tpu.memory_space<vmem>>, vector<32x152xbf16>
    tpu.vector_store %arg10[%c0_123, %c5_124], %144 {strides = array<i32>} : memref<32x162xbf16, #tpu.memory_space<vmem>>, vector<32x152xbf16>,
    %c2_125 = arith.constant 2 : index
    %c0_126 = arith.constant 0 : index
    %c0_127 = arith.constant 0 : index
    %c0_128 = arith.constant 0 : index
    %146 = vector.load %arg5[%c2_125, %c0_126, %c0_127, %c0_128] : memref<3x3x32x32xbf16, #tpu.memory_space<vmem>>, vector<1x1x32x32xbf16>
    %147 = vector.shape_cast %146 : vector<1x1x32x32xbf16> to vector<32x32xbf16>
    %c0_129 = arith.constant 0 : index
    %c0_130 = arith.constant 0 : index
    %148 = vector.load %arg10[%c0_129, %c0_130] : memref<32x162xbf16, #tpu.memory_space<vmem>>, vector<32x152xbf16>
    %cst_131 = arith.constant dense<0.000000e+00> : vector<32x152xf32>
    %149 = tpu.matmul %147, %148, %cst_131 {dimension_numbers = #tpu.dot_dimension_numbers<[1], [0], [0], [1], [0, 0, 1, 1], [], []>} : vector<32x32xbf16>, vector<32x152xbf16>, vector<32x152xf32> -> vector<32x152xf32>
    %c2_132 = arith.constant 2 : index
    %c1_133 = arith.constant 1 : index
    %c0_134 = arith.constant 0 : index
    %c0_135 = arith.constant 0 : index
    %150 = vector.load %arg5[%c2_132, %c1_133, %c0_134, %c0_135] : memref<3x3x32x32xbf16, #tpu.memory_space<vmem>>, vector<1x1x32x32xbf16>
    %151 = vector.shape_cast %150 : vector<1x1x32x32xbf16> to vector<32x32xbf16>
    %c0_136 = arith.constant 0 : index
    %c5_137 = arith.constant 5 : index
    %152 = vector.load %arg10[%c0_136, %c5_137] : memref<32x162xbf16, #tpu.memory_space<vmem>>, vector<32x152xbf16>
    %cst_138 = arith.constant dense<0.000000e+00> : vector<32x152xf32>
    %153 = tpu.matmul %151, %152, %cst_138 {dimension_numbers = #tpu.dot_dimension_numbers<[1], [0], [0], [1], [0, 0, 1, 1], [], []>} : vector<32x32xbf16>, vector<32x152xbf16>, vector<32x152xf32> -> vector<32x152xf32>
    %154 = arith.addf %149, %153 : vector<32x152xf32>
    %c2_139 = arith.constant 2 : index
    %c2_140 = arith.constant 2 : index
    %c0_141 = arith.constant 0 : index
    %c0_142 = arith.constant 0 : index
    %155 = vector.load %arg5[%c2_139, %c2_140, %c0_141, %c0_142] : memref<3x3x32x32xbf16, #tpu.memory_space<vmem>>, vector<1x1x32x32xbf16>
    %156 = vector.shape_cast %155 : vector<1x1x32x32xbf16> to vector<32x32xbf16>
    %c0_143 = arith.constant 0 : index
    %c10 = arith.constant 10 : index
    %157 = vector.load %arg10[%c0_143, %c10] : memref<32x162xbf16, #tpu.memory_space<vmem>>, vector<32x152xbf16>
    %cst_144 = arith.constant dense<0.000000e+00> : vector<32x152xf32>
    %158 = tpu.matmul %156, %157, %cst_144 {dimension_numbers = #tpu.dot_dimension_numbers<[1], [0], [0], [1], [0, 0, 1, 1], [], []>} : vector<32x32xbf16>, vector<32x152xbf16>, vector<32x152xf32> -> vector<32x152xf32>
    %159 = arith.addf %154, %158 : vector<32x152xf32>
    %c2_145 = arith.constant 2 : index
    %c0_146 = arith.constant 0 : index
    %c0_147 = arith.constant 0 : index
    %160 = vector.load %arg6[%c2_145, %c0_146, %c0_147] : memref<3x32x1xf32, #tpu.memory_space<vmem>>, vector<1x32x1xf32>
    %161 = vector.shape_cast %160 : vector<1x32x1xf32> to vector<32x1xf32>
    %162 = vector.broadcast %161 : vector<32x1xf32> to vector<32x152xf32>
    %163 = arith.addf %159, %162 : vector<32x152xf32>
    %cst_148 = arith.constant 0.000000e+00 : f32
    %164 = vector.broadcast %cst_148 : f32 to vector<32x152xf32>
    %165 = arith.cmpf oge, %163, %164 : vector<32x152xf32>
    %cst_149 = arith.constant 1.000000e-01 : f32
    %166 = vector.broadcast %cst_149 : f32 to vector<32x152xf32>
    %167 = arith.mulf %166, %163 : vector<32x152xf32>
    %168 = arith.select %165, %163, %167 : vector<32x152xi1>, vector<32x152xf32>
    %cst_150 = arith.constant 0.000000e+00 : f32
    %169 = vector.shape_cast %13 : vector<1x152xi1> to vector<1x152xi1>
    %170 = vector.broadcast %169 : vector<1x152xi1> to vector<32x152xi1>
    %171 = vector.broadcast %cst_150 : f32 to vector<32x152xf32>
    %172 = arith.select %170, %168, %171 : vector<32x152xi1>, vector<32x152xf32>
    %173 = arith.truncf %172 : vector<32x152xf32> to vector<32x152xbf16>
    %c0_151 = arith.constant 0 : index
    %c5_152 = arith.constant 5 : index
    %174 = vector.load %arg10[%c0_151, %c5_152] : memref<32x162xbf16, #tpu.memory_space<vmem>>, vector<32x152xbf16>
    tpu.vector_store %arg10[%c0_151, %c5_152], %173 {strides = array<i32>} : memref<32x162xbf16, #tpu.memory_space<vmem>>, vector<32x152xbf16>,
    %c2_153 = arith.constant 2 : index
    %c0_154 = arith.constant 0 : index
    %c0_155 = arith.constant 0 : index
    %c0_156 = arith.constant 0 : index
    %175 = vector.load %arg7[%c2_153, %c0_154, %c0_155, %c0_156] : memref<3x3x32x32xbf16, #tpu.memory_space<vmem>>, vector<1x1x32x32xbf16>
    %176 = vector.shape_cast %175 : vector<1x1x32x32xbf16> to vector<32x32xbf16>
    %c0_157 = arith.constant 0 : index
    %c4_158 = arith.constant 4 : index
    %177 = vector.load %arg10[%c0_157, %c4_158] : memref<32x162xbf16, #tpu.memory_space<vmem>>, vector<32x152xbf16>
    %cst_159 = arith.constant dense<0.000000e+00> : vector<32x152xf32>
    %178 = tpu.matmul %176, %177, %cst_159 {dimension_numbers = #tpu.dot_dimension_numbers<[1], [0], [0], [1], [0, 0, 1, 1], [], []>} : vector<32x32xbf16>, vector<32x152xbf16>, vector<32x152xf32> -> vector<32x152xf32>
    %c2_160 = arith.constant 2 : index
    %c1_161 = arith.constant 1 : index
    %c0_162 = arith.constant 0 : index
    %c0_163 = arith.constant 0 : index
    %179 = vector.load %arg7[%c2_160, %c1_161, %c0_162, %c0_163] : memref<3x3x32x32xbf16, #tpu.memory_space<vmem>>, vector<1x1x32x32xbf16>
    %180 = vector.shape_cast %179 : vector<1x1x32x32xbf16> to vector<32x32xbf16>
    %c0_164 = arith.constant 0 : index
    %c5_165 = arith.constant 5 : index
    %181 = vector.load %arg10[%c0_164, %c5_165] : memref<32x162xbf16, #tpu.memory_space<vmem>>, vector<32x152xbf16>
    %cst_166 = arith.constant dense<0.000000e+00> : vector<32x152xf32>
    %182 = tpu.matmul %180, %181, %cst_166 {dimension_numbers = #tpu.dot_dimension_numbers<[1], [0], [0], [1], [0, 0, 1, 1], [], []>} : vector<32x32xbf16>, vector<32x152xbf16>, vector<32x152xf32> -> vector<32x152xf32>
    %183 = arith.addf %178, %182 : vector<32x152xf32>
    %c2_167 = arith.constant 2 : index
    %c2_168 = arith.constant 2 : index
    %c0_169 = arith.constant 0 : index
    %c0_170 = arith.constant 0 : index
    %184 = vector.load %arg7[%c2_167, %c2_168, %c0_169, %c0_170] : memref<3x3x32x32xbf16, #tpu.memory_space<vmem>>, vector<1x1x32x32xbf16>
    %185 = vector.shape_cast %184 : vector<1x1x32x32xbf16> to vector<32x32xbf16>
    %c0_171 = arith.constant 0 : index
    %c6_172 = arith.constant 6 : index
    %186 = vector.load %arg10[%c0_171, %c6_172] : memref<32x162xbf16, #tpu.memory_space<vmem>>, vector<32x152xbf16>
    %cst_173 = arith.constant dense<0.000000e+00> : vector<32x152xf32>
    %187 = tpu.matmul %185, %186, %cst_173 {dimension_numbers = #tpu.dot_dimension_numbers<[1], [0], [0], [1], [0, 0, 1, 1], [], []>} : vector<32x32xbf16>, vector<32x152xbf16>, vector<32x152xf32> -> vector<32x152xf32>
    %188 = arith.addf %183, %187 : vector<32x152xf32>
    %c2_174 = arith.constant 2 : index
    %c0_175 = arith.constant 0 : index
    %c0_176 = arith.constant 0 : index
    %189 = vector.load %arg8[%c2_174, %c0_175, %c0_176] : memref<3x32x1xf32, #tpu.memory_space<vmem>>, vector<1x32x1xf32>
    %190 = vector.shape_cast %189 : vector<1x32x1xf32> to vector<32x1xf32>
    %191 = vector.broadcast %190 : vector<32x1xf32> to vector<32x152xf32>
    %192 = arith.addf %188, %191 : vector<32x152xf32>
    %193 = arith.addf %192, %134 : vector<32x152xf32>
    %194 = vector.extract_strided_slice %193 {offsets = [0, 12], sizes = [32, 128], strides = [1, 1]} : vector<32x152xf32> to vector<32x128xf32>
    %c0_177 = arith.constant 0 : index
    %c0_178 = arith.constant 0 : index
    %c0_179 = arith.constant 0 : index
    %195 = vector.load %arg9[%c0_177, %c0_178, %c0_179] : memref<1x32x128xf32, #tpu.memory_space<vmem>>, vector<1x32x128xf32>
    %196 = vector.shape_cast %195 : vector<1x32x128xf32> to vector<32x128xf32>
    %197 = vector.shape_cast %194 : vector<32x128xf32> to vector<1x32x128xf32>
    tpu.vector_store %arg9[%c0_177, %c0_178, %c0_179], %197 {strides = array<i32>} : memref<1x32x128xf32, #tpu.memory_space<vmem>>, vector<1x32x128xf32>,
    return
  }
  func.func @transform_0(%arg0: i32, %arg1: i32) -> (i32, i32, i32) {
    %c1_i32 = arith.constant 1 : i32
    %0 = arith.addi %arg1, %c1_i32 : i32
    %c1_i32_0 = arith.constant 1 : i32
    %1 = arith.muli %0, %c1_i32_0 : i32
    %c1_i32_1 = arith.constant 1 : i32
    %2 = arith.subi %1, %c1_i32_1 : i32
    %c0_i32 = arith.constant 0 : i32
    %c0_i32_2 = arith.constant 0 : i32
    return %arg0, %c0_i32, %2 : i32, i32, i32
  }
  func.func @transform_1(%arg0: i32, %arg1: i32) -> (i32, i32, i32) {
    %c1_i32 = arith.constant 1 : i32
    %0 = arith.addi %arg1, %c1_i32 : i32
    %c0_i32 = arith.constant 0 : i32
    %c0_i32_0 = arith.constant 0 : i32
    return %arg0, %c0_i32, %0 : i32, i32, i32
  }
  func.func @transform_2(%arg0: i32, %arg1: i32) -> (i32, i32, i32) {
    %c2_i32 = arith.constant 2 : i32
    %0 = arith.addi %arg1, %c2_i32 : i32
    %c1_i32 = arith.constant 1 : i32
    %1 = arith.muli %0, %c1_i32 : i32
    %c0_i32 = arith.constant 0 : i32
    %c0_i32_0 = arith.constant 0 : i32
    return %arg0, %c0_i32, %1 : i32, i32, i32
  }
  func.func @transform_3(%arg0: i32, %arg1: i32) -> (i32, i32, i32, i32) {
    %c0_i32 = arith.constant 0 : i32
    %c0_i32_0 = arith.constant 0 : i32
    %c0_i32_1 = arith.constant 0 : i32
    %c0_i32_2 = arith.constant 0 : i32
    %c0_i32_3 = arith.constant 0 : i32
    return %c0_i32, %c0_i32_0, %c0_i32_1, %c0_i32_2 : i32, i32, i32, i32
  }
  func.func @transform_4(%arg0: i32, %arg1: i32) -> (i32, i32, i32) {
    %c0_i32 = arith.constant 0 : i32
    %c0_i32_0 = arith.constant 0 : i32
    %c0_i32_1 = arith.constant 0 : i32
    %c0_i32_2 = arith.constant 0 : i32
    return %c0_i32, %c0_i32_0, %c0_i32_1 : i32, i32, i32
  }
  func.func @transform_5(%arg0: i32, %arg1: i32) -> (i32, i32, i32, i32) {
    %c0_i32 = arith.constant 0 : i32
    %c0_i32_0 = arith.constant 0 : i32
    %c0_i32_1 = arith.constant 0 : i32
    %c0_i32_2 = arith.constant 0 : i32
    %c0_i32_3 = arith.constant 0 : i32
    return %c0_i32, %c0_i32_0, %c0_i32_1, %c0_i32_2 : i32, i32, i32, i32
  }
  func.func @transform_6(%arg0: i32, %arg1: i32) -> (i32, i32, i32) {
    %c0_i32 = arith.constant 0 : i32
    %c0_i32_0 = arith.constant 0 : i32
    %c0_i32_1 = arith.constant 0 : i32
    %c0_i32_2 = arith.constant 0 : i32
    return %c0_i32, %c0_i32_0, %c0_i32_1 : i32, i32, i32
  }
  func.func @transform_7(%arg0: i32, %arg1: i32) -> (i32, i32, i32) {
    %c0_i32 = arith.constant 0 : i32
    %c0_i32_0 = arith.constant 0 : i32
    return %arg0, %c0_i32, %arg1 : i32, i32, i32
  }
}

</mosaic_0001>

<llo_original>
// kernel: tpu_custom_call.1
$region0: #{tpu_custom_call.1}
  #allocation0 [shape = 'u32[]', space=smem, size = 0x4, offset = 0x4, fixed_abs, tag = 'smem constant byte address 0x4 - core index']
  #allocation1 [shape = 'u32[144,128]{1,0:T(1,128)}', space=vmem, size = 0x12000, scoped, tag = 'internal scratch']
  #allocation2 [shape = 'bf16[32,162]{1,0:T(16,128)(2,1)}', space=vmem, size = 0x4000, scoped, tag = 'scratch operand']
  %s0 = inlined_call_operand.hbm [shape: f32[2,32,512], index: 0, kind: input, shape index: {}]
  %s1 = inlined_call_operand.hbm [shape: f32[2,32,512], index: 1, kind: input, shape index: {}]
  %s2 = inlined_call_operand.hbm [shape: f32[2,32,512], index: 2, kind: input, shape index: {}]
  %s3 = inlined_call_operand.vmem [shape: bf16[3,3,32,32], index: 3, kind: input, shape index: {}]
  %s4 = inlined_call_operand.vmem [shape: f32[3,32,1], index: 4, kind: input, shape index: {}]
  %s5 = inlined_call_operand.hbm [shape: bf16[3,3,32,32], index: 5, kind: input, shape index: {}]
  %s6 = inlined_call_operand.vmem [shape: f32[3,32,1], index: 6, kind: input, shape index: {}]
  %s7 = inlined_call_operand.hbm [shape: f32[2,32,256], index: 7, kind: output, shape index: {}]
  %s8 = sld [smem:[#allocation0]]
  $region77: #{tpu_custom_call.1} parent=0
    _
  %s10 = ssub.s32 1, %s8
  %s11 = scalar_select 0, %s10, %s8
  $region1: #{tpu_custom_call.1} parent=0
    #allocation3 [shape = 'u8[32768]{0}', space=vmem, size = 0x8000, scoped, tag = 'input window, operand 0']
    #allocation4 [shape = 's32[2]{0}', space=sflag, size = 0x8, scoped, tag = 'scoped memory for tpu_custom_call.1']
    #allocation5 [shape = 's32[2]{0}', space=sflag, size = 0x8, scoped, tag = 'scoped memory for tpu_custom_call.1']
    #allocation6 [shape = 'u8[32768]{0}', space=vmem, size = 0x8000, scoped, tag = 'input window, operand 1']
    #allocation7 [shape = 's32[2]{0}', space=sflag, size = 0x8, scoped, tag = 'scoped memory for tpu_custom_call.1']
    #allocation8 [shape = 'u8[32768]{0}', space=vmem, size = 0x8000, scoped, tag = 'input window, operand 2']
    #allocation9 [shape = 'u8[73728]{0}', space=vmem, size = 0x12000, scoped, tag = 'input window, operand 5, single buffered']
    #allocation10 [shape = 's32[1]{0}', space=sflag, size = 0x4, scoped, tag = 'scoped memory for tpu_custom_call.1']
    #allocation11 [shape = 'u8[32768]{0}', space=vmem, size = 0x8000, scoped, tag = 'output window, operand 0']
    %12 = vsyncpa [#allocation4], 0
    %s13 = scalar_lea.sflag [#allocation4], 1
    %14 = vsyncpa %s13, 0
    %15 = vsyncpa [#allocation7], 0
    %s16 = scalar_lea.sflag [#allocation7], 1
    %17 = vsyncpa %s16, 0
    %18 = vsyncpa [#allocation10], 0
    %19 = vsyncpa [#allocation5], 0
    %s20 = scalar_lea.sflag [#allocation5], 1
    %21 = vsyncpa %s20, 0
    loop: start=0, step=1, limit=6
    $region2: #{tpu_custom_call.1} parent=1 // loop_pre_header
      _
    $region3: #{tpu_custom_call.1} parent=1 // loop_header
      %s23 = sphi 0, %s27
      %p24 = scmp.ge.s32.totalorder %s23, 6
      %s30 = sphi 0, %s42
      %s31 = sphi 0, %s38
      %s32 = sphi 0, %s30
      %s33 = sphi 0, %s31
      %s34 = sphi 0, %s32
      %s35 = sphi 0, %s33
      %s47 = sphi 0, %s49
      %s50 = sphi 0, %s47
      %s51 = sphi 0, %s50
      %s67 = sphi 0, %s51
      %s77 = sphi 0, %s79
      %s80 = sphi 0, %s77
      %s81 = sphi 0, %s80
      %s97 = sphi 0, %s81
      %s107 = sphi 0, %s109
      %s110 = sphi 0, %s107
      %s111 = sphi 0, %s110
      %s127 = sphi 0, %s111
      %s131 = sphi 0, %s131
      %s133 = sphi 0, %s131
      %s134 = sphi 0, %s133
      %s148 = sphi 0, %s134
      %s152 = sphi 0, %s152
      %s154 = sphi 0, %s152
      %s155 = sphi 0, %s154
      %s169 = sphi 0, %s155
      %s173 = sphi 0, %s173
      %s175 = sphi 0, %s173
      %s176 = sphi 0, %s175
      %s190 = sphi 0, %s176
      %s194 = sphi 0, %s194
      %s196 = sphi 0, %s194
      %s197 = sphi 0, %s196
      %s211 = sphi 0, %s197
      %s219 = sphi 0, %s221
      %s222 = sphi 0, %s219
      %s223 = sphi 0, %s222
      %s239 = sphi 0, %s223
    $region4: #{tpu_custom_call.1} parent=1 // loop_header_branch
      %26 = sbr.rel (%p24) target = $region8
    $region5: #{tpu_custom_call.1} parent=1 // loop_body
      %s28 = ssub.s32 %s23, 1
      %s29 = ssub.s32 %s23, 2
      %s36 = sadd.s32 1, %s31
      %p37 = scmp.ge.s32.totalorder %s36, 2
      %s38 = scalar_select %p37, 0, %s36
      %s39 = sadd.s32 1, %s30
      %s40 = scalar_select %p37, %s39, %s30
      %p41 = scmp.ge.s32.totalorder %s40, 2
      %s42 = scalar_select %p41, 0, %s40
      %s43 = ssub.s32 %s30, %s42
      %s44 = ssub.s32 %s31, %s38
      %s45 = sor.u32 %s43, %s44
      %p46 = scmp.eq.s32.totalorder %s45, 0
      %s48 = sadd.s32 %s47, 1
      %s49 = scalar_select %p46, %s47, %s48
      %p52 = pneg %p46
      %p53 = scmp.eq.s32.totalorder %s23, 3
      %p54 = por %p52, %p53
      %p55 = scmp.ne.s32.totalorder %s47, %s50
      %p56 = scmp.eq.s32.totalorder %s23, 0
      %p57 = por %p55, %p56
      %p58 = scmp.ne.s32.totalorder %s47, %s50
      %p59 = scmp.eq.s32.totalorder %s28, 3
      %p60 = por %p58, %p59
      %p61 = scmp.ne.s32.totalorder %s50, %s51
      %p62 = scmp.eq.s32.totalorder %s28, 0
      %p63 = por %p61, %p62
      %p64 = scmp.ne.s32.totalorder %s50, %s51
      %p65 = scmp.eq.s32.totalorder %s29, 3
      %p66 = por %p64, %p65
      %p68 = scmp.ne.s32.totalorder %s51, %s67
      %p69 = scmp.eq.s32.totalorder %s29, 0
      %p70 = por %p68, %p69
      %s71 = sadd.s32 %s31, 1
      %s72 = sadd.s32 %s38, 1
      %s73 = ssub.s32 %s30, %s42
      %s74 = ssub.s32 %s71, %s72
      %s75 = sor.u32 %s73, %s74
      %p76 = scmp.eq.s32.totalorder %s75, 0
      %s78 = sadd.s32 %s77, 1
      %s79 = scalar_select %p76, %s77, %s78
      %p82 = pneg %p76
      %p83 = scmp.eq.s32.totalorder %s23, 3
      %p84 = por %p82, %p83
      %p85 = scmp.ne.s32.totalorder %s77, %s80
      %p86 = scmp.eq.s32.totalorder %s23, 0
      %p87 = por %p85, %p86
      %p88 = scmp.ne.s32.totalorder %s77, %s80
      %p89 = scmp.eq.s32.totalorder %s28, 3
      %p90 = por %p88, %p89
      %p91 = scmp.ne.s32.totalorder %s80, %s81
      %p92 = scmp.eq.s32.totalorder %s28, 0
      %p93 = por %p91, %p92
      %p94 = scmp.ne.s32.totalorder %s80, %s81
      %p95 = scmp.eq.s32.totalorder %s29, 3
      %p96 = por %p94, %p95
      %p98 = scmp.ne.s32.totalorder %s81, %s97
      %p99 = scmp.eq.s32.totalorder %s29, 0
      %p100 = por %p98, %p99
      %s101 = sadd.s32 %s31, 2
      %s102 = sadd.s32 %s38, 2
      %s103 = ssub.s32 %s30, %s42
      %s104 = ssub.s32 %s101, %s102
      %s105 = sor.u32 %s103, %s104
      %p106 = scmp.eq.s32.totalorder %s105, 0
      %s108 = sadd.s32 %s107, 1
      %s109 = scalar_select %p106, %s107, %s108
      %p112 = pneg %p106
      %p113 = scmp.eq.s32.totalorder %s23, 3
      %p114 = por %p112, %p113
      %p115 = scmp.ne.s32.totalorder %s107, %s110
      %p116 = scmp.eq.s32.totalorder %s23, 0
      %p117 = por %p115, %p116
      %p118 = scmp.ne.s32.totalorder %s107, %s110
      %p119 = scmp.eq.s32.totalorder %s28, 3
      %p120 = por %p118, %p119
      %p121 = scmp.ne.s32.totalorder %s110, %s111
      %p122 = scmp.eq.s32.totalorder %s28, 0
      %p123 = por %p121, %p122
      %p124 = scmp.ne.s32.totalorder %s110, %s111
      %p125 = scmp.eq.s32.totalorder %s29, 3
      %p126 = por %p124, %p125
      %p128 = scmp.ne.s32.totalorder %s111, %s127
      %p129 = scmp.eq.s32.totalorder %s29, 0
      %p130 = por %p128, %p129
      %s132 = sadd.s32 %s131, 1
      %p135 = scmp.eq.s32.totalorder %s23, 3
      %p136 = scmp.ne.s32.totalorder %s131, %s133
      %p137 = scmp.eq.s32.totalorder %s23, 0
      %p138 = por %p136, %p137
      %p139 = scmp.ne.s32.totalorder %s131, %s133
      %p140 = scmp.eq.s32.totalorder %s28, 3
      %p141 = por %p139, %p140
      %p142 = scmp.ne.s32.totalorder %s133, %s134
      %p143 = scmp.eq.s32.totalorder %s28, 0
      %p144 = por %p142, %p143
      %p145 = scmp.ne.s32.totalorder %s133, %s134
      %p146 = scmp.eq.s32.totalorder %s29, 3
      %p147 = por %p145, %p146
      %p149 = scmp.ne.s32.totalorder %s134, %s148
      %p150 = scmp.eq.s32.totalorder %s29, 0
      %p151 = por %p149, %p150
      %s153 = sadd.s32 %s152, 1
      %p156 = scmp.eq.s32.totalorder %s23, 3
      %p157 = scmp.ne.s32.totalorder %s152, %s154
      %p158 = scmp.eq.s32.totalorder %s23, 0
      %p159 = por %p157, %p158
      %p160 = scmp.ne.s32.totalorder %s152, %s154
      %p161 = scmp.eq.s32.totalorder %s28, 3
      %p162 = por %p160, %p161
      %p163 = scmp.ne.s32.totalorder %s154, %s155
      %p164 = scmp.eq.s32.totalorder %s28, 0
      %p165 = por %p163, %p164
      %p166 = scmp.ne.s32.totalorder %s154, %s155
      %p167 = scmp.eq.s32.totalorder %s29, 3
      %p168 = por %p166, %p167
      %p170 = scmp.ne.s32.totalorder %s155, %s169
      %p171 = scmp.eq.s32.totalorder %s29, 0
      %p172 = por %p170, %p171
      %s174 = sadd.s32 %s173, 1
      %p177 = scmp.eq.s32.totalorder %s23, 3
      %p178 = scmp.ne.s32.totalorder %s173, %s175
      %p179 = scmp.eq.s32.totalorder %s23, 0
      %p180 = por %p178, %p179
      %p181 = scmp.ne.s32.totalorder %s173, %s175
      %p182 = scmp.eq.s32.totalorder %s28, 3
      %p183 = por %p181, %p182
      %p184 = scmp.ne.s32.totalorder %s175, %s176
      %p185 = scmp.eq.s32.totalorder %s28, 0
      %p186 = por %p184, %p185
      %p187 = scmp.ne.s32.totalorder %s175, %s176
      %p188 = scmp.eq.s32.totalorder %s29, 3
      %p189 = por %p187, %p188
      %p191 = scmp.ne.s32.totalorder %s176, %s190
      %p192 = scmp.eq.s32.totalorder %s29, 0
      %p193 = por %p191, %p192
      %s195 = sadd.s32 %s194, 1
      %p198 = scmp.eq.s32.totalorder %s23, 3
      %p199 = scmp.ne.s32.totalorder %s194, %s196
      %p200 = scmp.eq.s32.totalorder %s23, 0
      %p201 = por %p199, %p200
      %p202 = scmp.ne.s32.totalorder %s194, %s196
      %p203 = scmp.eq.s32.totalorder %s28, 3
      %p204 = por %p202, %p203
      %p205 = scmp.ne.s32.totalorder %s196, %s197
      %p206 = scmp.eq.s32.totalorder %s28, 0
      %p207 = por %p205, %p206
      %p208 = scmp.ne.s32.totalorder %s196, %s197
      %p209 = scmp.eq.s32.totalorder %s29, 3
      %p210 = por %p208, %p209
      %p212 = scmp.ne.s32.totalorder %s197, %s211
      %p213 = scmp.eq.s32.totalorder %s29, 0
      %p214 = por %p212, %p213
      %s215 = ssub.s32 %s30, %s42
      %s216 = ssub.s32 %s31, %s38
      %s217 = sor.u32 %s215, %s216
      %p218 = scmp.eq.s32.totalorder %s217, 0
      %s220 = sadd.s32 %s219, 1
      %s221 = scalar_select %p218, %s219, %s220
      %p224 = pneg %p218
      %p225 = scmp.eq.s32.totalorder %s23, 3
      %p226 = por %p224, %p225
      %p227 = scmp.ne.s32.totalorder %s219, %s222
      %p228 = scmp.eq.s32.totalorder %s23, 0
      %p229 = por %p227, %p228
      %p230 = scmp.ne.s32.totalorder %s219, %s222
      %p231 = scmp.eq.s32.totalorder %s28, 3
      %p232 = por %p230, %p231
      %p233 = scmp.ne.s32.totalorder %s222, %s223
      %p234 = scmp.eq.s32.totalorder %s28, 0
      %p235 = por %p233, %p234
      %p236 = scmp.ne.s32.totalorder %s222, %s223
      %p237 = scmp.eq.s32.totalorder %s29, 3
      %p238 = por %p236, %p237
      %p240 = scmp.ne.s32.totalorder %s223, %s239
      %p241 = scmp.eq.s32.totalorder %s29, 0
      %p242 = por %p240, %p241
      %p243 = scmp.le.s32.totalorder 1, %s23
      %p244 = scmp.lt.s32.totalorder %s23, 5
      %p245 = pnand %p243, %p244
      %p246 = pneg %p245
      // Predicated region
      $region9: #{tpu_custom_call.1} parent=5 // pred_check
        _
      $region10: #{tpu_custom_call.1} parent=5 // pred_check_branch
        %248 = sbr.rel (%p245) target = $region12
      $region11: #{tpu_custom_call.1} parent=5 // pred_region
        %s249 = ssub.s32 %s23, 1
        // Predicated region
        $region13: #{tpu_custom_call.1} parent=11 // pred_check
          %p250 = pneg %p144
        $region14: #{tpu_custom_call.1} parent=11 // pred_check_branch
          %252 = sbr.rel (%p250) target = $region16
        $region15: #{tpu_custom_call.1} parent=11 // pred_region
          _
        $region16: #{tpu_custom_call.1} parent=11 // pred_fallthru
          _
        // Predicated region
        $region17: #{tpu_custom_call.1} parent=11 // pred_check
          %p253 = pneg %p165
        $region18: #{tpu_custom_call.1} parent=11 // pred_check_branch
          %255 = sbr.rel (%p253) target = $region20
        $region19: #{tpu_custom_call.1} parent=11 // pred_region
          _
        $region20: #{tpu_custom_call.1} parent=11 // pred_fallthru
          _
        // Predicated region
        $region21: #{tpu_custom_call.1} parent=11 // pred_check
          %p256 = pneg %p186
        $region22: #{tpu_custom_call.1} parent=11 // pred_check_branch
          %258 = sbr.rel (%p256) target = $region24
        $region23: #{tpu_custom_call.1} parent=11 // pred_region
          %s260 = ssub.s32 2304, 2304
          %261 = vsyncadd [#allocation10], %s260
          %s262 = sshll.u32 [#allocation9], 4
          %s263 = int_to_ptr.vmem [resolvable:$true] %s262
          %268 = dma.hbm_to_vmem [thread:$0]  %s5, 2304, %s263, [#allocation10], 64, 64, 4
        $region24: #{tpu_custom_call.1} parent=11 // pred_fallthru
          _
        // Predicated region
        $region25: #{tpu_custom_call.1} parent=11 // pred_check
          %p269 = pneg %p207
        $region26: #{tpu_custom_call.1} parent=11 // pred_check_branch
          %271 = sbr.rel (%p269) target = $region28
        $region27: #{tpu_custom_call.1} parent=11 // pred_region
          _
        $region28: #{tpu_custom_call.1} parent=11 // pred_fallthru
          _
      $region12: #{tpu_custom_call.1} parent=5 // pred_fallthru
        _
      %p272 = scmp.lt.s32.totalorder %s23, 4
      // Predicated region
      $region29: #{tpu_custom_call.1} parent=5 // pred_check
        %p273 = pneg %p272
      $region30: #{tpu_custom_call.1} parent=5 // pred_check_branch
        %275 = sbr.rel (%p273) target = $region32
      $region31: #{tpu_custom_call.1} parent=5 // pred_region
        // Predicated region
        $region33: #{tpu_custom_call.1} parent=31 // pred_check
          %p276 = pneg %p57
        $region34: #{tpu_custom_call.1} parent=31 // pred_check_branch
          %278 = sbr.rel (%p276) target = $region36
        $region35: #{tpu_custom_call.1} parent=31 // pred_region
          %s279 = sand.u32 %s47, 1
          %s280 = scalar_lea.sflag [#allocation4], %s279
          %s281 = sand.u32 %s47, 1
          %s282 = smul.addr %s281, 32
          %s283 = scalar_lea.vmem [#allocation3], %s282
          %s285 = ssub.s32 512, 512
          %286 = vsyncadd %s280, %s285
          %s287 = smul.addr %s30, 16
          %s288 = sadd.s32 %s31, %s287
          %s289 = smul.addr %s288, 128
          %s290 = scalar_lea.hbm %s0, %s289
          %s291 = sshll.u32 %s283, 4
          %s292 = int_to_ptr.vmem [resolvable:$true] %s291
          %297 = dma.hbm_to_vmem [thread:$0]  %s290, 512, %s292, %s280, 512, 128, 8
        $region36: #{tpu_custom_call.1} parent=31 // pred_fallthru
          _
        // Predicated region
        $region37: #{tpu_custom_call.1} parent=31 // pred_check
          %p298 = pneg %p87
        $region38: #{tpu_custom_call.1} parent=31 // pred_check_branch
          %300 = sbr.rel (%p298) target = $region40
        $region39: #{tpu_custom_call.1} parent=31 // pred_region
          %s301 = sand.u32 %s23, 1
          %s302 = scalar_lea.sflag [#allocation7], %s301
          %s303 = sand.u32 %s77, 1
          %s304 = smul.addr %s303, 32
          %s305 = scalar_lea.vmem [#allocation6], %s304
          %s306 = sadd.s32 %s31, 1
          %s308 = ssub.s32 512, 512
          %309 = vsyncadd %s302, %s308
          %s310 = smul.addr %s30, 16
          %s311 = sadd.s32 %s306, %s310
          %s312 = smul.addr %s311, 128
          %s313 = scalar_lea.hbm %s1, %s312
          %s314 = sshll.u32 %s305, 4
          %s315 = int_to_ptr.vmem [resolvable:$true] %s314
          %320 = dma.hbm_to_vmem [thread:$0]  %s313, 512, %s315, %s302, 512, 128, 8
        $region40: #{tpu_custom_call.1} parent=31 // pred_fallthru
          _
        // Predicated region
        $region41: #{tpu_custom_call.1} parent=31 // pred_check
          %p321 = pneg %p117
        $region42: #{tpu_custom_call.1} parent=31 // pred_check_branch
          %323 = sbr.rel (%p321) target = $region44
        $region43: #{tpu_custom_call.1} parent=31 // pred_region
          %s324 = sand.u32 %s23, 1
          %s325 = scalar_lea.sflag [#allocation7], %s324
          %s326 = sand.u32 %s107, 1
          %s327 = smul.addr %s326, 32
          %s328 = scalar_lea.vmem [#allocation8], %s327
          %s329 = sadd.s32 %s31, 2
          %s331 = ssub.s32 512, 512
          %332 = vsyncadd %s325, %s331
          %s333 = smul.addr %s30, 16
          %s334 = sadd.s32 %s329, %s333
          %s335 = smul.addr %s334, 128
          %s336 = scalar_lea.hbm %s2, %s335
          %s337 = sshll.u32 %s328, 4
          %s338 = int_to_ptr.vmem [resolvable:$true] %s337
          %343 = dma.hbm_to_vmem [thread:$0]  %s336, 512, %s338, %s325, 512, 128, 8
        $region44: #{tpu_custom_call.1} parent=31 // pred_fallthru
          _
      $region32: #{tpu_custom_call.1} parent=5 // pred_fallthru
        _
      %p344 = scmp.le.s32.totalorder 1, %s23
      %p345 = scmp.lt.s32.totalorder %s23, 5
      %p346 = pnand %p344, %p345
      %p347 = pneg %p346
      // Predicated region
      $region45: #{tpu_custom_call.1} parent=5 // pred_check
        _
      $region46: #{tpu_custom_call.1} parent=5 // pred_check_branch
        %349 = sbr.rel (%p346) target = $region48
      $region47: #{tpu_custom_call.1} parent=5 // pred_region
        %s350 = ssub.s32 %s23, 1
        %s351 = sand.u32 %s50, 1
        %s352 = scalar_lea.sflag [#allocation4], %s351
        %s353 = sand.u32 %s50, 1
        %s354 = smul.addr %s353, 32
        %s355 = scalar_lea.vmem [#allocation3], %s354
        // Predicated region
        $region49: #{tpu_custom_call.1} parent=47 // pred_check
          %p356 = pneg %p63
        $region50: #{tpu_custom_call.1} parent=47 // pred_check_branch
          %358 = sbr.rel (%p356) target = $region52
        $region51: #{tpu_custom_call.1} parent=47 // pred_region
          %359 = dma.done %s352, 512
        $region52: #{tpu_custom_call.1} parent=47 // pred_fallthru
          _
        %s360 = sand.u32 %s28, 1
        %s361 = scalar_lea.sflag [#allocation7], %s360
        %s362 = sand.u32 %s80, 1
        %s363 = smul.addr %s362, 32
        %s364 = scalar_lea.vmem [#allocation6], %s363
        // Predicated region
        $region53: #{tpu_custom_call.1} parent=47 // pred_check
          %p365 = pneg %p93
        $region54: #{tpu_custom_call.1} parent=47 // pred_check_branch
          %367 = sbr.rel (%p365) target = $region56
        $region55: #{tpu_custom_call.1} parent=47 // pred_region
          %368 = dma.done %s361, 512
        $region56: #{tpu_custom_call.1} parent=47 // pred_fallthru
          _
        %s369 = sand.u32 %s28, 1
        %s370 = scalar_lea.sflag [#allocation7], %s369
        %s371 = sand.u32 %s110, 1
        %s372 = smul.addr %s371, 32
        %s373 = scalar_lea.vmem [#allocation8], %s372
        // Predicated region
        $region57: #{tpu_custom_call.1} parent=47 // pred_check
          %p374 = pneg %p123
        $region58: #{tpu_custom_call.1} parent=47 // pred_check_branch
          %376 = sbr.rel (%p374) target = $region60
        $region59: #{tpu_custom_call.1} parent=47 // pred_region
          %377 = dma.done %s370, 512
        $region60: #{tpu_custom_call.1} parent=47 // pred_fallthru
          _
        // Predicated region
        $region61: #{tpu_custom_call.1} parent=47 // pred_check
          %p378 = pneg %p186
        $region62: #{tpu_custom_call.1} parent=47 // pred_check_branch
          %380 = sbr.rel (%p378) target = $region64
        $region63: #{tpu_custom_call.1} parent=47 // pred_region
          %381 = dma.done [#allocation10], 2304
        $region64: #{tpu_custom_call.1} parent=47 // pred_fallthru
          _
        %s382 = sand.u32 %s50, 1
        %s383 = scalar_lea.sflag [#allocation4], %s382
        %s384 = sand.u32 %s50, 1
        %s385 = smul.addr %s384, 32
        %s386 = scalar_lea.vmem [#allocation3], %s385
        %p387 = pneg %p63
        %p388 = pneg %p60
        %s389 = sand.u32 %s28, 1
        %s390 = scalar_lea.sflag [#allocation7], %s389
        %s391 = sand.u32 %s80, 1
        %s392 = smul.addr %s391, 32
        %s393 = scalar_lea.vmem [#allocation6], %s392
        %p394 = pneg %p93
        %p395 = pneg %p90
        %s396 = sand.u32 %s28, 1
        %s397 = scalar_lea.sflag [#allocation7], %s396
        %s398 = sand.u32 %s110, 1
        %s399 = smul.addr %s398, 32
        %s400 = scalar_lea.vmem [#allocation8], %s399
        %p401 = pneg %p123
        %p402 = pneg %p120
        %p403 = pneg %p144
        %p404 = pneg %p141
        %p405 = pneg %p165
        %p406 = pneg %p162
        %p407 = pneg %p186
        %p408 = pneg %p183
        %p409 = pneg %p207
        %p410 = pneg %p204
        %p411 = pneg %p235
        %p412 = pneg %p232
        %s413 = sand.u32 %s222, 1
        %s414 = scalar_lea.sflag [#allocation5], %s413
        %s415 = sand.u32 %s222, 1
        %s416 = smul.addr %s415, 32
        %s417 = scalar_lea.vmem [#allocation11], %s416
        %s418 = sadd.s32 %s33, 1
        %s419 = sadd.s32 %s33, 2
        %vm421 = vcmask 39936
        %422 = vst.msk [vmem:[#allocation2] sm:$0xff] %vm421, 0
        %423 = vst.msk [vmem:[#allocation2 + $0x10] sm:$0xff] %vm421, 0
        %vm424 = vcmask 277736
        %425 = vst.msk [vmem:[#allocation2 + $0x8] sm:$0xff] %vm424, 0
        %426 = vst.msk [vmem:[#allocation2 + $0x18] sm:$0xff] %vm424, 0
        %v427 = vlaneseq
        %v428 = vand.u32 %v427, 127
        %v429 = vadd.s32 %v428, 128
        %s430 = smul.u32 %s33, 128
        %s431 = ssub.s32 %s430, 12
        %v432 = vstv %s431
        %v433 = vadd.s32 %v428, %v432
        %v434 = vadd.s32 %v429, %v432
        %vm435 = vcmp.ge.s32.totalorder %v433, 0
        %vm436 = vcmp.ge.s32.totalorder %v434, 0
        %vm437 = vcmp.lt.s32.totalorder %v433, 250
        %vm438 = vcmp.lt.s32.totalorder %v434, 250
        %vm439 = vmand %vm435, %vm437
        %vm440 = vmand %vm436, %vm438
        %v441 = vld [vmem:[%s355] sm:$0xff]
        %v442 = vld [vmem:[%s355 + $0x8] sm:$0xff]
        %v443 = vld [vmem:[%s355 + $0x10] sm:$0xff]
        %v444 = vld [vmem:[%s355 + $0x18] sm:$0xff]
        %v445 = vld [vmem:[%s364] sm:$0xff]
        %v446 = vld [vmem:[%s364 + $0x8] sm:$0xff]
        %v447 = vld [vmem:[%s364 + $0x10] sm:$0xff]
        %v448 = vld [vmem:[%s364 + $0x18] sm:$0xff]
        %v449 = vld [vmem:[%s373] sm:$0xff]
        %v450 = vld [vmem:[%s373 + $0x8] sm:$0xff]
        %v451 = vld [vmem:[%s373 + $0x10] sm:$0xff]
        %v452 = vld [vmem:[%s373 + $0x18] sm:$0xff]
        %457 = vrot.lane.b32.xlu0 %v441, 12
        %v458 = vpop.permute.xlu0 %457
        %459 = vrot.lane.b32.xlu0 %v442, 12
        %v460 = vpop.permute.xlu0 %459
        %461 = vrot.lane.b32.xlu0 %v443, 12
        %v462 = vpop.permute.xlu0 %461
        %463 = vrot.lane.b32.xlu0 %v444, 12
        %v464 = vpop.permute.xlu0 %463
        %473 = vrot.lane.b32.xlu0 %v445, 12
        %v474 = vpop.permute.xlu0 %473
        %475 = vrot.lane.b32.xlu0 %v446, 12
        %v476 = vpop.permute.xlu0 %475
        %477 = vrot.lane.b32.xlu0 %v447, 12
        %v478 = vpop.permute.xlu0 %477
        %479 = vrot.lane.b32.xlu0 %v448, 12
        %v480 = vpop.permute.xlu0 %479
        %489 = vrot.lane.b32.xlu0 %v449, 12
        %v490 = vpop.permute.xlu0 %489
        %491 = vrot.lane.b32.xlu0 %v450, 12
        %v492 = vpop.permute.xlu0 %491
        %493 = vrot.lane.b32.xlu0 %v451, 12
        %v494 = vpop.permute.xlu0 %493
        %495 = vrot.lane.b32.xlu0 %v452, 12
        %v496 = vpop.permute.xlu0 %495
        %vm501 = vcmask 97280
        %v502 = vsel %vm501, %v458, %v474
        %v503 = vsel %vm501, %v460, %v476
        %v504 = vsel %vm501, %v462, %v478
        %v505 = vsel %vm501, %v464, %v480
        %v506 = vsel %vm501, %v474, %v490
        %v507 = vsel %vm501, %v476, %v492
        %v508 = vsel %vm501, %v478, %v494
        %v509 = vsel %vm501, %v480, %v496
        %vm510 = vcmp.ge.f32.partialorder %v502, 0.0
        %vm511 = vcmp.ge.f32.partialorder %v506, 0.0
        %vm512 = vcmp.ge.f32.partialorder %v503, 0.0
        %vm513 = vcmp.ge.f32.partialorder %v507, 0.0
        %vm514 = vcmp.ge.f32.partialorder %v504, 0.0
        %vm515 = vcmp.ge.f32.partialorder %v508, 0.0
        %vm516 = vcmp.ge.f32.partialorder %v505, 0.0
        %vm517 = vcmp.ge.f32.partialorder %v509, 0.0
        %v518 = vmul.f32 %v502, 0.1
        %v519 = vmul.f32 %v506, 0.1
        %v520 = vmul.f32 %v503, 0.1
        %v521 = vmul.f32 %v507, 0.1
        %v522 = vmul.f32 %v504, 0.1
        %v523 = vmul.f32 %v508, 0.1
        %v524 = vmul.f32 %v505, 0.1
        %v525 = vmul.f32 %v509, 0.1
        %v526 = vsel %vm510, %v502, %v518
        %v527 = vsel %vm511, %v506, %v519
        %v528 = vsel %vm512, %v503, %v520
        %v529 = vsel %vm513, %v507, %v521
        %v530 = vsel %vm514, %v504, %v522
        %v531 = vsel %vm515, %v508, %v523
        %v532 = vsel %vm516, %v505, %v524
        %v533 = vsel %vm517, %v509, %v525
        %v534 = vpack.c.bf16 %v528, %v526
        %v535 = vpack.c.bf16 %v529, %v527
        %v536 = vpack.c.bf16 %v532, %v530
        %v537 = vpack.c.bf16 %v533, %v531
        %542 = vrot.lane.b32.xlu0 %v534, 5
        %v543 = vpop.permute.xlu0 %542
        %544 = vrot.lane.b32.xlu0 %v535, 5
        %v545 = vpop.permute.xlu0 %544
        %546 = vrot.lane.b32.xlu0 %v536, 5
        %v547 = vpop.permute.xlu0 %546
        %548 = vrot.lane.b32.xlu0 %v537, 5
        %v549 = vpop.permute.xlu0 %548
        %vm550 = vcmask 39936
        %v551 = vsel %vm550, %v543, %v545
        %v552 = vsel %vm550, %v547, %v549
        %vm557 = vcmask 1047592
        %558 = vst.msk [vmem:[#allocation2] sm:$0xff] %vm557, %v543
        %vm559 = vcmask 236544
        %560 = vst.msk [vmem:[#allocation2 + $0x8] sm:$0xff] %vm559, %v551
        %561 = vst.msk [vmem:[#allocation2 + $0x10] sm:$0xff] %vm557, %v547
        %562 = vst.msk [vmem:[#allocation2 + $0x18] sm:$0xff] %vm559, %v552
        %v563 = vld [vmem:[%s3] sm:$0xf]
        %v564 = vld [vmem:[%s3 + $0x4] sm:$0xf]
        %v565 = vld [vmem:[%s3 + $0x8] sm:$0xf]
        %v566 = vld [vmem:[%s3 + $0xc] sm:$0xf]
        %v567 = vld [vmem:[#allocation2] sm:$0xff]
        %v568 = vld [vmem:[#allocation2 + $0x8] sm:$0xff]
        %v569 = vld [vmem:[#allocation2 + $0x10] sm:$0xff]
        %v570 = vld [vmem:[#allocation2 + $0x18] sm:$0xff]
        %s571 = scalar_lea.vmem %s3, 16
        %v572 = vld [vmem:[%s571] sm:$0xf]
        %v573 = vld [vmem:[%s571 + $0x4] sm:$0xf]
        %v574 = vld [vmem:[%s571 + $0x8] sm:$0xf]
        %v575 = vld [vmem:[%s571 + $0xc] sm:$0xf]
        %v580 = vunpack.c.l.b16 %v572
        %v581 = vunpack.c.l.b16 %v573
        %v582 = vunpack.c.l.b16 %v574
        %v583 = vunpack.c.l.b16 %v575
        %v584 = vpack.c.b16 %v581, %v580
        %v585 = vpack.c.b16 %v583, %v582
        %590 = vrot.lane.b32.xlu0 %v567, 123
        %v591 = vpop.permute.xlu0 %590
        %592 = vrot.lane.b32.xlu0 %v568, 123
        %v593 = vpop.permute.xlu0 %592
        %594 = vrot.lane.b32.xlu0 %v569, 123
        %v595 = vpop.permute.xlu0 %594
        %596 = vrot.lane.b32.xlu0 %v570, 123
        %v597 = vpop.permute.xlu0 %596
        %vm598 = vcmask 1006592
        %v599 = vsel %vm598, %v591, %v593
        %v600 = vsel %vm598, %v595, %v597
        %vm605 = vcmask 261120
        %v607 = vsel %vm605, %v584, 0
        %v610 = vsel %vm605, %v585, 0
        %612 = vmatprep.subr.bf16.mxu0 %v593
        %613 = vmatpush1.bf16.msra.mxu0 %v599
        %614 = vmatprep.subr.bf16.mxu0 %v597
        %615 = vmatpush1.bf16.msra.mxu0 %v600
        %616 = vmatprep.subr.bf16.mxu0 0
        %617 = vmatpush1.bf16.msra.mxu0 0
        %618 = vmatprep.subr.bf16.mxu0 0
        %619 = vmatpush1.bf16.msra.mxu0 0
        %620 = vmatprep.subr.bf16.mxu0 0
        %621 = vmatpush1.bf16.msra.mxu0 0
        %622 = vmatprep.subr.bf16.mxu0 0
        %623 = vmatpush1.bf16.msra.mxu0 0
        %624 = vmatprep.subr.bf16.mxu0 0
        %625 = vmatpush1.bf16.msra.mxu0 0
        %626 = vmatprep.subr.bf16.mxu0 0
        %627 = vmatpush1.bf16.msra.mxu0 0
        %628 = vmatprep.subr.bf16.mxu0 0
        %629 = vmatpush1.bf16.msra.mxu0 0
        %630 = vmatprep.subr.bf16.mxu0 0
        %631 = vmatpush1.bf16.msra.mxu0 0
        %632 = vmatprep.subr.bf16.mxu0 0
        %633 = vmatpush1.bf16.msra.mxu0 0
        %634 = vmatprep.subr.bf16.mxu0 0
        %635 = vmatpush1.bf16.msra.mxu0 0
        %636 = vmatprep.subr.bf16.mxu0 0
        %637 = vmatpush1.bf16.msra.mxu0 0
        %638 = vmatprep.subr.bf16.mxu0 0
        %639 = vmatpush1.bf16.msra.mxu0 0
        %640 = vmatprep.subr.bf16.mxu0 0
        %641 = vmatpush1.bf16.msra.mxu0 0
        %642 = vmatprep.subr.bf16.mxu0 0
        %643 = vmatpush1.bf16.msra.mxu0 0
        %644 = vmatprep.mubr.bf16.mxu0 0
        %645 = vmatmul.mubr.bf16.gmra.mrb[0].mxu0 %v607
        %v646 = vpop.f32.mrb[0].mxu0
        %v647 = vadd.f32 0.0, %v646
        %v648 = vpop.f32.mrb[0].mxu0
        %v649 = vadd.f32 0.0, %v648
        %v650 = vpop.f32.mrb[0].mxu0
        %v651 = vadd.f32 0.0, %v650
        %v652 = vpop.f32.mrb[0].mxu0
        %v653 = vadd.f32 0.0, %v652
        %654 = vmatprep.mubr.bf16.mxu0 0
        %655 = vmatmul.mubr.bf16.gmra.mrb[0].mxu0 %v610
        %v656 = vpop.f32.mrb[0].mxu0
        %v657 = vadd.f32 0.0, %v656
        %v658 = vpop.f32.mrb[0].mxu0
        %v659 = vadd.f32 0.0, %v658
        %v660 = vpop.f32.mrb[0].mxu0
        %v661 = vadd.f32 0.0, %v660
        %v662 = vpop.f32.mrb[0].mxu0
        %v663 = vadd.f32 0.0, %v662
        %664 = vdwg.mxu0
        %v669 = vunpack.c.l.b16 %v563
        %v670 = vunpack.c.l.b16 %v564
        %v671 = vunpack.c.l.b16 %v565
        %v672 = vunpack.c.l.b16 %v566
        %v673 = vpack.c.b16 %v670, %v669
        %v674 = vpack.c.b16 %v672, %v671
        %675 = vrot.lane.b32.xlu0 %v567, 124
        %v676 = vpop.permute.xlu0 %675
        %677 = vrot.lane.b32.xlu0 %v568, 124
        %v678 = vpop.permute.xlu0 %677
        %679 = vrot.lane.b32.xlu0 %v569, 124
        %v680 = vpop.permute.xlu0 %679
        %681 = vrot.lane.b32.xlu0 %v570, 124
        %v682 = vpop.permute.xlu0 %681
        %vm683 = vcmask 1014784
        %v684 = vsel %vm683, %v676, %v678
        %v685 = vsel %vm683, %v680, %v682
        %v691 = vsel %vm605, %v673, 0
        %v694 = vsel %vm605, %v674, 0
        %696 = vmatprep.subr.bf16.mxu0 %v678
        %697 = vmatpush1.bf16.msra.mxu0 %v684
        %698 = vmatprep.subr.bf16.mxu0 %v682
        %699 = vmatpush1.bf16.msra.mxu0 %v685
        %700 = vmatprep.subr.bf16.mxu0 0
        %701 = vmatpush1.bf16.msra.mxu0 0
        %702 = vmatprep.subr.bf16.mxu0 0
        %703 = vmatpush1.bf16.msra.mxu0 0
        %704 = vmatprep.subr.bf16.mxu0 0
        %705 = vmatpush1.bf16.msra.mxu0 0
        %706 = vmatprep.subr.bf16.mxu0 0
        %707 = vmatpush1.bf16.msra.mxu0 0
        %708 = vmatprep.subr.bf16.mxu0 0
        %709 = vmatpush1.bf16.msra.mxu0 0
        %710 = vmatprep.subr.bf16.mxu0 0
        %711 = vmatpush1.bf16.msra.mxu0 0
        %712 = vmatprep.subr.bf16.mxu0 0
        %713 = vmatpush1.bf16.msra.mxu0 0
        %714 = vmatprep.subr.bf16.mxu0 0
        %715 = vmatpush1.bf16.msra.mxu0 0
        %716 = vmatprep.subr.bf16.mxu0 0
        %717 = vmatpush1.bf16.msra.mxu0 0
        %718 = vmatprep.subr.bf16.mxu0 0
        %719 = vmatpush1.bf16.msra.mxu0 0
        %720 = vmatprep.subr.bf16.mxu0 0
        %721 = vmatpush1.bf16.msra.mxu0 0
        %722 = vmatprep.subr.bf16.mxu0 0
        %723 = vmatpush1.bf16.msra.mxu0 0
        %724 = vmatprep.subr.bf16.mxu0 0
        %725 = vmatpush1.bf16.msra.mxu0 0
        %726 = vmatprep.subr.bf16.mxu0 0
        %727 = vmatpush1.bf16.msra.mxu0 0
        %728 = vmatprep.mubr.bf16.mxu0 0
        %729 = vmatmul.mubr.bf16.gmra.mrb[0].mxu0 %v691
        %v730 = vpop.f32.mrb[0].mxu0
        %v731 = vadd.f32 %v647, %v730
        %v732 = vpop.f32.mrb[0].mxu0
        %v733 = vadd.f32 %v649, %v732
        %v734 = vpop.f32.mrb[0].mxu0
        %v735 = vadd.f32 %v651, %v734
        %v736 = vpop.f32.mrb[0].mxu0
        %v737 = vadd.f32 %v653, %v736
        %738 = vmatprep.mubr.bf16.mxu0 0
        %739 = vmatmul.mubr.bf16.gmra.mrb[0].mxu0 %v694
        %v740 = vpop.f32.mrb[0].mxu0
        %v741 = vadd.f32 %v657, %v740
        %v742 = vpop.f32.mrb[0].mxu0
        %v743 = vadd.f32 %v659, %v742
        %v744 = vpop.f32.mrb[0].mxu0
        %v745 = vadd.f32 %v661, %v744
        %v746 = vpop.f32.mrb[0].mxu0
        %v747 = vadd.f32 %v663, %v746
        %748 = vdwg.mxu0
        %s749 = scalar_lea.vmem %s3, 32
        %v750 = vld [vmem:[%s749] sm:$0xf]
        %v751 = vld [vmem:[%s749 + $0x4] sm:$0xf]
        %v752 = vld [vmem:[%s749 + $0x8] sm:$0xf]
        %v753 = vld [vmem:[%s749 + $0xc] sm:$0xf]
        %v758 = vunpack.c.l.b16 %v750
        %v759 = vunpack.c.l.b16 %v751
        %v760 = vunpack.c.l.b16 %v752
        %v761 = vunpack.c.l.b16 %v753
        %v762 = vpack.c.b16 %v759, %v758
        %v763 = vpack.c.b16 %v761, %v760
        %764 = vrot.lane.b32.xlu0 %v567, 122
        %v765 = vpop.permute.xlu0 %764
        %766 = vrot.lane.b32.xlu0 %v568, 122
        %v767 = vpop.permute.xlu0 %766
        %768 = vrot.lane.b32.xlu0 %v569, 122
        %v769 = vpop.permute.xlu0 %768
        %770 = vrot.lane.b32.xlu0 %v570, 122
        %v771 = vpop.permute.xlu0 %770
        %vm772 = vcmask 998400
        %v773 = vsel %vm772, %v765, %v767
        %v774 = vsel %vm772, %v769, %v771
        %v780 = vsel %vm605, %v762, 0
        %v783 = vsel %vm605, %v763, 0
        %785 = vmatprep.subr.bf16.mxu0 %v767
        %786 = vmatpush1.bf16.msra.mxu0 %v773
        %787 = vmatprep.subr.bf16.mxu0 %v771
        %788 = vmatpush1.bf16.msra.mxu0 %v774
        %789 = vmatprep.subr.bf16.mxu0 0
        %790 = vmatpush1.bf16.msra.mxu0 0
        %791 = vmatprep.subr.bf16.mxu0 0
        %792 = vmatpush1.bf16.msra.mxu0 0
        %793 = vmatprep.subr.bf16.mxu0 0
        %794 = vmatpush1.bf16.msra.mxu0 0
        %795 = vmatprep.subr.bf16.mxu0 0
        %796 = vmatpush1.bf16.msra.mxu0 0
        %797 = vmatprep.subr.bf16.mxu0 0
        %798 = vmatpush1.bf16.msra.mxu0 0
        %799 = vmatprep.subr.bf16.mxu0 0
        %800 = vmatpush1.bf16.msra.mxu0 0
        %801 = vmatprep.subr.bf16.mxu0 0
        %802 = vmatpush1.bf16.msra.mxu0 0
        %803 = vmatprep.subr.bf16.mxu0 0
        %804 = vmatpush1.bf16.msra.mxu0 0
        %805 = vmatprep.subr.bf16.mxu0 0
        %806 = vmatpush1.bf16.msra.mxu0 0
        %807 = vmatprep.subr.bf16.mxu0 0
        %808 = vmatpush1.bf16.msra.mxu0 0
        %809 = vmatprep.subr.bf16.mxu0 0
        %810 = vmatpush1.bf16.msra.mxu0 0
        %811 = vmatprep.subr.bf16.mxu0 0
        %812 = vmatpush1.bf16.msra.mxu0 0
        %813 = vmatprep.subr.bf16.mxu0 0
        %814 = vmatpush1.bf16.msra.mxu0 0
        %815 = vmatprep.subr.bf16.mxu0 0
        %816 = vmatpush1.bf16.msra.mxu0 0
        %817 = vmatprep.mubr.bf16.mxu0 0
        %818 = vmatmul.mubr.bf16.gmra.mrb[0].mxu0 %v780
        %v819 = vpop.f32.mrb[0].mxu0
        %v820 = vadd.f32 0.0, %v819
        %v821 = vpop.f32.mrb[0].mxu0
        %v822 = vadd.f32 0.0, %v821
        %v823 = vpop.f32.mrb[0].mxu0
        %v824 = vadd.f32 0.0, %v823
        %v825 = vpop.f32.mrb[0].mxu0
        %v826 = vadd.f32 0.0, %v825
        %827 = vmatprep.mubr.bf16.mxu0 0
        %828 = vmatmul.mubr.bf16.gmra.mrb[0].mxu0 %v783
        %v829 = vpop.f32.mrb[0].mxu0
        %v830 = vadd.f32 0.0, %v829
        %v831 = vpop.f32.mrb[0].mxu0
        %v832 = vadd.f32 0.0, %v831
        %v833 = vpop.f32.mrb[0].mxu0
        %v834 = vadd.f32 0.0, %v833
        %v835 = vpop.f32.mrb[0].mxu0
        %v836 = vadd.f32 0.0, %v835
        %837 = vdwg.mxu0
        %v838 = vadd.f32 %v731, %v820
        %v839 = vadd.f32 %v733, %v822
        %v840 = vadd.f32 %v735, %v824
        %v841 = vadd.f32 %v737, %v826
        %v842 = vadd.f32 %v741, %v830
        %v843 = vadd.f32 %v743, %v832
        %v844 = vadd.f32 %v745, %v834
        %v845 = vadd.f32 %v747, %v836
        %v846 = vld [vmem:[%s4] sm:$0xff]
        %v847 = vld [vmem:[%s4 + $0x8] sm:$0xff]
        %v848 = vld [vmem:[%s4 + $0x10] sm:$0xff]
        %v849 = vld [vmem:[%s4 + $0x18] sm:$0xff]
        %851 = vset.pattern.permute.xlu0 0
        %852 = vperm.xlu0 %851, %v846
        %v853 = vpop.permute.xlu0 %852
        %856 = vset.pattern.permute.xlu0 0
        %857 = vperm.xlu0 %856, %v847
        %v858 = vpop.permute.xlu0 %857
        %861 = vset.pattern.permute.xlu0 0
        %862 = vperm.xlu0 %861, %v848
        %v863 = vpop.permute.xlu0 %862
        %866 = vset.pattern.permute.xlu0 0
        %867 = vperm.xlu0 %866, %v849
        %v868 = vpop.permute.xlu0 %867
        %v870 = vadd.f32 %v838, %v853
        %v871 = vadd.f32 %v839, %v853
        %v872 = vadd.f32 %v840, %v858
        %v873 = vadd.f32 %v841, %v858
        %v874 = vadd.f32 %v842, %v863
        %v875 = vadd.f32 %v843, %v863
        %v876 = vadd.f32 %v844, %v868
        %v877 = vadd.f32 %v845, %v868
        %vm878 = vcmp.ge.f32.partialorder %v870, 0.0
        %vm879 = vcmp.ge.f32.partialorder %v871, 0.0
        %vm880 = vcmp.ge.f32.partialorder %v872, 0.0
        %vm881 = vcmp.ge.f32.partialorder %v873, 0.0
        %vm882 = vcmp.ge.f32.partialorder %v874, 0.0
        %vm883 = vcmp.ge.f32.partialorder %v875, 0.0
        %vm884 = vcmp.ge.f32.partialorder %v876, 0.0
        %vm885 = vcmp.ge.f32.partialorder %v877, 0.0
        %v886 = vmul.f32 %v870, 0.1
        %v887 = vmul.f32 %v871, 0.1
        %v888 = vmul.f32 %v872, 0.1
        %v889 = vmul.f32 %v873, 0.1
        %v890 = vmul.f32 %v874, 0.1
        %v891 = vmul.f32 %v875, 0.1
        %v892 = vmul.f32 %v876, 0.1
        %v893 = vmul.f32 %v877, 0.1
        %v894 = vsel %vm878, %v870, %v886
        %v895 = vsel %vm879, %v871, %v887
        %v896 = vsel %vm880, %v872, %v888
        %v897 = vsel %vm881, %v873, %v889
        %v898 = vsel %vm882, %v874, %v890
        %v899 = vsel %vm883, %v875, %v891
        %v900 = vsel %vm884, %v876, %v892
        %v901 = vsel %vm885, %v877, %v893
        %v902 = vsel %vm439, 1, 0
        %v903 = vsel %vm440, 1, 0
        %vm904 = vcmp.eq.s32.totalorder %v902, 1
        %vm905 = vcmp.eq.s32.totalorder %v903, 1
        %v906 = vsel %vm904, %v894, 0.0
        %v907 = vsel %vm905, %v895, 0.0
        %v908 = vsel %vm904, %v896, 0.0
        %v909 = vsel %vm905, %v897, 0.0
        %v910 = vsel %vm904, %v898, 0.0
        %v911 = vsel %vm905, %v899, 0.0
        %v912 = vsel %vm904, %v900, 0.0
        %v913 = vsel %vm905, %v901, 0.0
        %v914 = vpack.c.bf16 %v908, %v906
        %v915 = vpack.c.bf16 %v909, %v907
        %v916 = vpack.c.bf16 %v912, %v910
        %v917 = vpack.c.bf16 %v913, %v911
        %922 = vrot.lane.b32.xlu0 %v914, 5
        %v923 = vpop.permute.xlu0 %922
        %924 = vrot.lane.b32.xlu0 %v915, 5
        %v925 = vpop.permute.xlu0 %924
        %926 = vrot.lane.b32.xlu0 %v916, 5
        %v927 = vpop.permute.xlu0 %926
        %928 = vrot.lane.b32.xlu0 %v917, 5
        %v929 = vpop.permute.xlu0 %928
        %v930 = vsel %vm550, %v923, %v925
        %v931 = vsel %vm550, %v927, %v929
        %936 = vst.msk [vmem:[#allocation2] sm:$0xff] %vm557, %v923
        %937 = vst.msk [vmem:[#allocation2 + $0x8] sm:$0xff] %vm559, %v930
        %938 = vst.msk [vmem:[#allocation2 + $0x10] sm:$0xff] %vm557, %v927
        %939 = vst.msk [vmem:[#allocation2 + $0x18] sm:$0xff] %vm559, %v931
        %v940 = vld [vmem:[#allocation9] sm:$0xf]
        %v941 = vld [vmem:[#allocation9 + $0x4] sm:$0xf]
        %v942 = vld [vmem:[#allocation9 + $0x8] sm:$0xf]
        %v943 = vld [vmem:[#allocation9 + $0xc] sm:$0xf]
        %v944 = vld [vmem:[#allocation2] sm:$0xff]
        %v945 = vld [vmem:[#allocation2 + $0x8] sm:$0xff]
        %v946 = vld [vmem:[#allocation2 + $0x10] sm:$0xff]
        %v947 = vld [vmem:[#allocation2 + $0x18] sm:$0xff]
        %s948 = scalar_lea.vmem [#allocation9], 16
        %v949 = vld [vmem:[%s948] sm:$0xf]
        %v950 = vld [vmem:[%s948 + $0x4] sm:$0xf]
        %v951 = vld [vmem:[%s948 + $0x8] sm:$0xf]
        %v952 = vld [vmem:[%s948 + $0xc] sm:$0xf]
        %v957 = vunpack.c.l.b16 %v949
        %v958 = vunpack.c.l.b16 %v950
        %v959 = vunpack.c.l.b16 %v951
        %v960 = vunpack.c.l.b16 %v952
        %v961 = vpack.c.b16 %v958, %v957
        %v962 = vpack.c.b16 %v960, %v959
        %967 = vrot.lane.b32.xlu0 %v944, 123
        %v968 = vpop.permute.xlu0 %967
        %969 = vrot.lane.b32.xlu0 %v945, 123
        %v970 = vpop.permute.xlu0 %969
        %971 = vrot.lane.b32.xlu0 %v946, 123
        %v972 = vpop.permute.xlu0 %971
        %973 = vrot.lane.b32.xlu0 %v947, 123
        %v974 = vpop.permute.xlu0 %973
        %v975 = vsel %vm598, %v968, %v970
        %v976 = vsel %vm598, %v972, %v974
        %v982 = vsel %vm605, %v961, 0
        %v985 = vsel %vm605, %v962, 0
        %987 = vmatprep.subr.bf16.mxu0 %v970
        %988 = vmatpush1.bf16.msra.mxu0 %v975
        %989 = vmatprep.subr.bf16.mxu0 %v974
        %990 = vmatpush1.bf16.msra.mxu0 %v976
        %991 = vmatprep.subr.bf16.mxu0 0
        %992 = vmatpush1.bf16.msra.mxu0 0
        %993 = vmatprep.subr.bf16.mxu0 0
        %994 = vmatpush1.bf16.msra.mxu0 0
        %995 = vmatprep.subr.bf16.mxu0 0
        %996 = vmatpush1.bf16.msra.mxu0 0
        %997 = vmatprep.subr.bf16.mxu0 0
        %998 = vmatpush1.bf16.msra.mxu0 0
        %999 = vmatprep.subr.bf16.mxu0 0
        %1000 = vmatpush1.bf16.msra.mxu0 0
        %1001 = vmatprep.subr.bf16.mxu0 0
        %1002 = vmatpush1.bf16.msra.mxu0 0
        %1003 = vmatprep.subr.bf16.mxu0 0
        %1004 = vmatpush1.bf16.msra.mxu0 0
        %1005 = vmatprep.subr.bf16.mxu0 0
        %1006 = vmatpush1.bf16.msra.mxu0 0
        %1007 = vmatprep.subr.bf16.mxu0 0
        %1008 = vmatpush1.bf16.msra.mxu0 0
        %1009 = vmatprep.subr.bf16.mxu0 0
        %1010 = vmatpush1.bf16.msra.mxu0 0
        %1011 = vmatprep.subr.bf16.mxu0 0
        %1012 = vmatpush1.bf16.msra.mxu0 0
        %1013 = vmatprep.subr.bf16.mxu0 0
        %1014 = vmatpush1.bf16.msra.mxu0 0
        %1015 = vmatprep.subr.bf16.mxu0 0
        %1016 = vmatpush1.bf16.msra.mxu0 0
        %1017 = vmatprep.subr.bf16.mxu0 0
        %1018 = vmatpush1.bf16.msra.mxu0 0
        %1019 = vmatprep.mubr.bf16.mxu0 0
        %1020 = vmatmul.mubr.bf16.gmra.mrb[0].mxu0 %v982
        %v1021 = vpop.f32.mrb[0].mxu0
        %v1022 = vadd.f32 0.0, %v1021
        %v1023 = vpop.f32.mrb[0].mxu0
        %v1024 = vadd.f32 0.0, %v1023
        %v1025 = vpop.f32.mrb[0].mxu0
        %v1026 = vadd.f32 0.0, %v1025
        %v1027 = vpop.f32.mrb[0].mxu0
        %v1028 = vadd.f32 0.0, %v1027
        %1029 = vmatprep.mubr.bf16.mxu0 0
        %1030 = vmatmul.mubr.bf16.gmra.mrb[0].mxu0 %v985
        %v1031 = vpop.f32.mrb[0].mxu0
        %v1032 = vadd.f32 0.0, %v1031
        %v1033 = vpop.f32.mrb[0].mxu0
        %v1034 = vadd.f32 0.0, %v1033
        %v1035 = vpop.f32.mrb[0].mxu0
        %v1036 = vadd.f32 0.0, %v1035
        %v1037 = vpop.f32.mrb[0].mxu0
        %v1038 = vadd.f32 0.0, %v1037
        %1039 = vdwg.mxu0
        %v1044 = vunpack.c.l.b16 %v940
        %v1045 = vunpack.c.l.b16 %v941
        %v1046 = vunpack.c.l.b16 %v942
        %v1047 = vunpack.c.l.b16 %v943
        %v1048 = vpack.c.b16 %v1045, %v1044
        %v1049 = vpack.c.b16 %v1047, %v1046
        %1050 = vrot.lane.b32.xlu0 %v944, 124
        %v1051 = vpop.permute.xlu0 %1050
        %1052 = vrot.lane.b32.xlu0 %v945, 124
        %v1053 = vpop.permute.xlu0 %1052
        %1054 = vrot.lane.b32.xlu0 %v946, 124
        %v1055 = vpop.permute.xlu0 %1054
        %1056 = vrot.lane.b32.xlu0 %v947, 124
        %v1057 = vpop.permute.xlu0 %1056
        %v1058 = vsel %vm683, %v1051, %v1053
        %v1059 = vsel %vm683, %v1055, %v1057
        %v1065 = vsel %vm605, %v1048, 0
        %v1068 = vsel %vm605, %v1049, 0
        %1070 = vmatprep.subr.bf16.mxu0 %v1053
        %1071 = vmatpush1.bf16.msra.mxu0 %v1058
        %1072 = vmatprep.subr.bf16.mxu0 %v1057
        %1073 = vmatpush1.bf16.msra.mxu0 %v1059
        %1074 = vmatprep.subr.bf16.mxu0 0
        %1075 = vmatpush1.bf16.msra.mxu0 0
        %1076 = vmatprep.subr.bf16.mxu0 0
        %1077 = vmatpush1.bf16.msra.mxu0 0
        %1078 = vmatprep.subr.bf16.mxu0 0
        %1079 = vmatpush1.bf16.msra.mxu0 0
        %1080 = vmatprep.subr.bf16.mxu0 0
        %1081 = vmatpush1.bf16.msra.mxu0 0
        %1082 = vmatprep.subr.bf16.mxu0 0
        %1083 = vmatpush1.bf16.msra.mxu0 0
        %1084 = vmatprep.subr.bf16.mxu0 0
        %1085 = vmatpush1.bf16.msra.mxu0 0
        %1086 = vmatprep.subr.bf16.mxu0 0
        %1087 = vmatpush1.bf16.msra.mxu0 0
        %1088 = vmatprep.subr.bf16.mxu0 0
        %1089 = vmatpush1.bf16.msra.mxu0 0
        %1090 = vmatprep.subr.bf16.mxu0 0
        %1091 = vmatpush1.bf16.msra.mxu0 0
        %1092 = vmatprep.subr.bf16.mxu0 0
        %1093 = vmatpush1.bf16.msra.mxu0 0
        %1094 = vmatprep.subr.bf16.mxu0 0
        %1095 = vmatpush1.bf16.msra.mxu0 0
        %1096 = vmatprep.subr.bf16.mxu0 0
        %1097 = vmatpush1.bf16.msra.mxu0 0
        %1098 = vmatprep.subr.bf16.mxu0 0
        %1099 = vmatpush1.bf16.msra.mxu0 0
        %1100 = vmatprep.subr.bf16.mxu0 0
        %1101 = vmatpush1.bf16.msra.mxu0 0
        %1102 = vmatprep.mubr.bf16.mxu0 0
        %1103 = vmatmul.mubr.bf16.gmra.mrb[0].mxu0 %v1065
        %v1104 = vpop.f32.mrb[0].mxu0
        %v1105 = vadd.f32 %v1022, %v1104
        %v1106 = vpop.f32.mrb[0].mxu0
        %v1107 = vadd.f32 %v1024, %v1106
        %v1108 = vpop.f32.mrb[0].mxu0
        %v1109 = vadd.f32 %v1026, %v1108
        %v1110 = vpop.f32.mrb[0].mxu0
        %v1111 = vadd.f32 %v1028, %v1110
        %1112 = vmatprep.mubr.bf16.mxu0 0
        %1113 = vmatmul.mubr.bf16.gmra.mrb[0].mxu0 %v1068
        %v1114 = vpop.f32.mrb[0].mxu0
        %v1115 = vadd.f32 %v1032, %v1114
        %v1116 = vpop.f32.mrb[0].mxu0
        %v1117 = vadd.f32 %v1034, %v1116
        %v1118 = vpop.f32.mrb[0].mxu0
        %v1119 = vadd.f32 %v1036, %v1118
        %v1120 = vpop.f32.mrb[0].mxu0
        %v1121 = vadd.f32 %v1038, %v1120
        %1122 = vdwg.mxu0
        %s1123 = scalar_lea.vmem [#allocation9], 32
        %v1124 = vld [vmem:[%s1123] sm:$0xf]
        %v1125 = vld [vmem:[%s1123 + $0x4] sm:$0xf]
        %v1126 = vld [vmem:[%s1123 + $0x8] sm:$0xf]
        %v1127 = vld [vmem:[%s1123 + $0xc] sm:$0xf]
        %v1132 = vunpack.c.l.b16 %v1124
        %v1133 = vunpack.c.l.b16 %v1125
        %v1134 = vunpack.c.l.b16 %v1126
        %v1135 = vunpack.c.l.b16 %v1127
        %v1136 = vpack.c.b16 %v1133, %v1132
        %v1137 = vpack.c.b16 %v1135, %v1134
        %1138 = vrot.lane.b32.xlu0 %v944, 122
        %v1139 = vpop.permute.xlu0 %1138
        %1140 = vrot.lane.b32.xlu0 %v945, 122
        %v1141 = vpop.permute.xlu0 %1140
        %1142 = vrot.lane.b32.xlu0 %v946, 122
        %v1143 = vpop.permute.xlu0 %1142
        %1144 = vrot.lane.b32.xlu0 %v947, 122
        %v1145 = vpop.permute.xlu0 %1144
        %v1146 = vsel %vm772, %v1139, %v1141
        %v1147 = vsel %vm772, %v1143, %v1145
        %v1153 = vsel %vm605, %v1136, 0
        %v1156 = vsel %vm605, %v1137, 0
        %1158 = vmatprep.subr.bf16.mxu0 %v1141
        %1159 = vmatpush1.bf16.msra.mxu0 %v1146
        %1160 = vmatprep.subr.bf16.mxu0 %v1145
        %1161 = vmatpush1.bf16.msra.mxu0 %v1147
        %1162 = vmatprep.subr.bf16.mxu0 0
        %1163 = vmatpush1.bf16.msra.mxu0 0
        %1164 = vmatprep.subr.bf16.mxu0 0
        %1165 = vmatpush1.bf16.msra.mxu0 0
        %1166 = vmatprep.subr.bf16.mxu0 0
        %1167 = vmatpush1.bf16.msra.mxu0 0
        %1168 = vmatprep.subr.bf16.mxu0 0
        %1169 = vmatpush1.bf16.msra.mxu0 0
        %1170 = vmatprep.subr.bf16.mxu0 0
        %1171 = vmatpush1.bf16.msra.mxu0 0
        %1172 = vmatprep.subr.bf16.mxu0 0
        %1173 = vmatpush1.bf16.msra.mxu0 0
        %1174 = vmatprep.subr.bf16.mxu0 0
        %1175 = vmatpush1.bf16.msra.mxu0 0
        %1176 = vmatprep.subr.bf16.mxu0 0
        %1177 = vmatpush1.bf16.msra.mxu0 0
        %1178 = vmatprep.subr.bf16.mxu0 0
        %1179 = vmatpush1.bf16.msra.mxu0 0
        %1180 = vmatprep.subr.bf16.mxu0 0
        %1181 = vmatpush1.bf16.msra.mxu0 0
        %1182 = vmatprep.subr.bf16.mxu0 0
        %1183 = vmatpush1.bf16.msra.mxu0 0
        %1184 = vmatprep.subr.bf16.mxu0 0
        %1185 = vmatpush1.bf16.msra.mxu0 0
        %1186 = vmatprep.subr.bf16.mxu0 0
        %1187 = vmatpush1.bf16.msra.mxu0 0
        %1188 = vmatprep.subr.bf16.mxu0 0
        %1189 = vmatpush1.bf16.msra.mxu0 0
        %1190 = vmatprep.mubr.bf16.mxu0 0
        %1191 = vmatmul.mubr.bf16.gmra.mrb[0].mxu0 %v1153
        %v1192 = vpop.f32.mrb[0].mxu0
        %v1193 = vadd.f32 0.0, %v1192
        %v1194 = vpop.f32.mrb[0].mxu0
        %v1195 = vadd.f32 0.0, %v1194
        %v1196 = vpop.f32.mrb[0].mxu0
        %v1197 = vadd.f32 0.0, %v1196
        %v1198 = vpop.f32.mrb[0].mxu0
        %v1199 = vadd.f32 0.0, %v1198
        %1200 = vmatprep.mubr.bf16.mxu0 0
        %1201 = vmatmul.mubr.bf16.gmra.mrb[0].mxu0 %v1156
        %v1202 = vpop.f32.mrb[0].mxu0
        %v1203 = vadd.f32 0.0, %v1202
        %v1204 = vpop.f32.mrb[0].mxu0
        %v1205 = vadd.f32 0.0, %v1204
        %v1206 = vpop.f32.mrb[0].mxu0
        %v1207 = vadd.f32 0.0, %v1206
        %v1208 = vpop.f32.mrb[0].mxu0
        %v1209 = vadd.f32 0.0, %v1208
        %1210 = vdwg.mxu0
        %v1211 = vadd.f32 %v1105, %v1193
        %v1212 = vadd.f32 %v1107, %v1195
        %v1213 = vadd.f32 %v1109, %v1197
        %v1214 = vadd.f32 %v1111, %v1199
        %v1215 = vadd.f32 %v1115, %v1203
        %v1216 = vadd.f32 %v1117, %v1205
        %v1217 = vadd.f32 %v1119, %v1207
        %v1218 = vadd.f32 %v1121, %v1209
        %v1219 = vld [vmem:[%s6] sm:$0xff]
        %v1220 = vld [vmem:[%s6 + $0x8] sm:$0xff]
        %v1221 = vld [vmem:[%s6 + $0x10] sm:$0xff]
        %v1222 = vld [vmem:[%s6 + $0x18] sm:$0xff]
        %1224 = vset.pattern.permute.xlu0 0
        %1225 = vperm.xlu0 %1224, %v1219
        %v1226 = vpop.permute.xlu0 %1225
        %1229 = vset.pattern.permute.xlu0 0
        %1230 = vperm.xlu0 %1229, %v1220
        %v1231 = vpop.permute.xlu0 %1230
        %1234 = vset.pattern.permute.xlu0 0
        %1235 = vperm.xlu0 %1234, %v1221
        %v1236 = vpop.permute.xlu0 %1235
        %1239 = vset.pattern.permute.xlu0 0
        %1240 = vperm.xlu0 %1239, %v1222
        %v1241 = vpop.permute.xlu0 %1240
        %v1243 = vadd.f32 %v1211, %v1226
        %v1244 = vadd.f32 %v1212, %v1226
        %v1245 = vadd.f32 %v1213, %v1231
        %v1246 = vadd.f32 %v1214, %v1231
        %v1247 = vadd.f32 %v1215, %v1236
        %v1248 = vadd.f32 %v1216, %v1236
        %v1249 = vadd.f32 %v1217, %v1241
        %v1250 = vadd.f32 %v1218, %v1241
        %v1251 = vadd.f32 %v1243, %v502
        %v1252 = vadd.f32 %v1244, %v506
        %v1253 = vadd.f32 %v1245, %v503
        %v1254 = vadd.f32 %v1246, %v507
        %v1255 = vadd.f32 %v1247, %v504
        %v1256 = vadd.f32 %v1248, %v508
        %v1257 = vadd.f32 %v1249, %v505
        %v1258 = vadd.f32 %v1250, %v509
        %vm1259 = vcmp.ge.f32.partialorder %v1251, 0.0
        %vm1260 = vcmp.ge.f32.partialorder %v1252, 0.0
        %vm1261 = vcmp.ge.f32.partialorder %v1253, 0.0
        %vm1262 = vcmp.ge.f32.partialorder %v1254, 0.0
        %vm1263 = vcmp.ge.f32.partialorder %v1255, 0.0
        %vm1264 = vcmp.ge.f32.partialorder %v1256, 0.0
        %vm1265 = vcmp.ge.f32.partialorder %v1257, 0.0
        %vm1266 = vcmp.ge.f32.partialorder %v1258, 0.0
        %v1267 = vmul.f32 %v1251, 0.1
        %v1268 = vmul.f32 %v1252, 0.1
        %v1269 = vmul.f32 %v1253, 0.1
        %v1270 = vmul.f32 %v1254, 0.1
        %v1271 = vmul.f32 %v1255, 0.1
        %v1272 = vmul.f32 %v1256, 0.1
        %v1273 = vmul.f32 %v1257, 0.1
        %v1274 = vmul.f32 %v1258, 0.1
        %v1275 = vsel %vm1259, %v1251, %v1267
        %v1276 = vsel %vm1260, %v1252, %v1268
        %v1277 = vsel %vm1261, %v1253, %v1269
        %v1278 = vsel %vm1262, %v1254, %v1270
        %v1279 = vsel %vm1263, %v1255, %v1271
        %v1280 = vsel %vm1264, %v1256, %v1272
        %v1281 = vsel %vm1265, %v1257, %v1273
        %v1282 = vsel %vm1266, %v1258, %v1274
        %v1283 = vsel %vm904, %v1275, 0.0
        %v1284 = vsel %vm905, %v1276, 0.0
        %v1285 = vsel %vm904, %v1277, 0.0
        %v1286 = vsel %vm905, %v1278, 0.0
        %v1287 = vsel %vm904, %v1279, 0.0
        %v1288 = vsel %vm905, %v1280, 0.0
        %v1289 = vsel %vm904, %v1281, 0.0
        %v1290 = vsel %vm905, %v1282, 0.0
        %v1291 = vpack.c.bf16 %v1285, %v1283
        %v1292 = vpack.c.bf16 %v1286, %v1284
        %v1293 = vpack.c.bf16 %v1289, %v1287
        %v1294 = vpack.c.bf16 %v1290, %v1288
        %1299 = vrot.lane.b32.xlu0 %v1291, 5
        %v1300 = vpop.permute.xlu0 %1299
        %1301 = vrot.lane.b32.xlu0 %v1292, 5
        %v1302 = vpop.permute.xlu0 %1301
        %1303 = vrot.lane.b32.xlu0 %v1293, 5
        %v1304 = vpop.permute.xlu0 %1303
        %1305 = vrot.lane.b32.xlu0 %v1294, 5
        %v1306 = vpop.permute.xlu0 %1305
        %v1307 = vsel %vm550, %v1300, %v1302
        %v1308 = vsel %vm550, %v1304, %v1306
        %1313 = vst.msk [vmem:[#allocation2] sm:$0xff] %vm557, %v1300
        %1314 = vst.msk [vmem:[#allocation2 + $0x8] sm:$0xff] %vm559, %v1307
        %1315 = vst.msk [vmem:[#allocation2 + $0x10] sm:$0xff] %vm557, %v1304
        %1316 = vst.msk [vmem:[#allocation2 + $0x18] sm:$0xff] %vm559, %v1308
        %s1317 = scalar_lea.vmem %s3, 48
        %v1318 = vld [vmem:[%s1317] sm:$0xf]
        %v1319 = vld [vmem:[%s1317 + $0x4] sm:$0xf]
        %v1320 = vld [vmem:[%s1317 + $0x8] sm:$0xf]
        %v1321 = vld [vmem:[%s1317 + $0xc] sm:$0xf]
        %v1322 = vld [vmem:[#allocation2] sm:$0xff]
        %v1323 = vld [vmem:[#allocation2 + $0x8] sm:$0xff]
        %v1324 = vld [vmem:[#allocation2 + $0x10] sm:$0xff]
        %v1325 = vld [vmem:[#allocation2 + $0x18] sm:$0xff]
        %s1326 = scalar_lea.vmem %s3, 64
        %v1327 = vld [vmem:[%s1326] sm:$0xf]
        %v1328 = vld [vmem:[%s1326 + $0x4] sm:$0xf]
        %v1329 = vld [vmem:[%s1326 + $0x8] sm:$0xf]
        %v1330 = vld [vmem:[%s1326 + $0xc] sm:$0xf]
        %v1335 = vunpack.c.l.b16 %v1327
        %v1336 = vunpack.c.l.b16 %v1328
        %v1337 = vunpack.c.l.b16 %v1329
        %v1338 = vunpack.c.l.b16 %v1330
        %v1339 = vpack.c.b16 %v1336, %v1335
        %v1340 = vpack.c.b16 %v1338, %v1337
        %1345 = vrot.lane.b32.xlu0 %v1322, 123
        %v1346 = vpop.permute.xlu0 %1345
        %1347 = vrot.lane.b32.xlu0 %v1323, 123
        %v1348 = vpop.permute.xlu0 %1347
        %1349 = vrot.lane.b32.xlu0 %v1324, 123
        %v1350 = vpop.permute.xlu0 %1349
        %1351 = vrot.lane.b32.xlu0 %v1325, 123
        %v1352 = vpop.permute.xlu0 %1351
        %v1353 = vsel %vm598, %v1346, %v1348
        %v1354 = vsel %vm598, %v1350, %v1352
        %v1360 = vsel %vm605, %v1339, 0
        %v1363 = vsel %vm605, %v1340, 0
        %1365 = vmatprep.subr.bf16.mxu0 %v1348
        %1366 = vmatpush1.bf16.msra.mxu0 %v1353
        %1367 = vmatprep.subr.bf16.mxu0 %v1352
        %1368 = vmatpush1.bf16.msra.mxu0 %v1354
        %1369 = vmatprep.subr.bf16.mxu0 0
        %1370 = vmatpush1.bf16.msra.mxu0 0
        %1371 = vmatprep.subr.bf16.mxu0 0
        %1372 = vmatpush1.bf16.msra.mxu0 0
        %1373 = vmatprep.subr.bf16.mxu0 0
        %1374 = vmatpush1.bf16.msra.mxu0 0
        %1375 = vmatprep.subr.bf16.mxu0 0
        %1376 = vmatpush1.bf16.msra.mxu0 0
        %1377 = vmatprep.subr.bf16.mxu0 0
        %1378 = vmatpush1.bf16.msra.mxu0 0
        %1379 = vmatprep.subr.bf16.mxu0 0
        %1380 = vmatpush1.bf16.msra.mxu0 0
        %1381 = vmatprep.subr.bf16.mxu0 0
        %1382 = vmatpush1.bf16.msra.mxu0 0
        %1383 = vmatprep.subr.bf16.mxu0 0
        %1384 = vmatpush1.bf16.msra.mxu0 0
        %1385 = vmatprep.subr.bf16.mxu0 0
        %1386 = vmatpush1.bf16.msra.mxu0 0
        %1387 = vmatprep.subr.bf16.mxu0 0
        %1388 = vmatpush1.bf16.msra.mxu0 0
        %1389 = vmatprep.subr.bf16.mxu0 0
        %1390 = vmatpush1.bf16.msra.mxu0 0
        %1391 = vmatprep.subr.bf16.mxu0 0
        %1392 = vmatpush1.bf16.msra.mxu0 0
        %1393 = vmatprep.subr.bf16.mxu0 0
        %1394 = vmatpush1.bf16.msra.mxu0 0
        %1395 = vmatprep.subr.bf16.mxu0 0
        %1396 = vmatpush1.bf16.msra.mxu0 0
        %1397 = vmatprep.mubr.bf16.mxu0 0
        %1398 = vmatmul.mubr.bf16.gmra.mrb[0].mxu0 %v1360
        %v1399 = vpop.f32.mrb[0].mxu0
        %v1400 = vadd.f32 0.0, %v1399
        %v1401 = vpop.f32.mrb[0].mxu0
        %v1402 = vadd.f32 0.0, %v1401
        %v1403 = vpop.f32.mrb[0].mxu0
        %v1404 = vadd.f32 0.0, %v1403
        %v1405 = vpop.f32.mrb[0].mxu0
        %v1406 = vadd.f32 0.0, %v1405
        %1407 = vmatprep.mubr.bf16.mxu0 0
        %1408 = vmatmul.mubr.bf16.gmra.mrb[0].mxu0 %v1363
        %v1409 = vpop.f32.mrb[0].mxu0
        %v1410 = vadd.f32 0.0, %v1409
        %v1411 = vpop.f32.mrb[0].mxu0
        %v1412 = vadd.f32 0.0, %v1411
        %v1413 = vpop.f32.mrb[0].mxu0
        %v1414 = vadd.f32 0.0, %v1413
        %v1415 = vpop.f32.mrb[0].mxu0
        %v1416 = vadd.f32 0.0, %v1415
        %1417 = vdwg.mxu0
        %v1422 = vunpack.c.l.b16 %v1318
        %v1423 = vunpack.c.l.b16 %v1319
        %v1424 = vunpack.c.l.b16 %v1320
        %v1425 = vunpack.c.l.b16 %v1321
        %v1426 = vpack.c.b16 %v1423, %v1422
        %v1427 = vpack.c.b16 %v1425, %v1424
        %1428 = vrot.lane.b32.xlu0 %v1322, 126
        %v1429 = vpop.permute.xlu0 %1428
        %1430 = vrot.lane.b32.xlu0 %v1323, 126
        %v1431 = vpop.permute.xlu0 %1430
        %1432 = vrot.lane.b32.xlu0 %v1324, 126
        %v1433 = vpop.permute.xlu0 %1432
        %1434 = vrot.lane.b32.xlu0 %v1325, 126
        %v1435 = vpop.permute.xlu0 %1434
        %vm1436 = vcmask 1031168
        %v1437 = vsel %vm1436, %v1429, %v1431
        %v1438 = vsel %vm1436, %v1433, %v1435
        %v1444 = vsel %vm605, %v1426, 0
        %v1447 = vsel %vm605, %v1427, 0
        %1449 = vmatprep.subr.bf16.mxu0 %v1431
        %1450 = vmatpush1.bf16.msra.mxu0 %v1437
        %1451 = vmatprep.subr.bf16.mxu0 %v1435
        %1452 = vmatpush1.bf16.msra.mxu0 %v1438
        %1453 = vmatprep.subr.bf16.mxu0 0
        %1454 = vmatpush1.bf16.msra.mxu0 0
        %1455 = vmatprep.subr.bf16.mxu0 0
        %1456 = vmatpush1.bf16.msra.mxu0 0
        %1457 = vmatprep.subr.bf16.mxu0 0
        %1458 = vmatpush1.bf16.msra.mxu0 0
        %1459 = vmatprep.subr.bf16.mxu0 0
        %1460 = vmatpush1.bf16.msra.mxu0 0
        %1461 = vmatprep.subr.bf16.mxu0 0
        %1462 = vmatpush1.bf16.msra.mxu0 0
        %1463 = vmatprep.subr.bf16.mxu0 0
        %1464 = vmatpush1.bf16.msra.mxu0 0
        %1465 = vmatprep.subr.bf16.mxu0 0
        %1466 = vmatpush1.bf16.msra.mxu0 0
        %1467 = vmatprep.subr.bf16.mxu0 0
        %1468 = vmatpush1.bf16.msra.mxu0 0
        %1469 = vmatprep.subr.bf16.mxu0 0
        %1470 = vmatpush1.bf16.msra.mxu0 0
        %1471 = vmatprep.subr.bf16.mxu0 0
        %1472 = vmatpush1.bf16.msra.mxu0 0
        %1473 = vmatprep.subr.bf16.mxu0 0
        %1474 = vmatpush1.bf16.msra.mxu0 0
        %1475 = vmatprep.subr.bf16.mxu0 0
        %1476 = vmatpush1.bf16.msra.mxu0 0
        %1477 = vmatprep.subr.bf16.mxu0 0
        %1478 = vmatpush1.bf16.msra.mxu0 0
        %1479 = vmatprep.subr.bf16.mxu0 0
        %1480 = vmatpush1.bf16.msra.mxu0 0
        %1481 = vmatprep.mubr.bf16.mxu0 0
        %1482 = vmatmul.mubr.bf16.gmra.mrb[0].mxu0 %v1444
        %v1483 = vpop.f32.mrb[0].mxu0
        %v1484 = vadd.f32 %v1400, %v1483
        %v1485 = vpop.f32.mrb[0].mxu0
        %v1486 = vadd.f32 %v1402, %v1485
        %v1487 = vpop.f32.mrb[0].mxu0
        %v1488 = vadd.f32 %v1404, %v1487
        %v1489 = vpop.f32.mrb[0].mxu0
        %v1490 = vadd.f32 %v1406, %v1489
        %1491 = vmatprep.mubr.bf16.mxu0 0
        %1492 = vmatmul.mubr.bf16.gmra.mrb[0].mxu0 %v1447
        %v1493 = vpop.f32.mrb[0].mxu0
        %v1494 = vadd.f32 %v1410, %v1493
        %v1495 = vpop.f32.mrb[0].mxu0
        %v1496 = vadd.f32 %v1412, %v1495
        %v1497 = vpop.f32.mrb[0].mxu0
        %v1498 = vadd.f32 %v1414, %v1497
        %v1499 = vpop.f32.mrb[0].mxu0
        %v1500 = vadd.f32 %v1416, %v1499
        %1501 = vdwg.mxu0
        %s1502 = scalar_lea.vmem %s3, 80
        %v1503 = vld [vmem:[%s1502] sm:$0xf]
        %v1504 = vld [vmem:[%s1502 + $0x4] sm:$0xf]
        %v1505 = vld [vmem:[%s1502 + $0x8] sm:$0xf]
        %v1506 = vld [vmem:[%s1502 + $0xc] sm:$0xf]
        %v1511 = vunpack.c.l.b16 %v1503
        %v1512 = vunpack.c.l.b16 %v1504
        %v1513 = vunpack.c.l.b16 %v1505
        %v1514 = vunpack.c.l.b16 %v1506
        %v1515 = vpack.c.b16 %v1512, %v1511
        %v1516 = vpack.c.b16 %v1514, %v1513
        %1517 = vrot.lane.b32.xlu0 %v1322, 120
        %v1518 = vpop.permute.xlu0 %1517
        %1519 = vrot.lane.b32.xlu0 %v1323, 120
        %v1520 = vpop.permute.xlu0 %1519
        %1521 = vrot.lane.b32.xlu0 %v1324, 120
        %v1522 = vpop.permute.xlu0 %1521
        %1523 = vrot.lane.b32.xlu0 %v1325, 120
        %v1524 = vpop.permute.xlu0 %1523
        %vm1525 = vcmask 982016
        %v1526 = vsel %vm1525, %v1518, %v1520
        %v1527 = vsel %vm1525, %v1522, %v1524
        %v1533 = vsel %vm605, %v1515, 0
        %v1536 = vsel %vm605, %v1516, 0
        %1538 = vmatprep.subr.bf16.mxu0 %v1520
        %1539 = vmatpush1.bf16.msra.mxu0 %v1526
        %1540 = vmatprep.subr.bf16.mxu0 %v1524
        %1541 = vmatpush1.bf16.msra.mxu0 %v1527
        %1542 = vmatprep.subr.bf16.mxu0 0
        %1543 = vmatpush1.bf16.msra.mxu0 0
        %1544 = vmatprep.subr.bf16.mxu0 0
        %1545 = vmatpush1.bf16.msra.mxu0 0
        %1546 = vmatprep.subr.bf16.mxu0 0
        %1547 = vmatpush1.bf16.msra.mxu0 0
        %1548 = vmatprep.subr.bf16.mxu0 0
        %1549 = vmatpush1.bf16.msra.mxu0 0
        %1550 = vmatprep.subr.bf16.mxu0 0
        %1551 = vmatpush1.bf16.msra.mxu0 0
        %1552 = vmatprep.subr.bf16.mxu0 0
        %1553 = vmatpush1.bf16.msra.mxu0 0
        %1554 = vmatprep.subr.bf16.mxu0 0
        %1555 = vmatpush1.bf16.msra.mxu0 0
        %1556 = vmatprep.subr.bf16.mxu0 0
        %1557 = vmatpush1.bf16.msra.mxu0 0
        %1558 = vmatprep.subr.bf16.mxu0 0
        %1559 = vmatpush1.bf16.msra.mxu0 0
        %1560 = vmatprep.subr.bf16.mxu0 0
        %1561 = vmatpush1.bf16.msra.mxu0 0
        %1562 = vmatprep.subr.bf16.mxu0 0
        %1563 = vmatpush1.bf16.msra.mxu0 0
        %1564 = vmatprep.subr.bf16.mxu0 0
        %1565 = vmatpush1.bf16.msra.mxu0 0
        %1566 = vmatprep.subr.bf16.mxu0 0
        %1567 = vmatpush1.bf16.msra.mxu0 0
        %1568 = vmatprep.subr.bf16.mxu0 0
        %1569 = vmatpush1.bf16.msra.mxu0 0
        %1570 = vmatprep.mubr.bf16.mxu0 0
        %1571 = vmatmul.mubr.bf16.gmra.mrb[0].mxu0 %v1533
        %v1572 = vpop.f32.mrb[0].mxu0
        %v1573 = vadd.f32 0.0, %v1572
        %v1574 = vpop.f32.mrb[0].mxu0
        %v1575 = vadd.f32 0.0, %v1574
        %v1576 = vpop.f32.mrb[0].mxu0
        %v1577 = vadd.f32 0.0, %v1576
        %v1578 = vpop.f32.mrb[0].mxu0
        %v1579 = vadd.f32 0.0, %v1578
        %1580 = vmatprep.mubr.bf16.mxu0 0
        %1581 = vmatmul.mubr.bf16.gmra.mrb[0].mxu0 %v1536
        %v1582 = vpop.f32.mrb[0].mxu0
        %v1583 = vadd.f32 0.0, %v1582
        %v1584 = vpop.f32.mrb[0].mxu0
        %v1585 = vadd.f32 0.0, %v1584
        %v1586 = vpop.f32.mrb[0].mxu0
        %v1587 = vadd.f32 0.0, %v1586
        %v1588 = vpop.f32.mrb[0].mxu0
        %v1589 = vadd.f32 0.0, %v1588
        %1590 = vdwg.mxu0
        %v1591 = vadd.f32 %v1484, %v1573
        %v1592 = vadd.f32 %v1486, %v1575
        %v1593 = vadd.f32 %v1488, %v1577
        %v1594 = vadd.f32 %v1490, %v1579
        %v1595 = vadd.f32 %v1494, %v1583
        %v1596 = vadd.f32 %v1496, %v1585
        %v1597 = vadd.f32 %v1498, %v1587
        %v1598 = vadd.f32 %v1500, %v1589
        %s1599 = scalar_lea.vmem %s4, 32
        %v1600 = vld [vmem:[%s1599] sm:$0xff]
        %v1601 = vld [vmem:[%s1599 + $0x8] sm:$0xff]
        %v1602 = vld [vmem:[%s1599 + $0x10] sm:$0xff]
        %v1603 = vld [vmem:[%s1599 + $0x18] sm:$0xff]
        %1605 = vset.pattern.permute.xlu0 0
        %1606 = vperm.xlu0 %1605, %v1600
        %v1607 = vpop.permute.xlu0 %1606
        %1610 = vset.pattern.permute.xlu0 0
        %1611 = vperm.xlu0 %1610, %v1601
        %v1612 = vpop.permute.xlu0 %1611
        %1615 = vset.pattern.permute.xlu0 0
        %1616 = vperm.xlu0 %1615, %v1602
        %v1617 = vpop.permute.xlu0 %1616
        %1620 = vset.pattern.permute.xlu0 0
        %1621 = vperm.xlu0 %1620, %v1603
        %v1622 = vpop.permute.xlu0 %1621
        %v1624 = vadd.f32 %v1591, %v1607
        %v1625 = vadd.f32 %v1592, %v1607
        %v1626 = vadd.f32 %v1593, %v1612
        %v1627 = vadd.f32 %v1594, %v1612
        %v1628 = vadd.f32 %v1595, %v1617
        %v1629 = vadd.f32 %v1596, %v1617
        %v1630 = vadd.f32 %v1597, %v1622
        %v1631 = vadd.f32 %v1598, %v1622
        %vm1632 = vcmp.ge.f32.partialorder %v1624, 0.0
        %vm1633 = vcmp.ge.f32.partialorder %v1625, 0.0
        %vm1634 = vcmp.ge.f32.partialorder %v1626, 0.0
        %vm1635 = vcmp.ge.f32.partialorder %v1627, 0.0
        %vm1636 = vcmp.ge.f32.partialorder %v1628, 0.0
        %vm1637 = vcmp.ge.f32.partialorder %v1629, 0.0
        %vm1638 = vcmp.ge.f32.partialorder %v1630, 0.0
        %vm1639 = vcmp.ge.f32.partialorder %v1631, 0.0
        %v1640 = vmul.f32 %v1624, 0.1
        %v1641 = vmul.f32 %v1625, 0.1
        %v1642 = vmul.f32 %v1626, 0.1
        %v1643 = vmul.f32 %v1627, 0.1
        %v1644 = vmul.f32 %v1628, 0.1
        %v1645 = vmul.f32 %v1629, 0.1
        %v1646 = vmul.f32 %v1630, 0.1
        %v1647 = vmul.f32 %v1631, 0.1
        %v1648 = vsel %vm1632, %v1624, %v1640
        %v1649 = vsel %vm1633, %v1625, %v1641
        %v1650 = vsel %vm1634, %v1626, %v1642
        %v1651 = vsel %vm1635, %v1627, %v1643
        %v1652 = vsel %vm1636, %v1628, %v1644
        %v1653 = vsel %vm1637, %v1629, %v1645
        %v1654 = vsel %vm1638, %v1630, %v1646
        %v1655 = vsel %vm1639, %v1631, %v1647
        %v1656 = vsel %vm904, %v1648, 0.0
        %v1657 = vsel %vm905, %v1649, 0.0
        %v1658 = vsel %vm904, %v1650, 0.0
        %v1659 = vsel %vm905, %v1651, 0.0
        %v1660 = vsel %vm904, %v1652, 0.0
        %v1661 = vsel %vm905, %v1653, 0.0
        %v1662 = vsel %vm904, %v1654, 0.0
        %v1663 = vsel %vm905, %v1655, 0.0
        %v1664 = vpack.c.bf16 %v1658, %v1656
        %v1665 = vpack.c.bf16 %v1659, %v1657
        %v1666 = vpack.c.bf16 %v1662, %v1660
        %v1667 = vpack.c.bf16 %v1663, %v1661
        %1672 = vrot.lane.b32.xlu0 %v1664, 5
        %v1673 = vpop.permute.xlu0 %1672
        %1674 = vrot.lane.b32.xlu0 %v1665, 5
        %v1675 = vpop.permute.xlu0 %1674
        %1676 = vrot.lane.b32.xlu0 %v1666, 5
        %v1677 = vpop.permute.xlu0 %1676
        %1678 = vrot.lane.b32.xlu0 %v1667, 5
        %v1679 = vpop.permute.xlu0 %1678
        %v1680 = vsel %vm550, %v1673, %v1675
        %v1681 = vsel %vm550, %v1677, %v1679
        %1686 = vst.msk [vmem:[#allocation2] sm:$0xff] %vm557, %v1673
        %1687 = vst.msk [vmem:[#allocation2 + $0x8] sm:$0xff] %vm559, %v1680
        %1688 = vst.msk [vmem:[#allocation2 + $0x10] sm:$0xff] %vm557, %v1677
        %1689 = vst.msk [vmem:[#allocation2 + $0x18] sm:$0xff] %vm559, %v1681
        %s1690 = scalar_lea.vmem [#allocation9], 48
        %v1691 = vld [vmem:[%s1690] sm:$0xf]
        %v1692 = vld [vmem:[%s1690 + $0x4] sm:$0xf]
        %v1693 = vld [vmem:[%s1690 + $0x8] sm:$0xf]
        %v1694 = vld [vmem:[%s1690 + $0xc] sm:$0xf]
        %v1695 = vld [vmem:[#allocation2] sm:$0xff]
        %v1696 = vld [vmem:[#allocation2 + $0x8] sm:$0xff]
        %v1697 = vld [vmem:[#allocation2 + $0x10] sm:$0xff]
        %v1698 = vld [vmem:[#allocation2 + $0x18] sm:$0xff]
        %s1699 = scalar_lea.vmem [#allocation9], 64
        %v1700 = vld [vmem:[%s1699] sm:$0xf]
        %v1701 = vld [vmem:[%s1699 + $0x4] sm:$0xf]
        %v1702 = vld [vmem:[%s1699 + $0x8] sm:$0xf]
        %v1703 = vld [vmem:[%s1699 + $0xc] sm:$0xf]
        %v1708 = vunpack.c.l.b16 %v1700
        %v1709 = vunpack.c.l.b16 %v1701
        %v1710 = vunpack.c.l.b16 %v1702
        %v1711 = vunpack.c.l.b16 %v1703
        %v1712 = vpack.c.b16 %v1709, %v1708
        %v1713 = vpack.c.b16 %v1711, %v1710
        %1718 = vrot.lane.b32.xlu0 %v1695, 123
        %v1719 = vpop.permute.xlu0 %1718
        %1720 = vrot.lane.b32.xlu0 %v1696, 123
        %v1721 = vpop.permute.xlu0 %1720
        %1722 = vrot.lane.b32.xlu0 %v1697, 123
        %v1723 = vpop.permute.xlu0 %1722
        %1724 = vrot.lane.b32.xlu0 %v1698, 123
        %v1725 = vpop.permute.xlu0 %1724
        %v1726 = vsel %vm598, %v1719, %v1721
        %v1727 = vsel %vm598, %v1723, %v1725
        %v1733 = vsel %vm605, %v1712, 0
        %v1736 = vsel %vm605, %v1713, 0
        %1738 = vmatprep.subr.bf16.mxu0 %v1721
        %1739 = vmatpush1.bf16.msra.mxu0 %v1726
        %1740 = vmatprep.subr.bf16.mxu0 %v1725
        %1741 = vmatpush1.bf16.msra.mxu0 %v1727
        %1742 = vmatprep.subr.bf16.mxu0 0
        %1743 = vmatpush1.bf16.msra.mxu0 0
        %1744 = vmatprep.subr.bf16.mxu0 0
        %1745 = vmatpush1.bf16.msra.mxu0 0
        %1746 = vmatprep.subr.bf16.mxu0 0
        %1747 = vmatpush1.bf16.msra.mxu0 0
        %1748 = vmatprep.subr.bf16.mxu0 0
        %1749 = vmatpush1.bf16.msra.mxu0 0
        %1750 = vmatprep.subr.bf16.mxu0 0
        %1751 = vmatpush1.bf16.msra.mxu0 0
        %1752 = vmatprep.subr.bf16.mxu0 0
        %1753 = vmatpush1.bf16.msra.mxu0 0
        %1754 = vmatprep.subr.bf16.mxu0 0
        %1755 = vmatpush1.bf16.msra.mxu0 0
        %1756 = vmatprep.subr.bf16.mxu0 0
        %1757 = vmatpush1.bf16.msra.mxu0 0
        %1758 = vmatprep.subr.bf16.mxu0 0
        %1759 = vmatpush1.bf16.msra.mxu0 0
        %1760 = vmatprep.subr.bf16.mxu0 0
        %1761 = vmatpush1.bf16.msra.mxu0 0
        %1762 = vmatprep.subr.bf16.mxu0 0
        %1763 = vmatpush1.bf16.msra.mxu0 0
        %1764 = vmatprep.subr.bf16.mxu0 0
        %1765 = vmatpush1.bf16.msra.mxu0 0
        %1766 = vmatprep.subr.bf16.mxu0 0
        %1767 = vmatpush1.bf16.msra.mxu0 0
        %1768 = vmatprep.subr.bf16.mxu0 0
        %1769 = vmatpush1.bf16.msra.mxu0 0
        %1770 = vmatprep.mubr.bf16.mxu0 0
        %1771 = vmatmul.mubr.bf16.gmra.mrb[0].mxu0 %v1733
        %v1772 = vpop.f32.mrb[0].mxu0
        %v1773 = vadd.f32 0.0, %v1772
        %v1774 = vpop.f32.mrb[0].mxu0
        %v1775 = vadd.f32 0.0, %v1774
        %v1776 = vpop.f32.mrb[0].mxu0
        %v1777 = vadd.f32 0.0, %v1776
        %v1778 = vpop.f32.mrb[0].mxu0
        %v1779 = vadd.f32 0.0, %v1778
        %1780 = vmatprep.mubr.bf16.mxu0 0
        %1781 = vmatmul.mubr.bf16.gmra.mrb[0].mxu0 %v1736
        %v1782 = vpop.f32.mrb[0].mxu0
        %v1783 = vadd.f32 0.0, %v1782
        %v1784 = vpop.f32.mrb[0].mxu0
        %v1785 = vadd.f32 0.0, %v1784
        %v1786 = vpop.f32.mrb[0].mxu0
        %v1787 = vadd.f32 0.0, %v1786
        %v1788 = vpop.f32.mrb[0].mxu0
        %v1789 = vadd.f32 0.0, %v1788
        %1790 = vdwg.mxu0
        %v1795 = vunpack.c.l.b16 %v1691
        %v1796 = vunpack.c.l.b16 %v1692
        %v1797 = vunpack.c.l.b16 %v1693
        %v1798 = vunpack.c.l.b16 %v1694
        %v1799 = vpack.c.b16 %v1796, %v1795
        %v1800 = vpack.c.b16 %v1798, %v1797
        %1801 = vrot.lane.b32.xlu0 %v1695, 124
        %v1802 = vpop.permute.xlu0 %1801
        %1803 = vrot.lane.b32.xlu0 %v1696, 124
        %v1804 = vpop.permute.xlu0 %1803
        %1805 = vrot.lane.b32.xlu0 %v1697, 124
        %v1806 = vpop.permute.xlu0 %1805
        %1807 = vrot.lane.b32.xlu0 %v1698, 124
        %v1808 = vpop.permute.xlu0 %1807
        %v1809 = vsel %vm683, %v1802, %v1804
        %v1810 = vsel %vm683, %v1806, %v1808
        %v1816 = vsel %vm605, %v1799, 0
        %v1819 = vsel %vm605, %v1800, 0
        %1821 = vmatprep.subr.bf16.mxu0 %v1804
        %1822 = vmatpush1.bf16.msra.mxu0 %v1809
        %1823 = vmatprep.subr.bf16.mxu0 %v1808
        %1824 = vmatpush1.bf16.msra.mxu0 %v1810
        %1825 = vmatprep.subr.bf16.mxu0 0
        %1826 = vmatpush1.bf16.msra.mxu0 0
        %1827 = vmatprep.subr.bf16.mxu0 0
        %1828 = vmatpush1.bf16.msra.mxu0 0
        %1829 = vmatprep.subr.bf16.mxu0 0
        %1830 = vmatpush1.bf16.msra.mxu0 0
        %1831 = vmatprep.subr.bf16.mxu0 0
        %1832 = vmatpush1.bf16.msra.mxu0 0
        %1833 = vmatprep.subr.bf16.mxu0 0
        %1834 = vmatpush1.bf16.msra.mxu0 0
        %1835 = vmatprep.subr.bf16.mxu0 0
        %1836 = vmatpush1.bf16.msra.mxu0 0
        %1837 = vmatprep.subr.bf16.mxu0 0
        %1838 = vmatpush1.bf16.msra.mxu0 0
        %1839 = vmatprep.subr.bf16.mxu0 0
        %1840 = vmatpush1.bf16.msra.mxu0 0
        %1841 = vmatprep.subr.bf16.mxu0 0
        %1842 = vmatpush1.bf16.msra.mxu0 0
        %1843 = vmatprep.subr.bf16.mxu0 0
        %1844 = vmatpush1.bf16.msra.mxu0 0
        %1845 = vmatprep.subr.bf16.mxu0 0
        %1846 = vmatpush1.bf16.msra.mxu0 0
        %1847 = vmatprep.subr.bf16.mxu0 0
        %1848 = vmatpush1.bf16.msra.mxu0 0
        %1849 = vmatprep.subr.bf16.mxu0 0
        %1850 = vmatpush1.bf16.msra.mxu0 0
        %1851 = vmatprep.subr.bf16.mxu0 0
        %1852 = vmatpush1.bf16.msra.mxu0 0
        %1853 = vmatprep.mubr.bf16.mxu0 0
        %1854 = vmatmul.mubr.bf16.gmra.mrb[0].mxu0 %v1816
        %v1855 = vpop.f32.mrb[0].mxu0
        %v1856 = vadd.f32 %v1773, %v1855
        %v1857 = vpop.f32.mrb[0].mxu0
        %v1858 = vadd.f32 %v1775, %v1857
        %v1859 = vpop.f32.mrb[0].mxu0
        %v1860 = vadd.f32 %v1777, %v1859
        %v1861 = vpop.f32.mrb[0].mxu0
        %v1862 = vadd.f32 %v1779, %v1861
        %1863 = vmatprep.mubr.bf16.mxu0 0
        %1864 = vmatmul.mubr.bf16.gmra.mrb[0].mxu0 %v1819
        %v1865 = vpop.f32.mrb[0].mxu0
        %v1866 = vadd.f32 %v1783, %v1865
        %v1867 = vpop.f32.mrb[0].mxu0
        %v1868 = vadd.f32 %v1785, %v1867
        %v1869 = vpop.f32.mrb[0].mxu0
        %v1870 = vadd.f32 %v1787, %v1869
        %v1871 = vpop.f32.mrb[0].mxu0
        %v1872 = vadd.f32 %v1789, %v1871
        %1873 = vdwg.mxu0
        %s1874 = scalar_lea.vmem [#allocation9], 80
        %v1875 = vld [vmem:[%s1874] sm:$0xf]
        %v1876 = vld [vmem:[%s1874 + $0x4] sm:$0xf]
        %v1877 = vld [vmem:[%s1874 + $0x8] sm:$0xf]
        %v1878 = vld [vmem:[%s1874 + $0xc] sm:$0xf]
        %v1883 = vunpack.c.l.b16 %v1875
        %v1884 = vunpack.c.l.b16 %v1876
        %v1885 = vunpack.c.l.b16 %v1877
        %v1886 = vunpack.c.l.b16 %v1878
        %v1887 = vpack.c.b16 %v1884, %v1883
        %v1888 = vpack.c.b16 %v1886, %v1885
        %1889 = vrot.lane.b32.xlu0 %v1695, 122
        %v1890 = vpop.permute.xlu0 %1889
        %1891 = vrot.lane.b32.xlu0 %v1696, 122
        %v1892 = vpop.permute.xlu0 %1891
        %1893 = vrot.lane.b32.xlu0 %v1697, 122
        %v1894 = vpop.permute.xlu0 %1893
        %1895 = vrot.lane.b32.xlu0 %v1698, 122
        %v1896 = vpop.permute.xlu0 %1895
        %v1897 = vsel %vm772, %v1890, %v1892
        %v1898 = vsel %vm772, %v1894, %v1896
        %v1904 = vsel %vm605, %v1887, 0
        %v1907 = vsel %vm605, %v1888, 0
        %1909 = vmatprep.subr.bf16.mxu0 %v1892
        %1910 = vmatpush1.bf16.msra.mxu0 %v1897
        %1911 = vmatprep.subr.bf16.mxu0 %v1896
        %1912 = vmatpush1.bf16.msra.mxu0 %v1898
        %1913 = vmatprep.subr.bf16.mxu0 0
        %1914 = vmatpush1.bf16.msra.mxu0 0
        %1915 = vmatprep.subr.bf16.mxu0 0
        %1916 = vmatpush1.bf16.msra.mxu0 0
        %1917 = vmatprep.subr.bf16.mxu0 0
        %1918 = vmatpush1.bf16.msra.mxu0 0
        %1919 = vmatprep.subr.bf16.mxu0 0
        %1920 = vmatpush1.bf16.msra.mxu0 0
        %1921 = vmatprep.subr.bf16.mxu0 0
        %1922 = vmatpush1.bf16.msra.mxu0 0
        %1923 = vmatprep.subr.bf16.mxu0 0
        %1924 = vmatpush1.bf16.msra.mxu0 0
        %1925 = vmatprep.subr.bf16.mxu0 0
        %1926 = vmatpush1.bf16.msra.mxu0 0
        %1927 = vmatprep.subr.bf16.mxu0 0
        %1928 = vmatpush1.bf16.msra.mxu0 0
        %1929 = vmatprep.subr.bf16.mxu0 0
        %1930 = vmatpush1.bf16.msra.mxu0 0
        %1931 = vmatprep.subr.bf16.mxu0 0
        %1932 = vmatpush1.bf16.msra.mxu0 0
        %1933 = vmatprep.subr.bf16.mxu0 0
        %1934 = vmatpush1.bf16.msra.mxu0 0
        %1935 = vmatprep.subr.bf16.mxu0 0
        %1936 = vmatpush1.bf16.msra.mxu0 0
        %1937 = vmatprep.subr.bf16.mxu0 0
        %1938 = vmatpush1.bf16.msra.mxu0 0
        %1939 = vmatprep.subr.bf16.mxu0 0
        %1940 = vmatpush1.bf16.msra.mxu0 0
        %1941 = vmatprep.mubr.bf16.mxu0 0
        %1942 = vmatmul.mubr.bf16.gmra.mrb[0].mxu0 %v1904
        %v1943 = vpop.f32.mrb[0].mxu0
        %v1944 = vadd.f32 0.0, %v1943
        %v1945 = vpop.f32.mrb[0].mxu0
        %v1946 = vadd.f32 0.0, %v1945
        %v1947 = vpop.f32.mrb[0].mxu0
        %v1948 = vadd.f32 0.0, %v1947
        %v1949 = vpop.f32.mrb[0].mxu0
        %v1950 = vadd.f32 0.0, %v1949
        %1951 = vmatprep.mubr.bf16.mxu0 0
        %1952 = vmatmul.mubr.bf16.gmra.mrb[0].mxu0 %v1907
        %v1953 = vpop.f32.mrb[0].mxu0
        %v1954 = vadd.f32 0.0, %v1953
        %v1955 = vpop.f32.mrb[0].mxu0
        %v1956 = vadd.f32 0.0, %v1955
        %v1957 = vpop.f32.mrb[0].mxu0
        %v1958 = vadd.f32 0.0, %v1957
        %v1959 = vpop.f32.mrb[0].mxu0
        %v1960 = vadd.f32 0.0, %v1959
        %1961 = vdwg.mxu0
        %v1962 = vadd.f32 %v1856, %v1944
        %v1963 = vadd.f32 %v1858, %v1946
        %v1964 = vadd.f32 %v1860, %v1948
        %v1965 = vadd.f32 %v1862, %v1950
        %v1966 = vadd.f32 %v1866, %v1954
        %v1967 = vadd.f32 %v1868, %v1956
        %v1968 = vadd.f32 %v1870, %v1958
        %v1969 = vadd.f32 %v1872, %v1960
        %s1970 = scalar_lea.vmem %s6, 32
        %v1971 = vld [vmem:[%s1970] sm:$0xff]
        %v1972 = vld [vmem:[%s1970 + $0x8] sm:$0xff]
        %v1973 = vld [vmem:[%s1970 + $0x10] sm:$0xff]
        %v1974 = vld [vmem:[%s1970 + $0x18] sm:$0xff]
        %1976 = vset.pattern.permute.xlu0 0
        %1977 = vperm.xlu0 %1976, %v1971
        %v1978 = vpop.permute.xlu0 %1977
        %1981 = vset.pattern.permute.xlu0 0
        %1982 = vperm.xlu0 %1981, %v1972
        %v1983 = vpop.permute.xlu0 %1982
        %1986 = vset.pattern.permute.xlu0 0
        %1987 = vperm.xlu0 %1986, %v1973
        %v1988 = vpop.permute.xlu0 %1987
        %1991 = vset.pattern.permute.xlu0 0
        %1992 = vperm.xlu0 %1991, %v1974
        %v1993 = vpop.permute.xlu0 %1992
        %v1995 = vadd.f32 %v1962, %v1978
        %v1996 = vadd.f32 %v1963, %v1978
        %v1997 = vadd.f32 %v1964, %v1983
        %v1998 = vadd.f32 %v1965, %v1983
        %v1999 = vadd.f32 %v1966, %v1988
        %v2000 = vadd.f32 %v1967, %v1988
        %v2001 = vadd.f32 %v1968, %v1993
        %v2002 = vadd.f32 %v1969, %v1993
        %v2003 = vadd.f32 %v1995, %v1251
        %v2004 = vadd.f32 %v1996, %v1252
        %v2005 = vadd.f32 %v1997, %v1253
        %v2006 = vadd.f32 %v1998, %v1254
        %v2007 = vadd.f32 %v1999, %v1255
        %v2008 = vadd.f32 %v2000, %v1256
        %v2009 = vadd.f32 %v2001, %v1257
        %v2010 = vadd.f32 %v2002, %v1258
        %vm2011 = vcmp.ge.f32.partialorder %v2003, 0.0
        %vm2012 = vcmp.ge.f32.partialorder %v2004, 0.0
        %vm2013 = vcmp.ge.f32.partialorder %v2005, 0.0
        %vm2014 = vcmp.ge.f32.partialorder %v2006, 0.0
        %vm2015 = vcmp.ge.f32.partialorder %v2007, 0.0
        %vm2016 = vcmp.ge.f32.partialorder %v2008, 0.0
        %vm2017 = vcmp.ge.f32.partialorder %v2009, 0.0
        %vm2018 = vcmp.ge.f32.partialorder %v2010, 0.0
        %v2019 = vmul.f32 %v2003, 0.1
        %v2020 = vmul.f32 %v2004, 0.1
        %v2021 = vmul.f32 %v2005, 0.1
        %v2022 = vmul.f32 %v2006, 0.1
        %v2023 = vmul.f32 %v2007, 0.1
        %v2024 = vmul.f32 %v2008, 0.1
        %v2025 = vmul.f32 %v2009, 0.1
        %v2026 = vmul.f32 %v2010, 0.1
        %v2027 = vsel %vm2011, %v2003, %v2019
        %v2028 = vsel %vm2012, %v2004, %v2020
        %v2029 = vsel %vm2013, %v2005, %v2021
        %v2030 = vsel %vm2014, %v2006, %v2022
        %v2031 = vsel %vm2015, %v2007, %v2023
        %v2032 = vsel %vm2016, %v2008, %v2024
        %v2033 = vsel %vm2017, %v2009, %v2025
        %v2034 = vsel %vm2018, %v2010, %v2026
        %v2035 = vsel %vm904, %v2027, 0.0
        %v2036 = vsel %vm905, %v2028, 0.0
        %v2037 = vsel %vm904, %v2029, 0.0
        %v2038 = vsel %vm905, %v2030, 0.0
        %v2039 = vsel %vm904, %v2031, 0.0
        %v2040 = vsel %vm905, %v2032, 0.0
        %v2041 = vsel %vm904, %v2033, 0.0
        %v2042 = vsel %vm905, %v2034, 0.0
        %v2043 = vpack.c.bf16 %v2037, %v2035
        %v2044 = vpack.c.bf16 %v2038, %v2036
        %v2045 = vpack.c.bf16 %v2041, %v2039
        %v2046 = vpack.c.bf16 %v2042, %v2040
        %2051 = vrot.lane.b32.xlu0 %v2043, 5
        %v2052 = vpop.permute.xlu0 %2051
        %2053 = vrot.lane.b32.xlu0 %v2044, 5
        %v2054 = vpop.permute.xlu0 %2053
        %2055 = vrot.lane.b32.xlu0 %v2045, 5
        %v2056 = vpop.permute.xlu0 %2055
        %2057 = vrot.lane.b32.xlu0 %v2046, 5
        %v2058 = vpop.permute.xlu0 %2057
        %v2059 = vsel %vm550, %v2052, %v2054
        %v2060 = vsel %vm550, %v2056, %v2058
        %2065 = vst.msk [vmem:[#allocation2] sm:$0xff] %vm557, %v2052
        %2066 = vst.msk [vmem:[#allocation2 + $0x8] sm:$0xff] %vm559, %v2059
        %2067 = vst.msk [vmem:[#allocation2 + $0x10] sm:$0xff] %vm557, %v2056
        %2068 = vst.msk [vmem:[#allocation2 + $0x18] sm:$0xff] %vm559, %v2060
        %s2069 = scalar_lea.vmem %s3, 96
        %v2070 = vld [vmem:[%s2069] sm:$0xf]
        %v2071 = vld [vmem:[%s2069 + $0x4] sm:$0xf]
        %v2072 = vld [vmem:[%s2069 + $0x8] sm:$0xf]
        %v2073 = vld [vmem:[%s2069 + $0xc] sm:$0xf]
        %v2074 = vld [vmem:[#allocation2] sm:$0xff]
        %v2075 = vld [vmem:[#allocation2 + $0x8] sm:$0xff]
        %v2076 = vld [vmem:[#allocation2 + $0x10] sm:$0xff]
        %v2077 = vld [vmem:[#allocation2 + $0x18] sm:$0xff]
        %s2078 = scalar_lea.vmem %s3, 112
        %v2079 = vld [vmem:[%s2078] sm:$0xf]
        %v2080 = vld [vmem:[%s2078 + $0x4] sm:$0xf]
        %v2081 = vld [vmem:[%s2078 + $0x8] sm:$0xf]
        %v2082 = vld [vmem:[%s2078 + $0xc] sm:$0xf]
        %v2087 = vunpack.c.l.b16 %v2079
        %v2088 = vunpack.c.l.b16 %v2080
        %v2089 = vunpack.c.l.b16 %v2081
        %v2090 = vunpack.c.l.b16 %v2082
        %v2091 = vpack.c.b16 %v2088, %v2087
        %v2092 = vpack.c.b16 %v2090, %v2089
        %2097 = vrot.lane.b32.xlu0 %v2074, 123
        %v2098 = vpop.permute.xlu0 %2097
        %2099 = vrot.lane.b32.xlu0 %v2075, 123
        %v2100 = vpop.permute.xlu0 %2099
        %2101 = vrot.lane.b32.xlu0 %v2076, 123
        %v2102 = vpop.permute.xlu0 %2101
        %2103 = vrot.lane.b32.xlu0 %v2077, 123
        %v2104 = vpop.permute.xlu0 %2103
        %v2105 = vsel %vm598, %v2098, %v2100
        %v2106 = vsel %vm598, %v2102, %v2104
        %v2112 = vsel %vm605, %v2091, 0
        %v2115 = vsel %vm605, %v2092, 0
        %2117 = vmatprep.subr.bf16.mxu0 %v2100
        %2118 = vmatpush1.bf16.msra.mxu0 %v2105
        %2119 = vmatprep.subr.bf16.mxu0 %v2104
        %2120 = vmatpush1.bf16.msra.mxu0 %v2106
        %2121 = vmatprep.subr.bf16.mxu0 0
        %2122 = vmatpush1.bf16.msra.mxu0 0
        %2123 = vmatprep.subr.bf16.mxu0 0
        %2124 = vmatpush1.bf16.msra.mxu0 0
        %2125 = vmatprep.subr.bf16.mxu0 0
        %2126 = vmatpush1.bf16.msra.mxu0 0
        %2127 = vmatprep.subr.bf16.mxu0 0
        %2128 = vmatpush1.bf16.msra.mxu0 0
        %2129 = vmatprep.subr.bf16.mxu0 0
        %2130 = vmatpush1.bf16.msra.mxu0 0
        %2131 = vmatprep.subr.bf16.mxu0 0
        %2132 = vmatpush1.bf16.msra.mxu0 0
        %2133 = vmatprep.subr.bf16.mxu0 0
        %2134 = vmatpush1.bf16.msra.mxu0 0
        %2135 = vmatprep.subr.bf16.mxu0 0
        %2136 = vmatpush1.bf16.msra.mxu0 0
        %2137 = vmatprep.subr.bf16.mxu0 0
        %2138 = vmatpush1.bf16.msra.mxu0 0
        %2139 = vmatprep.subr.bf16.mxu0 0
        %2140 = vmatpush1.bf16.msra.mxu0 0
        %2141 = vmatprep.subr.bf16.mxu0 0
        %2142 = vmatpush1.bf16.msra.mxu0 0
        %2143 = vmatprep.subr.bf16.mxu0 0
        %2144 = vmatpush1.bf16.msra.mxu0 0
        %2145 = vmatprep.subr.bf16.mxu0 0
        %2146 = vmatpush1.bf16.msra.mxu0 0
        %2147 = vmatprep.subr.bf16.mxu0 0
        %2148 = vmatpush1.bf16.msra.mxu0 0
        %2149 = vmatprep.mubr.bf16.mxu0 0
        %2150 = vmatmul.mubr.bf16.gmra.mrb[0].mxu0 %v2112
        %v2151 = vpop.f32.mrb[0].mxu0
        %v2152 = vadd.f32 0.0, %v2151
        %v2153 = vpop.f32.mrb[0].mxu0
        %v2154 = vadd.f32 0.0, %v2153
        %v2155 = vpop.f32.mrb[0].mxu0
        %v2156 = vadd.f32 0.0, %v2155
        %v2157 = vpop.f32.mrb[0].mxu0
        %v2158 = vadd.f32 0.0, %v2157
        %2159 = vmatprep.mubr.bf16.mxu0 0
        %2160 = vmatmul.mubr.bf16.gmra.mrb[0].mxu0 %v2115
        %v2161 = vpop.f32.mrb[0].mxu0
        %v2162 = vadd.f32 0.0, %v2161
        %v2163 = vpop.f32.mrb[0].mxu0
        %v2164 = vadd.f32 0.0, %v2163
        %v2165 = vpop.f32.mrb[0].mxu0
        %v2166 = vadd.f32 0.0, %v2165
        %v2167 = vpop.f32.mrb[0].mxu0
        %v2168 = vadd.f32 0.0, %v2167
        %2169 = vdwg.mxu0
        %v2174 = vunpack.c.l.b16 %v2070
        %v2175 = vunpack.c.l.b16 %v2071
        %v2176 = vunpack.c.l.b16 %v2072
        %v2177 = vunpack.c.l.b16 %v2073
        %v2178 = vpack.c.b16 %v2175, %v2174
        %v2179 = vpack.c.b16 %v2177, %v2176
        %v2181 = vsel %vm605, %v2178, 0
        %v2184 = vsel %vm605, %v2179, 0
        %2186 = vmatprep.subr.bf16.mxu0 %v2075
        %2187 = vmatpush1.bf16.msra.mxu0 %v2074
        %2188 = vmatprep.subr.bf16.mxu0 %v2077
        %2189 = vmatpush1.bf16.msra.mxu0 %v2076
        %2190 = vmatprep.subr.bf16.mxu0 0
        %2191 = vmatpush1.bf16.msra.mxu0 0
        %2192 = vmatprep.subr.bf16.mxu0 0
        %2193 = vmatpush1.bf16.msra.mxu0 0
        %2194 = vmatprep.subr.bf16.mxu0 0
        %2195 = vmatpush1.bf16.msra.mxu0 0
        %2196 = vmatprep.subr.bf16.mxu0 0
        %2197 = vmatpush1.bf16.msra.mxu0 0
        %2198 = vmatprep.subr.bf16.mxu0 0
        %2199 = vmatpush1.bf16.msra.mxu0 0
        %2200 = vmatprep.subr.bf16.mxu0 0
        %2201 = vmatpush1.bf16.msra.mxu0 0
        %2202 = vmatprep.subr.bf16.mxu0 0
        %2203 = vmatpush1.bf16.msra.mxu0 0
        %2204 = vmatprep.subr.bf16.mxu0 0
        %2205 = vmatpush1.bf16.msra.mxu0 0
        %2206 = vmatprep.subr.bf16.mxu0 0
        %2207 = vmatpush1.bf16.msra.mxu0 0
        %2208 = vmatprep.subr.bf16.mxu0 0
        %2209 = vmatpush1.bf16.msra.mxu0 0
        %2210 = vmatprep.subr.bf16.mxu0 0
        %2211 = vmatpush1.bf16.msra.mxu0 0
        %2212 = vmatprep.subr.bf16.mxu0 0
        %2213 = vmatpush1.bf16.msra.mxu0 0
        %2214 = vmatprep.subr.bf16.mxu0 0
        %2215 = vmatpush1.bf16.msra.mxu0 0
        %2216 = vmatprep.subr.bf16.mxu0 0
        %2217 = vmatpush1.bf16.msra.mxu0 0
        %2218 = vmatprep.mubr.bf16.mxu0 0
        %2219 = vmatmul.mubr.bf16.gmra.mrb[0].mxu0 %v2181
        %v2220 = vpop.f32.mrb[0].mxu0
        %v2221 = vadd.f32 %v2152, %v2220
        %v2222 = vpop.f32.mrb[0].mxu0
        %v2223 = vadd.f32 %v2154, %v2222
        %v2224 = vpop.f32.mrb[0].mxu0
        %v2225 = vadd.f32 %v2156, %v2224
        %v2226 = vpop.f32.mrb[0].mxu0
        %v2227 = vadd.f32 %v2158, %v2226
        %2228 = vmatprep.mubr.bf16.mxu0 0
        %2229 = vmatmul.mubr.bf16.gmra.mrb[0].mxu0 %v2184
        %v2230 = vpop.f32.mrb[0].mxu0
        %v2231 = vadd.f32 %v2162, %v2230
        %v2232 = vpop.f32.mrb[0].mxu0
        %v2233 = vadd.f32 %v2164, %v2232
        %v2234 = vpop.f32.mrb[0].mxu0
        %v2235 = vadd.f32 %v2166, %v2234
        %v2236 = vpop.f32.mrb[0].mxu0
        %v2237 = vadd.f32 %v2168, %v2236
        %2238 = vdwg.mxu0
        %s2239 = scalar_lea.vmem %s3, 128
        %v2240 = vld [vmem:[%s2239] sm:$0xf]
        %v2241 = vld [vmem:[%s2239 + $0x4] sm:$0xf]
        %v2242 = vld [vmem:[%s2239 + $0x8] sm:$0xf]
        %v2243 = vld [vmem:[%s2239 + $0xc] sm:$0xf]
        %v2248 = vunpack.c.l.b16 %v2240
        %v2249 = vunpack.c.l.b16 %v2241
        %v2250 = vunpack.c.l.b16 %v2242
        %v2251 = vunpack.c.l.b16 %v2243
        %v2252 = vpack.c.b16 %v2249, %v2248
        %v2253 = vpack.c.b16 %v2251, %v2250
        %2254 = vrot.lane.b32.xlu0 %v2074, 118
        %v2255 = vpop.permute.xlu0 %2254
        %2256 = vrot.lane.b32.xlu0 %v2075, 118
        %v2257 = vpop.permute.xlu0 %2256
        %2258 = vrot.lane.b32.xlu0 %v2076, 118
        %v2259 = vpop.permute.xlu0 %2258
        %2260 = vrot.lane.b32.xlu0 %v2077, 118
        %v2261 = vpop.permute.xlu0 %2260
        %vm2262 = vcmask 965632
        %v2263 = vsel %vm2262, %v2255, %v2257
        %v2264 = vsel %vm2262, %v2259, %v2261
        %v2270 = vsel %vm605, %v2252, 0
        %v2273 = vsel %vm605, %v2253, 0
        %2275 = vmatprep.subr.bf16.mxu0 %v2257
        %2276 = vmatpush1.bf16.msra.mxu0 %v2263
        %2277 = vmatprep.subr.bf16.mxu0 %v2261
        %2278 = vmatpush1.bf16.msra.mxu0 %v2264
        %2279 = vmatprep.subr.bf16.mxu0 0
        %2280 = vmatpush1.bf16.msra.mxu0 0
        %2281 = vmatprep.subr.bf16.mxu0 0
        %2282 = vmatpush1.bf16.msra.mxu0 0
        %2283 = vmatprep.subr.bf16.mxu0 0
        %2284 = vmatpush1.bf16.msra.mxu0 0
        %2285 = vmatprep.subr.bf16.mxu0 0
        %2286 = vmatpush1.bf16.msra.mxu0 0
        %2287 = vmatprep.subr.bf16.mxu0 0
        %2288 = vmatpush1.bf16.msra.mxu0 0
        %2289 = vmatprep.subr.bf16.mxu0 0
        %2290 = vmatpush1.bf16.msra.mxu0 0
        %2291 = vmatprep.subr.bf16.mxu0 0
        %2292 = vmatpush1.bf16.msra.mxu0 0
        %2293 = vmatprep.subr.bf16.mxu0 0
        %2294 = vmatpush1.bf16.msra.mxu0 0
        %2295 = vmatprep.subr.bf16.mxu0 0
        %2296 = vmatpush1.bf16.msra.mxu0 0
        %2297 = vmatprep.subr.bf16.mxu0 0
        %2298 = vmatpush1.bf16.msra.mxu0 0
        %2299 = vmatprep.subr.bf16.mxu0 0
        %2300 = vmatpush1.bf16.msra.mxu0 0
        %2301 = vmatprep.subr.bf16.mxu0 0
        %2302 = vmatpush1.bf16.msra.mxu0 0
        %2303 = vmatprep.subr.bf16.mxu0 0
        %2304 = vmatpush1.bf16.msra.mxu0 0
        %2305 = vmatprep.subr.bf16.mxu0 0
        %2306 = vmatpush1.bf16.msra.mxu0 0
        %2307 = vmatprep.mubr.bf16.mxu0 0
        %2308 = vmatmul.mubr.bf16.gmra.mrb[0].mxu0 %v2270
        %v2309 = vpop.f32.mrb[0].mxu0
        %v2310 = vadd.f32 0.0, %v2309
        %v2311 = vpop.f32.mrb[0].mxu0
        %v2312 = vadd.f32 0.0, %v2311
        %v2313 = vpop.f32.mrb[0].mxu0
        %v2314 = vadd.f32 0.0, %v2313
        %v2315 = vpop.f32.mrb[0].mxu0
        %v2316 = vadd.f32 0.0, %v2315
        %2317 = vmatprep.mubr.bf16.mxu0 0
        %2318 = vmatmul.mubr.bf16.gmra.mrb[0].mxu0 %v2273
        %v2319 = vpop.f32.mrb[0].mxu0
        %v2320 = vadd.f32 0.0, %v2319
        %v2321 = vpop.f32.mrb[0].mxu0
        %v2322 = vadd.f32 0.0, %v2321
        %v2323 = vpop.f32.mrb[0].mxu0
        %v2324 = vadd.f32 0.0, %v2323
        %v2325 = vpop.f32.mrb[0].mxu0
        %v2326 = vadd.f32 0.0, %v2325
        %2327 = vdwg.mxu0
        %v2328 = vadd.f32 %v2221, %v2310
        %v2329 = vadd.f32 %v2223, %v2312
        %v2330 = vadd.f32 %v2225, %v2314
        %v2331 = vadd.f32 %v2227, %v2316
        %v2332 = vadd.f32 %v2231, %v2320
        %v2333 = vadd.f32 %v2233, %v2322
        %v2334 = vadd.f32 %v2235, %v2324
        %v2335 = vadd.f32 %v2237, %v2326
        %s2336 = scalar_lea.vmem %s4, 64
        %v2337 = vld [vmem:[%s2336] sm:$0xff]
        %v2338 = vld [vmem:[%s2336 + $0x8] sm:$0xff]
        %v2339 = vld [vmem:[%s2336 + $0x10] sm:$0xff]
        %v2340 = vld [vmem:[%s2336 + $0x18] sm:$0xff]
        %2342 = vset.pattern.permute.xlu0 0
        %2343 = vperm.xlu0 %2342, %v2337
        %v2344 = vpop.permute.xlu0 %2343
        %2347 = vset.pattern.permute.xlu0 0
        %2348 = vperm.xlu0 %2347, %v2338
        %v2349 = vpop.permute.xlu0 %2348
        %2352 = vset.pattern.permute.xlu0 0
        %2353 = vperm.xlu0 %2352, %v2339
        %v2354 = vpop.permute.xlu0 %2353
        %2357 = vset.pattern.permute.xlu0 0
        %2358 = vperm.xlu0 %2357, %v2340
        %v2359 = vpop.permute.xlu0 %2358
        %v2361 = vadd.f32 %v2328, %v2344
        %v2362 = vadd.f32 %v2329, %v2344
        %v2363 = vadd.f32 %v2330, %v2349
        %v2364 = vadd.f32 %v2331, %v2349
        %v2365 = vadd.f32 %v2332, %v2354
        %v2366 = vadd.f32 %v2333, %v2354
        %v2367 = vadd.f32 %v2334, %v2359
        %v2368 = vadd.f32 %v2335, %v2359
        %vm2369 = vcmp.ge.f32.partialorder %v2361, 0.0
        %vm2370 = vcmp.ge.f32.partialorder %v2362, 0.0
        %vm2371 = vcmp.ge.f32.partialorder %v2363, 0.0
        %vm2372 = vcmp.ge.f32.partialorder %v2364, 0.0
        %vm2373 = vcmp.ge.f32.partialorder %v2365, 0.0
        %vm2374 = vcmp.ge.f32.partialorder %v2366, 0.0
        %vm2375 = vcmp.ge.f32.partialorder %v2367, 0.0
        %vm2376 = vcmp.ge.f32.partialorder %v2368, 0.0
        %v2377 = vmul.f32 %v2361, 0.1
        %v2378 = vmul.f32 %v2362, 0.1
        %v2379 = vmul.f32 %v2363, 0.1
        %v2380 = vmul.f32 %v2364, 0.1
        %v2381 = vmul.f32 %v2365, 0.1
        %v2382 = vmul.f32 %v2366, 0.1
        %v2383 = vmul.f32 %v2367, 0.1
        %v2384 = vmul.f32 %v2368, 0.1
        %v2385 = vsel %vm2369, %v2361, %v2377
        %v2386 = vsel %vm2370, %v2362, %v2378
        %v2387 = vsel %vm2371, %v2363, %v2379
        %v2388 = vsel %vm2372, %v2364, %v2380
        %v2389 = vsel %vm2373, %v2365, %v2381
        %v2390 = vsel %vm2374, %v2366, %v2382
        %v2391 = vsel %vm2375, %v2367, %v2383
        %v2392 = vsel %vm2376, %v2368, %v2384
        %v2393 = vsel %vm904, %v2385, 0.0
        %v2394 = vsel %vm905, %v2386, 0.0
        %v2395 = vsel %vm904, %v2387, 0.0
        %v2396 = vsel %vm905, %v2388, 0.0
        %v2397 = vsel %vm904, %v2389, 0.0
        %v2398 = vsel %vm905, %v2390, 0.0
        %v2399 = vsel %vm904, %v2391, 0.0
        %v2400 = vsel %vm905, %v2392, 0.0
        %v2401 = vpack.c.bf16 %v2395, %v2393
        %v2402 = vpack.c.bf16 %v2396, %v2394
        %v2403 = vpack.c.bf16 %v2399, %v2397
        %v2404 = vpack.c.bf16 %v2400, %v2398
        %2409 = vrot.lane.b32.xlu0 %v2401, 5
        %v2410 = vpop.permute.xlu0 %2409
        %2411 = vrot.lane.b32.xlu0 %v2402, 5
        %v2412 = vpop.permute.xlu0 %2411
        %2413 = vrot.lane.b32.xlu0 %v2403, 5
        %v2414 = vpop.permute.xlu0 %2413
        %2415 = vrot.lane.b32.xlu0 %v2404, 5
        %v2416 = vpop.permute.xlu0 %2415
        %v2417 = vsel %vm550, %v2410, %v2412
        %v2418 = vsel %vm550, %v2414, %v2416
        %2423 = vst.msk [vmem:[#allocation2] sm:$0xff] %vm557, %v2410
        %2424 = vst.msk [vmem:[#allocation2 + $0x8] sm:$0xff] %vm559, %v2417
        %2425 = vst.msk [vmem:[#allocation2 + $0x10] sm:$0xff] %vm557, %v2414
        %2426 = vst.msk [vmem:[#allocation2 + $0x18] sm:$0xff] %vm559, %v2418
        %s2427 = scalar_lea.vmem [#allocation9], 96
        %v2428 = vld [vmem:[%s2427] sm:$0xf]
        %v2429 = vld [vmem:[%s2427 + $0x4] sm:$0xf]
        %v2430 = vld [vmem:[%s2427 + $0x8] sm:$0xf]
        %v2431 = vld [vmem:[%s2427 + $0xc] sm:$0xf]
        %v2432 = vld [vmem:[#allocation2] sm:$0xff]
        %v2433 = vld [vmem:[#allocation2 + $0x8] sm:$0xff]
        %v2434 = vld [vmem:[#allocation2 + $0x10] sm:$0xff]
        %v2435 = vld [vmem:[#allocation2 + $0x18] sm:$0xff]
        %s2436 = scalar_lea.vmem [#allocation9], 112
        %v2437 = vld [vmem:[%s2436] sm:$0xf]
        %v2438 = vld [vmem:[%s2436 + $0x4] sm:$0xf]
        %v2439 = vld [vmem:[%s2436 + $0x8] sm:$0xf]
        %v2440 = vld [vmem:[%s2436 + $0xc] sm:$0xf]
        %v2445 = vunpack.c.l.b16 %v2437
        %v2446 = vunpack.c.l.b16 %v2438
        %v2447 = vunpack.c.l.b16 %v2439
        %v2448 = vunpack.c.l.b16 %v2440
        %v2449 = vpack.c.b16 %v2446, %v2445
        %v2450 = vpack.c.b16 %v2448, %v2447
        %2455 = vrot.lane.b32.xlu0 %v2432, 123
        %v2456 = vpop.permute.xlu0 %2455
        %2457 = vrot.lane.b32.xlu0 %v2433, 123
        %v2458 = vpop.permute.xlu0 %2457
        %2459 = vrot.lane.b32.xlu0 %v2434, 123
        %v2460 = vpop.permute.xlu0 %2459
        %2461 = vrot.lane.b32.xlu0 %v2435, 123
        %v2462 = vpop.permute.xlu0 %2461
        %v2463 = vsel %vm598, %v2456, %v2458
        %v2464 = vsel %vm598, %v2460, %v2462
        %v2470 = vsel %vm605, %v2449, 0
        %v2473 = vsel %vm605, %v2450, 0
        %2475 = vmatprep.subr.bf16.mxu0 %v2458
        %2476 = vmatpush1.bf16.msra.mxu0 %v2463
        %2477 = vmatprep.subr.bf16.mxu0 %v2462
        %2478 = vmatpush1.bf16.msra.mxu0 %v2464
        %2479 = vmatprep.subr.bf16.mxu0 0
        %2480 = vmatpush1.bf16.msra.mxu0 0
        %2481 = vmatprep.subr.bf16.mxu0 0
        %2482 = vmatpush1.bf16.msra.mxu0 0
        %2483 = vmatprep.subr.bf16.mxu0 0
        %2484 = vmatpush1.bf16.msra.mxu0 0
        %2485 = vmatprep.subr.bf16.mxu0 0
        %2486 = vmatpush1.bf16.msra.mxu0 0
        %2487 = vmatprep.subr.bf16.mxu0 0
        %2488 = vmatpush1.bf16.msra.mxu0 0
        %2489 = vmatprep.subr.bf16.mxu0 0
        %2490 = vmatpush1.bf16.msra.mxu0 0
        %2491 = vmatprep.subr.bf16.mxu0 0
        %2492 = vmatpush1.bf16.msra.mxu0 0
        %2493 = vmatprep.subr.bf16.mxu0 0
        %2494 = vmatpush1.bf16.msra.mxu0 0
        %2495 = vmatprep.subr.bf16.mxu0 0
        %2496 = vmatpush1.bf16.msra.mxu0 0
        %2497 = vmatprep.subr.bf16.mxu0 0
        %2498 = vmatpush1.bf16.msra.mxu0 0
        %2499 = vmatprep.subr.bf16.mxu0 0
        %2500 = vmatpush1.bf16.msra.mxu0 0
        %2501 = vmatprep.subr.bf16.mxu0 0
        %2502 = vmatpush1.bf16.msra.mxu0 0
        %2503 = vmatprep.subr.bf16.mxu0 0
        %2504 = vmatpush1.bf16.msra.mxu0 0
        %2505 = vmatprep.subr.bf16.mxu0 0
        %2506 = vmatpush1.bf16.msra.mxu0 0
        %2507 = vmatprep.mubr.bf16.mxu0 0
        %2508 = vmatmul.mubr.bf16.gmra.mrb[0].mxu0 %v2470
        %v2509 = vpop.f32.mrb[0].mxu0
        %v2510 = vadd.f32 0.0, %v2509
        %v2511 = vpop.f32.mrb[0].mxu0
        %v2512 = vadd.f32 0.0, %v2511
        %v2513 = vpop.f32.mrb[0].mxu0
        %v2514 = vadd.f32 0.0, %v2513
        %v2515 = vpop.f32.mrb[0].mxu0
        %v2516 = vadd.f32 0.0, %v2515
        %2517 = vmatprep.mubr.bf16.mxu0 0
        %2518 = vmatmul.mubr.bf16.gmra.mrb[0].mxu0 %v2473
        %v2519 = vpop.f32.mrb[0].mxu0
        %v2520 = vadd.f32 0.0, %v2519
        %v2521 = vpop.f32.mrb[0].mxu0
        %v2522 = vadd.f32 0.0, %v2521
        %v2523 = vpop.f32.mrb[0].mxu0
        %v2524 = vadd.f32 0.0, %v2523
        %v2525 = vpop.f32.mrb[0].mxu0
        %v2526 = vadd.f32 0.0, %v2525
        %2527 = vdwg.mxu0
        %v2532 = vunpack.c.l.b16 %v2428
        %v2533 = vunpack.c.l.b16 %v2429
        %v2534 = vunpack.c.l.b16 %v2430
        %v2535 = vunpack.c.l.b16 %v2431
        %v2536 = vpack.c.b16 %v2533, %v2532
        %v2537 = vpack.c.b16 %v2535, %v2534
        %2538 = vrot.lane.b32.xlu0 %v2432, 124
        %v2539 = vpop.permute.xlu0 %2538
        %2540 = vrot.lane.b32.xlu0 %v2433, 124
        %v2541 = vpop.permute.xlu0 %2540
        %2542 = vrot.lane.b32.xlu0 %v2434, 124
        %v2543 = vpop.permute.xlu0 %2542
        %2544 = vrot.lane.b32.xlu0 %v2435, 124
        %v2545 = vpop.permute.xlu0 %2544
        %v2546 = vsel %vm683, %v2539, %v2541
        %v2547 = vsel %vm683, %v2543, %v2545
        %v2553 = vsel %vm605, %v2536, 0
        %v2556 = vsel %vm605, %v2537, 0
        %2558 = vmatprep.subr.bf16.mxu0 %v2541
        %2559 = vmatpush1.bf16.msra.mxu0 %v2546
        %2560 = vmatprep.subr.bf16.mxu0 %v2545
        %2561 = vmatpush1.bf16.msra.mxu0 %v2547
        %2562 = vmatprep.subr.bf16.mxu0 0
        %2563 = vmatpush1.bf16.msra.mxu0 0
        %2564 = vmatprep.subr.bf16.mxu0 0
        %2565 = vmatpush1.bf16.msra.mxu0 0
        %2566 = vmatprep.subr.bf16.mxu0 0
        %2567 = vmatpush1.bf16.msra.mxu0 0
        %2568 = vmatprep.subr.bf16.mxu0 0
        %2569 = vmatpush1.bf16.msra.mxu0 0
        %2570 = vmatprep.subr.bf16.mxu0 0
        %2571 = vmatpush1.bf16.msra.mxu0 0
        %2572 = vmatprep.subr.bf16.mxu0 0
        %2573 = vmatpush1.bf16.msra.mxu0 0
        %2574 = vmatprep.subr.bf16.mxu0 0
        %2575 = vmatpush1.bf16.msra.mxu0 0
        %2576 = vmatprep.subr.bf16.mxu0 0
        %2577 = vmatpush1.bf16.msra.mxu0 0
        %2578 = vmatprep.subr.bf16.mxu0 0
        %2579 = vmatpush1.bf16.msra.mxu0 0
        %2580 = vmatprep.subr.bf16.mxu0 0
        %2581 = vmatpush1.bf16.msra.mxu0 0
        %2582 = vmatprep.subr.bf16.mxu0 0
        %2583 = vmatpush1.bf16.msra.mxu0 0
        %2584 = vmatprep.subr.bf16.mxu0 0
        %2585 = vmatpush1.bf16.msra.mxu0 0
        %2586 = vmatprep.subr.bf16.mxu0 0
        %2587 = vmatpush1.bf16.msra.mxu0 0
        %2588 = vmatprep.subr.bf16.mxu0 0
        %2589 = vmatpush1.bf16.msra.mxu0 0
        %2590 = vmatprep.mubr.bf16.mxu0 0
        %2591 = vmatmul.mubr.bf16.gmra.mrb[0].mxu0 %v2553
        %v2592 = vpop.f32.mrb[0].mxu0
        %v2593 = vadd.f32 %v2510, %v2592
        %v2594 = vpop.f32.mrb[0].mxu0
        %v2595 = vadd.f32 %v2512, %v2594
        %v2596 = vpop.f32.mrb[0].mxu0
        %v2597 = vadd.f32 %v2514, %v2596
        %v2598 = vpop.f32.mrb[0].mxu0
        %v2599 = vadd.f32 %v2516, %v2598
        %2600 = vmatprep.mubr.bf16.mxu0 0
        %2601 = vmatmul.mubr.bf16.gmra.mrb[0].mxu0 %v2556
        %v2602 = vpop.f32.mrb[0].mxu0
        %v2603 = vadd.f32 %v2520, %v2602
        %v2604 = vpop.f32.mrb[0].mxu0
        %v2605 = vadd.f32 %v2522, %v2604
        %v2606 = vpop.f32.mrb[0].mxu0
        %v2607 = vadd.f32 %v2524, %v2606
        %v2608 = vpop.f32.mrb[0].mxu0
        %v2609 = vadd.f32 %v2526, %v2608
        %2610 = vdwg.mxu0
        %s2611 = scalar_lea.vmem [#allocation9], 128
        %v2612 = vld [vmem:[%s2611] sm:$0xf]
        %v2613 = vld [vmem:[%s2611 + $0x4] sm:$0xf]
        %v2614 = vld [vmem:[%s2611 + $0x8] sm:$0xf]
        %v2615 = vld [vmem:[%s2611 + $0xc] sm:$0xf]
        %v2620 = vunpack.c.l.b16 %v2612
        %v2621 = vunpack.c.l.b16 %v2613
        %v2622 = vunpack.c.l.b16 %v2614
        %v2623 = vunpack.c.l.b16 %v2615
        %v2624 = vpack.c.b16 %v2621, %v2620
        %v2625 = vpack.c.b16 %v2623, %v2622
        %2626 = vrot.lane.b32.xlu0 %v2432, 122
        %v2627 = vpop.permute.xlu0 %2626
        %2628 = vrot.lane.b32.xlu0 %v2433, 122
        %v2629 = vpop.permute.xlu0 %2628
        %2630 = vrot.lane.b32.xlu0 %v2434, 122
        %v2631 = vpop.permute.xlu0 %2630
        %2632 = vrot.lane.b32.xlu0 %v2435, 122
        %v2633 = vpop.permute.xlu0 %2632
        %v2634 = vsel %vm772, %v2627, %v2629
        %v2635 = vsel %vm772, %v2631, %v2633
        %v2641 = vsel %vm605, %v2624, 0
        %v2644 = vsel %vm605, %v2625, 0
        %2646 = vmatprep.subr.bf16.mxu0 %v2629
        %2647 = vmatpush1.bf16.msra.mxu0 %v2634
        %2648 = vmatprep.subr.bf16.mxu0 %v2633
        %2649 = vmatpush1.bf16.msra.mxu0 %v2635
        %2650 = vmatprep.subr.bf16.mxu0 0
        %2651 = vmatpush1.bf16.msra.mxu0 0
        %2652 = vmatprep.subr.bf16.mxu0 0
        %2653 = vmatpush1.bf16.msra.mxu0 0
        %2654 = vmatprep.subr.bf16.mxu0 0
        %2655 = vmatpush1.bf16.msra.mxu0 0
        %2656 = vmatprep.subr.bf16.mxu0 0
        %2657 = vmatpush1.bf16.msra.mxu0 0
        %2658 = vmatprep.subr.bf16.mxu0 0
        %2659 = vmatpush1.bf16.msra.mxu0 0
        %2660 = vmatprep.subr.bf16.mxu0 0
        %2661 = vmatpush1.bf16.msra.mxu0 0
        %2662 = vmatprep.subr.bf16.mxu0 0
        %2663 = vmatpush1.bf16.msra.mxu0 0
        %2664 = vmatprep.subr.bf16.mxu0 0
        %2665 = vmatpush1.bf16.msra.mxu0 0
        %2666 = vmatprep.subr.bf16.mxu0 0
        %2667 = vmatpush1.bf16.msra.mxu0 0
        %2668 = vmatprep.subr.bf16.mxu0 0
        %2669 = vmatpush1.bf16.msra.mxu0 0
        %2670 = vmatprep.subr.bf16.mxu0 0
        %2671 = vmatpush1.bf16.msra.mxu0 0
        %2672 = vmatprep.subr.bf16.mxu0 0
        %2673 = vmatpush1.bf16.msra.mxu0 0
        %2674 = vmatprep.subr.bf16.mxu0 0
        %2675 = vmatpush1.bf16.msra.mxu0 0
        %2676 = vmatprep.subr.bf16.mxu0 0
        %2677 = vmatpush1.bf16.msra.mxu0 0
        %2678 = vmatprep.mubr.bf16.mxu0 0
        %2679 = vmatmul.mubr.bf16.gmra.mrb[0].mxu0 %v2641
        %v2680 = vpop.f32.mrb[0].mxu0
        %v2681 = vadd.f32 0.0, %v2680
        %v2682 = vpop.f32.mrb[0].mxu0
        %v2683 = vadd.f32 0.0, %v2682
        %v2684 = vpop.f32.mrb[0].mxu0
        %v2685 = vadd.f32 0.0, %v2684
        %v2686 = vpop.f32.mrb[0].mxu0
        %v2687 = vadd.f32 0.0, %v2686
        %2688 = vmatprep.mubr.bf16.mxu0 0
        %2689 = vmatmul.mubr.bf16.gmra.mrb[0].mxu0 %v2644
        %v2690 = vpop.f32.mrb[0].mxu0
        %v2691 = vadd.f32 0.0, %v2690
        %v2692 = vpop.f32.mrb[0].mxu0
        %v2693 = vadd.f32 0.0, %v2692
        %v2694 = vpop.f32.mrb[0].mxu0
        %v2695 = vadd.f32 0.0, %v2694
        %v2696 = vpop.f32.mrb[0].mxu0
        %v2697 = vadd.f32 0.0, %v2696
        %2698 = vdwg.mxu0
        %v2699 = vadd.f32 %v2593, %v2681
        %v2700 = vadd.f32 %v2595, %v2683
        %v2701 = vadd.f32 %v2597, %v2685
        %v2702 = vadd.f32 %v2599, %v2687
        %v2703 = vadd.f32 %v2603, %v2691
        %v2704 = vadd.f32 %v2605, %v2693
        %v2705 = vadd.f32 %v2607, %v2695
        %v2706 = vadd.f32 %v2609, %v2697
        %s2707 = scalar_lea.vmem %s6, 64
        %v2708 = vld [vmem:[%s2707] sm:$0xff]
        %v2709 = vld [vmem:[%s2707 + $0x8] sm:$0xff]
        %v2710 = vld [vmem:[%s2707 + $0x10] sm:$0xff]
        %v2711 = vld [vmem:[%s2707 + $0x18] sm:$0xff]
        %2713 = vset.pattern.permute.xlu0 0
        %2714 = vperm.xlu0 %2713, %v2708
        %v2715 = vpop.permute.xlu0 %2714
        %2718 = vset.pattern.permute.xlu0 0
        %2719 = vperm.xlu0 %2718, %v2709
        %v2720 = vpop.permute.xlu0 %2719
        %2723 = vset.pattern.permute.xlu0 0
        %2724 = vperm.xlu0 %2723, %v2710
        %v2725 = vpop.permute.xlu0 %2724
        %2728 = vset.pattern.permute.xlu0 0
        %2729 = vperm.xlu0 %2728, %v2711
        %v2730 = vpop.permute.xlu0 %2729
        %v2732 = vadd.f32 %v2699, %v2715
        %v2733 = vadd.f32 %v2700, %v2715
        %v2734 = vadd.f32 %v2701, %v2720
        %v2735 = vadd.f32 %v2702, %v2720
        %v2736 = vadd.f32 %v2703, %v2725
        %v2737 = vadd.f32 %v2704, %v2725
        %v2738 = vadd.f32 %v2705, %v2730
        %v2739 = vadd.f32 %v2706, %v2730
        %v2740 = vadd.f32 %v2732, %v2003
        %v2741 = vadd.f32 %v2733, %v2004
        %v2742 = vadd.f32 %v2734, %v2005
        %v2743 = vadd.f32 %v2735, %v2006
        %v2744 = vadd.f32 %v2736, %v2007
        %v2745 = vadd.f32 %v2737, %v2008
        %v2746 = vadd.f32 %v2738, %v2009
        %v2747 = vadd.f32 %v2739, %v2010
        %2756 = vrot.lane.b32.xlu0 %v2740, 116
        %v2757 = vpop.permute.xlu0 %2756
        %2758 = vrot.lane.b32.xlu0 %v2741, 116
        %v2759 = vpop.permute.xlu0 %2758
        %2760 = vrot.lane.b32.xlu0 %v2742, 116
        %v2761 = vpop.permute.xlu0 %2760
        %2762 = vrot.lane.b32.xlu0 %v2743, 116
        %v2763 = vpop.permute.xlu0 %2762
        %2764 = vrot.lane.b32.xlu0 %v2744, 116
        %v2765 = vpop.permute.xlu0 %2764
        %2766 = vrot.lane.b32.xlu0 %v2745, 116
        %v2767 = vpop.permute.xlu0 %2766
        %2768 = vrot.lane.b32.xlu0 %v2746, 116
        %v2769 = vpop.permute.xlu0 %2768
        %2770 = vrot.lane.b32.xlu0 %v2747, 116
        %v2771 = vpop.permute.xlu0 %2770
        %vm2772 = vcmask 949248
        %v2773 = vsel %vm2772, %v2757, %v2759
        %v2774 = vsel %vm2772, %v2761, %v2763
        %v2775 = vsel %vm2772, %v2765, %v2767
        %v2776 = vsel %vm2772, %v2769, %v2771
        %2781 = vst [vmem:[%s417] sm:$0xff] %v2773
        %2782 = vst [vmem:[%s417 + $0x8] sm:$0xff] %v2774
        %2783 = vst [vmem:[%s417 + $0x10] sm:$0xff] %v2775
        %2784 = vst [vmem:[%s417 + $0x18] sm:$0xff] %v2776
        %s2785 = sand.u32 %s222, 1
        %s2786 = scalar_lea.sflag [#allocation5], %s2785
        %s2787 = sand.u32 %s222, 1
        %s2788 = smul.addr %s2787, 32
        %s2789 = scalar_lea.vmem [#allocation11], %s2788
        // Predicated region
        $region65: #{tpu_custom_call.1} parent=47 // pred_check
          %p2790 = pneg %p232
        $region66: #{tpu_custom_call.1} parent=47 // pred_check_branch
          %2792 = sbr.rel (%p2790) target = $region68
        $region67: #{tpu_custom_call.1} parent=47 // pred_region
          %s2794 = ssub.s32 512, 512
          %2795 = vsyncadd %s2786, %s2794
          %s2796 = smul.addr %s32, 8
          %s2797 = sadd.s32 %s33, %s2796
          %s2798 = smul.addr %s2797, 128
          %s2799 = scalar_lea.hbm %s7, %s2798
          %s2800 = sshll.u32 %s2789, 4
          %s2801 = int_to_ptr.vmem [resolvable:$true] %s2800
          %2806 = dma.vmem_to_hbm [thread:$0]  %s2801, 512, %s2799, %s2786, 128, 256, 8
        $region68: #{tpu_custom_call.1} parent=47 // pred_fallthru
          _
      $region48: #{tpu_custom_call.1} parent=5 // pred_fallthru
        _
      %p2807 = scmp.le.s32.totalorder 2, %s23
      // Predicated region
      $region69: #{tpu_custom_call.1} parent=5 // pred_check
        %p2808 = pneg %p2807
      $region70: #{tpu_custom_call.1} parent=5 // pred_check_branch
        %2810 = sbr.rel (%p2808) target = $region72
      $region71: #{tpu_custom_call.1} parent=5 // pred_region
        %s2811 = ssub.s32 %s23, 2
        // Predicated region
        $region73: #{tpu_custom_call.1} parent=71 // pred_check
          %p2812 = pneg %p238
        $region74: #{tpu_custom_call.1} parent=71 // pred_check_branch
          %2814 = sbr.rel (%p2812) target = $region76
        $region75: #{tpu_custom_call.1} parent=71 // pred_region
          %s2815 = sand.u32 %s223, 1
          %s2816 = scalar_lea.sflag [#allocation5], %s2815
          %s2817 = sand.u32 %s223, 1
          %s2818 = smul.addr %s2817, 32
          %s2819 = scalar_lea.vmem [#allocation11], %s2818
          %2820 = dma.done %s2816, 512
        $region76: #{tpu_custom_call.1} parent=71 // pred_fallthru
          _
      $region72: #{tpu_custom_call.1} parent=5 // pred_fallthru
        _
    $region6: #{tpu_custom_call.1} parent=1 // loop_footer
      %s27 = sadd.s32 1, %s23
    $region7: #{tpu_custom_call.1} parent=1 // loop_footer_branch
      %22 = sbr.rel target = $region3
    $region8: #{tpu_custom_call.1} parent=1 // loop_exit
      _
    %2821 = vsyncpa [#allocation4], 1
    %s2822 = scalar_lea.sflag [#allocation4], 1
    %2823 = vsyncpa %s2822, 1
    %2824 = vsyncpa [#allocation7], 1
    %s2825 = scalar_lea.sflag [#allocation7], 1
    %2826 = vsyncpa %s2825, 1
    %2827 = vsyncpa [#allocation10], 1
    %2828 = vsyncpa [#allocation5], 1
    %s2829 = scalar_lea.sflag [#allocation5], 1
    %2830 = vsyncpa %s2829, 1

// kernel: tpu_custom_call.1
$region0: #{tpu_custom_call.1}
  #allocation0 [shape = 'u32[]', space=smem, size = 0x4, offset = 0x4, fixed_abs, tag = 'smem constant byte address 0x4 - core index']
  #allocation1 [shape = 'u32[144,128]{1,0:T(1,128)}', space=vmem, size = 0x12000, scoped, tag = 'internal scratch']
  #allocation2 [shape = 'bf16[32,162]{1,0:T(16,128)(2,1)}', space=vmem, size = 0x4000, scoped, tag = 'scratch operand']
  %s0 = inlined_call_operand.hbm [shape: f32[2,32,512], index: 0, kind: input, shape index: {}]
  %s1 = inlined_call_operand.hbm [shape: f32[2,32,512], index: 1, kind: input, shape index: {}]
  %s2 = inlined_call_operand.hbm [shape: f32[2,32,512], index: 2, kind: input, shape index: {}]
  %s3 = inlined_call_operand.vmem [shape: bf16[3,3,32,32], index: 3, kind: input, shape index: {}]
  %s4 = inlined_call_operand.vmem [shape: f32[3,32,1], index: 4, kind: input, shape index: {}]
  %s5 = inlined_call_operand.hbm [shape: bf16[3,3,32,32], index: 5, kind: input, shape index: {}]
  %s6 = inlined_call_operand.vmem [shape: f32[3,32,1], index: 6, kind: input, shape index: {}]
  %s7 = inlined_call_operand.hbm [shape: f32[2,32,256], index: 7, kind: output, shape index: {}]
  %s8 = sld [smem:[#allocation0]]
  $region77: #{tpu_custom_call.1} parent=0
    _
  %s10 = ssub.s32 1, %s8
  %s11 = scalar_select 0, %s10, %s8
  $region1: #{tpu_custom_call.1} parent=0
    #allocation3 [shape = 'u8[32768]{0}', space=vmem, size = 0x8000, scoped, tag = 'input window, operand 0']
    #allocation4 [shape = 's32[2]{0}', space=sflag, size = 0x8, scoped, tag = 'scoped memory for tpu_custom_call.1']
    #allocation5 [shape = 's32[2]{0}', space=sflag, size = 0x8, scoped, tag = 'scoped memory for tpu_custom_call.1']
    #allocation6 [shape = 'u8[32768]{0}', space=vmem, size = 0x8000, scoped, tag = 'input window, operand 1']
    #allocation7 [shape = 's32[2]{0}', space=sflag, size = 0x8, scoped, tag = 'scoped memory for tpu_custom_call.1']
    #allocation8 [shape = 'u8[32768]{0}', space=vmem, size = 0x8000, scoped, tag = 'input window, operand 2']
    #allocation9 [shape = 'u8[73728]{0}', space=vmem, size = 0x12000, scoped, tag = 'input window, operand 5, single buffered']
    #allocation10 [shape = 's32[1]{0}', space=sflag, size = 0x4, scoped, tag = 'scoped memory for tpu_custom_call.1']
    #allocation11 [shape = 'u8[32768]{0}', space=vmem, size = 0x8000, scoped, tag = 'output window, operand 0']
    %12 = vsyncpa [#allocation4], 0
    %s13 = scalar_lea.sflag [#allocation4], 1
    %14 = vsyncpa %s13, 0
    %15 = vsyncpa [#allocation7], 0
    %s16 = scalar_lea.sflag [#allocation7], 1
    %17 = vsyncpa %s16, 0
    %18 = vsyncpa [#allocation10], 0
    %19 = vsyncpa [#allocation5], 0
    %s20 = scalar_lea.sflag [#allocation5], 1
    %21 = vsyncpa %s20, 0
    loop: start=0, step=1, limit=6
    $region2: #{tpu_custom_call.1} parent=1 // loop_pre_header
      _
    $region3: #{tpu_custom_call.1} parent=1 // loop_header
      %s23 = sphi 0, %s27
      %p24 = scmp.ge.s32.totalorder %s23, 6
      %s30 = sphi 0, %s42
      %s31 = sphi 0, %s38
      %s32 = sphi 0, %s30
      %s33 = sphi 0, %s31
      %s34 = sphi 0, %s32
      %s35 = sphi 0, %s33
      %s47 = sphi 0, %s49
      %s50 = sphi 0, %s47
      %s51 = sphi 0, %s50
      %s67 = sphi 0, %s51
      %s77 = sphi 0, %s79
      %s80 = sphi 0, %s77
      %s81 = sphi 0, %s80
      %s97 = sphi 0, %s81
      %s107 = sphi 0, %s109
      %s110 = sphi 0, %s107
      %s111 = sphi 0, %s110
      %s127 = sphi 0, %s111
      %s131 = sphi 0, %s131
      %s133 = sphi 0, %s131
      %s134 = sphi 0, %s133
      %s148 = sphi 0, %s134
      %s152 = sphi 0, %s152
      %s154 = sphi 0, %s152
      %s155 = sphi 0, %s154
      %s169 = sphi 0, %s155
      %s173 = sphi 0, %s173
      %s175 = sphi 0, %s173
      %s176 = sphi 0, %s175
      %s190 = sphi 0, %s176
      %s194 = sphi 0, %s194
      %s196 = sphi 0, %s194
      %s197 = sphi 0, %s196
      %s211 = sphi 0, %s197
      %s219 = sphi 0, %s221
      %s222 = sphi 0, %s219
      %s223 = sphi 0, %s222
      %s239 = sphi 0, %s223
    $region4: #{tpu_custom_call.1} parent=1 // loop_header_branch
      %26 = sbr.rel (%p24) target = $region8
    $region5: #{tpu_custom_call.1} parent=1 // loop_body
      %s28 = ssub.s32 %s23, 1
      %s29 = ssub.s32 %s23, 2
      %s36 = sadd.s32 1, %s31
      %p37 = scmp.ge.s32.totalorder %s36, 2
      %s38 = scalar_select %p37, 0, %s36
      %s39 = sadd.s32 1, %s30
      %s40 = scalar_select %p37, %s39, %s30
      %p41 = scmp.ge.s32.totalorder %s40, 2
      %s42 = scalar_select %p41, 0, %s40
      %s43 = ssub.s32 %s30, %s42
      %s44 = ssub.s32 %s31, %s38
      %s45 = sor.u32 %s43, %s44
      %p46 = scmp.eq.s32.totalorder %s45, 0
      %s48 = sadd.s32 %s47, 1
      %s49 = scalar_select %p46, %s47, %s48
      %p52 = pneg %p46
      %p53 = scmp.eq.s32.totalorder %s23, 3
      %p54 = por %p52, %p53
      %p55 = scmp.ne.s32.totalorder %s47, %s50
      %p56 = scmp.eq.s32.totalorder %s23, 0
      %p57 = por %p55, %p56
      %p58 = scmp.ne.s32.totalorder %s47, %s50
      %p59 = scmp.eq.s32.totalorder %s28, 3
      %p60 = por %p58, %p59
      %p61 = scmp.ne.s32.totalorder %s50, %s51
      %p62 = scmp.eq.s32.totalorder %s28, 0
      %p63 = por %p61, %p62
      %p64 = scmp.ne.s32.totalorder %s50, %s51
      %p65 = scmp.eq.s32.totalorder %s29, 3
      %p66 = por %p64, %p65
      %p68 = scmp.ne.s32.totalorder %s51, %s67
      %p69 = scmp.eq.s32.totalorder %s29, 0
      %p70 = por %p68, %p69
      %s71 = sadd.s32 %s31, 1
      %s72 = sadd.s32 %s38, 1
      %s73 = ssub.s32 %s30, %s42
      %s74 = ssub.s32 %s71, %s72
      %s75 = sor.u32 %s73, %s74
      %p76 = scmp.eq.s32.totalorder %s75, 0
      %s78 = sadd.s32 %s77, 1
      %s79 = scalar_select %p76, %s77, %s78
      %p82 = pneg %p76
      %p83 = scmp.eq.s32.totalorder %s23, 3
      %p84 = por %p82, %p83
      %p85 = scmp.ne.s32.totalorder %s77, %s80
      %p86 = scmp.eq.s32.totalorder %s23, 0
      %p87 = por %p85, %p86
      %p88 = scmp.ne.s32.totalorder %s77, %s80
      %p89 = scmp.eq.s32.totalorder %s28, 3
      %p90 = por %p88, %p89
      %p91 = scmp.ne.s32.totalorder %s80, %s81
      %p92 = scmp.eq.s32.totalorder %s28, 0
      %p93 = por %p91, %p92
      %p94 = scmp.ne.s32.totalorder %s80, %s81
      %p95 = scmp.eq.s32.totalorder %s29, 3
      %p96 = por %p94, %p95
      %p98 = scmp.ne.s32.totalorder %s81, %s97
      %p99 = scmp.eq.s32.totalorder %s29, 0
      %p100 = por %p98, %p99
      %s101 = sadd.s32 %s31, 2
      %s102 = sadd.s32 %s38, 2
      %s103 = ssub.s32 %s30, %s42
      %s104 = ssub.s32 %s101, %s102
      %s105 = sor.u32 %s103, %s104
      %p106 = scmp.eq.s32.totalorder %s105, 0
      %s108 = sadd.s32 %s107, 1
      %s109 = scalar_select %p106, %s107, %s108
      %p112 = pneg %p106
      %p113 = scmp.eq.s32.totalorder %s23, 3
      %p114 = por %p112, %p113
      %p115 = scmp.ne.s32.totalorder %s107, %s110
      %p116 = scmp.eq.s32.totalorder %s23, 0
      %p117 = por %p115, %p116
      %p118 = scmp.ne.s32.totalorder %s107, %s110
      %p119 = scmp.eq.s32.totalorder %s28, 3
      %p120 = por %p118, %p119
      %p121 = scmp.ne.s32.totalorder %s110, %s111
      %p122 = scmp.eq.s32.totalorder %s28, 0
      %p123 = por %p121, %p122
      %p124 = scmp.ne.s32.totalorder %s110, %s111
      %p125 = scmp.eq.s32.totalorder %s29, 3
      %p126 = por %p124, %p125
      %p128 = scmp.ne.s32.totalorder %s111, %s127
      %p129 = scmp.eq.s32.totalorder %s29, 0
      %p130 = por %p128, %p129
      %s132 = sadd.s32 %s131, 1
      %p135 = scmp.eq.s32.totalorder %s23, 3
      %p136 = scmp.ne.s32.totalorder %s131, %s133
      %p137 = scmp.eq.s32.totalorder %s23, 0
      %p138 = por %p136, %p137
      %p139 = scmp.ne.s32.totalorder %s131, %s133
      %p140 = scmp.eq.s32.totalorder %s28, 3
      %p141 = por %p139, %p140
      %p142 = scmp.ne.s32.totalorder %s133, %s134
      %p143 = scmp.eq.s32.totalorder %s28, 0
      %p144 = por %p142, %p143
      %p145 = scmp.ne.s32.totalorder %s133, %s134
      %p146 = scmp.eq.s32.totalorder %s29, 3
      %p147 = por %p145, %p146
      %p149 = scmp.ne.s32.totalorder %s134, %s148
      %p150 = scmp.eq.s32.totalorder %s29, 0
      %p151 = por %p149, %p150
      %s153 = sadd.s32 %s152, 1
      %p156 = scmp.eq.s32.totalorder %s23, 3
      %p157 = scmp.ne.s32.totalorder %s152, %s154
      %p158 = scmp.eq.s32.totalorder %s23, 0
      %p159 = por %p157, %p158
      %p160 = scmp.ne.s32.totalorder %s152, %s154
      %p161 = scmp.eq.s32.totalorder %s28, 3
      %p162 = por %p160, %p161
      %p163 = scmp.ne.s32.totalorder %s154, %s155
      %p164 = scmp.eq.s32.totalorder %s28, 0
      %p165 = por %p163, %p164
      %p166 = scmp.ne.s32.totalorder %s154, %s155
      %p167 = scmp.eq.s32.totalorder %s29, 3
      %p168 = por %p166, %p167
      %p170 = scmp.ne.s32.totalorder %s155, %s169
      %p171 = scmp.eq.s32.totalorder %s29, 0
      %p172 = por %p170, %p171
      %s174 = sadd.s32 %s173, 1
      %p177 = scmp.eq.s32.totalorder %s23, 3
      %p178 = scmp.ne.s32.totalorder %s173, %s175
      %p179 = scmp.eq.s32.totalorder %s23, 0
      %p180 = por %p178, %p179
      %p181 = scmp.ne.s32.totalorder %s173, %s175
      %p182 = scmp.eq.s32.totalorder %s28, 3
      %p183 = por %p181, %p182
      %p184 = scmp.ne.s32.totalorder %s175, %s176
      %p185 = scmp.eq.s32.totalorder %s28, 0
      %p186 = por %p184, %p185
      %p187 = scmp.ne.s32.totalorder %s175, %s176
      %p188 = scmp.eq.s32.totalorder %s29, 3
      %p189 = por %p187, %p188
      %p191 = scmp.ne.s32.totalorder %s176, %s190
      %p192 = scmp.eq.s32.totalorder %s29, 0
      %p193 = por %p191, %p192
      %s195 = sadd.s32 %s194, 1
      %p198 = scmp.eq.s32.totalorder %s23, 3
      %p199 = scmp.ne.s32.totalorder %s194, %s196
      %p200 = scmp.eq.s32.totalorder %s23, 0
      %p201 = por %p199, %p200
      %p202 = scmp.ne.s32.totalorder %s194, %s196
      %p203 = scmp.eq.s32.totalorder %s28, 3
      %p204 = por %p202, %p203
      %p205 = scmp.ne.s32.totalorder %s196, %s197
      %p206 = scmp.eq.s32.totalorder %s28, 0
      %p207 = por %p205, %p206
      %p208 = scmp.ne.s32.totalorder %s196, %s197
      %p209 = scmp.eq.s32.totalorder %s29, 3
      %p210 = por %p208, %p209
      %p212 = scmp.ne.s32.totalorder %s197, %s211
      %p213 = scmp.eq.s32.totalorder %s29, 0
      %p214 = por %p212, %p213
      %s215 = ssub.s32 %s30, %s42
      %s216 = ssub.s32 %s31, %s38
      %s217 = sor.u32 %s215, %s216
      %p218 = scmp.eq.s32.totalorder %s217, 0
      %s220 = sadd.s32 %s219, 1
      %s221 = scalar_select %p218, %s219, %s220
      %p224 = pneg %p218
      %p225 = scmp.eq.s32.totalorder %s23, 3
      %p226 = por %p224, %p225
      %p227 = scmp.ne.s32.totalorder %s219, %s222
      %p228 = scmp.eq.s32.totalorder %s23, 0
      %p229 = por %p227, %p228
      %p230 = scmp.ne.s32.totalorder %s219, %s222
      %p231 = scmp.eq.s32.totalorder %s28, 3
      %p232 = por %p230, %p231
      %p233 = scmp.ne.s32.totalorder %s222, %s223
      %p234 = scmp.eq.s32.totalorder %s28, 0
      %p235 = por %p233, %p234
      %p236 = scmp.ne.s32.totalorder %s222, %s223
      %p237 = scmp.eq.s32.totalorder %s29, 3
      %p238 = por %p236, %p237
      %p240 = scmp.ne.s32.totalorder %s223, %s239
      %p241 = scmp.eq.s32.totalorder %s29, 0
      %p242 = por %p240, %p241
      %p243 = scmp.le.s32.totalorder 1, %s23
      %p244 = scmp.lt.s32.totalorder %s23, 5
      %p245 = pnand %p243, %p244
      %p246 = pneg %p245
      // Predicated region
      $region9: #{tpu_custom_call.1} parent=5 // pred_check
        _
      $region10: #{tpu_custom_call.1} parent=5 // pred_check_branch
        %248 = sbr.rel (%p245) target = $region12
      $region11: #{tpu_custom_call.1} parent=5 // pred_region
        %s249 = ssub.s32 %s23, 1
        // Predicated region
        $region13: #{tpu_custom_call.1} parent=11 // pred_check
          %p250 = pneg %p144
        $region14: #{tpu_custom_call.1} parent=11 // pred_check_branch
          %252 = sbr.rel (%p250) target = $region16
        $region15: #{tpu_custom_call.1} parent=11 // pred_region
          _
        $region16: #{tpu_custom_call.1} parent=11 // pred_fallthru
          _
        // Predicated region
        $region17: #{tpu_custom_call.1} parent=11 // pred_check
          %p253 = pneg %p165
        $region18: #{tpu_custom_call.1} parent=11 // pred_check_branch
          %255 = sbr.rel (%p253) target = $region20
        $region19: #{tpu_custom_call.1} parent=11 // pred_region
          _
        $region20: #{tpu_custom_call.1} parent=11 // pred_fallthru
          _
        // Predicated region
        $region21: #{tpu_custom_call.1} parent=11 // pred_check
          %p256 = pneg %p186
        $region22: #{tpu_custom_call.1} parent=11 // pred_check_branch
          %258 = sbr.rel (%p256) target = $region24
        $region23: #{tpu_custom_call.1} parent=11 // pred_region
          %s260 = ssub.s32 2304, 2304
          %261 = vsyncadd [#allocation10], %s260
          %s262 = sshll.u32 [#allocation9], 4
          %s263 = int_to_ptr.vmem [resolvable:$true] %s262
          %268 = dma.hbm_to_vmem [thread:$0]  %s5, 2304, %s263, [#allocation10], 64, 64, 4
        $region24: #{tpu_custom_call.1} parent=11 // pred_fallthru
          _
        // Predicated region
        $region25: #{tpu_custom_call.1} parent=11 // pred_check
          %p269 = pneg %p207
        $region26: #{tpu_custom_call.1} parent=11 // pred_check_branch
          %271 = sbr.rel (%p269) target = $region28
        $region27: #{tpu_custom_call.1} parent=11 // pred_region
          _
        $region28: #{tpu_custom_call.1} parent=11 // pred_fallthru
          _
      $region12: #{tpu_custom_call.1} parent=5 // pred_fallthru
        _
      %p272 = scmp.lt.s32.totalorder %s23, 4
      // Predicated region
      $region29: #{tpu_custom_call.1} parent=5 // pred_check
        %p273 = pneg %p272
      $region30: #{tpu_custom_call.1} parent=5 // pred_check_branch
        %275 = sbr.rel (%p273) target = $region32
      $region31: #{tpu_custom_call.1} parent=5 // pred_region
        // Predicated region
        $region33: #{tpu_custom_call.1} parent=31 // pred_check
          %p276 = pneg %p57
        $region34: #{tpu_custom_call.1} parent=31 // pred_check_branch
          %278 = sbr.rel (%p276) target = $region36
        $region35: #{tpu_custom_call.1} parent=31 // pred_region
          %s279 = sand.u32 %s47, 1
          %s280 = scalar_lea.sflag [#allocation4], %s279
          %s281 = sand.u32 %s47, 1
          %s282 = smul.addr %s281, 32
          %s283 = scalar_lea.vmem [#allocation3], %s282
          %s285 = ssub.s32 512, 512
          %286 = vsyncadd %s280, %s285
          %s287 = smul.addr %s30, 16
          %s288 = sadd.s32 %s31, %s287
          %s289 = smul.addr %s288, 128
          %s290 = scalar_lea.hbm %s0, %s289
          %s291 = sshll.u32 %s283, 4
          %s292 = int_to_ptr.vmem [resolvable:$true] %s291
          %297 = dma.hbm_to_vmem [thread:$0]  %s290, 512, %s292, %s280, 512, 128, 8
        $region36: #{tpu_custom_call.1} parent=31 // pred_fallthru
          _
        // Predicated region
        $region37: #{tpu_custom_call.1} parent=31 // pred_check
          %p298 = pneg %p87
        $region38: #{tpu_custom_call.1} parent=31 // pred_check_branch
          %300 = sbr.rel (%p298) target = $region40
        $region39: #{tpu_custom_call.1} parent=31 // pred_region
          %s301 = sand.u32 %s23, 1
          %s302 = scalar_lea.sflag [#allocation7], %s301
          %s303 = sand.u32 %s77, 1
          %s304 = smul.addr %s303, 32
          %s305 = scalar_lea.vmem [#allocation6], %s304
          %s306 = sadd.s32 %s31, 1
          %s308 = ssub.s32 512, 512
          %309 = vsyncadd %s302, %s308
          %s310 = smul.addr %s30, 16
          %s311 = sadd.s32 %s306, %s310
          %s312 = smul.addr %s311, 128
          %s313 = scalar_lea.hbm %s1, %s312
          %s314 = sshll.u32 %s305, 4
          %s315 = int_to_ptr.vmem [resolvable:$true] %s314
          %320 = dma.hbm_to_vmem [thread:$0]  %s313, 512, %s315, %s302, 512, 128, 8
        $region40: #{tpu_custom_call.1} parent=31 // pred_fallthru
          _
        // Predicated region
        $region41: #{tpu_custom_call.1} parent=31 // pred_check
          %p321 = pneg %p117
        $region42: #{tpu_custom_call.1} parent=31 // pred_check_branch
          %323 = sbr.rel (%p321) target = $region44
        $region43: #{tpu_custom_call.1} parent=31 // pred_region
          %s324 = sand.u32 %s23, 1
          %s325 = scalar_lea.sflag [#allocation7], %s324
          %s326 = sand.u32 %s107, 1
          %s327 = smul.addr %s326, 32
          %s328 = scalar_lea.vmem [#allocation8], %s327
          %s329 = sadd.s32 %s31, 2
          %s331 = ssub.s32 512, 512
          %332 = vsyncadd %s325, %s331
          %s333 = smul.addr %s30, 16
          %s334 = sadd.s32 %s329, %s333
          %s335 = smul.addr %s334, 128
          %s336 = scalar_lea.hbm %s2, %s335
          %s337 = sshll.u32 %s328, 4
          %s338 = int_to_ptr.vmem [resolvable:$true] %s337
          %343 = dma.hbm_to_vmem [thread:$0]  %s336, 512, %s338, %s325, 512, 128, 8
        $region44: #{tpu_custom_call.1} parent=31 // pred_fallthru
          _
      $region32: #{tpu_custom_call.1} parent=5 // pred_fallthru
        _
      %p344 = scmp.le.s32.totalorder 1, %s23
      %p345 = scmp.lt.s32.totalorder %s23, 5
      %p346 = pnand %p344, %p345
      %p347 = pneg %p346
      // Predicated region
      $region45: #{tpu_custom_call.1} parent=5 // pred_check
        _
      $region46: #{tpu_custom_call.1} parent=5 // pred_check_branch
        %349 = sbr.rel (%p346) target = $region48
      $region47: #{tpu_custom_call.1} parent=5 // pred_region
        %s350 = ssub.s32 %s23, 1
        %s351 = sand.u32 %s50, 1
        %s352 = scalar_lea.sflag [#allocation4], %s351
        %s353 = sand.u32 %s50, 1
        %s354 = smul.addr %s353, 32
        %s355 = scalar_lea.vmem [#allocation3], %s354
        // Predicated region
        $region49: #{tpu_custom_call.1} parent=47 // pred_check
          %p356 = pneg %p63
        $region50: #{tpu_custom_call.1} parent=47 // pred_check_branch
          %358 = sbr.rel (%p356) target = $region52
        $region51: #{tpu_custom_call.1} parent=47 // pred_region
          %359 = dma.done %s352, 512
        $region52: #{tpu_custom_call.1} parent=47 // pred_fallthru
          _
        %s360 = sand.u32 %s28, 1
        %s361 = scalar_lea.sflag [#allocation7], %s360
        %s362 = sand.u32 %s80, 1
        %s363 = smul.addr %s362, 32
        %s364 = scalar_lea.vmem [#allocation6], %s363
        // Predicated region
        $region53: #{tpu_custom_call.1} parent=47 // pred_check
          %p365 = pneg %p93
        $region54: #{tpu_custom_call.1} parent=47 // pred_check_branch
          %367 = sbr.rel (%p365) target = $region56
        $region55: #{tpu_custom_call.1} parent=47 // pred_region
          %368 = dma.done %s361, 512
        $region56: #{tpu_custom_call.1} parent=47 // pred_fallthru
          _
        %s369 = sand.u32 %s28, 1
        %s370 = scalar_lea.sflag [#allocation7], %s369
        %s371 = sand.u32 %s110, 1
        %s372 = smul.addr %s371, 32
        %s373 = scalar_lea.vmem [#allocation8], %s372
        // Predicated region
        $region57: #{tpu_custom_call.1} parent=47 // pred_check
          %p374 = pneg %p123
        $region58: #{tpu_custom_call.1} parent=47 // pred_check_branch
          %376 = sbr.rel (%p374) target = $region60
        $region59: #{tpu_custom_call.1} parent=47 // pred_region
          %377 = dma.done %s370, 512
        $region60: #{tpu_custom_call.1} parent=47 // pred_fallthru
          _
        // Predicated region
        $region61: #{tpu_custom_call.1} parent=47 // pred_check
          %p378 = pneg %p186
        $region62: #{tpu_custom_call.1} parent=47 // pred_check_branch
          %380 = sbr.rel (%p378) target = $region64
        $region63: #{tpu_custom_call.1} parent=47 // pred_region
          %381 = dma.done [#allocation10], 2304
        $region64: #{tpu_custom_call.1} parent=47 // pred_fallthru
          _
        %s382 = sand.u32 %s50, 1
        %s383 = scalar_lea.sflag [#allocation4], %s382
        %s384 = sand.u32 %s50, 1
        %s385 = smul.addr %s384, 32
        %s386 = scalar_lea.vmem [#allocation3], %s385
        %p387 = pneg %p63
        %p388 = pneg %p60
        %s389 = sand.u32 %s28, 1
        %s390 = scalar_lea.sflag [#allocation7], %s389
        %s391 = sand.u32 %s80, 1
        %s392 = smul.addr %s391, 32
        %s393 = scalar_lea.vmem [#allocation6], %s392
        %p394 = pneg %p93
        %p395 = pneg %p90
        %s396 = sand.u32 %s28, 1
        %s397 = scalar_lea.sflag [#allocation7], %s396
        %s398 = sand.u32 %s110, 1
        %s399 = smul.addr %s398, 32
        %s400 = scalar_lea.vmem [#allocation8], %s399
        %p401 = pneg %p123
        %p402 = pneg %p120
        %p403 = pneg %p144
        %p404 = pneg %p141
        %p405 = pneg %p165
        %p406 = pneg %p162
        %p407 = pneg %p186
        %p408 = pneg %p183
        %p409 = pneg %p207
        %p410 = pneg %p204
        %p411 = pneg %p235
        %p412 = pneg %p232
        %s413 = sand.u32 %s222, 1
        %s414 = scalar_lea.sflag [#allocation5], %s413
        %s415 = sand.u32 %s222, 1
        %s416 = smul.addr %s415, 32
        %s417 = scalar_lea.vmem [#allocation11], %s416
        %s418 = sadd.s32 %s33, 1
        %s419 = sadd.s32 %s33, 2
        %vm421 = vcmask 39936
        %422 = vst.msk [vmem:[#allocation2] sm:$0xff] %vm421, 0
        %423 = vst.msk [vmem:[#allocation2 + $0x10] sm:$0xff] %vm421, 0
        %vm424 = vcmask 277736
        %425 = vst.msk [vmem:[#allocation2 + $0x8] sm:$0xff] %vm424, 0
        %426 = vst.msk [vmem:[#allocation2 + $0x18] sm:$0xff] %vm424, 0
        %v427 = vlaneseq
        %v428 = vand.u32 %v427, 127
        %v429 = vadd.s32 %v428, 128
        %s430 = smul.u32 %s33, 128
        %s431 = ssub.s32 %s430, 12
        %v432 = vstv %s431
        %v433 = vadd.s32 %v428, %v432
        %v434 = vadd.s32 %v429, %v432
        %vm435 = vcmp.ge.s32.totalorder %v433, 0
        %vm436 = vcmp.ge.s32.totalorder %v434, 0
        %vm437 = vcmp.lt.s32.totalorder %v433, 250
        %vm438 = vcmp.lt.s32.totalorder %v434, 250
        %vm439 = vmand %vm435, %vm437
        %vm440 = vmand %vm436, %vm438
        %v441 = vld [vmem:[%s355] sm:$0xff]
        %v442 = vld [vmem:[%s355 + $0x8] sm:$0xff]
        %v443 = vld [vmem:[%s355 + $0x10] sm:$0xff]
        %v444 = vld [vmem:[%s355 + $0x18] sm:$0xff]
        %v445 = vld [vmem:[%s364] sm:$0xff]
        %v446 = vld [vmem:[%s364 + $0x8] sm:$0xff]
        %v447 = vld [vmem:[%s364 + $0x10] sm:$0xff]
        %v448 = vld [vmem:[%s364 + $0x18] sm:$0xff]
        %v449 = vld [vmem:[%s373] sm:$0xff]
        %v450 = vld [vmem:[%s373 + $0x8] sm:$0xff]
        %v451 = vld [vmem:[%s373 + $0x10] sm:$0xff]
        %v452 = vld [vmem:[%s373 + $0x18] sm:$0xff]
        %457 = vrot.lane.b32.xlu0 %v441, 12
        %v458 = vpop.permute.xlu0 %457
        %459 = vrot.lane.b32.xlu0 %v442, 12
        %v460 = vpop.permute.xlu0 %459
        %461 = vrot.lane.b32.xlu0 %v443, 12
        %v462 = vpop.permute.xlu0 %461
        %463 = vrot.lane.b32.xlu0 %v444, 12
        %v464 = vpop.permute.xlu0 %463
        %473 = vrot.lane.b32.xlu0 %v445, 12
        %v474 = vpop.permute.xlu0 %473
        %475 = vrot.lane.b32.xlu0 %v446, 12
        %v476 = vpop.permute.xlu0 %475
        %477 = vrot.lane.b32.xlu0 %v447, 12
        %v478 = vpop.permute.xlu0 %477
        %479 = vrot.lane.b32.xlu0 %v448, 12
        %v480 = vpop.permute.xlu0 %479
        %489 = vrot.lane.b32.xlu0 %v449, 12
        %v490 = vpop.permute.xlu0 %489
        %491 = vrot.lane.b32.xlu0 %v450, 12
        %v492 = vpop.permute.xlu0 %491
        %493 = vrot.lane.b32.xlu0 %v451, 12
        %v494 = vpop.permute.xlu0 %493
        %495 = vrot.lane.b32.xlu0 %v452, 12
        %v496 = vpop.permute.xlu0 %495
        %vm501 = vcmask 97280
        %v502 = vsel %vm501, %v458, %v474
        %v503 = vsel %vm501, %v460, %v476
        %v504 = vsel %vm501, %v462, %v478
        %v505 = vsel %vm501, %v464, %v480
        %v506 = vsel %vm501, %v474, %v490
        %v507 = vsel %vm501, %v476, %v492
        %v508 = vsel %vm501, %v478, %v494
        %v509 = vsel %vm501, %v480, %v496
        %vm510 = vcmp.ge.f32.partialorder %v502, 0.0
        %vm511 = vcmp.ge.f32.partialorder %v506, 0.0
        %vm512 = vcmp.ge.f32.partialorder %v503, 0.0
        %vm513 = vcmp.ge.f32.partialorder %v507, 0.0
        %vm514 = vcmp.ge.f32.partialorder %v504, 0.0
        %vm515 = vcmp.ge.f32.partialorder %v508, 0.0
        %vm516 = vcmp.ge.f32.partialorder %v505, 0.0
        %vm517 = vcmp.ge.f32.partialorder %v509, 0.0
        %v518 = vmul.f32 %v502, 0.1
        %v519 = vmul.f32 %v506, 0.1
        %v520 = vmul.f32 %v503, 0.1
        %v521 = vmul.f32 %v507, 0.1
        %v522 = vmul.f32 %v504, 0.1
        %v523 = vmul.f32 %v508, 0.1
        %v524 = vmul.f32 %v505, 0.1
        %v525 = vmul.f32 %v509, 0.1
        %v526 = vsel %vm510, %v502, %v518
        %v527 = vsel %vm511, %v506, %v519
        %v528 = vsel %vm512, %v503, %v520
        %v529 = vsel %vm513, %v507, %v521
        %v530 = vsel %vm514, %v504, %v522
        %v531 = vsel %vm515, %v508, %v523
        %v532 = vsel %vm516, %v505, %v524
        %v533 = vsel %vm517, %v509, %v525
        %v534 = vpack.c.bf16 %v528, %v526
        %v535 = vpack.c.bf16 %v529, %v527
        %v536 = vpack.c.bf16 %v532, %v530
        %v537 = vpack.c.bf16 %v533, %v531
        %542 = vrot.lane.b32.xlu0 %v534, 5
        %v543 = vpop.permute.xlu0 %542
        %544 = vrot.lane.b32.xlu0 %v535, 5
        %v545 = vpop.permute.xlu0 %544
        %546 = vrot.lane.b32.xlu0 %v536, 5
        %v547 = vpop.permute.xlu0 %546
        %548 = vrot.lane.b32.xlu0 %v537, 5
        %v549 = vpop.permute.xlu0 %548
        %vm550 = vcmask 39936
        %v551 = vsel %vm550, %v543, %v545
        %v552 = vsel %vm550, %v547, %v549
        %vm557 = vcmask 1047592
        %558 = vst.msk [vmem:[#allocation2] sm:$0xff] %vm557, %v543
        %vm559 = vcmask 236544
        %560 = vst.msk [vmem:[#allocation2 + $0x8] sm:$0xff] %vm559, %v551
        %561 = vst.msk [vmem:[#allocation2 + $0x10] sm:$0xff] %vm557, %v547
        %562 = vst.msk [vmem:[#allocation2 + $0x18] sm:$0xff] %vm559, %v552
        %v563 = vld [vmem:[%s3] sm:$0xf]
        %v564 = vld [vmem:[%s3 + $0x4] sm:$0xf]
        %v565 = vld [vmem:[%s3 + $0x8] sm:$0xf]
        %v566 = vld [vmem:[%s3 + $0xc] sm:$0xf]
        %v567 = vld [vmem:[#allocation2] sm:$0xff]
        %v568 = vld [vmem:[#allocation2 + $0x8] sm:$0xff]
        %v569 = vld [vmem:[#allocation2 + $0x10] sm:$0xff]
        %v570 = vld [vmem:[#allocation2 + $0x18] sm:$0xff]
        %s571 = scalar_lea.vmem %s3, 16
        %v572 = vld [vmem:[%s571] sm:$0xf]
        %v573 = vld [vmem:[%s571 + $0x4] sm:$0xf]
        %v574 = vld [vmem:[%s571 + $0x8] sm:$0xf]
        %v575 = vld [vmem:[%s571 + $0xc] sm:$0xf]
        %v580 = vunpack.c.l.b16 %v572
        %v581 = vunpack.c.l.b16 %v573
        %v582 = vunpack.c.l.b16 %v574
        %v583 = vunpack.c.l.b16 %v575
        %v584 = vpack.c.b16 %v581, %v580
        %v585 = vpack.c.b16 %v583, %v582
        %590 = vrot.lane.b32.xlu0 %v567, 123
        %v591 = vpop.permute.xlu0 %590
        %592 = vrot.lane.b32.xlu0 %v568, 123
        %v593 = vpop.permute.xlu0 %592
        %594 = vrot.lane.b32.xlu0 %v569, 123
        %v595 = vpop.permute.xlu0 %594
        %596 = vrot.lane.b32.xlu0 %v570, 123
        %v597 = vpop.permute.xlu0 %596
        %vm598 = vcmask 1006592
        %v599 = vsel %vm598, %v591, %v593
        %v600 = vsel %vm598, %v595, %v597
        %vm605 = vcmask 261120
        %v607 = vsel %vm605, %v584, 0
        %v610 = vsel %vm605, %v585, 0
        %612 = vmatprep.subr.bf16.mxu0 %v593
        %613 = vmatpush1.bf16.msra.mxu0 %v599
        %614 = vmatprep.subr.bf16.mxu0 %v597
        %615 = vmatpush1.bf16.msra.mxu0 %v600
        %616 = vmatprep.subr.bf16.mxu0 0
        %617 = vmatpush1.bf16.msra.mxu0 0
        %618 = vmatprep.subr.bf16.mxu0 0
        %619 = vmatpush1.bf16.msra.mxu0 0
        %620 = vmatprep.subr.bf16.mxu0 0
        %621 = vmatpush1.bf16.msra.mxu0 0
        %622 = vmatprep.subr.bf16.mxu0 0
        %623 = vmatpush1.bf16.msra.mxu0 0
        %624 = vmatprep.subr.bf16.mxu0 0
        %625 = vmatpush1.bf16.msra.mxu0 0
        %626 = vmatprep.subr.bf16.mxu0 0
        %627 = vmatpush1.bf16.msra.mxu0 0
        %628 = vmatprep.subr.bf16.mxu0 0
        %629 = vmatpush1.bf16.msra.mxu0 0
        %630 = vmatprep.subr.bf16.mxu0 0
        %631 = vmatpush1.bf16.msra.mxu0 0
        %632 = vmatprep.subr.bf16.mxu0 0
        %633 = vmatpush1.bf16.msra.mxu0 0
        %634 = vmatprep.subr.bf16.mxu0 0
        %635 = vmatpush1.bf16.msra.mxu0 0
        %636 = vmatprep.subr.bf16.mxu0 0
        %637 = vmatpush1.bf16.msra.mxu0 0
        %638 = vmatprep.subr.bf16.mxu0 0
        %639 = vmatpush1.bf16.msra.mxu0 0
        %640 = vmatprep.subr.bf16.mxu0 0
        %641 = vmatpush1.bf16.msra.mxu0 0
        %642 = vmatprep.subr.bf16.mxu0 0
        %643 = vmatpush1.bf16.msra.mxu0 0
        %644 = vmatprep.mubr.bf16.mxu0 0
        %645 = vmatmul.mubr.bf16.gmra.mrb[0].mxu0 %v607
        %v646 = vpop.f32.mrb[0].mxu0
        %v647 = vadd.f32 0.0, %v646
        %v648 = vpop.f32.mrb[0].mxu0
        %v649 = vadd.f32 0.0, %v648
        %v650 = vpop.f32.mrb[0].mxu0
        %v651 = vadd.f32 0.0, %v650
        %v652 = vpop.f32.mrb[0].mxu0
        %v653 = vadd.f32 0.0, %v652
        %654 = vmatprep.mubr.bf16.mxu0 0
        %655 = vmatmul.mubr.bf16.gmra.mrb[0].mxu0 %v610
        %v656 = vpop.f32.mrb[0].mxu0
        %v657 = vadd.f32 0.0, %v656
        %v658 = vpop.f32.mrb[0].mxu0
        %v659 = vadd.f32 0.0, %v658
        %v660 = vpop.f32.mrb[0].mxu0
        %v661 = vadd.f32 0.0, %v660
        %v662 = vpop.f32.mrb[0].mxu0
        %v663 = vadd.f32 0.0, %v662
        %664 = vdwg.mxu0
        %v669 = vunpack.c.l.b16 %v563
        %v670 = vunpack.c.l.b16 %v564
        %v671 = vunpack.c.l.b16 %v565
        %v672 = vunpack.c.l.b16 %v566
        %v673 = vpack.c.b16 %v670, %v669
        %v674 = vpack.c.b16 %v672, %v671
        %675 = vrot.lane.b32.xlu0 %v567, 124
        %v676 = vpop.permute.xlu0 %675
        %677 = vrot.lane.b32.xlu0 %v568, 124
        %v678 = vpop.permute.xlu0 %677
        %679 = vrot.lane.b32.xlu0 %v569, 124
        %v680 = vpop.permute.xlu0 %679
        %681 = vrot.lane.b32.xlu0 %v570, 124
        %v682 = vpop.permute.xlu0 %681
        %vm683 = vcmask 1014784
        %v684 = vsel %vm683, %v676, %v678
        %v685 = vsel %vm683, %v680, %v682
        %v691 = vsel %vm605, %v673, 0
        %v694 = vsel %vm605, %v674, 0
        %696 = vmatprep.subr.bf16.mxu0 %v678
        %697 = vmatpush1.bf16.msra.mxu0 %v684
        %698 = vmatprep.subr.bf16.mxu0 %v682
        %699 = vmatpush1.bf16.msra.mxu0 %v685
        %700 = vmatprep.subr.bf16.mxu0 0
        %701 = vmatpush1.bf16.msra.mxu0 0
        %702 = vmatprep.subr.bf16.mxu0 0
        %703 = vmatpush1.bf16.msra.mxu0 0
        %704 = vmatprep.subr.bf16.mxu0 0
        %705 = vmatpush1.bf16.msra.mxu0 0
        %706 = vmatprep.subr.bf16.mxu0 0
        %707 = vmatpush1.bf16.msra.mxu0 0
        %708 = vmatprep.subr.bf16.mxu0 0
        %709 = vmatpush1.bf16.msra.mxu0 0
        %710 = vmatprep.subr.bf16.mxu0 0
        %711 = vmatpush1.bf16.msra.mxu0 0
        %712 = vmatprep.subr.bf16.mxu0 0
        %713 = vmatpush1.bf16.msra.mxu0 0
        %714 = vmatprep.subr.bf16.mxu0 0
        %715 = vmatpush1.bf16.msra.mxu0 0
        %716 = vmatprep.subr.bf16.mxu0 0
        %717 = vmatpush1.bf16.msra.mxu0 0
        %718 = vmatprep.subr.bf16.mxu0 0
        %719 = vmatpush1.bf16.msra.mxu0 0
        %720 = vmatprep.subr.bf16.mxu0 0
        %721 = vmatpush1.bf16.msra.mxu0 0
        %722 = vmatprep.subr.bf16.mxu0 0
        %723 = vmatpush1.bf16.msra.mxu0 0
        %724 = vmatprep.subr.bf16.mxu0 0
        %725 = vmatpush1.bf16.msra.mxu0 0
        %726 = vmatprep.subr.bf16.mxu0 0
        %727 = vmatpush1.bf16.msra.mxu0 0
        %728 = vmatprep.mubr.bf16.mxu0 0
        %729 = vmatmul.mubr.bf16.gmra.mrb[0].mxu0 %v691
        %v730 = vpop.f32.mrb[0].mxu0
        %v731 = vadd.f32 %v647, %v730
        %v732 = vpop.f32.mrb[0].mxu0
        %v733 = vadd.f32 %v649, %v732
        %v734 = vpop.f32.mrb[0].mxu0
        %v735 = vadd.f32 %v651, %v734
        %v736 = vpop.f32.mrb[0].mxu0
        %v737 = vadd.f32 %v653, %v736
        %738 = vmatprep.mubr.bf16.mxu0 0
        %739 = vmatmul.mubr.bf16.gmra.mrb[0].mxu0 %v694
        %v740 = vpop.f32.mrb[0].mxu0
        %v741 = vadd.f32 %v657, %v740
        %v742 = vpop.f32.mrb[0].mxu0
        %v743 = vadd.f32 %v659, %v742
        %v744 = vpop.f32.mrb[0].mxu0
        %v745 = vadd.f32 %v661, %v744
        %v746 = vpop.f32.mrb[0].mxu0
        %v747 = vadd.f32 %v663, %v746
        %748 = vdwg.mxu0
        %s749 = scalar_lea.vmem %s3, 32
        %v750 = vld [vmem:[%s749] sm:$0xf]
        %v751 = vld [vmem:[%s749 + $0x4] sm:$0xf]
        %v752 = vld [vmem:[%s749 + $0x8] sm:$0xf]
        %v753 = vld [vmem:[%s749 + $0xc] sm:$0xf]
        %v758 = vunpack.c.l.b16 %v750
        %v759 = vunpack.c.l.b16 %v751
        %v760 = vunpack.c.l.b16 %v752
        %v761 = vunpack.c.l.b16 %v753
        %v762 = vpack.c.b16 %v759, %v758
        %v763 = vpack.c.b16 %v761, %v760
        %764 = vrot.lane.b32.xlu0 %v567, 122
        %v765 = vpop.permute.xlu0 %764
        %766 = vrot.lane.b32.xlu0 %v568, 122
        %v767 = vpop.permute.xlu0 %766
        %768 = vrot.lane.b32.xlu0 %v569, 122
        %v769 = vpop.permute.xlu0 %768
        %770 = vrot.lane.b32.xlu0 %v570, 122
        %v771 = vpop.permute.xlu0 %770
        %vm772 = vcmask 998400
        %v773 = vsel %vm772, %v765, %v767
        %v774 = vsel %vm772, %v769, %v771
        %v780 = vsel %vm605, %v762, 0
        %v783 = vsel %vm605, %v763, 0
        %785 = vmatprep.subr.bf16.mxu0 %v767
        %786 = vmatpush1.bf16.msra.mxu0 %v773
        %787 = vmatprep.subr.bf16.mxu0 %v771
        %788 = vmatpush1.bf16.msra.mxu0 %v774
        %789 = vmatprep.subr.bf16.mxu0 0
        %790 = vmatpush1.bf16.msra.mxu0 0
        %791 = vmatprep.subr.bf16.mxu0 0
        %792 = vmatpush1.bf16.msra.mxu0 0
        %793 = vmatprep.subr.bf16.mxu0 0
        %794 = vmatpush1.bf16.msra.mxu0 0
        %795 = vmatprep.subr.bf16.mxu0 0
        %796 = vmatpush1.bf16.msra.mxu0 0
        %797 = vmatprep.subr.bf16.mxu0 0
        %798 = vmatpush1.bf16.msra.mxu0 0
        %799 = vmatprep.subr.bf16.mxu0 0
        %800 = vmatpush1.bf16.msra.mxu0 0
        %801 = vmatprep.subr.bf16.mxu0 0
        %802 = vmatpush1.bf16.msra.mxu0 0
        %803 = vmatprep.subr.bf16.mxu0 0
        %804 = vmatpush1.bf16.msra.mxu0 0
        %805 = vmatprep.subr.bf16.mxu0 0
        %806 = vmatpush1.bf16.msra.mxu0 0
        %807 = vmatprep.subr.bf16.mxu0 0
        %808 = vmatpush1.bf16.msra.mxu0 0
        %809 = vmatprep.subr.bf16.mxu0 0
        %810 = vmatpush1.bf16.msra.mxu0 0
        %811 = vmatprep.subr.bf16.mxu0 0
        %812 = vmatpush1.bf16.msra.mxu0 0
        %813 = vmatprep.subr.bf16.mxu0 0
        %814 = vmatpush1.bf16.msra.mxu0 0
        %815 = vmatprep.subr.bf16.mxu0 0
        %816 = vmatpush1.bf16.msra.mxu0 0
        %817 = vmatprep.mubr.bf16.mxu0 0
        %818 = vmatmul.mubr.bf16.gmra.mrb[0].mxu0 %v780
        %v819 = vpop.f32.mrb[0].mxu0
        %v820 = vadd.f32 0.0, %v819
        %v821 = vpop.f32.mrb[0].mxu0
        %v822 = vadd.f32 0.0, %v821
        %v823 = vpop.f32.mrb[0].mxu0
        %v824 = vadd.f32 0.0, %v823
        %v825 = vpop.f32.mrb[0].mxu0
        %v826 = vadd.f32 0.0, %v825
        %827 = vmatprep.mubr.bf16.mxu0 0
        %828 = vmatmul.mubr.bf16.gmra.mrb[0].mxu0 %v783
        %v829 = vpop.f32.mrb[0].mxu0
        %v830 = vadd.f32 0.0, %v829
        %v831 = vpop.f32.mrb[0].mxu0
        %v832 = vadd.f32 0.0, %v831
        %v833 = vpop.f32.mrb[0].mxu0
        %v834 = vadd.f32 0.0, %v833
        %v835 = vpop.f32.mrb[0].mxu0
        %v836 = vadd.f32 0.0, %v835
        %837 = vdwg.mxu0
        %v838 = vadd.f32 %v731, %v820
        %v839 = vadd.f32 %v733, %v822
        %v840 = vadd.f32 %v735, %v824
        %v841 = vadd.f32 %v737, %v826
        %v842 = vadd.f32 %v741, %v830
        %v843 = vadd.f32 %v743, %v832
        %v844 = vadd.f32 %v745, %v834
        %v845 = vadd.f32 %v747, %v836
        %v846 = vld [vmem:[%s4] sm:$0xff]
        %v847 = vld [vmem:[%s4 + $0x8] sm:$0xff]
        %v848 = vld [vmem:[%s4 + $0x10] sm:$0xff]
        %v849 = vld [vmem:[%s4 + $0x18] sm:$0xff]
        %851 = vset.pattern.permute.xlu0 0
        %852 = vperm.xlu0 %851, %v846
        %v853 = vpop.permute.xlu0 %852
        %856 = vset.pattern.permute.xlu0 0
        %857 = vperm.xlu0 %856, %v847
        %v858 = vpop.permute.xlu0 %857
        %861 = vset.pattern.permute.xlu0 0
        %862 = vperm.xlu0 %861, %v848
        %v863 = vpop.permute.xlu0 %862
        %866 = vset.pattern.permute.xlu0 0
        %867 = vperm.xlu0 %866, %v849
        %v868 = vpop.permute.xlu0 %867
        %v870 = vadd.f32 %v838, %v853
        %v871 = vadd.f32 %v839, %v853
        %v872 = vadd.f32 %v840, %v858
        %v873 = vadd.f32 %v841, %v858
        %v874 = vadd.f32 %v842, %v863
        %v875 = vadd.f32 %v843, %v863
        %v876 = vadd.f32 %v844, %v868
        %v877 = vadd.f32 %v845, %v868
        %vm878 = vcmp.ge.f32.partialorder %v870, 0.0
        %vm879 = vcmp.ge.f32.partialorder %v871, 0.0
        %vm880 = vcmp.ge.f32.partialorder %v872, 0.0
        %vm881 = vcmp.ge.f32.partialorder %v873, 0.0
        %vm882 = vcmp.ge.f32.partialorder %v874, 0.0
        %vm883 = vcmp.ge.f32.partialorder %v875, 0.0
        %vm884 = vcmp.ge.f32.partialorder %v876, 0.0
        %vm885 = vcmp.ge.f32.partialorder %v877, 0.0
        %v886 = vmul.f32 %v870, 0.1
        %v887 = vmul.f32 %v871, 0.1
        %v888 = vmul.f32 %v872, 0.1
        %v889 = vmul.f32 %v873, 0.1
        %v890 = vmul.f32 %v874, 0.1
        %v891 = vmul.f32 %v875, 0.1
        %v892 = vmul.f32 %v876, 0.1
        %v893 = vmul.f32 %v877, 0.1
        %v894 = vsel %vm878, %v870, %v886
        %v895 = vsel %vm879, %v871, %v887
        %v896 = vsel %vm880, %v872, %v888
        %v897 = vsel %vm881, %v873, %v889
        %v898 = vsel %vm882, %v874, %v890
        %v899 = vsel %vm883, %v875, %v891
        %v900 = vsel %vm884, %v876, %v892
        %v901 = vsel %vm885, %v877, %v893
        %v902 = vsel %vm439, 1, 0
        %v903 = vsel %vm440, 1, 0
        %vm904 = vcmp.eq.s32.totalorder %v902, 1
        %vm905 = vcmp.eq.s32.totalorder %v903, 1
        %v906 = vsel %vm904, %v894, 0.0
        %v907 = vsel %vm905, %v895, 0.0
        %v908 = vsel %vm904, %v896, 0.0
        %v909 = vsel %vm905, %v897, 0.0
        %v910 = vsel %vm904, %v898, 0.0
        %v911 = vsel %vm905, %v899, 0.0
        %v912 = vsel %vm904, %v900, 0.0
        %v913 = vsel %vm905, %v901, 0.0
        %v914 = vpack.c.bf16 %v908, %v906
        %v915 = vpack.c.bf16 %v909, %v907
        %v916 = vpack.c.bf16 %v912, %v910
        %v917 = vpack.c.bf16 %v913, %v911
        %922 = vrot.lane.b32.xlu0 %v914, 5
        %v923 = vpop.permute.xlu0 %922
        %924 = vrot.lane.b32.xlu0 %v915, 5
        %v925 = vpop.permute.xlu0 %924
        %926 = vrot.lane.b32.xlu0 %v916, 5
        %v927 = vpop.permute.xlu0 %926
        %928 = vrot.lane.b32.xlu0 %v917, 5
        %v929 = vpop.permute.xlu0 %928
        %v930 = vsel %vm550, %v923, %v925
        %v931 = vsel %vm550, %v927, %v929
        %936 = vst.msk [vmem:[#allocation2] sm:$0xff] %vm557, %v923
        %937 = vst.msk [vmem:[#allocation2 + $0x8] sm:$0xff] %vm559, %v930
        %938 = vst.msk [vmem:[#allocation2 + $0x10] sm:$0xff] %vm557, %v927
        %939 = vst.msk [vmem:[#allocation2 + $0x18] sm:$0xff] %vm559, %v931
        %v940 = vld [vmem:[#allocation9] sm:$0xf]
        %v941 = vld [vmem:[#allocation9 + $0x4] sm:$0xf]
        %v942 = vld [vmem:[#allocation9 + $0x8] sm:$0xf]
        %v943 = vld [vmem:[#allocation9 + $0xc] sm:$0xf]
        %v944 = vld [vmem:[#allocation2] sm:$0xff]
        %v945 = vld [vmem:[#allocation2 + $0x8] sm:$0xff]
        %v946 = vld [vmem:[#allocation2 + $0x10] sm:$0xff]
        %v947 = vld [vmem:[#allocation2 + $0x18] sm:$0xff]
        %s948 = scalar_lea.vmem [#allocation9], 16
        %v949 = vld [vmem:[%s948] sm:$0xf]
        %v950 = vld [vmem:[%s948 + $0x4] sm:$0xf]
        %v951 = vld [vmem:[%s948 + $0x8] sm:$0xf]
        %v952 = vld [vmem:[%s948 + $0xc] sm:$0xf]
        %v957 = vunpack.c.l.b16 %v949
        %v958 = vunpack.c.l.b16 %v950
        %v959 = vunpack.c.l.b16 %v951
        %v960 = vunpack.c.l.b16 %v952
        %v961 = vpack.c.b16 %v958, %v957
        %v962 = vpack.c.b16 %v960, %v959
        %967 = vrot.lane.b32.xlu0 %v944, 123
        %v968 = vpop.permute.xlu0 %967
        %969 = vrot.lane.b32.xlu0 %v945, 123
        %v970 = vpop.permute.xlu0 %969
        %971 = vrot.lane.b32.xlu0 %v946, 123
        %v972 = vpop.permute.xlu0 %971
        %973 = vrot.lane.b32.xlu0 %v947, 123
        %v974 = vpop.permute.xlu0 %973
        %v975 = vsel %vm598, %v968, %v970
        %v976 = vsel %vm598, %v972, %v974
        %v982 = vsel %vm605, %v961, 0
        %v985 = vsel %vm605, %v962, 0
        %987 = vmatprep.subr.bf16.mxu0 %v970
        %988 = vmatpush1.bf16.msra.mxu0 %v975
        %989 = vmatprep.subr.bf16.mxu0 %v974
        %990 = vmatpush1.bf16.msra.mxu0 %v976
        %991 = vmatprep.subr.bf16.mxu0 0
        %992 = vmatpush1.bf16.msra.mxu0 0
        %993 = vmatprep.subr.bf16.mxu0 0
        %994 = vmatpush1.bf16.msra.mxu0 0
        %995 = vmatprep.subr.bf16.mxu0 0
        %996 = vmatpush1.bf16.msra.mxu0 0
        %997 = vmatprep.subr.bf16.mxu0 0
        %998 = vmatpush1.bf16.msra.mxu0 0
        %999 = vmatprep.subr.bf16.mxu0 0
        %1000 = vmatpush1.bf16.msra.mxu0 0
        %1001 = vmatprep.subr.bf16.mxu0 0
        %1002 = vmatpush1.bf16.msra.mxu0 0
        %1003 = vmatprep.subr.bf16.mxu0 0
        %1004 = vmatpush1.bf16.msra.mxu0 0
        %1005 = vmatprep.subr.bf16.mxu0 0
        %1006 = vmatpush1.bf16.msra.mxu0 0
        %1007 = vmatprep.subr.bf16.mxu0 0
        %1008 = vmatpush1.bf16.msra.mxu0 0
        %1009 = vmatprep.subr.bf16.mxu0 0
        %1010 = vmatpush1.bf16.msra.mxu0 0
        %1011 = vmatprep.subr.bf16.mxu0 0
        %1012 = vmatpush1.bf16.msra.mxu0 0
        %1013 = vmatprep.subr.bf16.mxu0 0
        %1014 = vmatpush1.bf16.msra.mxu0 0
        %1015 = vmatprep.subr.bf16.mxu0 0
        %1016 = vmatpush1.bf16.msra.mxu0 0
        %1017 = vmatprep.subr.bf16.mxu0 0
        %1018 = vmatpush1.bf16.msra.mxu0 0
        %1019 = vmatprep.mubr.bf16.mxu0 0
        %1020 = vmatmul.mubr.bf16.gmra.mrb[0].mxu0 %v982
        %v1021 = vpop.f32.mrb[0].mxu0
        %v1022 = vadd.f32 0.0, %v1021
        %v1023 = vpop.f32.mrb[0].mxu0
        %v1024 = vadd.f32 0.0, %v1023
        %v1025 = vpop.f32.mrb[0].mxu0
        %v1026 = vadd.f32 0.0, %v1025
        %v1027 = vpop.f32.mrb[0].mxu0
        %v1028 = vadd.f32 0.0, %v1027
        %1029 = vmatprep.mubr.bf16.mxu0 0
        %1030 = vmatmul.mubr.bf16.gmra.mrb[0].mxu0 %v985
        %v1031 = vpop.f32.mrb[0].mxu0
        %v1032 = vadd.f32 0.0, %v1031
        %v1033 = vpop.f32.mrb[0].mxu0
        %v1034 = vadd.f32 0.0, %v1033
        %v1035 = vpop.f32.mrb[0].mxu0
        %v1036 = vadd.f32 0.0, %v1035
        %v1037 = vpop.f32.mrb[0].mxu0
        %v1038 = vadd.f32 0.0, %v1037
        %1039 = vdwg.mxu0
        %v1044 = vunpack.c.l.b16 %v940
        %v1045 = vunpack.c.l.b16 %v941
        %v1046 = vunpack.c.l.b16 %v942
        %v1047 = vunpack.c.l.b16 %v943
        %v1048 = vpack.c.b16 %v1045, %v1044
        %v1049 = vpack.c.b16 %v1047, %v1046
        %1050 = vrot.lane.b32.xlu0 %v944, 124
        %v1051 = vpop.permute.xlu0 %1050
        %1052 = vrot.lane.b32.xlu0 %v945, 124
        %v1053 = vpop.permute.xlu0 %1052
        %1054 = vrot.lane.b32.xlu0 %v946, 124
        %v1055 = vpop.permute.xlu0 %1054
        %1056 = vrot.lane.b32.xlu0 %v947, 124
        %v1057 = vpop.permute.xlu0 %1056
        %v1058 = vsel %vm683, %v1051, %v1053
        %v1059 = vsel %vm683, %v1055, %v1057
        %v1065 = vsel %vm605, %v1048, 0
        %v1068 = vsel %vm605, %v1049, 0
        %1070 = vmatprep.subr.bf16.mxu0 %v1053
        %1071 = vmatpush1.bf16.msra.mxu0 %v1058
        %1072 = vmatprep.subr.bf16.mxu0 %v1057
        %1073 = vmatpush1.bf16.msra.mxu0 %v1059
        %1074 = vmatprep.subr.bf16.mxu0 0
        %1075 = vmatpush1.bf16.msra.mxu0 0
        %1076 = vmatprep.subr.bf16.mxu0 0
        %1077 = vmatpush1.bf16.msra.mxu0 0
        %1078 = vmatprep.subr.bf16.mxu0 0
        %1079 = vmatpush1.bf16.msra.mxu0 0
        %1080 = vmatprep.subr.bf16.mxu0 0
        %1081 = vmatpush1.bf16.msra.mxu0 0
        %1082 = vmatprep.subr.bf16.mxu0 0
        %1083 = vmatpush1.bf16.msra.mxu0 0
        %1084 = vmatprep.subr.bf16.mxu0 0
        %1085 = vmatpush1.bf16.msra.mxu0 0
        %1086 = vmatprep.subr.bf16.mxu0 0
        %1087 = vmatpush1.bf16.msra.mxu0 0
        %1088 = vmatprep.subr.bf16.mxu0 0
        %1089 = vmatpush1.bf16.msra.mxu0 0
        %1090 = vmatprep.subr.bf16.mxu0 0
        %1091 = vmatpush1.bf16.msra.mxu0 0
        %1092 = vmatprep.subr.bf16.mxu0 0
        %1093 = vmatpush1.bf16.msra.mxu0 0
        %1094 = vmatprep.subr.bf16.mxu0 0
        %1095 = vmatpush1.bf16.msra.mxu0 0
        %1096 = vmatprep.subr.bf16.mxu0 0
        %1097 = vmatpush1.bf16.msra.mxu0 0
        %1098 = vmatprep.subr.bf16.mxu0 0
        %1099 = vmatpush1.bf16.msra.mxu0 0
        %1100 = vmatprep.subr.bf16.mxu0 0
        %1101 = vmatpush1.bf16.msra.mxu0 0
        %1102 = vmatprep.mubr.bf16.mxu0 0
        %1103 = vmatmul.mubr.bf16.gmra.mrb[0].mxu0 %v1065
        %v1104 = vpop.f32.mrb[0].mxu0
        %v1105 = vadd.f32 %v1022, %v1104
        %v1106 = vpop.f32.mrb[0].mxu0
        %v1107 = vadd.f32 %v1024, %v1106
        %v1108 = vpop.f32.mrb[0].mxu0
        %v1109 = vadd.f32 %v1026, %v1108
        %v1110 = vpop.f32.mrb[0].mxu0
        %v1111 = vadd.f32 %v1028, %v1110
        %1112 = vmatprep.mubr.bf16.mxu0 0
        %1113 = vmatmul.mubr.bf16.gmra.mrb[0].mxu0 %v1068
        %v1114 = vpop.f32.mrb[0].mxu0
        %v1115 = vadd.f32 %v1032, %v1114
        %v1116 = vpop.f32.mrb[0].mxu0
        %v1117 = vadd.f32 %v1034, %v1116
        %v1118 = vpop.f32.mrb[0].mxu0
        %v1119 = vadd.f32 %v1036, %v1118
        %v1120 = vpop.f32.mrb[0].mxu0
        %v1121 = vadd.f32 %v1038, %v1120
        %1122 = vdwg.mxu0
        %s1123 = scalar_lea.vmem [#allocation9], 32
        %v1124 = vld [vmem:[%s1123] sm:$0xf]
        %v1125 = vld [vmem:[%s1123 + $0x4] sm:$0xf]
        %v1126 = vld [vmem:[%s1123 + $0x8] sm:$0xf]
        %v1127 = vld [vmem:[%s1123 + $0xc] sm:$0xf]
        %v1132 = vunpack.c.l.b16 %v1124
        %v1133 = vunpack.c.l.b16 %v1125
        %v1134 = vunpack.c.l.b16 %v1126
        %v1135 = vunpack.c.l.b16 %v1127
        %v1136 = vpack.c.b16 %v1133, %v1132
        %v1137 = vpack.c.b16 %v1135, %v1134
        %1138 = vrot.lane.b32.xlu0 %v944, 122
        %v1139 = vpop.permute.xlu0 %1138
        %1140 = vrot.lane.b32.xlu0 %v945, 122
        %v1141 = vpop.permute.xlu0 %1140
        %1142 = vrot.lane.b32.xlu0 %v946, 122
        %v1143 = vpop.permute.xlu0 %1142
        %1144 = vrot.lane.b32.xlu0 %v947, 122
        %v1145 = vpop.permute.xlu0 %1144
        %v1146 = vsel %vm772, %v1139, %v1141
        %v1147 = vsel %vm772, %v1143, %v1145
        %v1153 = vsel %vm605, %v1136, 0
        %v1156 = vsel %vm605, %v1137, 0
        %1158 = vmatprep.subr.bf16.mxu0 %v1141
        %1159 = vmatpush1.bf16.msra.mxu0 %v1146
        %1160 = vmatprep.subr.bf16.mxu0 %v1145
        %1161 = vmatpush1.bf16.msra.mxu0 %v1147
        %1162 = vmatprep.subr.bf16.mxu0 0
        %1163 = vmatpush1.bf16.msra.mxu0 0
        %1164 = vmatprep.subr.bf16.mxu0 0
        %1165 = vmatpush1.bf16.msra.mxu0 0
        %1166 = vmatprep.subr.bf16.mxu0 0
        %1167 = vmatpush1.bf16.msra.mxu0 0
        %1168 = vmatprep.subr.bf16.mxu0 0
        %1169 = vmatpush1.bf16.msra.mxu0 0
        %1170 = vmatprep.subr.bf16.mxu0 0
        %1171 = vmatpush1.bf16.msra.mxu0 0
        %1172 = vmatprep.subr.bf16.mxu0 0
        %1173 = vmatpush1.bf16.msra.mxu0 0
        %1174 = vmatprep.subr.bf16.mxu0 0
        %1175 = vmatpush1.bf16.msra.mxu0 0
        %1176 = vmatprep.subr.bf16.mxu0 0
        %1177 = vmatpush1.bf16.msra.mxu0 0
        %1178 = vmatprep.subr.bf16.mxu0 0
        %1179 = vmatpush1.bf16.msra.mxu0 0
        %1180 = vmatprep.subr.bf16.mxu0 0
        %1181 = vmatpush1.bf16.msra.mxu0 0
        %1182 = vmatprep.subr.bf16.mxu0 0
        %1183 = vmatpush1.bf16.msra.mxu0 0
        %1184 = vmatprep.subr.bf16.mxu0 0
        %1185 = vmatpush1.bf16.msra.mxu0 0
        %1186 = vmatprep.subr.bf16.mxu0 0
        %1187 = vmatpush1.bf16.msra.mxu0 0
        %1188 = vmatprep.subr.bf16.mxu0 0
        %1189 = vmatpush1.bf16.msra.mxu0 0
        %1190 = vmatprep.mubr.bf16.mxu0 0
        %1191 = vmatmul.mubr.bf16.gmra.mrb[0].mxu0 %v1153
        %v1192 = vpop.f32.mrb[0].mxu0
        %v1193 = vadd.f32 0.0, %v1192
        %v1194 = vpop.f32.mrb[0].mxu0
        %v1195 = vadd.f32 0.0, %v1194
        %v1196 = vpop.f32.mrb[0].mxu0
        %v1197 = vadd.f32 0.0, %v1196
        %v1198 = vpop.f32.mrb[0].mxu0
        %v1199 = vadd.f32 0.0, %v1198
        %1200 = vmatprep.mubr.bf16.mxu0 0
        %1201 = vmatmul.mubr.bf16.gmra.mrb[0].mxu0 %v1156
        %v1202 = vpop.f32.mrb[0].mxu0
        %v1203 = vadd.f32 0.0, %v1202
        %v1204 = vpop.f32.mrb[0].mxu0
        %v1205 = vadd.f32 0.0, %v1204
        %v1206 = vpop.f32.mrb[0].mxu0
        %v1207 = vadd.f32 0.0, %v1206
        %v1208 = vpop.f32.mrb[0].mxu0
        %v1209 = vadd.f32 0.0, %v1208
        %1210 = vdwg.mxu0
        %v1211 = vadd.f32 %v1105, %v1193
        %v1212 = vadd.f32 %v1107, %v1195
        %v1213 = vadd.f32 %v1109, %v1197
        %v1214 = vadd.f32 %v1111, %v1199
        %v1215 = vadd.f32 %v1115, %v1203
        %v1216 = vadd.f32 %v1117, %v1205
        %v1217 = vadd.f32 %v1119, %v1207
        %v1218 = vadd.f32 %v1121, %v1209
        %v1219 = vld [vmem:[%s6] sm:$0xff]
        %v1220 = vld [vmem:[%s6 + $0x8] sm:$0xff]
        %v1221 = vld [vmem:[%s6 + $0x10] sm:$0xff]
        %v1222 = vld [vmem:[%s6 + $0x18] sm:$0xff]
        %1224 = vset.pattern.permute.xlu0 0
        %1225 = vperm.xlu0 %1224, %v1219
        %v1226 = vpop.permute.xlu0 %1225
        %1229 = vset.pattern.permute.xlu0 0
        %1230 = vperm.xlu0 %1229, %v1220
        %v1231 = vpop.permute.xlu0 %1230
        %1234 = vset.pattern.permute.xlu0 0
        %1235 = vperm.xlu0 %1234, %v1221
        %v1236 = vpop.permute.xlu0 %1235
        %1239 = vset.pattern.permute.xlu0 0
        %1240 = vperm.xlu0 %1239, %v1222
        %v1241 = vpop.permute.xlu0 %1240
        %v1243 = vadd.f32 %v1211, %v1226
        %v1244 = vadd.f32 %v1212, %v1226
        %v1245 = vadd.f32 %v1213, %v1231
        %v1246 = vadd.f32 %v1214, %v1231
        %v1247 = vadd.f32 %v1215, %v1236
        %v1248 = vadd.f32 %v1216, %v1236
        %v1249 = vadd.f32 %v1217, %v1241
        %v1250 = vadd.f32 %v1218, %v1241
        %v1251 = vadd.f32 %v1243, %v502
        %v1252 = vadd.f32 %v1244, %v506
        %v1253 = vadd.f32 %v1245, %v503
        %v1254 = vadd.f32 %v1246, %v507
        %v1255 = vadd.f32 %v1247, %v504
        %v1256 = vadd.f32 %v1248, %v508
        %v1257 = vadd.f32 %v1249, %v505
        %v1258 = vadd.f32 %v1250, %v509
        %vm1259 = vcmp.ge.f32.partialorder %v1251, 0.0
        %vm1260 = vcmp.ge.f32.partialorder %v1252, 0.0
        %vm1261 = vcmp.ge.f32.partialorder %v1253, 0.0
        %vm1262 = vcmp.ge.f32.partialorder %v1254, 0.0
        %vm1263 = vcmp.ge.f32.partialorder %v1255, 0.0
        %vm1264 = vcmp.ge.f32.partialorder %v1256, 0.0
        %vm1265 = vcmp.ge.f32.partialorder %v1257, 0.0
        %vm1266 = vcmp.ge.f32.partialorder %v1258, 0.0
        %v1267 = vmul.f32 %v1251, 0.1
        %v1268 = vmul.f32 %v1252, 0.1
        %v1269 = vmul.f32 %v1253, 0.1
        %v1270 = vmul.f32 %v1254, 0.1
        %v1271 = vmul.f32 %v1255, 0.1
        %v1272 = vmul.f32 %v1256, 0.1
        %v1273 = vmul.f32 %v1257, 0.1
        %v1274 = vmul.f32 %v1258, 0.1
        %v1275 = vsel %vm1259, %v1251, %v1267
        %v1276 = vsel %vm1260, %v1252, %v1268
        %v1277 = vsel %vm1261, %v1253, %v1269
        %v1278 = vsel %vm1262, %v1254, %v1270
        %v1279 = vsel %vm1263, %v1255, %v1271
        %v1280 = vsel %vm1264, %v1256, %v1272
        %v1281 = vsel %vm1265, %v1257, %v1273
        %v1282 = vsel %vm1266, %v1258, %v1274
        %v1283 = vsel %vm904, %v1275, 0.0
        %v1284 = vsel %vm905, %v1276, 0.0
        %v1285 = vsel %vm904, %v1277, 0.0
        %v1286 = vsel %vm905, %v1278, 0.0
        %v1287 = vsel %vm904, %v1279, 0.0
        %v1288 = vsel %vm905, %v1280, 0.0
        %v1289 = vsel %vm904, %v1281, 0.0
        %v1290 = vsel %vm905, %v1282, 0.0
        %v1291 = vpack.c.bf16 %v1285, %v1283
        %v1292 = vpack.c.bf16 %v1286, %v1284
        %v1293 = vpack.c.bf16 %v1289, %v1287
        %v1294 = vpack.c.bf16 %v1290, %v1288
        %1299 = vrot.lane.b32.xlu0 %v1291, 5
        %v1300 = vpop.permute.xlu0 %1299
        %1301 = vrot.lane.b32.xlu0 %v1292, 5
        %v1302 = vpop.permute.xlu0 %1301
        %1303 = vrot.lane.b32.xlu0 %v1293, 5
        %v1304 = vpop.permute.xlu0 %1303
        %1305 = vrot.lane.b32.xlu0 %v1294, 5
        %v1306 = vpop.permute.xlu0 %1305
        %v1307 = vsel %vm550, %v1300, %v1302
        %v1308 = vsel %vm550, %v1304, %v1306
        %1313 = vst.msk [vmem:[#allocation2] sm:$0xff] %vm557, %v1300
        %1314 = vst.msk [vmem:[#allocation2 + $0x8] sm:$0xff] %vm559, %v1307
        %1315 = vst.msk [vmem:[#allocation2 + $0x10] sm:$0xff] %vm557, %v1304
        %1316 = vst.msk [vmem:[#allocation2 + $0x18] sm:$0xff] %vm559, %v1308
        %s1317 = scalar_lea.vmem %s3, 48
        %v1318 = vld [vmem:[%s1317] sm:$0xf]
        %v1319 = vld [vmem:[%s1317 + $0x4] sm:$0xf]
        %v1320 = vld [vmem:[%s1317 + $0x8] sm:$0xf]
        %v1321 = vld [vmem:[%s1317 + $0xc] sm:$0xf]
        %v1322 = vld [vmem:[#allocation2] sm:$0xff]
        %v1323 = vld [vmem:[#allocation2 + $0x8] sm:$0xff]
        %v1324 = vld [vmem:[#allocation2 + $0x10] sm:$0xff]
        %v1325 = vld [vmem:[#allocation2 + $0x18] sm:$0xff]
        %s1326 = scalar_lea.vmem %s3, 64
        %v1327 = vld [vmem:[%s1326] sm:$0xf]
        %v1328 = vld [vmem:[%s1326 + $0x4] sm:$0xf]
        %v1329 = vld [vmem:[%s1326 + $0x8] sm:$0xf]
        %v1330 = vld [vmem:[%s1326 + $0xc] sm:$0xf]
        %v1335 = vunpack.c.l.b16 %v1327
        %v1336 = vunpack.c.l.b16 %v1328
        %v1337 = vunpack.c.l.b16 %v1329
        %v1338 = vunpack.c.l.b16 %v1330
        %v1339 = vpack.c.b16 %v1336, %v1335
        %v1340 = vpack.c.b16 %v1338, %v1337
        %1345 = vrot.lane.b32.xlu0 %v1322, 123
        %v1346 = vpop.permute.xlu0 %1345
        %1347 = vrot.lane.b32.xlu0 %v1323, 123
        %v1348 = vpop.permute.xlu0 %1347
        %1349 = vrot.lane.b32.xlu0 %v1324, 123
        %v1350 = vpop.permute.xlu0 %1349
        %1351 = vrot.lane.b32.xlu0 %v1325, 123
        %v1352 = vpop.permute.xlu0 %1351
        %v1353 = vsel %vm598, %v1346, %v1348
        %v1354 = vsel %vm598, %v1350, %v1352
        %v1360 = vsel %vm605, %v1339, 0
        %v1363 = vsel %vm605, %v1340, 0
        %1365 = vmatprep.subr.bf16.mxu0 %v1348
        %1366 = vmatpush1.bf16.msra.mxu0 %v1353
        %1367 = vmatprep.subr.bf16.mxu0 %v1352
        %1368 = vmatpush1.bf16.msra.mxu0 %v1354
        %1369 = vmatprep.subr.bf16.mxu0 0
        %1370 = vmatpush1.bf16.msra.mxu0 0
        %1371 = vmatprep.subr.bf16.mxu0 0
        %1372 = vmatpush1.bf16.msra.mxu0 0
        %1373 = vmatprep.subr.bf16.mxu0 0
        %1374 = vmatpush1.bf16.msra.mxu0 0
        %1375 = vmatprep.subr.bf16.mxu0 0
        %1376 = vmatpush1.bf16.msra.mxu0 0
        %1377 = vmatprep.subr.bf16.mxu0 0
        %1378 = vmatpush1.bf16.msra.mxu0 0
        %1379 = vmatprep.subr.bf16.mxu0 0
        %1380 = vmatpush1.bf16.msra.mxu0 0
        %1381 = vmatprep.subr.bf16.mxu0 0
        %1382 = vmatpush1.bf16.msra.mxu0 0
        %1383 = vmatprep.subr.bf16.mxu0 0
        %1384 = vmatpush1.bf16.msra.mxu0 0
        %1385 = vmatprep.subr.bf16.mxu0 0
        %1386 = vmatpush1.bf16.msra.mxu0 0
        %1387 = vmatprep.subr.bf16.mxu0 0
        %1388 = vmatpush1.bf16.msra.mxu0 0
        %1389 = vmatprep.subr.bf16.mxu0 0
        %1390 = vmatpush1.bf16.msra.mxu0 0
        %1391 = vmatprep.subr.bf16.mxu0 0
        %1392 = vmatpush1.bf16.msra.mxu0 0
        %1393 = vmatprep.subr.bf16.mxu0 0
        %1394 = vmatpush1.bf16.msra.mxu0 0
        %1395 = vmatprep.subr.bf16.mxu0 0
        %1396 = vmatpush1.bf16.msra.mxu0 0
        %1397 = vmatprep.mubr.bf16.mxu0 0
        %1398 = vmatmul.mubr.bf16.gmra.mrb[0].mxu0 %v1360
        %v1399 = vpop.f32.mrb[0].mxu0
        %v1400 = vadd.f32 0.0, %v1399
        %v1401 = vpop.f32.mrb[0].mxu0
        %v1402 = vadd.f32 0.0, %v1401
        %v1403 = vpop.f32.mrb[0].mxu0
        %v1404 = vadd.f32 0.0, %v1403
        %v1405 = vpop.f32.mrb[0].mxu0
        %v1406 = vadd.f32 0.0, %v1405
        %1407 = vmatprep.mubr.bf16.mxu0 0
        %1408 = vmatmul.mubr.bf16.gmra.mrb[0].mxu0 %v1363
        %v1409 = vpop.f32.mrb[0].mxu0
        %v1410 = vadd.f32 0.0, %v1409
        %v1411 = vpop.f32.mrb[0].mxu0
        %v1412 = vadd.f32 0.0, %v1411
        %v1413 = vpop.f32.mrb[0].mxu0
        %v1414 = vadd.f32 0.0, %v1413
        %v1415 = vpop.f32.mrb[0].mxu0
        %v1416 = vadd.f32 0.0, %v1415
        %1417 = vdwg.mxu0
        %v1422 = vunpack.c.l.b16 %v1318
        %v1423 = vunpack.c.l.b16 %v1319
        %v1424 = vunpack.c.l.b16 %v1320
        %v1425 = vunpack.c.l.b16 %v1321
        %v1426 = vpack.c.b16 %v1423, %v1422
        %v1427 = vpack.c.b16 %v1425, %v1424
        %1428 = vrot.lane.b32.xlu0 %v1322, 126
        %v1429 = vpop.permute.xlu0 %1428
        %1430 = vrot.lane.b32.xlu0 %v1323, 126
        %v1431 = vpop.permute.xlu0 %1430
        %1432 = vrot.lane.b32.xlu0 %v1324, 126
        %v1433 = vpop.permute.xlu0 %1432
        %1434 = vrot.lane.b32.xlu0 %v1325, 126
        %v1435 = vpop.permute.xlu0 %1434
        %vm1436 = vcmask 1031168
        %v1437 = vsel %vm1436, %v1429, %v1431
        %v1438 = vsel %vm1436, %v1433, %v1435
        %v1444 = vsel %vm605, %v1426, 0
        %v1447 = vsel %vm605, %v1427, 0
        %1449 = vmatprep.subr.bf16.mxu0 %v1431
        %1450 = vmatpush1.bf16.msra.mxu0 %v1437
        %1451 = vmatprep.subr.bf16.mxu0 %v1435
        %1452 = vmatpush1.bf16.msra.mxu0 %v1438
        %1453 = vmatprep.subr.bf16.mxu0 0
        %1454 = vmatpush1.bf16.msra.mxu0 0
        %1455 = vmatprep.subr.bf16.mxu0 0
        %1456 = vmatpush1.bf16.msra.mxu0 0
        %1457 = vmatprep.subr.bf16.mxu0 0
        %1458 = vmatpush1.bf16.msra.mxu0 0
        %1459 = vmatprep.subr.bf16.mxu0 0
        %1460 = vmatpush1.bf16.msra.mxu0 0
        %1461 = vmatprep.subr.bf16.mxu0 0
        %1462 = vmatpush1.bf16.msra.mxu0 0
        %1463 = vmatprep.subr.bf16.mxu0 0
        %1464 = vmatpush1.bf16.msra.mxu0 0
        %1465 = vmatprep.subr.bf16.mxu0 0
        %1466 = vmatpush1.bf16.msra.mxu0 0
        %1467 = vmatprep.subr.bf16.mxu0 0
        %1468 = vmatpush1.bf16.msra.mxu0 0
        %1469 = vmatprep.subr.bf16.mxu0 0
        %1470 = vmatpush1.bf16.msra.mxu0 0
        %1471 = vmatprep.subr.bf16.mxu0 0
        %1472 = vmatpush1.bf16.msra.mxu0 0
        %1473 = vmatprep.subr.bf16.mxu0 0
        %1474 = vmatpush1.bf16.msra.mxu0 0
        %1475 = vmatprep.subr.bf16.mxu0 0
        %1476 = vmatpush1.bf16.msra.mxu0 0
        %1477 = vmatprep.subr.bf16.mxu0 0
        %1478 = vmatpush1.bf16.msra.mxu0 0
        %1479 = vmatprep.subr.bf16.mxu0 0
        %1480 = vmatpush1.bf16.msra.mxu0 0
        %1481 = vmatprep.mubr.bf16.mxu0 0
        %1482 = vmatmul.mubr.bf16.gmra.mrb[0].mxu0 %v1444
        %v1483 = vpop.f32.mrb[0].mxu0
        %v1484 = vadd.f32 %v1400, %v1483
        %v1485 = vpop.f32.mrb[0].mxu0
        %v1486 = vadd.f32 %v1402, %v1485
        %v1487 = vpop.f32.mrb[0].mxu0
        %v1488 = vadd.f32 %v1404, %v1487
        %v1489 = vpop.f32.mrb[0].mxu0
        %v1490 = vadd.f32 %v1406, %v1489
        %1491 = vmatprep.mubr.bf16.mxu0 0
        %1492 = vmatmul.mubr.bf16.gmra.mrb[0].mxu0 %v1447
        %v1493 = vpop.f32.mrb[0].mxu0
        %v1494 = vadd.f32 %v1410, %v1493
        %v1495 = vpop.f32.mrb[0].mxu0
        %v1496 = vadd.f32 %v1412, %v1495
        %v1497 = vpop.f32.mrb[0].mxu0
        %v1498 = vadd.f32 %v1414, %v1497
        %v1499 = vpop.f32.mrb[0].mxu0
        %v1500 = vadd.f32 %v1416, %v1499
        %1501 = vdwg.mxu0
        %s1502 = scalar_lea.vmem %s3, 80
        %v1503 = vld [vmem:[%s1502] sm:$0xf]
        %v1504 = vld [vmem:[%s1502 + $0x4] sm:$0xf]
        %v1505 = vld [vmem:[%s1502 + $0x8] sm:$0xf]
        %v1506 = vld [vmem:[%s1502 + $0xc] sm:$0xf]
        %v1511 = vunpack.c.l.b16 %v1503
        %v1512 = vunpack.c.l.b16 %v1504
        %v1513 = vunpack.c.l.b16 %v1505
        %v1514 = vunpack.c.l.b16 %v1506
        %v1515 = vpack.c.b16 %v1512, %v1511
        %v1516 = vpack.c.b16 %v1514, %v1513
        %1517 = vrot.lane.b32.xlu0 %v1322, 120
        %v1518 = vpop.permute.xlu0 %1517
        %1519 = vrot.lane.b32.xlu0 %v1323, 120
        %v1520 = vpop.permute.xlu0 %1519
        %1521 = vrot.lane.b32.xlu0 %v1324, 120
        %v1522 = vpop.permute.xlu0 %1521
        %1523 = vrot.lane.b32.xlu0 %v1325, 120
        %v1524 = vpop.permute.xlu0 %1523
        %vm1525 = vcmask 982016
        %v1526 = vsel %vm1525, %v1518, %v1520
        %v1527 = vsel %vm1525, %v1522, %v1524
        %v1533 = vsel %vm605, %v1515, 0
        %v1536 = vsel %vm605, %v1516, 0
        %1538 = vmatprep.subr.bf16.mxu0 %v1520
        %1539 = vmatpush1.bf16.msra.mxu0 %v1526
        %1540 = vmatprep.subr.bf16.mxu0 %v1524
        %1541 = vmatpush1.bf16.msra.mxu0 %v1527
        %1542 = vmatprep.subr.bf16.mxu0 0
        %1543 = vmatpush1.bf16.msra.mxu0 0
        %1544 = vmatprep.subr.bf16.mxu0 0
        %1545 = vmatpush1.bf16.msra.mxu0 0
        %1546 = vmatprep.subr.bf16.mxu0 0
        %1547 = vmatpush1.bf16.msra.mxu0 0
        %1548 = vmatprep.subr.bf16.mxu0 0
        %1549 = vmatpush1.bf16.msra.mxu0 0
        %1550 = vmatprep.subr.bf16.mxu0 0
        %1551 = vmatpush1.bf16.msra.mxu0 0
        %1552 = vmatprep.subr.bf16.mxu0 0
        %1553 = vmatpush1.bf16.msra.mxu0 0
        %1554 = vmatprep.subr.bf16.mxu0 0
        %1555 = vmatpush1.bf16.msra.mxu0 0
        %1556 = vmatprep.subr.bf16.mxu0 0
        %1557 = vmatpush1.bf16.msra.mxu0 0
        %1558 = vmatprep.subr.bf16.mxu0 0
        %1559 = vmatpush1.bf16.msra.mxu0 0
        %1560 = vmatprep.subr.bf16.mxu0 0
        %1561 = vmatpush1.bf16.msra.mxu0 0
        %1562 = vmatprep.subr.bf16.mxu0 0
        %1563 = vmatpush1.bf16.msra.mxu0 0
        %1564 = vmatprep.subr.bf16.mxu0 0
        %1565 = vmatpush1.bf16.msra.mxu0 0
        %1566 = vmatprep.subr.bf16.mxu0 0
        %1567 = vmatpush1.bf16.msra.mxu0 0
        %1568 = vmatprep.subr.bf16.mxu0 0
        %1569 = vmatpush1.bf16.msra.mxu0 0
        %1570 = vmatprep.mubr.bf16.mxu0 0
        %1571 = vmatmul.mubr.bf16.gmra.mrb[0].mxu0 %v1533
        %v1572 = vpop.f32.mrb[0].mxu0
        %v1573 = vadd.f32 0.0, %v1572
        %v1574 = vpop.f32.mrb[0].mxu0
        %v1575 = vadd.f32 0.0, %v1574
        %v1576 = vpop.f32.mrb[0].mxu0
        %v1577 = vadd.f32 0.0, %v1576
        %v1578 = vpop.f32.mrb[0].mxu0
        %v1579 = vadd.f32 0.0, %v1578
        %1580 = vmatprep.mubr.bf16.mxu0 0
        %1581 = vmatmul.mubr.bf16.gmra.mrb[0].mxu0 %v1536
        %v1582 = vpop.f32.mrb[0].mxu0
        %v1583 = vadd.f32 0.0, %v1582
        %v1584 = vpop.f32.mrb[0].mxu0
        %v1585 = vadd.f32 0.0, %v1584
        %v1586 = vpop.f32.mrb[0].mxu0
        %v1587 = vadd.f32 0.0, %v1586
        %v1588 = vpop.f32.mrb[0].mxu0
        %v1589 = vadd.f32 0.0, %v1588
        %1590 = vdwg.mxu0
        %v1591 = vadd.f32 %v1484, %v1573
        %v1592 = vadd.f32 %v1486, %v1575
        %v1593 = vadd.f32 %v1488, %v1577
        %v1594 = vadd.f32 %v1490, %v1579
        %v1595 = vadd.f32 %v1494, %v1583
        %v1596 = vadd.f32 %v1496, %v1585
        %v1597 = vadd.f32 %v1498, %v1587
        %v1598 = vadd.f32 %v1500, %v1589
        %s1599 = scalar_lea.vmem %s4, 32
        %v1600 = vld [vmem:[%s1599] sm:$0xff]
        %v1601 = vld [vmem:[%s1599 + $0x8] sm:$0xff]
        %v1602 = vld [vmem:[%s1599 + $0x10] sm:$0xff]
        %v1603 = vld [vmem:[%s1599 + $0x18] sm:$0xff]
        %1605 = vset.pattern.permute.xlu0 0
        %1606 = vperm.xlu0 %1605, %v1600
        %v1607 = vpop.permute.xlu0 %1606
        %1610 = vset.pattern.permute.xlu0 0
        %1611 = vperm.xlu0 %1610, %v1601
        %v1612 = vpop.permute.xlu0 %1611
        %1615 = vset.pattern.permute.xlu0 0
        %1616 = vperm.xlu0 %1615, %v1602
        %v1617 = vpop.permute.xlu0 %1616
        %1620 = vset.pattern.permute.xlu0 0
        %1621 = vperm.xlu0 %1620, %v1603
        %v1622 = vpop.permute.xlu0 %1621
        %v1624 = vadd.f32 %v1591, %v1607
        %v1625 = vadd.f32 %v1592, %v1607
        %v1626 = vadd.f32 %v1593, %v1612
        %v1627 = vadd.f32 %v1594, %v1612
        %v1628 = vadd.f32 %v1595, %v1617
        %v1629 = vadd.f32 %v1596, %v1617
        %v1630 = vadd.f32 %v1597, %v1622
        %v1631 = vadd.f32 %v1598, %v1622
        %vm1632 = vcmp.ge.f32.partialorder %v1624, 0.0
        %vm1633 = vcmp.ge.f32.partialorder %v1625, 0.0
        %vm1634 = vcmp.ge.f32.partialorder %v1626, 0.0
        %vm1635 = vcmp.ge.f32.partialorder %v1627, 0.0
        %vm1636 = vcmp.ge.f32.partialorder %v1628, 0.0
        %vm1637 = vcmp.ge.f32.partialorder %v1629, 0.0
        %vm1638 = vcmp.ge.f32.partialorder %v1630, 0.0
        %vm1639 = vcmp.ge.f32.partialorder %v1631, 0.0
        %v1640 = vmul.f32 %v1624, 0.1
        %v1641 = vmul.f32 %v1625, 0.1
        %v1642 = vmul.f32 %v1626, 0.1
        %v1643 = vmul.f32 %v1627, 0.1
        %v1644 = vmul.f32 %v1628, 0.1
        %v1645 = vmul.f32 %v1629, 0.1
        %v1646 = vmul.f32 %v1630, 0.1
        %v1647 = vmul.f32 %v1631, 0.1
        %v1648 = vsel %vm1632, %v1624, %v1640
        %v1649 = vsel %vm1633, %v1625, %v1641
        %v1650 = vsel %vm1634, %v1626, %v1642
        %v1651 = vsel %vm1635, %v1627, %v1643
        %v1652 = vsel %vm1636, %v1628, %v1644
        %v1653 = vsel %vm1637, %v1629, %v1645
        %v1654 = vsel %vm1638, %v1630, %v1646
        %v1655 = vsel %vm1639, %v1631, %v1647
        %v1656 = vsel %vm904, %v1648, 0.0
        %v1657 = vsel %vm905, %v1649, 0.0
        %v1658 = vsel %vm904, %v1650, 0.0
        %v1659 = vsel %vm905, %v1651, 0.0
        %v1660 = vsel %vm904, %v1652, 0.0
        %v1661 = vsel %vm905, %v1653, 0.0
        %v1662 = vsel %vm904, %v1654, 0.0
        %v1663 = vsel %vm905, %v1655, 0.0
        %v1664 = vpack.c.bf16 %v1658, %v1656
        %v1665 = vpack.c.bf16 %v1659, %v1657
        %v1666 = vpack.c.bf16 %v1662, %v1660
        %v1667 = vpack.c.bf16 %v1663, %v1661
        %1672 = vrot.lane.b32.xlu0 %v1664, 5
        %v1673 = vpop.permute.xlu0 %1672
        %1674 = vrot.lane.b32.xlu0 %v1665, 5
        %v1675 = vpop.permute.xlu0 %1674
        %1676 = vrot.lane.b32.xlu0 %v1666, 5
        %v1677 = vpop.permute.xlu0 %1676
        %1678 = vrot.lane.b32.xlu0 %v1667, 5
        %v1679 = vpop.permute.xlu0 %1678
        %v1680 = vsel %vm550, %v1673, %v1675
        %v1681 = vsel %vm550, %v1677, %v1679
        %1686 = vst.msk [vmem:[#allocation2] sm:$0xff] %vm557, %v1673
        %1687 = vst.msk [vmem:[#allocation2 + $0x8] sm:$0xff] %vm559, %v1680
        %1688 = vst.msk [vmem:[#allocation2 + $0x10] sm:$0xff] %vm557, %v1677
        %1689 = vst.msk [vmem:[#allocation2 + $0x18] sm:$0xff] %vm559, %v1681
        %s1690 = scalar_lea.vmem [#allocation9], 48
        %v1691 = vld [vmem:[%s1690] sm:$0xf]
        %v1692 = vld [vmem:[%s1690 + $0x4] sm:$0xf]
        %v1693 = vld [vmem:[%s1690 + $0x8] sm:$0xf]
        %v1694 = vld [vmem:[%s1690 + $0xc] sm:$0xf]
        %v1695 = vld [vmem:[#allocation2] sm:$0xff]
        %v1696 = vld [vmem:[#allocation2 + $0x8] sm:$0xff]
        %v1697 = vld [vmem:[#allocation2 + $0x10] sm:$0xff]
        %v1698 = vld [vmem:[#allocation2 + $0x18] sm:$0xff]
        %s1699 = scalar_lea.vmem [#allocation9], 64
        %v1700 = vld [vmem:[%s1699] sm:$0xf]
        %v1701 = vld [vmem:[%s1699 + $0x4] sm:$0xf]
        %v1702 = vld [vmem:[%s1699 + $0x8] sm:$0xf]
        %v1703 = vld [vmem:[%s1699 + $0xc] sm:$0xf]
        %v1708 = vunpack.c.l.b16 %v1700
        %v1709 = vunpack.c.l.b16 %v1701
        %v1710 = vunpack.c.l.b16 %v1702
        %v1711 = vunpack.c.l.b16 %v1703
        %v1712 = vpack.c.b16 %v1709, %v1708
        %v1713 = vpack.c.b16 %v1711, %v1710
        %1718 = vrot.lane.b32.xlu0 %v1695, 123
        %v1719 = vpop.permute.xlu0 %1718
        %1720 = vrot.lane.b32.xlu0 %v1696, 123
        %v1721 = vpop.permute.xlu0 %1720
        %1722 = vrot.lane.b32.xlu0 %v1697, 123
        %v1723 = vpop.permute.xlu0 %1722
        %1724 = vrot.lane.b32.xlu0 %v1698, 123
        %v1725 = vpop.permute.xlu0 %1724
        %v1726 = vsel %vm598, %v1719, %v1721
        %v1727 = vsel %vm598, %v1723, %v1725
        %v1733 = vsel %vm605, %v1712, 0
        %v1736 = vsel %vm605, %v1713, 0
        %1738 = vmatprep.subr.bf16.mxu0 %v1721
        %1739 = vmatpush1.bf16.msra.mxu0 %v1726
        %1740 = vmatprep.subr.bf16.mxu0 %v1725
        %1741 = vmatpush1.bf16.msra.mxu0 %v1727
        %1742 = vmatprep.subr.bf16.mxu0 0
        %1743 = vmatpush1.bf16.msra.mxu0 0
        %1744 = vmatprep.subr.bf16.mxu0 0
        %1745 = vmatpush1.bf16.msra.mxu0 0
        %1746 = vmatprep.subr.bf16.mxu0 0
        %1747 = vmatpush1.bf16.msra.mxu0 0
        %1748 = vmatprep.subr.bf16.mxu0 0
        %1749 = vmatpush1.bf16.msra.mxu0 0
        %1750 = vmatprep.subr.bf16.mxu0 0
        %1751 = vmatpush1.bf16.msra.mxu0 0
        %1752 = vmatprep.subr.bf16.mxu0 0
        %1753 = vmatpush1.bf16.msra.mxu0 0
        %1754 = vmatprep.subr.bf16.mxu0 0
        %1755 = vmatpush1.bf16.msra.mxu0 0
        %1756 = vmatprep.subr.bf16.mxu0 0
        %1757 = vmatpush1.bf16.msra.mxu0 0
        %1758 = vmatprep.subr.bf16.mxu0 0
        %1759 = vmatpush1.bf16.msra.mxu0 0
        %1760 = vmatprep.subr.bf16.mxu0 0
        %1761 = vmatpush1.bf16.msra.mxu0 0
        %1762 = vmatprep.subr.bf16.mxu0 0
        %1763 = vmatpush1.bf16.msra.mxu0 0
        %1764 = vmatprep.subr.bf16.mxu0 0
        %1765 = vmatpush1.bf16.msra.mxu0 0
        %1766 = vmatprep.subr.bf16.mxu0 0
        %1767 = vmatpush1.bf16.msra.mxu0 0
        %1768 = vmatprep.subr.bf16.mxu0 0
        %1769 = vmatpush1.bf16.msra.mxu0 0
        %1770 = vmatprep.mubr.bf16.mxu0 0
        %1771 = vmatmul.mubr.bf16.gmra.mrb[0].mxu0 %v1733
        %v1772 = vpop.f32.mrb[0].mxu0
        %v1773 = vadd.f32 0.0, %v1772
        %v1774 = vpop.f32.mrb[0].mxu0
        %v1775 = vadd.f32 0.0, %v1774
        %v1776 = vpop.f32.mrb[0].mxu0
        %v1777 = vadd.f32 0.0, %v1776
        %v1778 = vpop.f32.mrb[0].mxu0
        %v1779 = vadd.f32 0.0, %v1778
        %1780 = vmatprep.mubr.bf16.mxu0 0
        %1781 = vmatmul.mubr.bf16.gmra.mrb[0].mxu0 %v1736
        %v1782 = vpop.f32.mrb[0].mxu0
        %v1783 = vadd.f32 0.0, %v1782
        %v1784 = vpop.f32.mrb[0].mxu0
        %v1785 = vadd.f32 0.0, %v1784
        %v1786 = vpop.f32.mrb[0].mxu0
        %v1787 = vadd.f32 0.0, %v1786
        %v1788 = vpop.f32.mrb[0].mxu0
        %v1789 = vadd.f32 0.0, %v1788
        %1790 = vdwg.mxu0
        %v1795 = vunpack.c.l.b16 %v1691
        %v1796 = vunpack.c.l.b16 %v1692
        %v1797 = vunpack.c.l.b16 %v1693
        %v1798 = vunpack.c.l.b16 %v1694
        %v1799 = vpack.c.b16 %v1796, %v1795
        %v1800 = vpack.c.b16 %v1798, %v1797
        %1801 = vrot.lane.b32.xlu0 %v1695, 124
        %v1802 = vpop.permute.xlu0 %1801
        %1803 = vrot.lane.b32.xlu0 %v1696, 124
        %v1804 = vpop.permute.xlu0 %1803
        %1805 = vrot.lane.b32.xlu0 %v1697, 124
        %v1806 = vpop.permute.xlu0 %1805
        %1807 = vrot.lane.b32.xlu0 %v1698, 124
        %v1808 = vpop.permute.xlu0 %1807
        %v1809 = vsel %vm683, %v1802, %v1804
        %v1810 = vsel %vm683, %v1806, %v1808
        %v1816 = vsel %vm605, %v1799, 0
        %v1819 = vsel %vm605, %v1800, 0
        %1821 = vmatprep.subr.bf16.mxu0 %v1804
        %1822 = vmatpush1.bf16.msra.mxu0 %v1809
        %1823 = vmatprep.subr.bf16.mxu0 %v1808
        %1824 = vmatpush1.bf16.msra.mxu0 %v1810
        %1825 = vmatprep.subr.bf16.mxu0 0
        %1826 = vmatpush1.bf16.msra.mxu0 0
        %1827 = vmatprep.subr.bf16.mxu0 0
        %1828 = vmatpush1.bf16.msra.mxu0 0
        %1829 = vmatprep.subr.bf16.mxu0 0
        %1830 = vmatpush1.bf16.msra.mxu0 0
        %1831 = vmatprep.subr.bf16.mxu0 0
        %1832 = vmatpush1.bf16.msra.mxu0 0
        %1833 = vmatprep.subr.bf16.mxu0 0
        %1834 = vmatpush1.bf16.msra.mxu0 0
        %1835 = vmatprep.subr.bf16.mxu0 0
        %1836 = vmatpush1.bf16.msra.mxu0 0
        %1837 = vmatprep.subr.bf16.mxu0 0
        %1838 = vmatpush1.bf16.msra.mxu0 0
        %1839 = vmatprep.subr.bf16.mxu0 0
        %1840 = vmatpush1.bf16.msra.mxu0 0
        %1841 = vmatprep.subr.bf16.mxu0 0
        %1842 = vmatpush1.bf16.msra.mxu0 0
        %1843 = vmatprep.subr.bf16.mxu0 0
        %1844 = vmatpush1.bf16.msra.mxu0 0
        %1845 = vmatprep.subr.bf16.mxu0 0
        %1846 = vmatpush1.bf16.msra.mxu0 0
        %1847 = vmatprep.subr.bf16.mxu0 0
        %1848 = vmatpush1.bf16.msra.mxu0 0
        %1849 = vmatprep.subr.bf16.mxu0 0
        %1850 = vmatpush1.bf16.msra.mxu0 0
        %1851 = vmatprep.subr.bf16.mxu0 0
        %1852 = vmatpush1.bf16.msra.mxu0 0
        %1853 = vmatprep.mubr.bf16.mxu0 0
        %1854 = vmatmul.mubr.bf16.gmra.mrb[0].mxu0 %v1816
        %v1855 = vpop.f32.mrb[0].mxu0
        %v1856 = vadd.f32 %v1773, %v1855
        %v1857 = vpop.f32.mrb[0].mxu0
        %v1858 = vadd.f32 %v1775, %v1857
        %v1859 = vpop.f32.mrb[0].mxu0
        %v1860 = vadd.f32 %v1777, %v1859
        %v1861 = vpop.f32.mrb[0].mxu0
        %v1862 = vadd.f32 %v1779, %v1861
        %1863 = vmatprep.mubr.bf16.mxu0 0
        %1864 = vmatmul.mubr.bf16.gmra.mrb[0].mxu0 %v1819
        %v1865 = vpop.f32.mrb[0].mxu0
        %v1866 = vadd.f32 %v1783, %v1865
        %v1867 = vpop.f32.mrb[0].mxu0
        %v1868 = vadd.f32 %v1785, %v1867
        %v1869 = vpop.f32.mrb[0].mxu0
        %v1870 = vadd.f32 %v1787, %v1869
        %v1871 = vpop.f32.mrb[0].mxu0
        %v1872 = vadd.f32 %v1789, %v1871
        %1873 = vdwg.mxu0
        %s1874 = scalar_lea.vmem [#allocation9], 80
        %v1875 = vld [vmem:[%s1874] sm:$0xf]
        %v1876 = vld [vmem:[%s1874 + $0x4] sm:$0xf]
        %v1877 = vld [vmem:[%s1874 + $0x8] sm:$0xf]
        %v1878 = vld [vmem:[%s1874 + $0xc] sm:$0xf]
        %v1883 = vunpack.c.l.b16 %v1875
        %v1884 = vunpack.c.l.b16 %v1876
        %v1885 = vunpack.c.l.b16 %v1877
        %v1886 = vunpack.c.l.b16 %v1878
        %v1887 = vpack.c.b16 %v1884, %v1883
        %v1888 = vpack.c.b16 %v1886, %v1885
        %1889 = vrot.lane.b32.xlu0 %v1695, 122
        %v1890 = vpop.permute.xlu0 %1889
        %1891 = vrot.lane.b32.xlu0 %v1696, 122
        %v1892 = vpop.permute.xlu0 %1891
        %1893 = vrot.lane.b32.xlu0 %v1697, 122
        %v1894 = vpop.permute.xlu0 %1893
        %1895 = vrot.lane.b32.xlu0 %v1698, 122
        %v1896 = vpop.permute.xlu0 %1895
        %v1897 = vsel %vm772, %v1890, %v1892
        %v1898 = vsel %vm772, %v1894, %v1896
        %v1904 = vsel %vm605, %v1887, 0
        %v1907 = vsel %vm605, %v1888, 0
        %1909 = vmatprep.subr.bf16.mxu0 %v1892
        %1910 = vmatpush1.bf16.msra.mxu0 %v1897
        %1911 = vmatprep.subr.bf16.mxu0 %v1896
        %1912 = vmatpush1.bf16.msra.mxu0 %v1898
        %1913 = vmatprep.subr.bf16.mxu0 0
        %1914 = vmatpush1.bf16.msra.mxu0 0
        %1915 = vmatprep.subr.bf16.mxu0 0
        %1916 = vmatpush1.bf16.msra.mxu0 0
        %1917 = vmatprep.subr.bf16.mxu0 0
        %1918 = vmatpush1.bf16.msra.mxu0 0
        %1919 = vmatprep.subr.bf16.mxu0 0
        %1920 = vmatpush1.bf16.msra.mxu0 0
        %1921 = vmatprep.subr.bf16.mxu0 0
        %1922 = vmatpush1.bf16.msra.mxu0 0
        %1923 = vmatprep.subr.bf16.mxu0 0
        %1924 = vmatpush1.bf16.msra.mxu0 0
        %1925 = vmatprep.subr.bf16.mxu0 0
        %1926 = vmatpush1.bf16.msra.mxu0 0
        %1927 = vmatprep.subr.bf16.mxu0 0
        %1928 = vmatpush1.bf16.msra.mxu0 0
        %1929 = vmatprep.subr.bf16.mxu0 0
        %1930 = vmatpush1.bf16.msra.mxu0 0
        %1931 = vmatprep.subr.bf16.mxu0 0
        %1932 = vmatpush1.bf16.msra.mxu0 0
        %1933 = vmatprep.subr.bf16.mxu0 0
        %1934 = vmatpush1.bf16.msra.mxu0 0
        %1935 = vmatprep.subr.bf16.mxu0 0
        %1936 = vmatpush1.bf16.msra.mxu0 0
        %1937 = vmatprep.subr.bf16.mxu0 0
        %1938 = vmatpush1.bf16.msra.mxu0 0
        %1939 = vmatprep.subr.bf16.mxu0 0
        %1940 = vmatpush1.bf16.msra.mxu0 0
        %1941 = vmatprep.mubr.bf16.mxu0 0
        %1942 = vmatmul.mubr.bf16.gmra.mrb[0].mxu0 %v1904
        %v1943 = vpop.f32.mrb[0].mxu0
        %v1944 = vadd.f32 0.0, %v1943
        %v1945 = vpop.f32.mrb[0].mxu0
        %v1946 = vadd.f32 0.0, %v1945
        %v1947 = vpop.f32.mrb[0].mxu0
        %v1948 = vadd.f32 0.0, %v1947
        %v1949 = vpop.f32.mrb[0].mxu0
        %v1950 = vadd.f32 0.0, %v1949
        %1951 = vmatprep.mubr.bf16.mxu0 0
        %1952 = vmatmul.mubr.bf16.gmra.mrb[0].mxu0 %v1907
        %v1953 = vpop.f32.mrb[0].mxu0
        %v1954 = vadd.f32 0.0, %v1953
        %v1955 = vpop.f32.mrb[0].mxu0
        %v1956 = vadd.f32 0.0, %v1955
        %v1957 = vpop.f32.mrb[0].mxu0
        %v1958 = vadd.f32 0.0, %v1957
        %v1959 = vpop.f32.mrb[0].mxu0
        %v1960 = vadd.f32 0.0, %v1959
        %1961 = vdwg.mxu0
        %v1962 = vadd.f32 %v1856, %v1944
        %v1963 = vadd.f32 %v1858, %v1946
        %v1964 = vadd.f32 %v1860, %v1948
        %v1965 = vadd.f32 %v1862, %v1950
        %v1966 = vadd.f32 %v1866, %v1954
        %v1967 = vadd.f32 %v1868, %v1956
        %v1968 = vadd.f32 %v1870, %v1958
        %v1969 = vadd.f32 %v1872, %v1960
        %s1970 = scalar_lea.vmem %s6, 32
        %v1971 = vld [vmem:[%s1970] sm:$0xff]
        %v1972 = vld [vmem:[%s1970 + $0x8] sm:$0xff]
        %v1973 = vld [vmem:[%s1970 + $0x10] sm:$0xff]
        %v1974 = vld [vmem:[%s1970 + $0x18] sm:$0xff]
        %1976 = vset.pattern.permute.xlu0 0
        %1977 = vperm.xlu0 %1976, %v1971
        %v1978 = vpop.permute.xlu0 %1977
        %1981 = vset.pattern.permute.xlu0 0
        %1982 = vperm.xlu0 %1981, %v1972
        %v1983 = vpop.permute.xlu0 %1982
        %1986 = vset.pattern.permute.xlu0 0
        %1987 = vperm.xlu0 %1986, %v1973
        %v1988 = vpop.permute.xlu0 %1987
        %1991 = vset.pattern.permute.xlu0 0
        %1992 = vperm.xlu0 %1991, %v1974
        %v1993 = vpop.permute.xlu0 %1992
        %v1995 = vadd.f32 %v1962, %v1978
        %v1996 = vadd.f32 %v1963, %v1978
        %v1997 = vadd.f32 %v1964, %v1983
        %v1998 = vadd.f32 %v1965, %v1983
        %v1999 = vadd.f32 %v1966, %v1988
        %v2000 = vadd.f32 %v1967, %v1988
        %v2001 = vadd.f32 %v1968, %v1993
        %v2002 = vadd.f32 %v1969, %v1993
        %v2003 = vadd.f32 %v1995, %v1251
        %v2004 = vadd.f32 %v1996, %v1252
        %v2005 = vadd.f32 %v1997, %v1253
        %v2006 = vadd.f32 %v1998, %v1254
        %v2007 = vadd.f32 %v1999, %v1255
        %v2008 = vadd.f32 %v2000, %v1256
        %v2009 = vadd.f32 %v2001, %v1257
        %v2010 = vadd.f32 %v2002, %v1258
        %vm2011 = vcmp.ge.f32.partialorder %v2003, 0.0
        %vm2012 = vcmp.ge.f32.partialorder %v2004, 0.0
        %vm2013 = vcmp.ge.f32.partialorder %v2005, 0.0
        %vm2014 = vcmp.ge.f32.partialorder %v2006, 0.0
        %vm2015 = vcmp.ge.f32.partialorder %v2007, 0.0
        %vm2016 = vcmp.ge.f32.partialorder %v2008, 0.0
        %vm2017 = vcmp.ge.f32.partialorder %v2009, 0.0
        %vm2018 = vcmp.ge.f32.partialorder %v2010, 0.0
        %v2019 = vmul.f32 %v2003, 0.1
        %v2020 = vmul.f32 %v2004, 0.1
        %v2021 = vmul.f32 %v2005, 0.1
        %v2022 = vmul.f32 %v2006, 0.1
        %v2023 = vmul.f32 %v2007, 0.1
        %v2024 = vmul.f32 %v2008, 0.1
        %v2025 = vmul.f32 %v2009, 0.1
        %v2026 = vmul.f32 %v2010, 0.1
        %v2027 = vsel %vm2011, %v2003, %v2019
        %v2028 = vsel %vm2012, %v2004, %v2020
        %v2029 = vsel %vm2013, %v2005, %v2021
        %v2030 = vsel %vm2014, %v2006, %v2022
        %v2031 = vsel %vm2015, %v2007, %v2023
        %v2032 = vsel %vm2016, %v2008, %v2024
        %v2033 = vsel %vm2017, %v2009, %v2025
        %v2034 = vsel %vm2018, %v2010, %v2026
        %v2035 = vsel %vm904, %v2027, 0.0
        %v2036 = vsel %vm905, %v2028, 0.0
        %v2037 = vsel %vm904, %v2029, 0.0
        %v2038 = vsel %vm905, %v2030, 0.0
        %v2039 = vsel %vm904, %v2031, 0.0
        %v2040 = vsel %vm905, %v2032, 0.0
        %v2041 = vsel %vm904, %v2033, 0.0
        %v2042 = vsel %vm905, %v2034, 0.0
        %v2043 = vpack.c.bf16 %v2037, %v2035
        %v2044 = vpack.c.bf16 %v2038, %v2036
        %v2045 = vpack.c.bf16 %v2041, %v2039
        %v2046 = vpack.c.bf16 %v2042, %v2040
        %2051 = vrot.lane.b32.xlu0 %v2043, 5
        %v2052 = vpop.permute.xlu0 %2051
        %2053 = vrot.lane.b32.xlu0 %v2044, 5
        %v2054 = vpop.permute.xlu0 %2053
        %2055 = vrot.lane.b32.xlu0 %v2045, 5
        %v2056 = vpop.permute.xlu0 %2055
        %2057 = vrot.lane.b32.xlu0 %v2046, 5
        %v2058 = vpop.permute.xlu0 %2057
        %v2059 = vsel %vm550, %v2052, %v2054
        %v2060 = vsel %vm550, %v2056, %v2058
        %2065 = vst.msk [vmem:[#allocation2] sm:$0xff] %vm557, %v2052
        %2066 = vst.msk [vmem:[#allocation2 + $0x8] sm:$0xff] %vm559, %v2059
        %2067 = vst.msk [vmem:[#allocation2 + $0x10] sm:$0xff] %vm557, %v2056
        %2068 = vst.msk [vmem:[#allocation2 + $0x18] sm:$0xff] %vm559, %v2060
        %s2069 = scalar_lea.vmem %s3, 96
        %v2070 = vld [vmem:[%s2069] sm:$0xf]
        %v2071 = vld [vmem:[%s2069 + $0x4] sm:$0xf]
        %v2072 = vld [vmem:[%s2069 + $0x8] sm:$0xf]
        %v2073 = vld [vmem:[%s2069 + $0xc] sm:$0xf]
        %v2074 = vld [vmem:[#allocation2] sm:$0xff]
        %v2075 = vld [vmem:[#allocation2 + $0x8] sm:$0xff]
        %v2076 = vld [vmem:[#allocation2 + $0x10] sm:$0xff]
        %v2077 = vld [vmem:[#allocation2 + $0x18] sm:$0xff]
        %s2078 = scalar_lea.vmem %s3, 112
        %v2079 = vld [vmem:[%s2078] sm:$0xf]
        %v2080 = vld [vmem:[%s2078 + $0x4] sm:$0xf]
        %v2081 = vld [vmem:[%s2078 + $0x8] sm:$0xf]
        %v2082 = vld [vmem:[%s2078 + $0xc] sm:$0xf]
        %v2087 = vunpack.c.l.b16 %v2079
        %v2088 = vunpack.c.l.b16 %v2080
        %v2089 = vunpack.c.l.b16 %v2081
        %v2090 = vunpack.c.l.b16 %v2082
        %v2091 = vpack.c.b16 %v2088, %v2087
        %v2092 = vpack.c.b16 %v2090, %v2089
        %2097 = vrot.lane.b32.xlu0 %v2074, 123
        %v2098 = vpop.permute.xlu0 %2097
        %2099 = vrot.lane.b32.xlu0 %v2075, 123
        %v2100 = vpop.permute.xlu0 %2099
        %2101 = vrot.lane.b32.xlu0 %v2076, 123
        %v2102 = vpop.permute.xlu0 %2101
        %2103 = vrot.lane.b32.xlu0 %v2077, 123
        %v2104 = vpop.permute.xlu0 %2103
        %v2105 = vsel %vm598, %v2098, %v2100
        %v2106 = vsel %vm598, %v2102, %v2104
        %v2112 = vsel %vm605, %v2091, 0
        %v2115 = vsel %vm605, %v2092, 0
        %2117 = vmatprep.subr.bf16.mxu0 %v2100
        %2118 = vmatpush1.bf16.msra.mxu0 %v2105
        %2119 = vmatprep.subr.bf16.mxu0 %v2104
        %2120 = vmatpush1.bf16.msra.mxu0 %v2106
        %2121 = vmatprep.subr.bf16.mxu0 0
        %2122 = vmatpush1.bf16.msra.mxu0 0
        %2123 = vmatprep.subr.bf16.mxu0 0
        %2124 = vmatpush1.bf16.msra.mxu0 0
        %2125 = vmatprep.subr.bf16.mxu0 0
        %2126 = vmatpush1.bf16.msra.mxu0 0
        %2127 = vmatprep.subr.bf16.mxu0 0
        %2128 = vmatpush1.bf16.msra.mxu0 0
        %2129 = vmatprep.subr.bf16.mxu0 0
        %2130 = vmatpush1.bf16.msra.mxu0 0
        %2131 = vmatprep.subr.bf16.mxu0 0
        %2132 = vmatpush1.bf16.msra.mxu0 0
        %2133 = vmatprep.subr.bf16.mxu0 0
        %2134 = vmatpush1.bf16.msra.mxu0 0
        %2135 = vmatprep.subr.bf16.mxu0 0
        %2136 = vmatpush1.bf16.msra.mxu0 0
        %2137 = vmatprep.subr.bf16.mxu0 0
        %2138 = vmatpush1.bf16.msra.mxu0 0
        %2139 = vmatprep.subr.bf16.mxu0 0
        %2140 = vmatpush1.bf16.msra.mxu0 0
        %2141 = vmatprep.subr.bf16.mxu0 0
        %2142 = vmatpush1.bf16.msra.mxu0 0
        %2143 = vmatprep.subr.bf16.mxu0 0
        %2144 = vmatpush1.bf16.msra.mxu0 0
        %2145 = vmatprep.subr.bf16.mxu0 0
        %2146 = vmatpush1.bf16.msra.mxu0 0
        %2147 = vmatprep.subr.bf16.mxu0 0
        %2148 = vmatpush1.bf16.msra.mxu0 0
        %2149 = vmatprep.mubr.bf16.mxu0 0
        %2150 = vmatmul.mubr.bf16.gmra.mrb[0].mxu0 %v2112
        %v2151 = vpop.f32.mrb[0].mxu0
        %v2152 = vadd.f32 0.0, %v2151
        %v2153 = vpop.f32.mrb[0].mxu0
        %v2154 = vadd.f32 0.0, %v2153
        %v2155 = vpop.f32.mrb[0].mxu0
        %v2156 = vadd.f32 0.0, %v2155
        %v2157 = vpop.f32.mrb[0].mxu0
        %v2158 = vadd.f32 0.0, %v2157
        %2159 = vmatprep.mubr.bf16.mxu0 0
        %2160 = vmatmul.mubr.bf16.gmra.mrb[0].mxu0 %v2115
        %v2161 = vpop.f32.mrb[0].mxu0
        %v2162 = vadd.f32 0.0, %v2161
        %v2163 = vpop.f32.mrb[0].mxu0
        %v2164 = vadd.f32 0.0, %v2163
        %v2165 = vpop.f32.mrb[0].mxu0
        %v2166 = vadd.f32 0.0, %v2165
        %v2167 = vpop.f32.mrb[0].mxu0
        %v2168 = vadd.f32 0.0, %v2167
        %2169 = vdwg.mxu0
        %v2174 = vunpack.c.l.b16 %v2070
        %v2175 = vunpack.c.l.b16 %v2071
        %v2176 = vunpack.c.l.b16 %v2072
        %v2177 = vunpack.c.l.b16 %v2073
        %v2178 = vpack.c.b16 %v2175, %v2174
        %v2179 = vpack.c.b16 %v2177, %v2176
        %v2181 = vsel %vm605, %v2178, 0
        %v2184 = vsel %vm605, %v2179, 0
        %2186 = vmatprep.subr.bf16.mxu0 %v2075
        %2187 = vmatpush1.bf16.msra.mxu0 %v2074
        %2188 = vmatprep.subr.bf16.mxu0 %v2077
        %2189 = vmatpush1.bf16.msra.mxu0 %v2076
        %2190 = vmatprep.subr.bf16.mxu0 0
        %2191 = vmatpush1.bf16.msra.mxu0 0
        %2192 = vmatprep.subr.bf16.mxu0 0
        %2193 = vmatpush1.bf16.msra.mxu0 0
        %2194 = vmatprep.subr.bf16.mxu0 0
        %2195 = vmatpush1.bf16.msra.mxu0 0
        %2196 = vmatprep.subr.bf16.mxu0 0
        %2197 = vmatpush1.bf16.msra.mxu0 0
        %2198 = vmatprep.subr.bf16.mxu0 0
        %2199 = vmatpush1.bf16.msra.mxu0 0
        %2200 = vmatprep.subr.bf16.mxu0 0
        %2201 = vmatpush1.bf16.msra.mxu0 0
        %2202 = vmatprep.subr.bf16.mxu0 0
        %2203 = vmatpush1.bf16.msra.mxu0 0
        %2204 = vmatprep.subr.bf16.mxu0 0
        %2205 = vmatpush1.bf16.msra.mxu0 0
        %2206 = vmatprep.subr.bf16.mxu0 0
        %2207 = vmatpush1.bf16.msra.mxu0 0
        %2208 = vmatprep.subr.bf16.mxu0 0
        %2209 = vmatpush1.bf16.msra.mxu0 0
        %2210 = vmatprep.subr.bf16.mxu0 0
        %2211 = vmatpush1.bf16.msra.mxu0 0
        %2212 = vmatprep.subr.bf16.mxu0 0
        %2213 = vmatpush1.bf16.msra.mxu0 0
        %2214 = vmatprep.subr.bf16.mxu0 0
        %2215 = vmatpush1.bf16.msra.mxu0 0
        %2216 = vmatprep.subr.bf16.mxu0 0
        %2217 = vmatpush1.bf16.msra.mxu0 0
        %2218 = vmatprep.mubr.bf16.mxu0 0
        %2219 = vmatmul.mubr.bf16.gmra.mrb[0].mxu0 %v2181
        %v2220 = vpop.f32.mrb[0].mxu0
        %v2221 = vadd.f32 %v2152, %v2220
        %v2222 = vpop.f32.mrb[0].mxu0
        %v2223 = vadd.f32 %v2154, %v2222
        %v2224 = vpop.f32.mrb[0].mxu0
        %v2225 = vadd.f32 %v2156, %v2224
        %v2226 = vpop.f32.mrb[0].mxu0
        %v2227 = vadd.f32 %v2158, %v2226
        %2228 = vmatprep.mubr.bf16.mxu0 0
        %2229 = vmatmul.mubr.bf16.gmra.mrb[0].mxu0 %v2184
        %v2230 = vpop.f32.mrb[0].mxu0
        %v2231 = vadd.f32 %v2162, %v2230
        %v2232 = vpop.f32.mrb[0].mxu0
        %v2233 = vadd.f32 %v2164, %v2232
        %v2234 = vpop.f32.mrb[0].mxu0
        %v2235 = vadd.f32 %v2166, %v2234
        %v2236 = vpop.f32.mrb[0].mxu0
        %v2237 = vadd.f32 %v2168, %v2236
        %2238 = vdwg.mxu0
        %s2239 = scalar_lea.vmem %s3, 128
        %v2240 = vld [vmem:[%s2239] sm:$0xf]
        %v2241 = vld [vmem:[%s2239 + $0x4] sm:$0xf]
        %v2242 = vld [vmem:[%s2239 + $0x8] sm:$0xf]
        %v2243 = vld [vmem:[%s2239 + $0xc] sm:$0xf]
        %v2248 = vunpack.c.l.b16 %v2240
        %v2249 = vunpack.c.l.b16 %v2241
        %v2250 = vunpack.c.l.b16 %v2242
        %v2251 = vunpack.c.l.b16 %v2243
        %v2252 = vpack.c.b16 %v2249, %v2248
        %v2253 = vpack.c.b16 %v2251, %v2250
        %2254 = vrot.lane.b32.xlu0 %v2074, 118
        %v2255 = vpop.permute.xlu0 %2254
        %2256 = vrot.lane.b32.xlu0 %v2075, 118
        %v2257 = vpop.permute.xlu0 %2256
        %2258 = vrot.lane.b32.xlu0 %v2076, 118
        %v2259 = vpop.permute.xlu0 %2258
        %2260 = vrot.lane.b32.xlu0 %v2077, 118
        %v2261 = vpop.permute.xlu0 %2260
        %vm2262 = vcmask 965632
        %v2263 = vsel %vm2262, %v2255, %v2257
        %v2264 = vsel %vm2262, %v2259, %v2261
        %v2270 = vsel %vm605, %v2252, 0
        %v2273 = vsel %vm605, %v2253, 0
        %2275 = vmatprep.subr.bf16.mxu0 %v2257
        %2276 = vmatpush1.bf16.msra.mxu0 %v2263
        %2277 = vmatprep.subr.bf16.mxu0 %v2261
        %2278 = vmatpush1.bf16.msra.mxu0 %v2264
        %2279 = vmatprep.subr.bf16.mxu0 0
        %2280 = vmatpush1.bf16.msra.mxu0 0
        %2281 = vmatprep.subr.bf16.mxu0 0
        %2282 = vmatpush1.bf16.msra.mxu0 0
        %2283 = vmatprep.subr.bf16.mxu0 0
        %2284 = vmatpush1.bf16.msra.mxu0 0
        %2285 = vmatprep.subr.bf16.mxu0 0
        %2286 = vmatpush1.bf16.msra.mxu0 0
        %2287 = vmatprep.subr.bf16.mxu0 0
        %2288 = vmatpush1.bf16.msra.mxu0 0
        %2289 = vmatprep.subr.bf16.mxu0 0
        %2290 = vmatpush1.bf16.msra.mxu0 0
        %2291 = vmatprep.subr.bf16.mxu0 0
        %2292 = vmatpush1.bf16.msra.mxu0 0
        %2293 = vmatprep.subr.bf16.mxu0 0
        %2294 = vmatpush1.bf16.msra.mxu0 0
        %2295 = vmatprep.subr.bf16.mxu0 0
        %2296 = vmatpush1.bf16.msra.mxu0 0
        %2297 = vmatprep.subr.bf16.mxu0 0
        %2298 = vmatpush1.bf16.msra.mxu0 0
        %2299 = vmatprep.subr.bf16.mxu0 0
        %2300 = vmatpush1.bf16.msra.mxu0 0
        %2301 = vmatprep.subr.bf16.mxu0 0
        %2302 = vmatpush1.bf16.msra.mxu0 0
        %2303 = vmatprep.subr.bf16.mxu0 0
        %2304 = vmatpush1.bf16.msra.mxu0 0
        %2305 = vmatprep.subr.bf16.mxu0 0
        %2306 = vmatpush1.bf16.msra.mxu0 0
        %2307 = vmatprep.mubr.bf16.mxu0 0
        %2308 = vmatmul.mubr.bf16.gmra.mrb[0].mxu0 %v2270
        %v2309 = vpop.f32.mrb[0].mxu0
        %v2310 = vadd.f32 0.0, %v2309
        %v2311 = vpop.f32.mrb[0].mxu0
        %v2312 = vadd.f32 0.0, %v2311
        %v2313 = vpop.f32.mrb[0].mxu0
        %v2314 = vadd.f32 0.0, %v2313
        %v2315 = vpop.f32.mrb[0].mxu0
        %v2316 = vadd.f32 0.0, %v2315
        %2317 = vmatprep.mubr.bf16.mxu0 0
        %2318 = vmatmul.mubr.bf16.gmra.mrb[0].mxu0 %v2273
        %v2319 = vpop.f32.mrb[0].mxu0
        %v2320 = vadd.f32 0.0, %v2319
        %v2321 = vpop.f32.mrb[0].mxu0
        %v2322 = vadd.f32 0.0, %v2321
        %v2323 = vpop.f32.mrb[0].mxu0
        %v2324 = vadd.f32 0.0, %v2323
        %v2325 = vpop.f32.mrb[0].mxu0
        %v2326 = vadd.f32 0.0, %v2325
        %2327 = vdwg.mxu0
        %v2328 = vadd.f32 %v2221, %v2310
        %v2329 = vadd.f32 %v2223, %v2312
        %v2330 = vadd.f32 %v2225, %v2314
        %v2331 = vadd.f32 %v2227, %v2316
        %v2332 = vadd.f32 %v2231, %v2320
        %v2333 = vadd.f32 %v2233, %v2322
        %v2334 = vadd.f32 %v2235, %v2324
        %v2335 = vadd.f32 %v2237, %v2326
        %s2336 = scalar_lea.vmem %s4, 64
        %v2337 = vld [vmem:[%s2336] sm:$0xff]
        %v2338 = vld [vmem:[%s2336 + $0x8] sm:$0xff]
        %v2339 = vld [vmem:[%s2336 + $0x10] sm:$0xff]
        %v2340 = vld [vmem:[%s2336 + $0x18] sm:$0xff]
        %2342 = vset.pattern.permute.xlu0 0
        %2343 = vperm.xlu0 %2342, %v2337
        %v2344 = vpop.permute.xlu0 %2343
        %2347 = vset.pattern.permute.xlu0 0
        %2348 = vperm.xlu0 %2347, %v2338
        %v2349 = vpop.permute.xlu0 %2348
        %2352 = vset.pattern.permute.xlu0 0
        %2353 = vperm.xlu0 %2352, %v2339
        %v2354 = vpop.permute.xlu0 %2353
        %2357 = vset.pattern.permute.xlu0 0
        %2358 = vperm.xlu0 %2357, %v2340
        %v2359 = vpop.permute.xlu0 %2358
        %v2361 = vadd.f32 %v2328, %v2344
        %v2362 = vadd.f32 %v2329, %v2344
        %v2363 = vadd.f32 %v2330, %v2349
        %v2364 = vadd.f32 %v2331, %v2349
        %v2365 = vadd.f32 %v2332, %v2354
        %v2366 = vadd.f32 %v2333, %v2354
        %v2367 = vadd.f32 %v2334, %v2359
        %v2368 = vadd.f32 %v2335, %v2359
        %vm2369 = vcmp.ge.f32.partialorder %v2361, 0.0
        %vm2370 = vcmp.ge.f32.partialorder %v2362, 0.0
        %vm2371 = vcmp.ge.f32.partialorder %v2363, 0.0
        %vm2372 = vcmp.ge.f32.partialorder %v2364, 0.0
        %vm2373 = vcmp.ge.f32.partialorder %v2365, 0.0
        %vm2374 = vcmp.ge.f32.partialorder %v2366, 0.0
        %vm2375 = vcmp.ge.f32.partialorder %v2367, 0.0
        %vm2376 = vcmp.ge.f32.partialorder %v2368, 0.0
        %v2377 = vmul.f32 %v2361, 0.1
        %v2378 = vmul.f32 %v2362, 0.1
        %v2379 = vmul.f32 %v2363, 0.1
        %v2380 = vmul.f32 %v2364, 0.1
        %v2381 = vmul.f32 %v2365, 0.1
        %v2382 = vmul.f32 %v2366, 0.1
        %v2383 = vmul.f32 %v2367, 0.1
        %v2384 = vmul.f32 %v2368, 0.1
        %v2385 = vsel %vm2369, %v2361, %v2377
        %v2386 = vsel %vm2370, %v2362, %v2378
        %v2387 = vsel %vm2371, %v2363, %v2379
        %v2388 = vsel %vm2372, %v2364, %v2380
        %v2389 = vsel %vm2373, %v2365, %v2381
        %v2390 = vsel %vm2374, %v2366, %v2382
        %v2391 = vsel %vm2375, %v2367, %v2383
        %v2392 = vsel %vm2376, %v2368, %v2384
        %v2393 = vsel %vm904, %v2385, 0.0
        %v2394 = vsel %vm905, %v2386, 0.0
        %v2395 = vsel %vm904, %v2387, 0.0
        %v2396 = vsel %vm905, %v2388, 0.0
        %v2397 = vsel %vm904, %v2389, 0.0
        %v2398 = vsel %vm905, %v2390, 0.0
        %v2399 = vsel %vm904, %v2391, 0.0
        %v2400 = vsel %vm905, %v2392, 0.0
        %v2401 = vpack.c.bf16 %v2395, %v2393
        %v2402 = vpack.c.bf16 %v2396, %v2394
        %v2403 = vpack.c.bf16 %v2399, %v2397
        %v2404 = vpack.c.bf16 %v2400, %v2398
        %2409 = vrot.lane.b32.xlu0 %v2401, 5
        %v2410 = vpop.permute.xlu0 %2409
        %2411 = vrot.lane.b32.xlu0 %v2402, 5
        %v2412 = vpop.permute.xlu0 %2411
        %2413 = vrot.lane.b32.xlu0 %v2403, 5
        %v2414 = vpop.permute.xlu0 %2413
        %2415 = vrot.lane.b32.xlu0 %v2404, 5
        %v2416 = vpop.permute.xlu0 %2415
        %v2417 = vsel %vm550, %v2410, %v2412
        %v2418 = vsel %vm550, %v2414, %v2416
        %2423 = vst.msk [vmem:[#allocation2] sm:$0xff] %vm557, %v2410
        %2424 = vst.msk [vmem:[#allocation2 + $0x8] sm:$0xff] %vm559, %v2417
        %2425 = vst.msk [vmem:[#allocation2 + $0x10] sm:$0xff] %vm557, %v2414
        %2426 = vst.msk [vmem:[#allocation2 + $0x18] sm:$0xff] %vm559, %v2418
        %s2427 = scalar_lea.vmem [#allocation9], 96
        %v2428 = vld [vmem:[%s2427] sm:$0xf]
        %v2429 = vld [vmem:[%s2427 + $0x4] sm:$0xf]
        %v2430 = vld [vmem:[%s2427 + $0x8] sm:$0xf]
        %v2431 = vld [vmem:[%s2427 + $0xc] sm:$0xf]
        %v2432 = vld [vmem:[#allocation2] sm:$0xff]
        %v2433 = vld [vmem:[#allocation2 + $0x8] sm:$0xff]
        %v2434 = vld [vmem:[#allocation2 + $0x10] sm:$0xff]
        %v2435 = vld [vmem:[#allocation2 + $0x18] sm:$0xff]
        %s2436 = scalar_lea.vmem [#allocation9], 112
        %v2437 = vld [vmem:[%s2436] sm:$0xf]
        %v2438 = vld [vmem:[%s2436 + $0x4] sm:$0xf]
        %v2439 = vld [vmem:[%s2436 + $0x8] sm:$0xf]
        %v2440 = vld [vmem:[%s2436 + $0xc] sm:$0xf]
        %v2445 = vunpack.c.l.b16 %v2437
        %v2446 = vunpack.c.l.b16 %v2438
        %v2447 = vunpack.c.l.b16 %v2439
        %v2448 = vunpack.c.l.b16 %v2440
        %v2449 = vpack.c.b16 %v2446, %v2445
        %v2450 = vpack.c.b16 %v2448, %v2447
        %2455 = vrot.lane.b32.xlu0 %v2432, 123
        %v2456 = vpop.permute.xlu0 %2455
        %2457 = vrot.lane.b32.xlu0 %v2433, 123
        %v2458 = vpop.permute.xlu0 %2457
        %2459 = vrot.lane.b32.xlu0 %v2434, 123
        %v2460 = vpop.permute.xlu0 %2459
        %2461 = vrot.lane.b32.xlu0 %v2435, 123
        %v2462 = vpop.permute.xlu0 %2461
        %v2463 = vsel %vm598, %v2456, %v2458
        %v2464 = vsel %vm598, %v2460, %v2462
        %v2470 = vsel %vm605, %v2449, 0
        %v2473 = vsel %vm605, %v2450, 0
        %2475 = vmatprep.subr.bf16.mxu0 %v2458
        %2476 = vmatpush1.bf16.msra.mxu0 %v2463
        %2477 = vmatprep.subr.bf16.mxu0 %v2462
        %2478 = vmatpush1.bf16.msra.mxu0 %v2464
        %2479 = vmatprep.subr.bf16.mxu0 0
        %2480 = vmatpush1.bf16.msra.mxu0 0
        %2481 = vmatprep.subr.bf16.mxu0 0
        %2482 = vmatpush1.bf16.msra.mxu0 0
        %2483 = vmatprep.subr.bf16.mxu0 0
        %2484 = vmatpush1.bf16.msra.mxu0 0
        %2485 = vmatprep.subr.bf16.mxu0 0
        %2486 = vmatpush1.bf16.msra.mxu0 0
        %2487 = vmatprep.subr.bf16.mxu0 0
        %2488 = vmatpush1.bf16.msra.mxu0 0
        %2489 = vmatprep.subr.bf16.mxu0 0
        %2490 = vmatpush1.bf16.msra.mxu0 0
        %2491 = vmatprep.subr.bf16.mxu0 0
        %2492 = vmatpush1.bf16.msra.mxu0 0
        %2493 = vmatprep.subr.bf16.mxu0 0
        %2494 = vmatpush1.bf16.msra.mxu0 0
        %2495 = vmatprep.subr.bf16.mxu0 0
        %2496 = vmatpush1.bf16.msra.mxu0 0
        %2497 = vmatprep.subr.bf16.mxu0 0
        %2498 = vmatpush1.bf16.msra.mxu0 0
        %2499 = vmatprep.subr.bf16.mxu0 0
        %2500 = vmatpush1.bf16.msra.mxu0 0
        %2501 = vmatprep.subr.bf16.mxu0 0
        %2502 = vmatpush1.bf16.msra.mxu0 0
        %2503 = vmatprep.subr.bf16.mxu0 0
        %2504 = vmatpush1.bf16.msra.mxu0 0
        %2505 = vmatprep.subr.bf16.mxu0 0
        %2506 = vmatpush1.bf16.msra.mxu0 0
        %2507 = vmatprep.mubr.bf16.mxu0 0
        %2508 = vmatmul.mubr.bf16.gmra.mrb[0].mxu0 %v2470
        %v2509 = vpop.f32.mrb[0].mxu0
        %v2510 = vadd.f32 0.0, %v2509
        %v2511 = vpop.f32.mrb[0].mxu0
        %v2512 = vadd.f32 0.0, %v2511
        %v2513 = vpop.f32.mrb[0].mxu0
        %v2514 = vadd.f32 0.0, %v2513
        %v2515 = vpop.f32.mrb[0].mxu0
        %v2516 = vadd.f32 0.0, %v2515
        %2517 = vmatprep.mubr.bf16.mxu0 0
        %2518 = vmatmul.mubr.bf16.gmra.mrb[0].mxu0 %v2473
        %v2519 = vpop.f32.mrb[0].mxu0
        %v2520 = vadd.f32 0.0, %v2519
        %v2521 = vpop.f32.mrb[0].mxu0
        %v2522 = vadd.f32 0.0, %v2521
        %v2523 = vpop.f32.mrb[0].mxu0
        %v2524 = vadd.f32 0.0, %v2523
        %v2525 = vpop.f32.mrb[0].mxu0
        %v2526 = vadd.f32 0.0, %v2525
        %2527 = vdwg.mxu0
        %v2532 = vunpack.c.l.b16 %v2428
        %v2533 = vunpack.c.l.b16 %v2429
        %v2534 = vunpack.c.l.b16 %v2430
        %v2535 = vunpack.c.l.b16 %v2431
        %v2536 = vpack.c.b16 %v2533, %v2532
        %v2537 = vpack.c.b16 %v2535, %v2534
        %2538 = vrot.lane.b32.xlu0 %v2432, 124
        %v2539 = vpop.permute.xlu0 %2538
        %2540 = vrot.lane.b32.xlu0 %v2433, 124
        %v2541 = vpop.permute.xlu0 %2540
        %2542 = vrot.lane.b32.xlu0 %v2434, 124
        %v2543 = vpop.permute.xlu0 %2542
        %2544 = vrot.lane.b32.xlu0 %v2435, 124
        %v2545 = vpop.permute.xlu0 %2544
        %v2546 = vsel %vm683, %v2539, %v2541
        %v2547 = vsel %vm683, %v2543, %v2545
        %v2553 = vsel %vm605, %v2536, 0
        %v2556 = vsel %vm605, %v2537, 0
        %2558 = vmatprep.subr.bf16.mxu0 %v2541
        %2559 = vmatpush1.bf16.msra.mxu0 %v2546
        %2560 = vmatprep.subr.bf16.mxu0 %v2545
        %2561 = vmatpush1.bf16.msra.mxu0 %v2547
        %2562 = vmatprep.subr.bf16.mxu0 0
        %2563 = vmatpush1.bf16.msra.mxu0 0
        %2564 = vmatprep.subr.bf16.mxu0 0
        %2565 = vmatpush1.bf16.msra.mxu0 0
        %2566 = vmatprep.subr.bf16.mxu0 0
        %2567 = vmatpush1.bf16.msra.mxu0 0
        %2568 = vmatprep.subr.bf16.mxu0 0
        %2569 = vmatpush1.bf16.msra.mxu0 0
        %2570 = vmatprep.subr.bf16.mxu0 0
        %2571 = vmatpush1.bf16.msra.mxu0 0
        %2572 = vmatprep.subr.bf16.mxu0 0
        %2573 = vmatpush1.bf16.msra.mxu0 0
        %2574 = vmatprep.subr.bf16.mxu0 0
        %2575 = vmatpush1.bf16.msra.mxu0 0
        %2576 = vmatprep.subr.bf16.mxu0 0
        %2577 = vmatpush1.bf16.msra.mxu0 0
        %2578 = vmatprep.subr.bf16.mxu0 0
        %2579 = vmatpush1.bf16.msra.mxu0 0
        %2580 = vmatprep.subr.bf16.mxu0 0
        %2581 = vmatpush1.bf16.msra.mxu0 0
        %2582 = vmatprep.subr.bf16.mxu0 0
        %2583 = vmatpush1.bf16.msra.mxu0 0
        %2584 = vmatprep.subr.bf16.mxu0 0
        %2585 = vmatpush1.bf16.msra.mxu0 0
        %2586 = vmatprep.subr.bf16.mxu0 0
        %2587 = vmatpush1.bf16.msra.mxu0 0
        %2588 = vmatprep.subr.bf16.mxu0 0
        %2589 = vmatpush1.bf16.msra.mxu0 0
        %2590 = vmatprep.mubr.bf16.mxu0 0
        %2591 = vmatmul.mubr.bf16.gmra.mrb[0].mxu0 %v2553
        %v2592 = vpop.f32.mrb[0].mxu0
        %v2593 = vadd.f32 %v2510, %v2592
        %v2594 = vpop.f32.mrb[0].mxu0
        %v2595 = vadd.f32 %v2512, %v2594
        %v2596 = vpop.f32.mrb[0].mxu0
        %v2597 = vadd.f32 %v2514, %v2596
        %v2598 = vpop.f32.mrb[0].mxu0
        %v2599 = vadd.f32 %v2516, %v2598
        %2600 = vmatprep.mubr.bf16.mxu0 0
        %2601 = vmatmul.mubr.bf16.gmra.mrb[0].mxu0 %v2556
        %v2602 = vpop.f32.mrb[0].mxu0
        %v2603 = vadd.f32 %v2520, %v2602
        %v2604 = vpop.f32.mrb[0].mxu0
        %v2605 = vadd.f32 %v2522, %v2604
        %v2606 = vpop.f32.mrb[0].mxu0
        %v2607 = vadd.f32 %v2524, %v2606
        %v2608 = vpop.f32.mrb[0].mxu0
        %v2609 = vadd.f32 %v2526, %v2608
        %2610 = vdwg.mxu0
        %s2611 = scalar_lea.vmem [#allocation9], 128
        %v2612 = vld [vmem:[%s2611] sm:$0xf]
        %v2613 = vld [vmem:[%s2611 + $0x4] sm:$0xf]
        %v2614 = vld [vmem:[%s2611 + $0x8] sm:$0xf]
        %v2615 = vld [vmem:[%s2611 + $0xc] sm:$0xf]
        %v2620 = vunpack.c.l.b16 %v2612
        %v2621 = vunpack.c.l.b16 %v2613
        %v2622 = vunpack.c.l.b16 %v2614
        %v2623 = vunpack.c.l.b16 %v2615
        %v2624 = vpack.c.b16 %v2621, %v2620
        %v2625 = vpack.c.b16 %v2623, %v2622
        %2626 = vrot.lane.b32.xlu0 %v2432, 122
        %v2627 = vpop.permute.xlu0 %2626
        %2628 = vrot.lane.b32.xlu0 %v2433, 122
        %v2629 = vpop.permute.xlu0 %2628
        %2630 = vrot.lane.b32.xlu0 %v2434, 122
        %v2631 = vpop.permute.xlu0 %2630
        %2632 = vrot.lane.b32.xlu0 %v2435, 122
        %v2633 = vpop.permute.xlu0 %2632
        %v2634 = vsel %vm772, %v2627, %v2629
        %v2635 = vsel %vm772, %v2631, %v2633
        %v2641 = vsel %vm605, %v2624, 0
        %v2644 = vsel %vm605, %v2625, 0
        %2646 = vmatprep.subr.bf16.mxu0 %v2629
        %2647 = vmatpush1.bf16.msra.mxu0 %v2634
        %2648 = vmatprep.subr.bf16.mxu0 %v2633
        %2649 = vmatpush1.bf16.msra.mxu0 %v2635
        %2650 = vmatprep.subr.bf16.mxu0 0
        %2651 = vmatpush1.bf16.msra.mxu0 0
        %2652 = vmatprep.subr.bf16.mxu0 0
        %2653 = vmatpush1.bf16.msra.mxu0 0
        %2654 = vmatprep.subr.bf16.mxu0 0
        %2655 = vmatpush1.bf16.msra.mxu0 0
        %2656 = vmatprep.subr.bf16.mxu0 0
        %2657 = vmatpush1.bf16.msra.mxu0 0
        %2658 = vmatprep.subr.bf16.mxu0 0
        %2659 = vmatpush1.bf16.msra.mxu0 0
        %2660 = vmatprep.subr.bf16.mxu0 0
        %2661 = vmatpush1.bf16.msra.mxu0 0
        %2662 = vmatprep.subr.bf16.mxu0 0
        %2663 = vmatpush1.bf16.msra.mxu0 0
        %2664 = vmatprep.subr.bf16.mxu0 0
        %2665 = vmatpush1.bf16.msra.mxu0 0
        %2666 = vmatprep.subr.bf16.mxu0 0
        %2667 = vmatpush1.bf16.msra.mxu0 0
        %2668 = vmatprep.subr.bf16.mxu0 0
        %2669 = vmatpush1.bf16.msra.mxu0 0
        %2670 = vmatprep.subr.bf16.mxu0 0
        %2671 = vmatpush1.bf16.msra.mxu0 0
        %2672 = vmatprep.subr.bf16.mxu0 0
        %2673 = vmatpush1.bf16.msra.mxu0 0
        %2674 = vmatprep.subr.bf16.mxu0 0
        %2675 = vmatpush1.bf16.msra.mxu0 0
        %2676 = vmatprep.subr.bf16.mxu0 0
        %2677 = vmatpush1.bf16.msra.mxu0 0
        %2678 = vmatprep.mubr.bf16.mxu0 0
        %2679 = vmatmul.mubr.bf16.gmra.mrb[0].mxu0 %v2641
        %v2680 = vpop.f32.mrb[0].mxu0
        %v2681 = vadd.f32 0.0, %v2680
        %v2682 = vpop.f32.mrb[0].mxu0
        %v2683 = vadd.f32 0.0, %v2682
        %v2684 = vpop.f32.mrb[0].mxu0
        %v2685 = vadd.f32 0.0, %v2684
        %v2686 = vpop.f32.mrb[0].mxu0
        %v2687 = vadd.f32 0.0, %v2686
        %2688 = vmatprep.mubr.bf16.mxu0 0
        %2689 = vmatmul.mubr.bf16.gmra.mrb[0].mxu0 %v2644
        %v2690 = vpop.f32.mrb[0].mxu0
        %v2691 = vadd.f32 0.0, %v2690
        %v2692 = vpop.f32.mrb[0].mxu0
        %v2693 = vadd.f32 0.0, %v2692
        %v2694 = vpop.f32.mrb[0].mxu0
        %v2695 = vadd.f32 0.0, %v2694
        %v2696 = vpop.f32.mrb[0].mxu0
        %v2697 = vadd.f32 0.0, %v2696
        %2698 = vdwg.mxu0
        %v2699 = vadd.f32 %v2593, %v2681
        %v2700 = vadd.f32 %v2595, %v2683
        %v2701 = vadd.f32 %v2597, %v2685
        %v2702 = vadd.f32 %v2599, %v2687
        %v2703 = vadd.f32 %v2603, %v2691
        %v2704 = vadd.f32 %v2605, %v2693
        %v2705 = vadd.f32 %v2607, %v2695
        %v2706 = vadd.f32 %v2609, %v2697
        %s2707 = scalar_lea.vmem %s6, 64
        %v2708 = vld [vmem:[%s2707] sm:$0xff]
        %v2709 = vld [vmem:[%s2707 + $0x8] sm:$0xff]
        %v2710 = vld [vmem:[%s2707 + $0x10] sm:$0xff]
        %v2711 = vld [vmem:[%s2707 + $0x18] sm:$0xff]
        %2713 = vset.pattern.permute.xlu0 0
        %2714 = vperm.xlu0 %2713, %v2708
        %v2715 = vpop.permute.xlu0 %2714
        %2718 = vset.pattern.permute.xlu0 0
        %2719 = vperm.xlu0 %2718, %v2709
        %v2720 = vpop.permute.xlu0 %2719
        %2723 = vset.pattern.permute.xlu0 0
        %2724 = vperm.xlu0 %2723, %v2710
        %v2725 = vpop.permute.xlu0 %2724
        %2728 = vset.pattern.permute.xlu0 0
        %2729 = vperm.xlu0 %2728, %v2711
        %v2730 = vpop.permute.xlu0 %2729
        %v2732 = vadd.f32 %v2699, %v2715
        %v2733 = vadd.f32 %v2700, %v2715
        %v2734 = vadd.f32 %v2701, %v2720
        %v2735 = vadd.f32 %v2702, %v2720
        %v2736 = vadd.f32 %v2703, %v2725
        %v2737 = vadd.f32 %v2704, %v2725
        %v2738 = vadd.f32 %v2705, %v2730
        %v2739 = vadd.f32 %v2706, %v2730
        %v2740 = vadd.f32 %v2732, %v2003
        %v2741 = vadd.f32 %v2733, %v2004
        %v2742 = vadd.f32 %v2734, %v2005
        %v2743 = vadd.f32 %v2735, %v2006
        %v2744 = vadd.f32 %v2736, %v2007
        %v2745 = vadd.f32 %v2737, %v2008
        %v2746 = vadd.f32 %v2738, %v2009
        %v2747 = vadd.f32 %v2739, %v2010
        %2756 = vrot.lane.b32.xlu0 %v2740, 116
        %v2757 = vpop.permute.xlu0 %2756
        %2758 = vrot.lane.b32.xlu0 %v2741, 116
        %v2759 = vpop.permute.xlu0 %2758
        %2760 = vrot.lane.b32.xlu0 %v2742, 116
        %v2761 = vpop.permute.xlu0 %2760
        %2762 = vrot.lane.b32.xlu0 %v2743, 116
        %v2763 = vpop.permute.xlu0 %2762
        %2764 = vrot.lane.b32.xlu0 %v2744, 116
        %v2765 = vpop.permute.xlu0 %2764
        %2766 = vrot.lane.b32.xlu0 %v2745, 116
        %v2767 = vpop.permute.xlu0 %2766
        %2768 = vrot.lane.b32.xlu0 %v2746, 116
        %v2769 = vpop.permute.xlu0 %2768
        %2770 = vrot.lane.b32.xlu0 %v2747, 116
        %v2771 = vpop.permute.xlu0 %2770
        %vm2772 = vcmask 949248
        %v2773 = vsel %vm2772, %v2757, %v2759
        %v2774 = vsel %vm2772, %v2761, %v2763
        %v2775 = vsel %vm2772, %v2765, %v2767
        %v2776 = vsel %vm2772, %v2769, %v2771
        %2781 = vst [vmem:[%s417] sm:$0xff] %v2773
        %2782 = vst [vmem:[%s417 + $0x8] sm:$0xff] %v2774
        %2783 = vst [vmem:[%s417 + $0x10] sm:$0xff] %v2775
        %2784 = vst [vmem:[%s417 + $0x18] sm:$0xff] %v2776
        %s2785 = sand.u32 %s222, 1
        %s2786 = scalar_lea.sflag [#allocation5], %s2785
        %s2787 = sand.u32 %s222, 1
        %s2788 = smul.addr %s2787, 32
        %s2789 = scalar_lea.vmem [#allocation11], %s2788
        // Predicated region
        $region65: #{tpu_custom_call.1} parent=47 // pred_check
          %p2790 = pneg %p232
        $region66: #{tpu_custom_call.1} parent=47 // pred_check_branch
          %2792 = sbr.rel (%p2790) target = $region68
        $region67: #{tpu_custom_call.1} parent=47 // pred_region
          %s2794 = ssub.s32 512, 512
          %2795 = vsyncadd %s2786, %s2794
          %s2796 = smul.addr %s32, 8
          %s2797 = sadd.s32 %s33, %s2796
          %s2798 = smul.addr %s2797, 128
          %s2799 = scalar_lea.hbm %s7, %s2798
          %s2800 = sshll.u32 %s2789, 4
          %s2801 = int_to_ptr.vmem [resolvable:$true] %s2800
          %2806 = dma.vmem_to_hbm [thread:$0]  %s2801, 512, %s2799, %s2786, 128, 256, 8
        $region68: #{tpu_custom_call.1} parent=47 // pred_fallthru
          _
      $region48: #{tpu_custom_call.1} parent=5 // pred_fallthru
        _
      %p2807 = scmp.le.s32.totalorder 2, %s23
      // Predicated region
      $region69: #{tpu_custom_call.1} parent=5 // pred_check
        %p2808 = pneg %p2807
      $region70: #{tpu_custom_call.1} parent=5 // pred_check_branch
        %2810 = sbr.rel (%p2808) target = $region72
      $region71: #{tpu_custom_call.1} parent=5 // pred_region
        %s2811 = ssub.s32 %s23, 2
        // Predicated region
        $region73: #{tpu_custom_call.1} parent=71 // pred_check
          %p2812 = pneg %p238
        $region74: #{tpu_custom_call.1} parent=71 // pred_check_branch
          %2814 = sbr.rel (%p2812) target = $region76
        $region75: #{tpu_custom_call.1} parent=71 // pred_region
          %s2815 = sand.u32 %s223, 1
          %s2816 = scalar_lea.sflag [#allocation5], %s2815
          %s2817 = sand.u32 %s223, 1
          %s2818 = smul.addr %s2817, 32
          %s2819 = scalar_lea.vmem [#allocation11], %s2818
          %2820 = dma.done %s2816, 512
        $region76: #{tpu_custom_call.1} parent=71 // pred_fallthru
          _
      $region72: #{tpu_custom_call.1} parent=5 // pred_fallthru
        _
    $region6: #{tpu_custom_call.1} parent=1 // loop_footer
      %s27 = sadd.s32 1, %s23
    $region7: #{tpu_custom_call.1} parent=1 // loop_footer_branch
      %22 = sbr.rel target = $region3
    $region8: #{tpu_custom_call.1} parent=1 // loop_exit
      _
    %2821 = vsyncpa [#allocation4], 1
    %s2822 = scalar_lea.sflag [#allocation4], 1
    %2823 = vsyncpa %s2822, 1
    %2824 = vsyncpa [#allocation7], 1
    %s2825 = scalar_lea.sflag [#allocation7], 1
    %2826 = vsyncpa %s2825, 1
    %2827 = vsyncpa [#allocation10], 1
    %2828 = vsyncpa [#allocation5], 1
    %s2829 = scalar_lea.sflag [#allocation5], 1
    %2830 = vsyncpa %s2829, 1

</llo_original>
